<compile_context>
chip_gen: v5e
topology: v5e:2x2
jax: 0.10.0
libtpu: 0.0.40
codegen_flags: <defaults>
</compile_context>

<pallas_src>
import jax
import jax.numpy as jnp
from jax.experimental import pallas as pl
from jax.experimental.pallas import tpu as pltpu

# ---- Model hyper-parameters (match the PyTorch module's __init__ defaults) ----
D = 40            # input_size (d_model), must be divisible by num_heads
H = 5             # num_heads (default)
DH = D // H       # per-head dim
DFF = 2048        # nn.TransformerEncoderLayer default dim_feedforward
NUM_LAYERS = 3    # default num_layers
NUM_CLASSES = 10
LN_EPS = 1e-5

N_PER_LAYER = 16                              # restructured weight arrays per encoder layer
N_WEIGHTS = N_PER_LAYER * NUM_LAYERS + 4      # + decoder (wd_mean, wd_max, wd_min, bd)


def _layer_norm(x, w, b):
    mu = jnp.mean(x, axis=-1, keepdims=True)
    var = jnp.mean((x - mu) ** 2, axis=-1, keepdims=True)
    return (x - mu) * jax.lax.rsqrt(var + LN_EPS) * w + b


def fused_transformer_kernel(x_ref, *rest):
    """All encoder layers + mean/max/min pooling + decoder for one batch block.

    x_ref: (TB, S, D)  ->  out_ref: (TB, 1, NUM_CLASSES).
    Activations stay in VMEM/vregs for the whole forward; weights are pre-split /
    pre-transposed host-side so every matmul is lane-aligned (no lane-offset slicing
    or concatenation inside the kernel).
    """
    w = rest[:N_WEIGHTS]
    out_ref = rest[N_WEIGHTS]

    TB, S, _ = x_ref.shape
    h2 = x_ref[...].reshape(TB * S, D)        # (TB*S, D): shared rows for all projections

    wi = 0
    for _layer in range(NUM_LAYERS):
        (wqh_ref, bqh_ref, wkh_ref, bkh_ref, wvh_ref, bvh_ref,
         woh_ref, bo_ref, w1_ref, b1_ref, w2_ref, b2_ref,
         ln1w_ref, ln1b_ref, ln2w_ref, ln2b_ref) = w[wi:wi + N_PER_LAYER]
        wi += N_PER_LAYER

        # ---- multi-head self-attention (per-head weights, out-proj folded per head) ----
        attn_b = [jnp.zeros((S, D), jnp.float32) for _ in range(TB)]
        for h in range(H):
            q2 = jnp.dot(h2, wqh_ref[h], preferred_element_type=jnp.float32) + bqh_ref[h]
            k2 = jnp.dot(h2, wkh_ref[h], preferred_element_type=jnp.float32) + bkh_ref[h]
            v2 = jnp.dot(h2, wvh_ref[h], preferred_element_type=jnp.float32) + bvh_ref[h]
            q3 = q2.reshape(TB, S, DH)
            k3 = k2.reshape(TB, S, DH)
            v3 = v2.reshape(TB, S, DH)
            wo_h = woh_ref[h]                                          # (DH, D)
            for b in range(TB):
                scores = jax.lax.dot_general(q3[b], k3[b], (((1,), (1,)), ((), ())),
                                             preferred_element_type=jnp.float32)  # (S, S)
                scores = scores - jnp.max(scores, axis=-1, keepdims=True)
                p = jnp.exp(scores)
                p = p * pl.reciprocal(jnp.sum(p, axis=-1, keepdims=True), approx=True)
                o_h = jnp.dot(p, v3[b], preferred_element_type=jnp.float32)        # (S, DH)
                attn_b[b] = attn_b[b] + jnp.dot(o_h, wo_h,
                                                preferred_element_type=jnp.float32)
        attn2 = attn_b[0] if TB == 1 else jnp.concatenate(attn_b, axis=0)
        attn2 = attn2 + bo_ref[...]                                    # (TB*S, D)

        # ---- residual + LayerNorm1 (dropout = identity at eval) ----
        y2 = _layer_norm(h2 + attn2, ln1w_ref[...], ln1b_ref[...])

        # ---- feed-forward (ReLU), weights pre-transposed to (K, N) ----
        ff = jnp.dot(y2, w1_ref[...], preferred_element_type=jnp.float32) + b1_ref[...]
        ff = jnp.maximum(ff, 0.0)
        ff2 = jnp.dot(ff, w2_ref[...], preferred_element_type=jnp.float32) + b2_ref[...]

        # ---- residual + LayerNorm2 ----
        h2 = _layer_norm(y2 + ff2, ln2w_ref[...], ln2b_ref[...])

    # ---- mean/max/min pooling over sequence + decoder (split weights, no lane concat) ----
    wdm_ref, wdx_ref, wdn_ref, bd_ref = w[wi:wi + 4]
    x3 = h2.reshape(TB, S, D)
    m = jnp.mean(x3, axis=1)
    mx = jnp.max(x3, axis=1)
    mn = jnp.min(x3, axis=1)
    logits = (jnp.dot(m, wdm_ref[...], preferred_element_type=jnp.float32)
              + jnp.dot(mx, wdx_ref[...], preferred_element_type=jnp.float32)
              + jnp.dot(mn, wdn_ref[...], preferred_element_type=jnp.float32)
              + bd_ref[...])
    out_ref[...] = logits.reshape(TB, 1, NUM_CLASSES)


def _pick_tb(batch):
    """Largest batch block (<=8) dividing B while keeping >=2 grid steps (v7x megacore)."""
    if batch <= 1:
        return 1
    tb = 1
    for cand in range(1, batch // 2 + 1):
        if cand <= 8 and batch % cand == 0:
            tb = cand
    return tb


def prepare_weights(params):
    """Host-side restructuring: split/transpose PyTorch-layout weights into lane-aligned
    (K, N) operands (per-head Q/K/V/out-proj, transposed FFN weights, split decoder)."""
    scale = 1.0 / (DH ** 0.5)
    flat = []
    for p in params["layers"]:
        wqkv = p["wqkv"]                     # (3D, D)
        bqkv = p["bqkv"][0]                  # (3D,)
        wq, wk, wv = wqkv[0:D], wqkv[D:2 * D], wqkv[2 * D:3 * D]
        bq, bk, bv = bqkv[0:D], bqkv[D:2 * D], bqkv[2 * D:3 * D]
        # per-head (K=D, N=DH); fold the 1/sqrt(DH) query scale into Wq and bq
        wqh = (wq * scale).reshape(H, DH, D).transpose(0, 2, 1)
        wkh = wk.reshape(H, DH, D).transpose(0, 2, 1)
        wvh = wv.reshape(H, DH, D).transpose(0, 2, 1)
        bqh = (bq * scale).reshape(H, 1, DH)
        bkh = bk.reshape(H, 1, DH)
        bvh = bv.reshape(H, 1, DH)
        woh = p["wo"].T.reshape(H, DH, D)    # per-head slices of the out-projection
        flat += [wqh, bqh, wkh, bkh, wvh, bvh, woh, p["bo"],
                 p["w1"].T, p["b1"], p["w2"].T, p["b2"],
                 p["ln1_w"], p["ln1_b"], p["ln2_w"], p["ln2_b"]]
    wdt = params["wd"].T                     # (3D, C)
    flat += [wdt[0:D], wdt[D:2 * D], wdt[2 * D:3 * D], params["bd"]]
    return [jnp.asarray(a, jnp.float32) for a in flat]


@jax.jit
def transformer_classifier_forward(sentences, X_lens, flat_weights):
    # X_lens is accepted (as in the PyTorch forward signature) but unused there as well.
    del X_lens
    B, S, _ = sentences.shape
    TB = _pick_tb(B)
    grid = (B // TB,)

    in_specs = [pl.BlockSpec((TB, S, D), lambda b: (b, 0, 0))]
    for wgt in flat_weights:
        nd = wgt.ndim
        in_specs.append(pl.BlockSpec(wgt.shape, lambda b, _nd=nd: (0,) * _nd))

    out = pl.pallas_call(
        fused_transformer_kernel,
        out_shape=jax.ShapeDtypeStruct((B, 1, NUM_CLASSES), jnp.float32),
        grid=grid,
        in_specs=in_specs,
        out_specs=pl.BlockSpec((TB, 1, NUM_CLASSES), lambda b: (b, 0, 0)),
        compiler_params=pltpu.CompilerParams(
            dimension_semantics=("parallel",),
            vmem_limit_bytes=32 * 1024 * 1024),
    )(sentences, *flat_weights)
    return out.reshape(B, NUM_CLASSES)


# ---------------- Parameter init (deterministic, PyTorch-like shapes) ----------------
def init_params(key):
    layers = []
    for _ in range(NUM_LAYERS):
        ks = jax.random.split(key, 7)
        key = ks[0]
        layers.append(dict(
            wqkv=jax.random.uniform(ks[1], (3 * D, D), jnp.float32, -0.1, 0.1),
            bqkv=jnp.zeros((1, 3 * D), jnp.float32),
            wo=jax.random.uniform(ks[2], (D, D), jnp.float32, -0.1, 0.1),
            bo=jnp.zeros((1, D), jnp.float32),
            w1=jax.random.uniform(ks[3], (DFF, D), jnp.float32, -0.05, 0.05),
            b1=jnp.zeros((1, DFF), jnp.float32),
            w2=jax.random.uniform(ks[4], (D, DFF), jnp.float32, -0.05, 0.05),
            b2=jnp.zeros((1, D), jnp.float32),
            ln1_w=jnp.ones((1, D), jnp.float32),
            ln1_b=jnp.zeros((1, D), jnp.float32),
            ln2_w=jnp.ones((1, D), jnp.float32),
            ln2_b=jnp.zeros((1, D), jnp.float32),
        ))
    kd, key = jax.random.split(key)
    # self.decoder: init_weights() -> weight ~ U(-0.1, 0.1), bias = 0
    wd = jax.random.uniform(kd, (NUM_CLASSES, 3 * D), jnp.float32, -0.1, 0.1)
    bd = jnp.zeros((1, NUM_CLASSES), jnp.float32)
    return dict(layers=layers, wd=wd, bd=bd)


# ---------------- Pure-JAX reference (for correctness check) ----------------
def reference_forward(x, params):
    def ln(v, w, b):
        mu = jnp.mean(v, axis=-1, keepdims=True)
        var = jnp.mean((v - mu) ** 2, axis=-1, keepdims=True)
        return (v - mu) / jnp.sqrt(var + LN_EPS) * w[0] + b[0]

    out = x
    for p in params["layers"]:
        qkv = jnp.einsum("bsd,ed->bse", out, p["wqkv"]) + p["bqkv"][0]
        q, k, v = qkv[..., :D], qkv[..., D:2 * D], qkv[..., 2 * D:]
        B, S, _ = out.shape
        qh = q.reshape(B, S, H, DH).transpose(0, 2, 1, 3) / jnp.sqrt(jnp.float32(DH))
        kh = k.reshape(B, S, H, DH).transpose(0, 2, 1, 3)
        vh = v.reshape(B, S, H, DH).transpose(0, 2, 1, 3)
        s = jnp.einsum("bhqd,bhkd->bhqk", qh, kh)
        pnorm = jax.nn.softmax(s, axis=-1)
        a = jnp.einsum("bhqk,bhkd->bhqd", pnorm, vh).transpose(0, 2, 1, 3).reshape(B, S, D)
        a = jnp.einsum("bsd,ed->bse", a, p["wo"]) + p["bo"][0]
        y = ln(out + a, p["ln1_w"], p["ln1_b"])
        ff = jnp.maximum(jnp.einsum("bsd,fd->bsf", y, p["w1"]) + p["b1"][0], 0.0)
        ff = jnp.einsum("bsf,df->bsd", ff, p["w2"]) + p["b2"][0]
        out = ln(y + ff, p["ln2_w"], p["ln2_b"])
    pooled = jnp.concatenate([out.mean(1), out.max(1), out.min(1)], axis=-1)
    return jnp.einsum("bk,ck->bc", pooled, params["wd"]) + params["bd"][0]


if __name__ == "__main__":
    B, S = 2, 8
    key = jax.random.PRNGKey(0)
    kx, kp = jax.random.split(key)
    sentences = jax.random.normal(kx, (B, S, D), jnp.float32)
    X_lens = jnp.full((B,), S, jnp.int32)   # unused by forward, as in the PyTorch module
    params = init_params(kp)
    flat_w = prepare_weights(params)        # host-side weight restructuring, done once

    logits = transformer_classifier_forward(sentences, X_lens, flat_w)
    logits = jax.block_until_ready(logits)

    ref = reference_forward(sentences, params)
    assert logits.shape == (B, NUM_CLASSES)
    assert jnp.allclose(logits, ref, atol=3e-3, rtol=3e-3), (logits, ref)

    print("KERNEL_OK")
</pallas_src>

<mosaic_0001>
module attributes {stable_mosaic.version = 11 : i64} {
  func.func @fused_transformer_kernel(%arg0: i32, %arg1: memref<1x8x40xf32, #tpu.memory_space<vmem>>, %arg2: memref<5x40x8xf32, #tpu.memory_space<vmem>>, %arg3: memref<5x1x8xf32, #tpu.memory_space<vmem>>, %arg4: memref<5x40x8xf32, #tpu.memory_space<vmem>>, %arg5: memref<5x1x8xf32, #tpu.memory_space<vmem>>, %arg6: memref<5x40x8xf32, #tpu.memory_space<vmem>>, %arg7: memref<5x1x8xf32, #tpu.memory_space<vmem>>, %arg8: memref<5x8x40xf32, #tpu.memory_space<vmem>>, %arg9: memref<1x40xf32, #tpu.memory_space<vmem>>, %arg10: memref<40x2048xf32, #tpu.memory_space<vmem>>, %arg11: memref<1x2048xf32, #tpu.memory_space<vmem>>, %arg12: memref<2048x40xf32, #tpu.memory_space<vmem>>, %arg13: memref<1x40xf32, #tpu.memory_space<vmem>>, %arg14: memref<1x40xf32, #tpu.memory_space<vmem>>, %arg15: memref<1x40xf32, #tpu.memory_space<vmem>>, %arg16: memref<1x40xf32, #tpu.memory_space<vmem>>, %arg17: memref<1x40xf32, #tpu.memory_space<vmem>>, %arg18: memref<5x40x8xf32, #tpu.memory_space<vmem>>, %arg19: memref<5x1x8xf32, #tpu.memory_space<vmem>>, %arg20: memref<5x40x8xf32, #tpu.memory_space<vmem>>, %arg21: memref<5x1x8xf32, #tpu.memory_space<vmem>>, %arg22: memref<5x40x8xf32, #tpu.memory_space<vmem>>, %arg23: memref<5x1x8xf32, #tpu.memory_space<vmem>>, %arg24: memref<5x8x40xf32, #tpu.memory_space<vmem>>, %arg25: memref<1x40xf32, #tpu.memory_space<vmem>>, %arg26: memref<40x2048xf32, #tpu.memory_space<vmem>>, %arg27: memref<1x2048xf32, #tpu.memory_space<vmem>>, %arg28: memref<2048x40xf32, #tpu.memory_space<vmem>>, %arg29: memref<1x40xf32, #tpu.memory_space<vmem>>, %arg30: memref<1x40xf32, #tpu.memory_space<vmem>>, %arg31: memref<1x40xf32, #tpu.memory_space<vmem>>, %arg32: memref<1x40xf32, #tpu.memory_space<vmem>>, %arg33: memref<1x40xf32, #tpu.memory_space<vmem>>, %arg34: memref<5x40x8xf32, #tpu.memory_space<vmem>>, %arg35: memref<5x1x8xf32, #tpu.memory_space<vmem>>, %arg36: memref<5x40x8xf32, #tpu.memory_space<vmem>>, %arg37: memref<5x1x8xf32, #tpu.memory_space<vmem>>, %arg38: memref<5x40x8xf32, #tpu.memory_space<vmem>>, %arg39: memref<5x1x8xf32, #tpu.memory_space<vmem>>, %arg40: memref<5x8x40xf32, #tpu.memory_space<vmem>>, %arg41: memref<1x40xf32, #tpu.memory_space<vmem>>, %arg42: memref<40x2048xf32, #tpu.memory_space<vmem>>, %arg43: memref<1x2048xf32, #tpu.memory_space<vmem>>, %arg44: memref<2048x40xf32, #tpu.memory_space<vmem>>, %arg45: memref<1x40xf32, #tpu.memory_space<vmem>>, %arg46: memref<1x40xf32, #tpu.memory_space<vmem>>, %arg47: memref<1x40xf32, #tpu.memory_space<vmem>>, %arg48: memref<1x40xf32, #tpu.memory_space<vmem>>, %arg49: memref<1x40xf32, #tpu.memory_space<vmem>>, %arg50: memref<40x10xf32, #tpu.memory_space<vmem>>, %arg51: memref<40x10xf32, #tpu.memory_space<vmem>>, %arg52: memref<40x10xf32, #tpu.memory_space<vmem>>, %arg53: memref<1x10xf32, #tpu.memory_space<vmem>>, %arg54: memref<1x1x10xf32, #tpu.memory_space<vmem>>) attributes {dimension_semantics = [#tpu.dimension_semantics<parallel>], iteration_bounds = array<i64: 2>, scalar_prefetch = 0 : i64, scratch_operands = 0 : i64, tpu.core_type = #tpu.core_type<tc>, window_params = [{transform_indices = @transform_0, window_bounds = array<i64: 1, 8, 40>}, {pipeline_mode = #tpu.pipeline_mode<synchronous>, transform_indices = @transform_1, window_bounds = array<i64: 5, 40, 8>}, {pipeline_mode = #tpu.pipeline_mode<synchronous>, transform_indices = @transform_2, window_bounds = array<i64: 5, 1, 8>}, {pipeline_mode = #tpu.pipeline_mode<synchronous>, transform_indices = @transform_3, window_bounds = array<i64: 5, 40, 8>}, {pipeline_mode = #tpu.pipeline_mode<synchronous>, transform_indices = @transform_4, window_bounds = array<i64: 5, 1, 8>}, {pipeline_mode = #tpu.pipeline_mode<synchronous>, transform_indices = @transform_5, window_bounds = array<i64: 5, 40, 8>}, {pipeline_mode = #tpu.pipeline_mode<synchronous>, transform_indices = @transform_6, window_bounds = array<i64: 5, 1, 8>}, {pipeline_mode = #tpu.pipeline_mode<synchronous>, transform_indices = @transform_7, window_bounds = array<i64: 5, 8, 40>}, {pipeline_mode = #tpu.pipeline_mode<synchronous>, transform_indices = @transform_8, window_bounds = array<i64: 1, 40>}, {pipeline_mode = #tpu.pipeline_mode<synchronous>, transform_indices = @transform_9, window_bounds = array<i64: 40, 2048>}, {pipeline_mode = #tpu.pipeline_mode<synchronous>, transform_indices = @transform_10, window_bounds = array<i64: 1, 2048>}, {pipeline_mode = #tpu.pipeline_mode<synchronous>, transform_indices = @transform_11, window_bounds = array<i64: 2048, 40>}, {pipeline_mode = #tpu.pipeline_mode<synchronous>, transform_indices = @transform_12, window_bounds = array<i64: 1, 40>}, {pipeline_mode = #tpu.pipeline_mode<synchronous>, transform_indices = @transform_13, window_bounds = array<i64: 1, 40>}, {pipeline_mode = #tpu.pipeline_mode<synchronous>, transform_indices = @transform_14, window_bounds = array<i64: 1, 40>}, {pipeline_mode = #tpu.pipeline_mode<synchronous>, transform_indices = @transform_15, window_bounds = array<i64: 1, 40>}, {pipeline_mode = #tpu.pipeline_mode<synchronous>, transform_indices = @transform_16, window_bounds = array<i64: 1, 40>}, {pipeline_mode = #tpu.pipeline_mode<synchronous>, transform_indices = @transform_17, window_bounds = array<i64: 5, 40, 8>}, {pipeline_mode = #tpu.pipeline_mode<synchronous>, transform_indices = @transform_18, window_bounds = array<i64: 5, 1, 8>}, {pipeline_mode = #tpu.pipeline_mode<synchronous>, transform_indices = @transform_19, window_bounds = array<i64: 5, 40, 8>}, {pipeline_mode = #tpu.pipeline_mode<synchronous>, transform_indices = @transform_20, window_bounds = array<i64: 5, 1, 8>}, {pipeline_mode = #tpu.pipeline_mode<synchronous>, transform_indices = @transform_21, window_bounds = array<i64: 5, 40, 8>}, {pipeline_mode = #tpu.pipeline_mode<synchronous>, transform_indices = @transform_22, window_bounds = array<i64: 5, 1, 8>}, {pipeline_mode = #tpu.pipeline_mode<synchronous>, transform_indices = @transform_23, window_bounds = array<i64: 5, 8, 40>}, {pipeline_mode = #tpu.pipeline_mode<synchronous>, transform_indices = @transform_24, window_bounds = array<i64: 1, 40>}, {pipeline_mode = #tpu.pipeline_mode<synchronous>, transform_indices = @transform_25, window_bounds = array<i64: 40, 2048>}, {pipeline_mode = #tpu.pipeline_mode<synchronous>, transform_indices = @transform_26, window_bounds = array<i64: 1, 2048>}, {pipeline_mode = #tpu.pipeline_mode<synchronous>, transform_indices = @transform_27, window_bounds = array<i64: 2048, 40>}, {pipeline_mode = #tpu.pipeline_mode<synchronous>, transform_indices = @transform_28, window_bounds = array<i64: 1, 40>}, {pipeline_mode = #tpu.pipeline_mode<synchronous>, transform_indices = @transform_29, window_bounds = array<i64: 1, 40>}, {pipeline_mode = #tpu.pipeline_mode<synchronous>, transform_indices = @transform_30, window_bounds = array<i64: 1, 40>}, {pipeline_mode = #tpu.pipeline_mode<synchronous>, transform_indices = @transform_31, window_bounds = array<i64: 1, 40>}, {pipeline_mode = #tpu.pipeline_mode<synchronous>, transform_indices = @transform_32, window_bounds = array<i64: 1, 40>}, {pipeline_mode = #tpu.pipeline_mode<synchronous>, transform_indices = @transform_33, window_bounds = array<i64: 5, 40, 8>}, {pipeline_mode = #tpu.pipeline_mode<synchronous>, transform_indices = @transform_34, window_bounds = array<i64: 5, 1, 8>}, {pipeline_mode = #tpu.pipeline_mode<synchronous>, transform_indices = @transform_35, window_bounds = array<i64: 5, 40, 8>}, {pipeline_mode = #tpu.pipeline_mode<synchronous>, transform_indices = @transform_36, window_bounds = array<i64: 5, 1, 8>}, {pipeline_mode = #tpu.pipeline_mode<synchronous>, transform_indices = @transform_37, window_bounds = array<i64: 5, 40, 8>}, {pipeline_mode = #tpu.pipeline_mode<synchronous>, transform_indices = @transform_38, window_bounds = array<i64: 5, 1, 8>}, {pipeline_mode = #tpu.pipeline_mode<synchronous>, transform_indices = @transform_39, window_bounds = array<i64: 5, 8, 40>}, {pipeline_mode = #tpu.pipeline_mode<synchronous>, transform_indices = @transform_40, window_bounds = array<i64: 1, 40>}, {pipeline_mode = #tpu.pipeline_mode<synchronous>, transform_indices = @transform_41, window_bounds = array<i64: 40, 2048>}, {pipeline_mode = #tpu.pipeline_mode<synchronous>, transform_indices = @transform_42, window_bounds = array<i64: 1, 2048>}, {pipeline_mode = #tpu.pipeline_mode<synchronous>, transform_indices = @transform_43, window_bounds = array<i64: 2048, 40>}, {pipeline_mode = #tpu.pipeline_mode<synchronous>, transform_indices = @transform_44, window_bounds = array<i64: 1, 40>}, {pipeline_mode = #tpu.pipeline_mode<synchronous>, transform_indices = @transform_45, window_bounds = array<i64: 1, 40>}, {pipeline_mode = #tpu.pipeline_mode<synchronous>, transform_indices = @transform_46, window_bounds = array<i64: 1, 40>}, {pipeline_mode = #tpu.pipeline_mode<synchronous>, transform_indices = @transform_47, window_bounds = array<i64: 1, 40>}, {pipeline_mode = #tpu.pipeline_mode<synchronous>, transform_indices = @transform_48, window_bounds = array<i64: 1, 40>}, {pipeline_mode = #tpu.pipeline_mode<synchronous>, transform_indices = @transform_49, window_bounds = array<i64: 40, 10>}, {pipeline_mode = #tpu.pipeline_mode<synchronous>, transform_indices = @transform_50, window_bounds = array<i64: 40, 10>}, {pipeline_mode = #tpu.pipeline_mode<synchronous>, transform_indices = @transform_51, window_bounds = array<i64: 40, 10>}, {pipeline_mode = #tpu.pipeline_mode<synchronous>, transform_indices = @transform_52, window_bounds = array<i64: 1, 10>}, {transform_indices = @transform_53, window_bounds = array<i64: 1, 1, 10>}]} {
    %c0 = arith.constant 0 : index
    %c0_0 = arith.constant 0 : index
    %c0_1 = arith.constant 0 : index
    %0 = vector.load %arg1[%c0, %c0_0, %c0_1] : memref<1x8x40xf32, #tpu.memory_space<vmem>>, vector<1x8x40xf32>
    %1 = vector.shape_cast %0 : vector<1x8x40xf32> to vector<8x40xf32>
    %cst = arith.constant 0.000000e+00 : f32
    %2 = vector.broadcast %cst : f32 to vector<8x40xf32>
    %c0_2 = arith.constant 0 : index
    %c0_3 = arith.constant 0 : index
    %c0_4 = arith.constant 0 : index
    %3 = vector.load %arg2[%c0_2, %c0_3, %c0_4] : memref<5x40x8xf32, #tpu.memory_space<vmem>>, vector<1x40x8xf32>
    %4 = vector.shape_cast %3 : vector<1x40x8xf32> to vector<40x8xf32>
    %cst_5 = arith.constant dense<0.000000e+00> : vector<8x8xf32>
    %5 = tpu.matmul %1, %4, %cst_5 {dimension_numbers = #tpu.dot_dimension_numbers<[1], [0], [0], [1], [0, 0, 1, 1], [], []>} : vector<8x40xf32>, vector<40x8xf32>, vector<8x8xf32> -> vector<8x8xf32>
    %c0_6 = arith.constant 0 : index
    %c0_7 = arith.constant 0 : index
    %c0_8 = arith.constant 0 : index
    %6 = vector.load %arg3[%c0_6, %c0_7, %c0_8] : memref<5x1x8xf32, #tpu.memory_space<vmem>>, vector<1x1x8xf32>
    %7 = vector.shape_cast %6 : vector<1x1x8xf32> to vector<1x8xf32>
    %8 = vector.broadcast %7 : vector<1x8xf32> to vector<8x8xf32>
    %9 = arith.addf %5, %8 : vector<8x8xf32>
    %c0_9 = arith.constant 0 : index
    %c0_10 = arith.constant 0 : index
    %c0_11 = arith.constant 0 : index
    %10 = vector.load %arg4[%c0_9, %c0_10, %c0_11] : memref<5x40x8xf32, #tpu.memory_space<vmem>>, vector<1x40x8xf32>
    %11 = vector.shape_cast %10 : vector<1x40x8xf32> to vector<40x8xf32>
    %cst_12 = arith.constant dense<0.000000e+00> : vector<8x8xf32>
    %12 = tpu.matmul %1, %11, %cst_12 {dimension_numbers = #tpu.dot_dimension_numbers<[1], [0], [0], [1], [0, 0, 1, 1], [], []>} : vector<8x40xf32>, vector<40x8xf32>, vector<8x8xf32> -> vector<8x8xf32>
    %c0_13 = arith.constant 0 : index
    %c0_14 = arith.constant 0 : index
    %c0_15 = arith.constant 0 : index
    %13 = vector.load %arg5[%c0_13, %c0_14, %c0_15] : memref<5x1x8xf32, #tpu.memory_space<vmem>>, vector<1x1x8xf32>
    %14 = vector.shape_cast %13 : vector<1x1x8xf32> to vector<1x8xf32>
    %15 = vector.broadcast %14 : vector<1x8xf32> to vector<8x8xf32>
    %16 = arith.addf %12, %15 : vector<8x8xf32>
    %c0_16 = arith.constant 0 : index
    %c0_17 = arith.constant 0 : index
    %c0_18 = arith.constant 0 : index
    %17 = vector.load %arg6[%c0_16, %c0_17, %c0_18] : memref<5x40x8xf32, #tpu.memory_space<vmem>>, vector<1x40x8xf32>
    %18 = vector.shape_cast %17 : vector<1x40x8xf32> to vector<40x8xf32>
    %cst_19 = arith.constant dense<0.000000e+00> : vector<8x8xf32>
    %19 = tpu.matmul %1, %18, %cst_19 {dimension_numbers = #tpu.dot_dimension_numbers<[1], [0], [0], [1], [0, 0, 1, 1], [], []>} : vector<8x40xf32>, vector<40x8xf32>, vector<8x8xf32> -> vector<8x8xf32>
    %c0_20 = arith.constant 0 : index
    %c0_21 = arith.constant 0 : index
    %c0_22 = arith.constant 0 : index
    %20 = vector.load %arg7[%c0_20, %c0_21, %c0_22] : memref<5x1x8xf32, #tpu.memory_space<vmem>>, vector<1x1x8xf32>
    %21 = vector.shape_cast %20 : vector<1x1x8xf32> to vector<1x8xf32>
    %22 = vector.broadcast %21 : vector<1x8xf32> to vector<8x8xf32>
    %23 = arith.addf %19, %22 : vector<8x8xf32>
    %24 = vector.shape_cast %9 : vector<8x8xf32> to vector<1x8x8xf32>
    %25 = vector.shape_cast %16 : vector<8x8xf32> to vector<1x8x8xf32>
    %26 = vector.shape_cast %23 : vector<8x8xf32> to vector<1x8x8xf32>
    %c0_23 = arith.constant 0 : index
    %c0_24 = arith.constant 0 : index
    %c0_25 = arith.constant 0 : index
    %27 = vector.load %arg8[%c0_23, %c0_24, %c0_25] : memref<5x8x40xf32, #tpu.memory_space<vmem>>, vector<1x8x40xf32>
    %28 = vector.shape_cast %27 : vector<1x8x40xf32> to vector<8x40xf32>
    %29 = vector.shape_cast %24 : vector<1x8x8xf32> to vector<8x8xf32>
    %30 = vector.shape_cast %25 : vector<1x8x8xf32> to vector<8x8xf32>
    %cst_26 = arith.constant dense<0.000000e+00> : vector<8x8xf32>
    %31 = tpu.matmul %29, %30, %cst_26 {dimension_numbers = #tpu.dot_dimension_numbers<[1], [1], [0], [0], [0, 0, 1, 0], [], []>} : vector<8x8xf32>, vector<8x8xf32>, vector<8x8xf32> -> vector<8x8xf32>
    %cst_27 = arith.constant dense<0xFF800000> : vector<8xf32>
    %32 = vector.multi_reduction <maximumf>, %31, %cst_27 [1] : vector<8x8xf32> to vector<8xf32>
    %33 = vector.shape_cast %32 : vector<8xf32> to vector<8x1xf32>
    %34 = vector.broadcast %33 : vector<8x1xf32> to vector<8x8xf32>
    %35 = arith.subf %31, %34 : vector<8x8xf32>
    %36 = math.exp %35 : vector<8x8xf32>
    %cst_28 = arith.constant dense<0.000000e+00> : vector<8xf32>
    %37 = vector.multi_reduction <add>, %36, %cst_28 [1] : vector<8x8xf32> to vector<8xf32>
    %38 = vector.shape_cast %37 : vector<8xf32> to vector<8x1xf32>
    %39 = tpu.reciprocal %38 {approx = true} : vector<8x1xf32> -> vector<8x1xf32>
    %40 = vector.broadcast %39 : vector<8x1xf32> to vector<8x8xf32>
    %41 = arith.mulf %36, %40 : vector<8x8xf32>
    %42 = vector.shape_cast %26 : vector<1x8x8xf32> to vector<8x8xf32>
    %cst_29 = arith.constant dense<0.000000e+00> : vector<8x8xf32>
    %43 = tpu.matmul %41, %42, %cst_29 {dimension_numbers = #tpu.dot_dimension_numbers<[1], [0], [0], [1], [0, 0, 1, 1], [], []>} : vector<8x8xf32>, vector<8x8xf32>, vector<8x8xf32> -> vector<8x8xf32>
    %cst_30 = arith.constant dense<0.000000e+00> : vector<8x40xf32>
    %44 = tpu.matmul %43, %28, %cst_30 {dimension_numbers = #tpu.dot_dimension_numbers<[1], [0], [0], [1], [0, 0, 1, 1], [], []>} : vector<8x8xf32>, vector<8x40xf32>, vector<8x40xf32> -> vector<8x40xf32>
    %45 = arith.addf %2, %44 : vector<8x40xf32>
    %c1 = arith.constant 1 : index
    %c0_31 = arith.constant 0 : index
    %c0_32 = arith.constant 0 : index
    %46 = vector.load %arg2[%c1, %c0_31, %c0_32] : memref<5x40x8xf32, #tpu.memory_space<vmem>>, vector<1x40x8xf32>
    %47 = vector.shape_cast %46 : vector<1x40x8xf32> to vector<40x8xf32>
    %cst_33 = arith.constant dense<0.000000e+00> : vector<8x8xf32>
    %48 = tpu.matmul %1, %47, %cst_33 {dimension_numbers = #tpu.dot_dimension_numbers<[1], [0], [0], [1], [0, 0, 1, 1], [], []>} : vector<8x40xf32>, vector<40x8xf32>, vector<8x8xf32> -> vector<8x8xf32>
    %c1_34 = arith.constant 1 : index
    %c0_35 = arith.constant 0 : index
    %c0_36 = arith.constant 0 : index
    %49 = vector.load %arg3[%c1_34, %c0_35, %c0_36] : memref<5x1x8xf32, #tpu.memory_space<vmem>>, vector<1x1x8xf32>
    %50 = vector.shape_cast %49 : vector<1x1x8xf32> to vector<1x8xf32>
    %51 = vector.broadcast %50 : vector<1x8xf32> to vector<8x8xf32>
    %52 = arith.addf %48, %51 : vector<8x8xf32>
    %c1_37 = arith.constant 1 : index
    %c0_38 = arith.constant 0 : index
    %c0_39 = arith.constant 0 : index
    %53 = vector.load %arg4[%c1_37, %c0_38, %c0_39] : memref<5x40x8xf32, #tpu.memory_space<vmem>>, vector<1x40x8xf32>
    %54 = vector.shape_cast %53 : vector<1x40x8xf32> to vector<40x8xf32>
    %cst_40 = arith.constant dense<0.000000e+00> : vector<8x8xf32>
    %55 = tpu.matmul %1, %54, %cst_40 {dimension_numbers = #tpu.dot_dimension_numbers<[1], [0], [0], [1], [0, 0, 1, 1], [], []>} : vector<8x40xf32>, vector<40x8xf32>, vector<8x8xf32> -> vector<8x8xf32>
    %c1_41 = arith.constant 1 : index
    %c0_42 = arith.constant 0 : index
    %c0_43 = arith.constant 0 : index
    %56 = vector.load %arg5[%c1_41, %c0_42, %c0_43] : memref<5x1x8xf32, #tpu.memory_space<vmem>>, vector<1x1x8xf32>
    %57 = vector.shape_cast %56 : vector<1x1x8xf32> to vector<1x8xf32>
    %58 = vector.broadcast %57 : vector<1x8xf32> to vector<8x8xf32>
    %59 = arith.addf %55, %58 : vector<8x8xf32>
    %c1_44 = arith.constant 1 : index
    %c0_45 = arith.constant 0 : index
    %c0_46 = arith.constant 0 : index
    %60 = vector.load %arg6[%c1_44, %c0_45, %c0_46] : memref<5x40x8xf32, #tpu.memory_space<vmem>>, vector<1x40x8xf32>
    %61 = vector.shape_cast %60 : vector<1x40x8xf32> to vector<40x8xf32>
    %cst_47 = arith.constant dense<0.000000e+00> : vector<8x8xf32>
    %62 = tpu.matmul %1, %61, %cst_47 {dimension_numbers = #tpu.dot_dimension_numbers<[1], [0], [0], [1], [0, 0, 1, 1], [], []>} : vector<8x40xf32>, vector<40x8xf32>, vector<8x8xf32> -> vector<8x8xf32>
    %c1_48 = arith.constant 1 : index
    %c0_49 = arith.constant 0 : index
    %c0_50 = arith.constant 0 : index
    %63 = vector.load %arg7[%c1_48, %c0_49, %c0_50] : memref<5x1x8xf32, #tpu.memory_space<vmem>>, vector<1x1x8xf32>
    %64 = vector.shape_cast %63 : vector<1x1x8xf32> to vector<1x8xf32>
    %65 = vector.broadcast %64 : vector<1x8xf32> to vector<8x8xf32>
    %66 = arith.addf %62, %65 : vector<8x8xf32>
    %67 = vector.shape_cast %52 : vector<8x8xf32> to vector<1x8x8xf32>
    %68 = vector.shape_cast %59 : vector<8x8xf32> to vector<1x8x8xf32>
    %69 = vector.shape_cast %66 : vector<8x8xf32> to vector<1x8x8xf32>
    %c1_51 = arith.constant 1 : index
    %c0_52 = arith.constant 0 : index
    %c0_53 = arith.constant 0 : index
    %70 = vector.load %arg8[%c1_51, %c0_52, %c0_53] : memref<5x8x40xf32, #tpu.memory_space<vmem>>, vector<1x8x40xf32>
    %71 = vector.shape_cast %70 : vector<1x8x40xf32> to vector<8x40xf32>
    %72 = vector.shape_cast %67 : vector<1x8x8xf32> to vector<8x8xf32>
    %73 = vector.shape_cast %68 : vector<1x8x8xf32> to vector<8x8xf32>
    %cst_54 = arith.constant dense<0.000000e+00> : vector<8x8xf32>
    %74 = tpu.matmul %72, %73, %cst_54 {dimension_numbers = #tpu.dot_dimension_numbers<[1], [1], [0], [0], [0, 0, 1, 0], [], []>} : vector<8x8xf32>, vector<8x8xf32>, vector<8x8xf32> -> vector<8x8xf32>
    %cst_55 = arith.constant dense<0xFF800000> : vector<8xf32>
    %75 = vector.multi_reduction <maximumf>, %74, %cst_55 [1] : vector<8x8xf32> to vector<8xf32>
    %76 = vector.shape_cast %75 : vector<8xf32> to vector<8x1xf32>
    %77 = vector.broadcast %76 : vector<8x1xf32> to vector<8x8xf32>
    %78 = arith.subf %74, %77 : vector<8x8xf32>
    %79 = math.exp %78 : vector<8x8xf32>
    %cst_56 = arith.constant dense<0.000000e+00> : vector<8xf32>
    %80 = vector.multi_reduction <add>, %79, %cst_56 [1] : vector<8x8xf32> to vector<8xf32>
    %81 = vector.shape_cast %80 : vector<8xf32> to vector<8x1xf32>
    %82 = tpu.reciprocal %81 {approx = true} : vector<8x1xf32> -> vector<8x1xf32>
    %83 = vector.broadcast %82 : vector<8x1xf32> to vector<8x8xf32>
    %84 = arith.mulf %79, %83 : vector<8x8xf32>
    %85 = vector.shape_cast %69 : vector<1x8x8xf32> to vector<8x8xf32>
    %cst_57 = arith.constant dense<0.000000e+00> : vector<8x8xf32>
    %86 = tpu.matmul %84, %85, %cst_57 {dimension_numbers = #tpu.dot_dimension_numbers<[1], [0], [0], [1], [0, 0, 1, 1], [], []>} : vector<8x8xf32>, vector<8x8xf32>, vector<8x8xf32> -> vector<8x8xf32>
    %cst_58 = arith.constant dense<0.000000e+00> : vector<8x40xf32>
    %87 = tpu.matmul %86, %71, %cst_58 {dimension_numbers = #tpu.dot_dimension_numbers<[1], [0], [0], [1], [0, 0, 1, 1], [], []>} : vector<8x8xf32>, vector<8x40xf32>, vector<8x40xf32> -> vector<8x40xf32>
    %88 = arith.addf %45, %87 : vector<8x40xf32>
    %c2 = arith.constant 2 : index
    %c0_59 = arith.constant 0 : index
    %c0_60 = arith.constant 0 : index
    %89 = vector.load %arg2[%c2, %c0_59, %c0_60] : memref<5x40x8xf32, #tpu.memory_space<vmem>>, vector<1x40x8xf32>
    %90 = vector.shape_cast %89 : vector<1x40x8xf32> to vector<40x8xf32>
    %cst_61 = arith.constant dense<0.000000e+00> : vector<8x8xf32>
    %91 = tpu.matmul %1, %90, %cst_61 {dimension_numbers = #tpu.dot_dimension_numbers<[1], [0], [0], [1], [0, 0, 1, 1], [], []>} : vector<8x40xf32>, vector<40x8xf32>, vector<8x8xf32> -> vector<8x8xf32>
    %c2_62 = arith.constant 2 : index
    %c0_63 = arith.constant 0 : index
    %c0_64 = arith.constant 0 : index
    %92 = vector.load %arg3[%c2_62, %c0_63, %c0_64] : memref<5x1x8xf32, #tpu.memory_space<vmem>>, vector<1x1x8xf32>
    %93 = vector.shape_cast %92 : vector<1x1x8xf32> to vector<1x8xf32>
    %94 = vector.broadcast %93 : vector<1x8xf32> to vector<8x8xf32>
    %95 = arith.addf %91, %94 : vector<8x8xf32>
    %c2_65 = arith.constant 2 : index
    %c0_66 = arith.constant 0 : index
    %c0_67 = arith.constant 0 : index
    %96 = vector.load %arg4[%c2_65, %c0_66, %c0_67] : memref<5x40x8xf32, #tpu.memory_space<vmem>>, vector<1x40x8xf32>
    %97 = vector.shape_cast %96 : vector<1x40x8xf32> to vector<40x8xf32>
    %cst_68 = arith.constant dense<0.000000e+00> : vector<8x8xf32>
    %98 = tpu.matmul %1, %97, %cst_68 {dimension_numbers = #tpu.dot_dimension_numbers<[1], [0], [0], [1], [0, 0, 1, 1], [], []>} : vector<8x40xf32>, vector<40x8xf32>, vector<8x8xf32> -> vector<8x8xf32>
    %c2_69 = arith.constant 2 : index
    %c0_70 = arith.constant 0 : index
    %c0_71 = arith.constant 0 : index
    %99 = vector.load %arg5[%c2_69, %c0_70, %c0_71] : memref<5x1x8xf32, #tpu.memory_space<vmem>>, vector<1x1x8xf32>
    %100 = vector.shape_cast %99 : vector<1x1x8xf32> to vector<1x8xf32>
    %101 = vector.broadcast %100 : vector<1x8xf32> to vector<8x8xf32>
    %102 = arith.addf %98, %101 : vector<8x8xf32>
    %c2_72 = arith.constant 2 : index
    %c0_73 = arith.constant 0 : index
    %c0_74 = arith.constant 0 : index
    %103 = vector.load %arg6[%c2_72, %c0_73, %c0_74] : memref<5x40x8xf32, #tpu.memory_space<vmem>>, vector<1x40x8xf32>
    %104 = vector.shape_cast %103 : vector<1x40x8xf32> to vector<40x8xf32>
    %cst_75 = arith.constant dense<0.000000e+00> : vector<8x8xf32>
    %105 = tpu.matmul %1, %104, %cst_75 {dimension_numbers = #tpu.dot_dimension_numbers<[1], [0], [0], [1], [0, 0, 1, 1], [], []>} : vector<8x40xf32>, vector<40x8xf32>, vector<8x8xf32> -> vector<8x8xf32>
    %c2_76 = arith.constant 2 : index
    %c0_77 = arith.constant 0 : index
    %c0_78 = arith.constant 0 : index
    %106 = vector.load %arg7[%c2_76, %c0_77, %c0_78] : memref<5x1x8xf32, #tpu.memory_space<vmem>>, vector<1x1x8xf32>
    %107 = vector.shape_cast %106 : vector<1x1x8xf32> to vector<1x8xf32>
    %108 = vector.broadcast %107 : vector<1x8xf32> to vector<8x8xf32>
    %109 = arith.addf %105, %108 : vector<8x8xf32>
    %110 = vector.shape_cast %95 : vector<8x8xf32> to vector<1x8x8xf32>
    %111 = vector.shape_cast %102 : vector<8x8xf32> to vector<1x8x8xf32>
    %112 = vector.shape_cast %109 : vector<8x8xf32> to vector<1x8x8xf32>
    %c2_79 = arith.constant 2 : index
    %c0_80 = arith.constant 0 : index
    %c0_81 = arith.constant 0 : index
    %113 = vector.load %arg8[%c2_79, %c0_80, %c0_81] : memref<5x8x40xf32, #tpu.memory_space<vmem>>, vector<1x8x40xf32>
    %114 = vector.shape_cast %113 : vector<1x8x40xf32> to vector<8x40xf32>
    %115 = vector.shape_cast %110 : vector<1x8x8xf32> to vector<8x8xf32>
    %116 = vector.shape_cast %111 : vector<1x8x8xf32> to vector<8x8xf32>
    %cst_82 = arith.constant dense<0.000000e+00> : vector<8x8xf32>
    %117 = tpu.matmul %115, %116, %cst_82 {dimension_numbers = #tpu.dot_dimension_numbers<[1], [1], [0], [0], [0, 0, 1, 0], [], []>} : vector<8x8xf32>, vector<8x8xf32>, vector<8x8xf32> -> vector<8x8xf32>
    %cst_83 = arith.constant dense<0xFF800000> : vector<8xf32>
    %118 = vector.multi_reduction <maximumf>, %117, %cst_83 [1] : vector<8x8xf32> to vector<8xf32>
    %119 = vector.shape_cast %118 : vector<8xf32> to vector<8x1xf32>
    %120 = vector.broadcast %119 : vector<8x1xf32> to vector<8x8xf32>
    %121 = arith.subf %117, %120 : vector<8x8xf32>
    %122 = math.exp %121 : vector<8x8xf32>
    %cst_84 = arith.constant dense<0.000000e+00> : vector<8xf32>
    %123 = vector.multi_reduction <add>, %122, %cst_84 [1] : vector<8x8xf32> to vector<8xf32>
    %124 = vector.shape_cast %123 : vector<8xf32> to vector<8x1xf32>
    %125 = tpu.reciprocal %124 {approx = true} : vector<8x1xf32> -> vector<8x1xf32>
    %126 = vector.broadcast %125 : vector<8x1xf32> to vector<8x8xf32>
    %127 = arith.mulf %122, %126 : vector<8x8xf32>
    %128 = vector.shape_cast %112 : vector<1x8x8xf32> to vector<8x8xf32>
    %cst_85 = arith.constant dense<0.000000e+00> : vector<8x8xf32>
    %129 = tpu.matmul %127, %128, %cst_85 {dimension_numbers = #tpu.dot_dimension_numbers<[1], [0], [0], [1], [0, 0, 1, 1], [], []>} : vector<8x8xf32>, vector<8x8xf32>, vector<8x8xf32> -> vector<8x8xf32>
    %cst_86 = arith.constant dense<0.000000e+00> : vector<8x40xf32>
    %130 = tpu.matmul %129, %114, %cst_86 {dimension_numbers = #tpu.dot_dimension_numbers<[1], [0], [0], [1], [0, 0, 1, 1], [], []>} : vector<8x8xf32>, vector<8x40xf32>, vector<8x40xf32> -> vector<8x40xf32>
    %131 = arith.addf %88, %130 : vector<8x40xf32>
    %c3 = arith.constant 3 : index
    %c0_87 = arith.constant 0 : index
    %c0_88 = arith.constant 0 : index
    %132 = vector.load %arg2[%c3, %c0_87, %c0_88] : memref<5x40x8xf32, #tpu.memory_space<vmem>>, vector<1x40x8xf32>
    %133 = vector.shape_cast %132 : vector<1x40x8xf32> to vector<40x8xf32>
    %cst_89 = arith.constant dense<0.000000e+00> : vector<8x8xf32>
    %134 = tpu.matmul %1, %133, %cst_89 {dimension_numbers = #tpu.dot_dimension_numbers<[1], [0], [0], [1], [0, 0, 1, 1], [], []>} : vector<8x40xf32>, vector<40x8xf32>, vector<8x8xf32> -> vector<8x8xf32>
    %c3_90 = arith.constant 3 : index
    %c0_91 = arith.constant 0 : index
    %c0_92 = arith.constant 0 : index
    %135 = vector.load %arg3[%c3_90, %c0_91, %c0_92] : memref<5x1x8xf32, #tpu.memory_space<vmem>>, vector<1x1x8xf32>
    %136 = vector.shape_cast %135 : vector<1x1x8xf32> to vector<1x8xf32>
    %137 = vector.broadcast %136 : vector<1x8xf32> to vector<8x8xf32>
    %138 = arith.addf %134, %137 : vector<8x8xf32>
    %c3_93 = arith.constant 3 : index
    %c0_94 = arith.constant 0 : index
    %c0_95 = arith.constant 0 : index
    %139 = vector.load %arg4[%c3_93, %c0_94, %c0_95] : memref<5x40x8xf32, #tpu.memory_space<vmem>>, vector<1x40x8xf32>
    %140 = vector.shape_cast %139 : vector<1x40x8xf32> to vector<40x8xf32>
    %cst_96 = arith.constant dense<0.000000e+00> : vector<8x8xf32>
    %141 = tpu.matmul %1, %140, %cst_96 {dimension_numbers = #tpu.dot_dimension_numbers<[1], [0], [0], [1], [0, 0, 1, 1], [], []>} : vector<8x40xf32>, vector<40x8xf32>, vector<8x8xf32> -> vector<8x8xf32>
    %c3_97 = arith.constant 3 : index
    %c0_98 = arith.constant 0 : index
    %c0_99 = arith.constant 0 : index
    %142 = vector.load %arg5[%c3_97, %c0_98, %c0_99] : memref<5x1x8xf32, #tpu.memory_space<vmem>>, vector<1x1x8xf32>
    %143 = vector.shape_cast %142 : vector<1x1x8xf32> to vector<1x8xf32>
    %144 = vector.broadcast %143 : vector<1x8xf32> to vector<8x8xf32>
    %145 = arith.addf %141, %144 : vector<8x8xf32>
    %c3_100 = arith.constant 3 : index
    %c0_101 = arith.constant 0 : index
    %c0_102 = arith.constant 0 : index
    %146 = vector.load %arg6[%c3_100, %c0_101, %c0_102] : memref<5x40x8xf32, #tpu.memory_space<vmem>>, vector<1x40x8xf32>
    %147 = vector.shape_cast %146 : vector<1x40x8xf32> to vector<40x8xf32>
    %cst_103 = arith.constant dense<0.000000e+00> : vector<8x8xf32>
    %148 = tpu.matmul %1, %147, %cst_103 {dimension_numbers = #tpu.dot_dimension_numbers<[1], [0], [0], [1], [0, 0, 1, 1], [], []>} : vector<8x40xf32>, vector<40x8xf32>, vector<8x8xf32> -> vector<8x8xf32>
    %c3_104 = arith.constant 3 : index
    %c0_105 = arith.constant 0 : index
    %c0_106 = arith.constant 0 : index
    %149 = vector.load %arg7[%c3_104, %c0_105, %c0_106] : memref<5x1x8xf32, #tpu.memory_space<vmem>>, vector<1x1x8xf32>
    %150 = vector.shape_cast %149 : vector<1x1x8xf32> to vector<1x8xf32>
    %151 = vector.broadcast %150 : vector<1x8xf32> to vector<8x8xf32>
    %152 = arith.addf %148, %151 : vector<8x8xf32>
    %153 = vector.shape_cast %138 : vector<8x8xf32> to vector<1x8x8xf32>
    %154 = vector.shape_cast %145 : vector<8x8xf32> to vector<1x8x8xf32>
    %155 = vector.shape_cast %152 : vector<8x8xf32> to vector<1x8x8xf32>
    %c3_107 = arith.constant 3 : index
    %c0_108 = arith.constant 0 : index
    %c0_109 = arith.constant 0 : index
    %156 = vector.load %arg8[%c3_107, %c0_108, %c0_109] : memref<5x8x40xf32, #tpu.memory_space<vmem>>, vector<1x8x40xf32>
    %157 = vector.shape_cast %156 : vector<1x8x40xf32> to vector<8x40xf32>
    %158 = vector.shape_cast %153 : vector<1x8x8xf32> to vector<8x8xf32>
    %159 = vector.shape_cast %154 : vector<1x8x8xf32> to vector<8x8xf32>
    %cst_110 = arith.constant dense<0.000000e+00> : vector<8x8xf32>
    %160 = tpu.matmul %158, %159, %cst_110 {dimension_numbers = #tpu.dot_dimension_numbers<[1], [1], [0], [0], [0, 0, 1, 0], [], []>} : vector<8x8xf32>, vector<8x8xf32>, vector<8x8xf32> -> vector<8x8xf32>
    %cst_111 = arith.constant dense<0xFF800000> : vector<8xf32>
    %161 = vector.multi_reduction <maximumf>, %160, %cst_111 [1] : vector<8x8xf32> to vector<8xf32>
    %162 = vector.shape_cast %161 : vector<8xf32> to vector<8x1xf32>
    %163 = vector.broadcast %162 : vector<8x1xf32> to vector<8x8xf32>
    %164 = arith.subf %160, %163 : vector<8x8xf32>
    %165 = math.exp %164 : vector<8x8xf32>
    %cst_112 = arith.constant dense<0.000000e+00> : vector<8xf32>
    %166 = vector.multi_reduction <add>, %165, %cst_112 [1] : vector<8x8xf32> to vector<8xf32>
    %167 = vector.shape_cast %166 : vector<8xf32> to vector<8x1xf32>
    %168 = tpu.reciprocal %167 {approx = true} : vector<8x1xf32> -> vector<8x1xf32>
    %169 = vector.broadcast %168 : vector<8x1xf32> to vector<8x8xf32>
    %170 = arith.mulf %165, %169 : vector<8x8xf32>
    %171 = vector.shape_cast %155 : vector<1x8x8xf32> to vector<8x8xf32>
    %cst_113 = arith.constant dense<0.000000e+00> : vector<8x8xf32>
    %172 = tpu.matmul %170, %171, %cst_113 {dimension_numbers = #tpu.dot_dimension_numbers<[1], [0], [0], [1], [0, 0, 1, 1], [], []>} : vector<8x8xf32>, vector<8x8xf32>, vector<8x8xf32> -> vector<8x8xf32>
    %cst_114 = arith.constant dense<0.000000e+00> : vector<8x40xf32>
    %173 = tpu.matmul %172, %157, %cst_114 {dimension_numbers = #tpu.dot_dimension_numbers<[1], [0], [0], [1], [0, 0, 1, 1], [], []>} : vector<8x8xf32>, vector<8x40xf32>, vector<8x40xf32> -> vector<8x40xf32>
    %174 = arith.addf %131, %173 : vector<8x40xf32>
    %c4 = arith.constant 4 : index
    %c0_115 = arith.constant 0 : index
    %c0_116 = arith.constant 0 : index
    %175 = vector.load %arg2[%c4, %c0_115, %c0_116] : memref<5x40x8xf32, #tpu.memory_space<vmem>>, vector<1x40x8xf32>
    %176 = vector.shape_cast %175 : vector<1x40x8xf32> to vector<40x8xf32>
    %cst_117 = arith.constant dense<0.000000e+00> : vector<8x8xf32>
    %177 = tpu.matmul %1, %176, %cst_117 {dimension_numbers = #tpu.dot_dimension_numbers<[1], [0], [0], [1], [0, 0, 1, 1], [], []>} : vector<8x40xf32>, vector<40x8xf32>, vector<8x8xf32> -> vector<8x8xf32>
    %c4_118 = arith.constant 4 : index
    %c0_119 = arith.constant 0 : index
    %c0_120 = arith.constant 0 : index
    %178 = vector.load %arg3[%c4_118, %c0_119, %c0_120] : memref<5x1x8xf32, #tpu.memory_space<vmem>>, vector<1x1x8xf32>
    %179 = vector.shape_cast %178 : vector<1x1x8xf32> to vector<1x8xf32>
    %180 = vector.broadcast %179 : vector<1x8xf32> to vector<8x8xf32>
    %181 = arith.addf %177, %180 : vector<8x8xf32>
    %c4_121 = arith.constant 4 : index
    %c0_122 = arith.constant 0 : index
    %c0_123 = arith.constant 0 : index
    %182 = vector.load %arg4[%c4_121, %c0_122, %c0_123] : memref<5x40x8xf32, #tpu.memory_space<vmem>>, vector<1x40x8xf32>
    %183 = vector.shape_cast %182 : vector<1x40x8xf32> to vector<40x8xf32>
    %cst_124 = arith.constant dense<0.000000e+00> : vector<8x8xf32>
    %184 = tpu.matmul %1, %183, %cst_124 {dimension_numbers = #tpu.dot_dimension_numbers<[1], [0], [0], [1], [0, 0, 1, 1], [], []>} : vector<8x40xf32>, vector<40x8xf32>, vector<8x8xf32> -> vector<8x8xf32>
    %c4_125 = arith.constant 4 : index
    %c0_126 = arith.constant 0 : index
    %c0_127 = arith.constant 0 : index
    %185 = vector.load %arg5[%c4_125, %c0_126, %c0_127] : memref<5x1x8xf32, #tpu.memory_space<vmem>>, vector<1x1x8xf32>
    %186 = vector.shape_cast %185 : vector<1x1x8xf32> to vector<1x8xf32>
    %187 = vector.broadcast %186 : vector<1x8xf32> to vector<8x8xf32>
    %188 = arith.addf %184, %187 : vector<8x8xf32>
    %c4_128 = arith.constant 4 : index
    %c0_129 = arith.constant 0 : index
    %c0_130 = arith.constant 0 : index
    %189 = vector.load %arg6[%c4_128, %c0_129, %c0_130] : memref<5x40x8xf32, #tpu.memory_space<vmem>>, vector<1x40x8xf32>
    %190 = vector.shape_cast %189 : vector<1x40x8xf32> to vector<40x8xf32>
    %cst_131 = arith.constant dense<0.000000e+00> : vector<8x8xf32>
    %191 = tpu.matmul %1, %190, %cst_131 {dimension_numbers = #tpu.dot_dimension_numbers<[1], [0], [0], [1], [0, 0, 1, 1], [], []>} : vector<8x40xf32>, vector<40x8xf32>, vector<8x8xf32> -> vector<8x8xf32>
    %c4_132 = arith.constant 4 : index
    %c0_133 = arith.constant 0 : index
    %c0_134 = arith.constant 0 : index
    %192 = vector.load %arg7[%c4_132, %c0_133, %c0_134] : memref<5x1x8xf32, #tpu.memory_space<vmem>>, vector<1x1x8xf32>
    %193 = vector.shape_cast %192 : vector<1x1x8xf32> to vector<1x8xf32>
    %194 = vector.broadcast %193 : vector<1x8xf32> to vector<8x8xf32>
    %195 = arith.addf %191, %194 : vector<8x8xf32>
    %196 = vector.shape_cast %181 : vector<8x8xf32> to vector<1x8x8xf32>
    %197 = vector.shape_cast %188 : vector<8x8xf32> to vector<1x8x8xf32>
    %198 = vector.shape_cast %195 : vector<8x8xf32> to vector<1x8x8xf32>
    %c4_135 = arith.constant 4 : index
    %c0_136 = arith.constant 0 : index
    %c0_137 = arith.constant 0 : index
    %199 = vector.load %arg8[%c4_135, %c0_136, %c0_137] : memref<5x8x40xf32, #tpu.memory_space<vmem>>, vector<1x8x40xf32>
    %200 = vector.shape_cast %199 : vector<1x8x40xf32> to vector<8x40xf32>
    %201 = vector.shape_cast %196 : vector<1x8x8xf32> to vector<8x8xf32>
    %202 = vector.shape_cast %197 : vector<1x8x8xf32> to vector<8x8xf32>
    %cst_138 = arith.constant dense<0.000000e+00> : vector<8x8xf32>
    %203 = tpu.matmul %201, %202, %cst_138 {dimension_numbers = #tpu.dot_dimension_numbers<[1], [1], [0], [0], [0, 0, 1, 0], [], []>} : vector<8x8xf32>, vector<8x8xf32>, vector<8x8xf32> -> vector<8x8xf32>
    %cst_139 = arith.constant dense<0xFF800000> : vector<8xf32>
    %204 = vector.multi_reduction <maximumf>, %203, %cst_139 [1] : vector<8x8xf32> to vector<8xf32>
    %205 = vector.shape_cast %204 : vector<8xf32> to vector<8x1xf32>
    %206 = vector.broadcast %205 : vector<8x1xf32> to vector<8x8xf32>
    %207 = arith.subf %203, %206 : vector<8x8xf32>
    %208 = math.exp %207 : vector<8x8xf32>
    %cst_140 = arith.constant dense<0.000000e+00> : vector<8xf32>
    %209 = vector.multi_reduction <add>, %208, %cst_140 [1] : vector<8x8xf32> to vector<8xf32>
    %210 = vector.shape_cast %209 : vector<8xf32> to vector<8x1xf32>
    %211 = tpu.reciprocal %210 {approx = true} : vector<8x1xf32> -> vector<8x1xf32>
    %212 = vector.broadcast %211 : vector<8x1xf32> to vector<8x8xf32>
    %213 = arith.mulf %208, %212 : vector<8x8xf32>
    %214 = vector.shape_cast %198 : vector<1x8x8xf32> to vector<8x8xf32>
    %cst_141 = arith.constant dense<0.000000e+00> : vector<8x8xf32>
    %215 = tpu.matmul %213, %214, %cst_141 {dimension_numbers = #tpu.dot_dimension_numbers<[1], [0], [0], [1], [0, 0, 1, 1], [], []>} : vector<8x8xf32>, vector<8x8xf32>, vector<8x8xf32> -> vector<8x8xf32>
    %cst_142 = arith.constant dense<0.000000e+00> : vector<8x40xf32>
    %216 = tpu.matmul %215, %200, %cst_142 {dimension_numbers = #tpu.dot_dimension_numbers<[1], [0], [0], [1], [0, 0, 1, 1], [], []>} : vector<8x8xf32>, vector<8x40xf32>, vector<8x40xf32> -> vector<8x40xf32>
    %217 = arith.addf %174, %216 : vector<8x40xf32>
    %c0_143 = arith.constant 0 : index
    %c0_144 = arith.constant 0 : index
    %218 = vector.load %arg9[%c0_143, %c0_144] : memref<1x40xf32, #tpu.memory_space<vmem>>, vector<1x40xf32>
    %219 = vector.broadcast %218 : vector<1x40xf32> to vector<8x40xf32>
    %220 = arith.addf %217, %219 : vector<8x40xf32>
    %221 = arith.addf %1, %220 : vector<8x40xf32>
    %c0_145 = arith.constant 0 : index
    %c0_146 = arith.constant 0 : index
    %222 = vector.load %arg14[%c0_145, %c0_146] : memref<1x40xf32, #tpu.memory_space<vmem>>, vector<1x40xf32>
    %c0_147 = arith.constant 0 : index
    %c0_148 = arith.constant 0 : index
    %223 = vector.load %arg15[%c0_147, %c0_148] : memref<1x40xf32, #tpu.memory_space<vmem>>, vector<1x40xf32>
    %cst_149 = arith.constant dense<0.000000e+00> : vector<8xf32>
    %224 = vector.multi_reduction <add>, %221, %cst_149 [1] : vector<8x40xf32> to vector<8xf32>
    %225 = vector.shape_cast %224 : vector<8xf32> to vector<8x1xf32>
    %cst_150 = arith.constant 4.000000e+01 : f32
    %226 = vector.broadcast %cst_150 : f32 to vector<8x1xf32>
    %227 = arith.divf %225, %226 : vector<8x1xf32>
    %228 = vector.broadcast %227 : vector<8x1xf32> to vector<8x40xf32>
    %229 = arith.subf %221, %228 : vector<8x40xf32>
    %230 = arith.mulf %229, %229 : vector<8x40xf32>
    %cst_151 = arith.constant dense<0.000000e+00> : vector<8xf32>
    %231 = vector.multi_reduction <add>, %230, %cst_151 [1] : vector<8x40xf32> to vector<8xf32>
    %232 = vector.shape_cast %231 : vector<8xf32> to vector<8x1xf32>
    %cst_152 = arith.constant 4.000000e+01 : f32
    %233 = vector.broadcast %cst_152 : f32 to vector<8x1xf32>
    %234 = arith.divf %232, %233 : vector<8x1xf32>
    %235 = vector.broadcast %227 : vector<8x1xf32> to vector<8x40xf32>
    %236 = arith.subf %221, %235 : vector<8x40xf32>
    %cst_153 = arith.constant 9.99999974E-6 : f32
    %237 = vector.broadcast %cst_153 : f32 to vector<8x1xf32>
    %238 = arith.addf %234, %237 : vector<8x1xf32>
    %239 = math.rsqrt %238 : vector<8x1xf32>
    %240 = vector.broadcast %239 : vector<8x1xf32> to vector<8x40xf32>
    %241 = arith.mulf %236, %240 : vector<8x40xf32>
    %242 = vector.broadcast %222 : vector<1x40xf32> to vector<8x40xf32>
    %243 = arith.mulf %241, %242 : vector<8x40xf32>
    %244 = vector.broadcast %223 : vector<1x40xf32> to vector<8x40xf32>
    %245 = arith.addf %243, %244 : vector<8x40xf32>
    %c0_154 = arith.constant 0 : index
    %c0_155 = arith.constant 0 : index
    %246 = vector.load %arg10[%c0_154, %c0_155] : memref<40x2048xf32, #tpu.memory_space<vmem>>, vector<40x2048xf32>
    %cst_156 = arith.constant dense<0.000000e+00> : vector<8x2048xf32>
    %247 = tpu.matmul %245, %246, %cst_156 {dimension_numbers = #tpu.dot_dimension_numbers<[1], [0], [0], [1], [0, 0, 1, 1], [], []>} : vector<8x40xf32>, vector<40x2048xf32>, vector<8x2048xf32> -> vector<8x2048xf32>
    %c0_157 = arith.constant 0 : index
    %c0_158 = arith.constant 0 : index
    %248 = vector.load %arg11[%c0_157, %c0_158] : memref<1x2048xf32, #tpu.memory_space<vmem>>, vector<1x2048xf32>
    %249 = vector.broadcast %248 : vector<1x2048xf32> to vector<8x2048xf32>
    %250 = arith.addf %247, %249 : vector<8x2048xf32>
    %cst_159 = arith.constant 0.000000e+00 : f32
    %251 = vector.broadcast %cst_159 : f32 to vector<8x2048xf32>
    %252 = arith.maximumf %250, %251 : vector<8x2048xf32>
    %c0_160 = arith.constant 0 : index
    %c0_161 = arith.constant 0 : index
    %253 = vector.load %arg12[%c0_160, %c0_161] : memref<2048x40xf32, #tpu.memory_space<vmem>>, vector<2048x40xf32>
    %cst_162 = arith.constant dense<0.000000e+00> : vector<8x40xf32>
    %254 = tpu.matmul %252, %253, %cst_162 {dimension_numbers = #tpu.dot_dimension_numbers<[1], [0], [0], [1], [0, 0, 1, 1], [], []>} : vector<8x2048xf32>, vector<2048x40xf32>, vector<8x40xf32> -> vector<8x40xf32>
    %c0_163 = arith.constant 0 : index
    %c0_164 = arith.constant 0 : index
    %255 = vector.load %arg13[%c0_163, %c0_164] : memref<1x40xf32, #tpu.memory_space<vmem>>, vector<1x40xf32>
    %256 = vector.broadcast %255 : vector<1x40xf32> to vector<8x40xf32>
    %257 = arith.addf %254, %256 : vector<8x40xf32>
    %258 = arith.addf %245, %257 : vector<8x40xf32>
    %c0_165 = arith.constant 0 : index
    %c0_166 = arith.constant 0 : index
    %259 = vector.load %arg16[%c0_165, %c0_166] : memref<1x40xf32, #tpu.memory_space<vmem>>, vector<1x40xf32>
    %c0_167 = arith.constant 0 : index
    %c0_168 = arith.constant 0 : index
    %260 = vector.load %arg17[%c0_167, %c0_168] : memref<1x40xf32, #tpu.memory_space<vmem>>, vector<1x40xf32>
    %cst_169 = arith.constant dense<0.000000e+00> : vector<8xf32>
    %261 = vector.multi_reduction <add>, %258, %cst_169 [1] : vector<8x40xf32> to vector<8xf32>
    %262 = vector.shape_cast %261 : vector<8xf32> to vector<8x1xf32>
    %cst_170 = arith.constant 4.000000e+01 : f32
    %263 = vector.broadcast %cst_170 : f32 to vector<8x1xf32>
    %264 = arith.divf %262, %263 : vector<8x1xf32>
    %265 = vector.broadcast %264 : vector<8x1xf32> to vector<8x40xf32>
    %266 = arith.subf %258, %265 : vector<8x40xf32>
    %267 = arith.mulf %266, %266 : vector<8x40xf32>
    %cst_171 = arith.constant dense<0.000000e+00> : vector<8xf32>
    %268 = vector.multi_reduction <add>, %267, %cst_171 [1] : vector<8x40xf32> to vector<8xf32>
    %269 = vector.shape_cast %268 : vector<8xf32> to vector<8x1xf32>
    %cst_172 = arith.constant 4.000000e+01 : f32
    %270 = vector.broadcast %cst_172 : f32 to vector<8x1xf32>
    %271 = arith.divf %269, %270 : vector<8x1xf32>
    %272 = vector.broadcast %264 : vector<8x1xf32> to vector<8x40xf32>
    %273 = arith.subf %258, %272 : vector<8x40xf32>
    %cst_173 = arith.constant 9.99999974E-6 : f32
    %274 = vector.broadcast %cst_173 : f32 to vector<8x1xf32>
    %275 = arith.addf %271, %274 : vector<8x1xf32>
    %276 = math.rsqrt %275 : vector<8x1xf32>
    %277 = vector.broadcast %276 : vector<8x1xf32> to vector<8x40xf32>
    %278 = arith.mulf %273, %277 : vector<8x40xf32>
    %279 = vector.broadcast %259 : vector<1x40xf32> to vector<8x40xf32>
    %280 = arith.mulf %278, %279 : vector<8x40xf32>
    %281 = vector.broadcast %260 : vector<1x40xf32> to vector<8x40xf32>
    %282 = arith.addf %280, %281 : vector<8x40xf32>
    %cst_174 = arith.constant 0.000000e+00 : f32
    %283 = vector.broadcast %cst_174 : f32 to vector<8x40xf32>
    %c0_175 = arith.constant 0 : index
    %c0_176 = arith.constant 0 : index
    %c0_177 = arith.constant 0 : index
    %284 = vector.load %arg18[%c0_175, %c0_176, %c0_177] : memref<5x40x8xf32, #tpu.memory_space<vmem>>, vector<1x40x8xf32>
    %285 = vector.shape_cast %284 : vector<1x40x8xf32> to vector<40x8xf32>
    %cst_178 = arith.constant dense<0.000000e+00> : vector<8x8xf32>
    %286 = tpu.matmul %282, %285, %cst_178 {dimension_numbers = #tpu.dot_dimension_numbers<[1], [0], [0], [1], [0, 0, 1, 1], [], []>} : vector<8x40xf32>, vector<40x8xf32>, vector<8x8xf32> -> vector<8x8xf32>
    %c0_179 = arith.constant 0 : index
    %c0_180 = arith.constant 0 : index
    %c0_181 = arith.constant 0 : index
    %287 = vector.load %arg19[%c0_179, %c0_180, %c0_181] : memref<5x1x8xf32, #tpu.memory_space<vmem>>, vector<1x1x8xf32>
    %288 = vector.shape_cast %287 : vector<1x1x8xf32> to vector<1x8xf32>
    %289 = vector.broadcast %288 : vector<1x8xf32> to vector<8x8xf32>
    %290 = arith.addf %286, %289 : vector<8x8xf32>
    %c0_182 = arith.constant 0 : index
    %c0_183 = arith.constant 0 : index
    %c0_184 = arith.constant 0 : index
    %291 = vector.load %arg20[%c0_182, %c0_183, %c0_184] : memref<5x40x8xf32, #tpu.memory_space<vmem>>, vector<1x40x8xf32>
    %292 = vector.shape_cast %291 : vector<1x40x8xf32> to vector<40x8xf32>
    %cst_185 = arith.constant dense<0.000000e+00> : vector<8x8xf32>
    %293 = tpu.matmul %282, %292, %cst_185 {dimension_numbers = #tpu.dot_dimension_numbers<[1], [0], [0], [1], [0, 0, 1, 1], [], []>} : vector<8x40xf32>, vector<40x8xf32>, vector<8x8xf32> -> vector<8x8xf32>
    %c0_186 = arith.constant 0 : index
    %c0_187 = arith.constant 0 : index
    %c0_188 = arith.constant 0 : index
    %294 = vector.load %arg21[%c0_186, %c0_187, %c0_188] : memref<5x1x8xf32, #tpu.memory_space<vmem>>, vector<1x1x8xf32>
    %295 = vector.shape_cast %294 : vector<1x1x8xf32> to vector<1x8xf32>
    %296 = vector.broadcast %295 : vector<1x8xf32> to vector<8x8xf32>
    %297 = arith.addf %293, %296 : vector<8x8xf32>
    %c0_189 = arith.constant 0 : index
    %c0_190 = arith.constant 0 : index
    %c0_191 = arith.constant 0 : index
    %298 = vector.load %arg22[%c0_189, %c0_190, %c0_191] : memref<5x40x8xf32, #tpu.memory_space<vmem>>, vector<1x40x8xf32>
    %299 = vector.shape_cast %298 : vector<1x40x8xf32> to vector<40x8xf32>
    %cst_192 = arith.constant dense<0.000000e+00> : vector<8x8xf32>
    %300 = tpu.matmul %282, %299, %cst_192 {dimension_numbers = #tpu.dot_dimension_numbers<[1], [0], [0], [1], [0, 0, 1, 1], [], []>} : vector<8x40xf32>, vector<40x8xf32>, vector<8x8xf32> -> vector<8x8xf32>
    %c0_193 = arith.constant 0 : index
    %c0_194 = arith.constant 0 : index
    %c0_195 = arith.constant 0 : index
    %301 = vector.load %arg23[%c0_193, %c0_194, %c0_195] : memref<5x1x8xf32, #tpu.memory_space<vmem>>, vector<1x1x8xf32>
    %302 = vector.shape_cast %301 : vector<1x1x8xf32> to vector<1x8xf32>
    %303 = vector.broadcast %302 : vector<1x8xf32> to vector<8x8xf32>
    %304 = arith.addf %300, %303 : vector<8x8xf32>
    %305 = vector.shape_cast %290 : vector<8x8xf32> to vector<1x8x8xf32>
    %306 = vector.shape_cast %297 : vector<8x8xf32> to vector<1x8x8xf32>
    %307 = vector.shape_cast %304 : vector<8x8xf32> to vector<1x8x8xf32>
    %c0_196 = arith.constant 0 : index
    %c0_197 = arith.constant 0 : index
    %c0_198 = arith.constant 0 : index
    %308 = vector.load %arg24[%c0_196, %c0_197, %c0_198] : memref<5x8x40xf32, #tpu.memory_space<vmem>>, vector<1x8x40xf32>
    %309 = vector.shape_cast %308 : vector<1x8x40xf32> to vector<8x40xf32>
    %310 = vector.shape_cast %305 : vector<1x8x8xf32> to vector<8x8xf32>
    %311 = vector.shape_cast %306 : vector<1x8x8xf32> to vector<8x8xf32>
    %cst_199 = arith.constant dense<0.000000e+00> : vector<8x8xf32>
    %312 = tpu.matmul %310, %311, %cst_199 {dimension_numbers = #tpu.dot_dimension_numbers<[1], [1], [0], [0], [0, 0, 1, 0], [], []>} : vector<8x8xf32>, vector<8x8xf32>, vector<8x8xf32> -> vector<8x8xf32>
    %cst_200 = arith.constant dense<0xFF800000> : vector<8xf32>
    %313 = vector.multi_reduction <maximumf>, %312, %cst_200 [1] : vector<8x8xf32> to vector<8xf32>
    %314 = vector.shape_cast %313 : vector<8xf32> to vector<8x1xf32>
    %315 = vector.broadcast %314 : vector<8x1xf32> to vector<8x8xf32>
    %316 = arith.subf %312, %315 : vector<8x8xf32>
    %317 = math.exp %316 : vector<8x8xf32>
    %cst_201 = arith.constant dense<0.000000e+00> : vector<8xf32>
    %318 = vector.multi_reduction <add>, %317, %cst_201 [1] : vector<8x8xf32> to vector<8xf32>
    %319 = vector.shape_cast %318 : vector<8xf32> to vector<8x1xf32>
    %320 = tpu.reciprocal %319 {approx = true} : vector<8x1xf32> -> vector<8x1xf32>
    %321 = vector.broadcast %320 : vector<8x1xf32> to vector<8x8xf32>
    %322 = arith.mulf %317, %321 : vector<8x8xf32>
    %323 = vector.shape_cast %307 : vector<1x8x8xf32> to vector<8x8xf32>
    %cst_202 = arith.constant dense<0.000000e+00> : vector<8x8xf32>
    %324 = tpu.matmul %322, %323, %cst_202 {dimension_numbers = #tpu.dot_dimension_numbers<[1], [0], [0], [1], [0, 0, 1, 1], [], []>} : vector<8x8xf32>, vector<8x8xf32>, vector<8x8xf32> -> vector<8x8xf32>
    %cst_203 = arith.constant dense<0.000000e+00> : vector<8x40xf32>
    %325 = tpu.matmul %324, %309, %cst_203 {dimension_numbers = #tpu.dot_dimension_numbers<[1], [0], [0], [1], [0, 0, 1, 1], [], []>} : vector<8x8xf32>, vector<8x40xf32>, vector<8x40xf32> -> vector<8x40xf32>
    %326 = arith.addf %283, %325 : vector<8x40xf32>
    %c1_204 = arith.constant 1 : index
    %c0_205 = arith.constant 0 : index
    %c0_206 = arith.constant 0 : index
    %327 = vector.load %arg18[%c1_204, %c0_205, %c0_206] : memref<5x40x8xf32, #tpu.memory_space<vmem>>, vector<1x40x8xf32>
    %328 = vector.shape_cast %327 : vector<1x40x8xf32> to vector<40x8xf32>
    %cst_207 = arith.constant dense<0.000000e+00> : vector<8x8xf32>
    %329 = tpu.matmul %282, %328, %cst_207 {dimension_numbers = #tpu.dot_dimension_numbers<[1], [0], [0], [1], [0, 0, 1, 1], [], []>} : vector<8x40xf32>, vector<40x8xf32>, vector<8x8xf32> -> vector<8x8xf32>
    %c1_208 = arith.constant 1 : index
    %c0_209 = arith.constant 0 : index
    %c0_210 = arith.constant 0 : index
    %330 = vector.load %arg19[%c1_208, %c0_209, %c0_210] : memref<5x1x8xf32, #tpu.memory_space<vmem>>, vector<1x1x8xf32>
    %331 = vector.shape_cast %330 : vector<1x1x8xf32> to vector<1x8xf32>
    %332 = vector.broadcast %331 : vector<1x8xf32> to vector<8x8xf32>
    %333 = arith.addf %329, %332 : vector<8x8xf32>
    %c1_211 = arith.constant 1 : index
    %c0_212 = arith.constant 0 : index
    %c0_213 = arith.constant 0 : index
    %334 = vector.load %arg20[%c1_211, %c0_212, %c0_213] : memref<5x40x8xf32, #tpu.memory_space<vmem>>, vector<1x40x8xf32>
    %335 = vector.shape_cast %334 : vector<1x40x8xf32> to vector<40x8xf32>
    %cst_214 = arith.constant dense<0.000000e+00> : vector<8x8xf32>
    %336 = tpu.matmul %282, %335, %cst_214 {dimension_numbers = #tpu.dot_dimension_numbers<[1], [0], [0], [1], [0, 0, 1, 1], [], []>} : vector<8x40xf32>, vector<40x8xf32>, vector<8x8xf32> -> vector<8x8xf32>
    %c1_215 = arith.constant 1 : index
    %c0_216 = arith.constant 0 : index
    %c0_217 = arith.constant 0 : index
    %337 = vector.load %arg21[%c1_215, %c0_216, %c0_217] : memref<5x1x8xf32, #tpu.memory_space<vmem>>, vector<1x1x8xf32>
    %338 = vector.shape_cast %337 : vector<1x1x8xf32> to vector<1x8xf32>
    %339 = vector.broadcast %338 : vector<1x8xf32> to vector<8x8xf32>
    %340 = arith.addf %336, %339 : vector<8x8xf32>
    %c1_218 = arith.constant 1 : index
    %c0_219 = arith.constant 0 : index
    %c0_220 = arith.constant 0 : index
    %341 = vector.load %arg22[%c1_218, %c0_219, %c0_220] : memref<5x40x8xf32, #tpu.memory_space<vmem>>, vector<1x40x8xf32>
    %342 = vector.shape_cast %341 : vector<1x40x8xf32> to vector<40x8xf32>
    %cst_221 = arith.constant dense<0.000000e+00> : vector<8x8xf32>
    %343 = tpu.matmul %282, %342, %cst_221 {dimension_numbers = #tpu.dot_dimension_numbers<[1], [0], [0], [1], [0, 0, 1, 1], [], []>} : vector<8x40xf32>, vector<40x8xf32>, vector<8x8xf32> -> vector<8x8xf32>
    %c1_222 = arith.constant 1 : index
    %c0_223 = arith.constant 0 : index
    %c0_224 = arith.constant 0 : index
    %344 = vector.load %arg23[%c1_222, %c0_223, %c0_224] : memref<5x1x8xf32, #tpu.memory_space<vmem>>, vector<1x1x8xf32>
    %345 = vector.shape_cast %344 : vector<1x1x8xf32> to vector<1x8xf32>
    %346 = vector.broadcast %345 : vector<1x8xf32> to vector<8x8xf32>
    %347 = arith.addf %343, %346 : vector<8x8xf32>
    %348 = vector.shape_cast %333 : vector<8x8xf32> to vector<1x8x8xf32>
    %349 = vector.shape_cast %340 : vector<8x8xf32> to vector<1x8x8xf32>
    %350 = vector.shape_cast %347 : vector<8x8xf32> to vector<1x8x8xf32>
    %c1_225 = arith.constant 1 : index
    %c0_226 = arith.constant 0 : index
    %c0_227 = arith.constant 0 : index
    %351 = vector.load %arg24[%c1_225, %c0_226, %c0_227] : memref<5x8x40xf32, #tpu.memory_space<vmem>>, vector<1x8x40xf32>
    %352 = vector.shape_cast %351 : vector<1x8x40xf32> to vector<8x40xf32>
    %353 = vector.shape_cast %348 : vector<1x8x8xf32> to vector<8x8xf32>
    %354 = vector.shape_cast %349 : vector<1x8x8xf32> to vector<8x8xf32>
    %cst_228 = arith.constant dense<0.000000e+00> : vector<8x8xf32>
    %355 = tpu.matmul %353, %354, %cst_228 {dimension_numbers = #tpu.dot_dimension_numbers<[1], [1], [0], [0], [0, 0, 1, 0], [], []>} : vector<8x8xf32>, vector<8x8xf32>, vector<8x8xf32> -> vector<8x8xf32>
    %cst_229 = arith.constant dense<0xFF800000> : vector<8xf32>
    %356 = vector.multi_reduction <maximumf>, %355, %cst_229 [1] : vector<8x8xf32> to vector<8xf32>
    %357 = vector.shape_cast %356 : vector<8xf32> to vector<8x1xf32>
    %358 = vector.broadcast %357 : vector<8x1xf32> to vector<8x8xf32>
    %359 = arith.subf %355, %358 : vector<8x8xf32>
    %360 = math.exp %359 : vector<8x8xf32>
    %cst_230 = arith.constant dense<0.000000e+00> : vector<8xf32>
    %361 = vector.multi_reduction <add>, %360, %cst_230 [1] : vector<8x8xf32> to vector<8xf32>
    %362 = vector.shape_cast %361 : vector<8xf32> to vector<8x1xf32>
    %363 = tpu.reciprocal %362 {approx = true} : vector<8x1xf32> -> vector<8x1xf32>
    %364 = vector.broadcast %363 : vector<8x1xf32> to vector<8x8xf32>
    %365 = arith.mulf %360, %364 : vector<8x8xf32>
    %366 = vector.shape_cast %350 : vector<1x8x8xf32> to vector<8x8xf32>
    %cst_231 = arith.constant dense<0.000000e+00> : vector<8x8xf32>
    %367 = tpu.matmul %365, %366, %cst_231 {dimension_numbers = #tpu.dot_dimension_numbers<[1], [0], [0], [1], [0, 0, 1, 1], [], []>} : vector<8x8xf32>, vector<8x8xf32>, vector<8x8xf32> -> vector<8x8xf32>
    %cst_232 = arith.constant dense<0.000000e+00> : vector<8x40xf32>
    %368 = tpu.matmul %367, %352, %cst_232 {dimension_numbers = #tpu.dot_dimension_numbers<[1], [0], [0], [1], [0, 0, 1, 1], [], []>} : vector<8x8xf32>, vector<8x40xf32>, vector<8x40xf32> -> vector<8x40xf32>
    %369 = arith.addf %326, %368 : vector<8x40xf32>
    %c2_233 = arith.constant 2 : index
    %c0_234 = arith.constant 0 : index
    %c0_235 = arith.constant 0 : index
    %370 = vector.load %arg18[%c2_233, %c0_234, %c0_235] : memref<5x40x8xf32, #tpu.memory_space<vmem>>, vector<1x40x8xf32>
    %371 = vector.shape_cast %370 : vector<1x40x8xf32> to vector<40x8xf32>
    %cst_236 = arith.constant dense<0.000000e+00> : vector<8x8xf32>
    %372 = tpu.matmul %282, %371, %cst_236 {dimension_numbers = #tpu.dot_dimension_numbers<[1], [0], [0], [1], [0, 0, 1, 1], [], []>} : vector<8x40xf32>, vector<40x8xf32>, vector<8x8xf32> -> vector<8x8xf32>
    %c2_237 = arith.constant 2 : index
    %c0_238 = arith.constant 0 : index
    %c0_239 = arith.constant 0 : index
    %373 = vector.load %arg19[%c2_237, %c0_238, %c0_239] : memref<5x1x8xf32, #tpu.memory_space<vmem>>, vector<1x1x8xf32>
    %374 = vector.shape_cast %373 : vector<1x1x8xf32> to vector<1x8xf32>
    %375 = vector.broadcast %374 : vector<1x8xf32> to vector<8x8xf32>
    %376 = arith.addf %372, %375 : vector<8x8xf32>
    %c2_240 = arith.constant 2 : index
    %c0_241 = arith.constant 0 : index
    %c0_242 = arith.constant 0 : index
    %377 = vector.load %arg20[%c2_240, %c0_241, %c0_242] : memref<5x40x8xf32, #tpu.memory_space<vmem>>, vector<1x40x8xf32>
    %378 = vector.shape_cast %377 : vector<1x40x8xf32> to vector<40x8xf32>
    %cst_243 = arith.constant dense<0.000000e+00> : vector<8x8xf32>
    %379 = tpu.matmul %282, %378, %cst_243 {dimension_numbers = #tpu.dot_dimension_numbers<[1], [0], [0], [1], [0, 0, 1, 1], [], []>} : vector<8x40xf32>, vector<40x8xf32>, vector<8x8xf32> -> vector<8x8xf32>
    %c2_244 = arith.constant 2 : index
    %c0_245 = arith.constant 0 : index
    %c0_246 = arith.constant 0 : index
    %380 = vector.load %arg21[%c2_244, %c0_245, %c0_246] : memref<5x1x8xf32, #tpu.memory_space<vmem>>, vector<1x1x8xf32>
    %381 = vector.shape_cast %380 : vector<1x1x8xf32> to vector<1x8xf32>
    %382 = vector.broadcast %381 : vector<1x8xf32> to vector<8x8xf32>
    %383 = arith.addf %379, %382 : vector<8x8xf32>
    %c2_247 = arith.constant 2 : index
    %c0_248 = arith.constant 0 : index
    %c0_249 = arith.constant 0 : index
    %384 = vector.load %arg22[%c2_247, %c0_248, %c0_249] : memref<5x40x8xf32, #tpu.memory_space<vmem>>, vector<1x40x8xf32>
    %385 = vector.shape_cast %384 : vector<1x40x8xf32> to vector<40x8xf32>
    %cst_250 = arith.constant dense<0.000000e+00> : vector<8x8xf32>
    %386 = tpu.matmul %282, %385, %cst_250 {dimension_numbers = #tpu.dot_dimension_numbers<[1], [0], [0], [1], [0, 0, 1, 1], [], []>} : vector<8x40xf32>, vector<40x8xf32>, vector<8x8xf32> -> vector<8x8xf32>
    %c2_251 = arith.constant 2 : index
    %c0_252 = arith.constant 0 : index
    %c0_253 = arith.constant 0 : index
    %387 = vector.load %arg23[%c2_251, %c0_252, %c0_253] : memref<5x1x8xf32, #tpu.memory_space<vmem>>, vector<1x1x8xf32>
    %388 = vector.shape_cast %387 : vector<1x1x8xf32> to vector<1x8xf32>
    %389 = vector.broadcast %388 : vector<1x8xf32> to vector<8x8xf32>
    %390 = arith.addf %386, %389 : vector<8x8xf32>
    %391 = vector.shape_cast %376 : vector<8x8xf32> to vector<1x8x8xf32>
    %392 = vector.shape_cast %383 : vector<8x8xf32> to vector<1x8x8xf32>
    %393 = vector.shape_cast %390 : vector<8x8xf32> to vector<1x8x8xf32>
    %c2_254 = arith.constant 2 : index
    %c0_255 = arith.constant 0 : index
    %c0_256 = arith.constant 0 : index
    %394 = vector.load %arg24[%c2_254, %c0_255, %c0_256] : memref<5x8x40xf32, #tpu.memory_space<vmem>>, vector<1x8x40xf32>
    %395 = vector.shape_cast %394 : vector<1x8x40xf32> to vector<8x40xf32>
    %396 = vector.shape_cast %391 : vector<1x8x8xf32> to vector<8x8xf32>
    %397 = vector.shape_cast %392 : vector<1x8x8xf32> to vector<8x8xf32>
    %cst_257 = arith.constant dense<0.000000e+00> : vector<8x8xf32>
    %398 = tpu.matmul %396, %397, %cst_257 {dimension_numbers = #tpu.dot_dimension_numbers<[1], [1], [0], [0], [0, 0, 1, 0], [], []>} : vector<8x8xf32>, vector<8x8xf32>, vector<8x8xf32> -> vector<8x8xf32>
    %cst_258 = arith.constant dense<0xFF800000> : vector<8xf32>
    %399 = vector.multi_reduction <maximumf>, %398, %cst_258 [1] : vector<8x8xf32> to vector<8xf32>
    %400 = vector.shape_cast %399 : vector<8xf32> to vector<8x1xf32>
    %401 = vector.broadcast %400 : vector<8x1xf32> to vector<8x8xf32>
    %402 = arith.subf %398, %401 : vector<8x8xf32>
    %403 = math.exp %402 : vector<8x8xf32>
    %cst_259 = arith.constant dense<0.000000e+00> : vector<8xf32>
    %404 = vector.multi_reduction <add>, %403, %cst_259 [1] : vector<8x8xf32> to vector<8xf32>
    %405 = vector.shape_cast %404 : vector<8xf32> to vector<8x1xf32>
    %406 = tpu.reciprocal %405 {approx = true} : vector<8x1xf32> -> vector<8x1xf32>
    %407 = vector.broadcast %406 : vector<8x1xf32> to vector<8x8xf32>
    %408 = arith.mulf %403, %407 : vector<8x8xf32>
    %409 = vector.shape_cast %393 : vector<1x8x8xf32> to vector<8x8xf32>
    %cst_260 = arith.constant dense<0.000000e+00> : vector<8x8xf32>
    %410 = tpu.matmul %408, %409, %cst_260 {dimension_numbers = #tpu.dot_dimension_numbers<[1], [0], [0], [1], [0, 0, 1, 1], [], []>} : vector<8x8xf32>, vector<8x8xf32>, vector<8x8xf32> -> vector<8x8xf32>
    %cst_261 = arith.constant dense<0.000000e+00> : vector<8x40xf32>
    %411 = tpu.matmul %410, %395, %cst_261 {dimension_numbers = #tpu.dot_dimension_numbers<[1], [0], [0], [1], [0, 0, 1, 1], [], []>} : vector<8x8xf32>, vector<8x40xf32>, vector<8x40xf32> -> vector<8x40xf32>
    %412 = arith.addf %369, %411 : vector<8x40xf32>
    %c3_262 = arith.constant 3 : index
    %c0_263 = arith.constant 0 : index
    %c0_264 = arith.constant 0 : index
    %413 = vector.load %arg18[%c3_262, %c0_263, %c0_264] : memref<5x40x8xf32, #tpu.memory_space<vmem>>, vector<1x40x8xf32>
    %414 = vector.shape_cast %413 : vector<1x40x8xf32> to vector<40x8xf32>
    %cst_265 = arith.constant dense<0.000000e+00> : vector<8x8xf32>
    %415 = tpu.matmul %282, %414, %cst_265 {dimension_numbers = #tpu.dot_dimension_numbers<[1], [0], [0], [1], [0, 0, 1, 1], [], []>} : vector<8x40xf32>, vector<40x8xf32>, vector<8x8xf32> -> vector<8x8xf32>
    %c3_266 = arith.constant 3 : index
    %c0_267 = arith.constant 0 : index
    %c0_268 = arith.constant 0 : index
    %416 = vector.load %arg19[%c3_266, %c0_267, %c0_268] : memref<5x1x8xf32, #tpu.memory_space<vmem>>, vector<1x1x8xf32>
    %417 = vector.shape_cast %416 : vector<1x1x8xf32> to vector<1x8xf32>
    %418 = vector.broadcast %417 : vector<1x8xf32> to vector<8x8xf32>
    %419 = arith.addf %415, %418 : vector<8x8xf32>
    %c3_269 = arith.constant 3 : index
    %c0_270 = arith.constant 0 : index
    %c0_271 = arith.constant 0 : index
    %420 = vector.load %arg20[%c3_269, %c0_270, %c0_271] : memref<5x40x8xf32, #tpu.memory_space<vmem>>, vector<1x40x8xf32>
    %421 = vector.shape_cast %420 : vector<1x40x8xf32> to vector<40x8xf32>
    %cst_272 = arith.constant dense<0.000000e+00> : vector<8x8xf32>
    %422 = tpu.matmul %282, %421, %cst_272 {dimension_numbers = #tpu.dot_dimension_numbers<[1], [0], [0], [1], [0, 0, 1, 1], [], []>} : vector<8x40xf32>, vector<40x8xf32>, vector<8x8xf32> -> vector<8x8xf32>
    %c3_273 = arith.constant 3 : index
    %c0_274 = arith.constant 0 : index
    %c0_275 = arith.constant 0 : index
    %423 = vector.load %arg21[%c3_273, %c0_274, %c0_275] : memref<5x1x8xf32, #tpu.memory_space<vmem>>, vector<1x1x8xf32>
    %424 = vector.shape_cast %423 : vector<1x1x8xf32> to vector<1x8xf32>
    %425 = vector.broadcast %424 : vector<1x8xf32> to vector<8x8xf32>
    %426 = arith.addf %422, %425 : vector<8x8xf32>
    %c3_276 = arith.constant 3 : index
    %c0_277 = arith.constant 0 : index
    %c0_278 = arith.constant 0 : index
    %427 = vector.load %arg22[%c3_276, %c0_277, %c0_278] : memref<5x40x8xf32, #tpu.memory_space<vmem>>, vector<1x40x8xf32>
    %428 = vector.shape_cast %427 : vector<1x40x8xf32> to vector<40x8xf32>
    %cst_279 = arith.constant dense<0.000000e+00> : vector<8x8xf32>
    %429 = tpu.matmul %282, %428, %cst_279 {dimension_numbers = #tpu.dot_dimension_numbers<[1], [0], [0], [1], [0, 0, 1, 1], [], []>} : vector<8x40xf32>, vector<40x8xf32>, vector<8x8xf32> -> vector<8x8xf32>
    %c3_280 = arith.constant 3 : index
    %c0_281 = arith.constant 0 : index
    %c0_282 = arith.constant 0 : index
    %430 = vector.load %arg23[%c3_280, %c0_281, %c0_282] : memref<5x1x8xf32, #tpu.memory_space<vmem>>, vector<1x1x8xf32>
    %431 = vector.shape_cast %430 : vector<1x1x8xf32> to vector<1x8xf32>
    %432 = vector.broadcast %431 : vector<1x8xf32> to vector<8x8xf32>
    %433 = arith.addf %429, %432 : vector<8x8xf32>
    %434 = vector.shape_cast %419 : vector<8x8xf32> to vector<1x8x8xf32>
    %435 = vector.shape_cast %426 : vector<8x8xf32> to vector<1x8x8xf32>
    %436 = vector.shape_cast %433 : vector<8x8xf32> to vector<1x8x8xf32>
    %c3_283 = arith.constant 3 : index
    %c0_284 = arith.constant 0 : index
    %c0_285 = arith.constant 0 : index
    %437 = vector.load %arg24[%c3_283, %c0_284, %c0_285] : memref<5x8x40xf32, #tpu.memory_space<vmem>>, vector<1x8x40xf32>
    %438 = vector.shape_cast %437 : vector<1x8x40xf32> to vector<8x40xf32>
    %439 = vector.shape_cast %434 : vector<1x8x8xf32> to vector<8x8xf32>
    %440 = vector.shape_cast %435 : vector<1x8x8xf32> to vector<8x8xf32>
    %cst_286 = arith.constant dense<0.000000e+00> : vector<8x8xf32>
    %441 = tpu.matmul %439, %440, %cst_286 {dimension_numbers = #tpu.dot_dimension_numbers<[1], [1], [0], [0], [0, 0, 1, 0], [], []>} : vector<8x8xf32>, vector<8x8xf32>, vector<8x8xf32> -> vector<8x8xf32>
    %cst_287 = arith.constant dense<0xFF800000> : vector<8xf32>
    %442 = vector.multi_reduction <maximumf>, %441, %cst_287 [1] : vector<8x8xf32> to vector<8xf32>
    %443 = vector.shape_cast %442 : vector<8xf32> to vector<8x1xf32>
    %444 = vector.broadcast %443 : vector<8x1xf32> to vector<8x8xf32>
    %445 = arith.subf %441, %444 : vector<8x8xf32>
    %446 = math.exp %445 : vector<8x8xf32>
    %cst_288 = arith.constant dense<0.000000e+00> : vector<8xf32>
    %447 = vector.multi_reduction <add>, %446, %cst_288 [1] : vector<8x8xf32> to vector<8xf32>
    %448 = vector.shape_cast %447 : vector<8xf32> to vector<8x1xf32>
    %449 = tpu.reciprocal %448 {approx = true} : vector<8x1xf32> -> vector<8x1xf32>
    %450 = vector.broadcast %449 : vector<8x1xf32> to vector<8x8xf32>
    %451 = arith.mulf %446, %450 : vector<8x8xf32>
    %452 = vector.shape_cast %436 : vector<1x8x8xf32> to vector<8x8xf32>
    %cst_289 = arith.constant dense<0.000000e+00> : vector<8x8xf32>
    %453 = tpu.matmul %451, %452, %cst_289 {dimension_numbers = #tpu.dot_dimension_numbers<[1], [0], [0], [1], [0, 0, 1, 1], [], []>} : vector<8x8xf32>, vector<8x8xf32>, vector<8x8xf32> -> vector<8x8xf32>
    %cst_290 = arith.constant dense<0.000000e+00> : vector<8x40xf32>
    %454 = tpu.matmul %453, %438, %cst_290 {dimension_numbers = #tpu.dot_dimension_numbers<[1], [0], [0], [1], [0, 0, 1, 1], [], []>} : vector<8x8xf32>, vector<8x40xf32>, vector<8x40xf32> -> vector<8x40xf32>
    %455 = arith.addf %412, %454 : vector<8x40xf32>
    %c4_291 = arith.constant 4 : index
    %c0_292 = arith.constant 0 : index
    %c0_293 = arith.constant 0 : index
    %456 = vector.load %arg18[%c4_291, %c0_292, %c0_293] : memref<5x40x8xf32, #tpu.memory_space<vmem>>, vector<1x40x8xf32>
    %457 = vector.shape_cast %456 : vector<1x40x8xf32> to vector<40x8xf32>
    %cst_294 = arith.constant dense<0.000000e+00> : vector<8x8xf32>
    %458 = tpu.matmul %282, %457, %cst_294 {dimension_numbers = #tpu.dot_dimension_numbers<[1], [0], [0], [1], [0, 0, 1, 1], [], []>} : vector<8x40xf32>, vector<40x8xf32>, vector<8x8xf32> -> vector<8x8xf32>
    %c4_295 = arith.constant 4 : index
    %c0_296 = arith.constant 0 : index
    %c0_297 = arith.constant 0 : index
    %459 = vector.load %arg19[%c4_295, %c0_296, %c0_297] : memref<5x1x8xf32, #tpu.memory_space<vmem>>, vector<1x1x8xf32>
    %460 = vector.shape_cast %459 : vector<1x1x8xf32> to vector<1x8xf32>
    %461 = vector.broadcast %460 : vector<1x8xf32> to vector<8x8xf32>
    %462 = arith.addf %458, %461 : vector<8x8xf32>
    %c4_298 = arith.constant 4 : index
    %c0_299 = arith.constant 0 : index
    %c0_300 = arith.constant 0 : index
    %463 = vector.load %arg20[%c4_298, %c0_299, %c0_300] : memref<5x40x8xf32, #tpu.memory_space<vmem>>, vector<1x40x8xf32>
    %464 = vector.shape_cast %463 : vector<1x40x8xf32> to vector<40x8xf32>
    %cst_301 = arith.constant dense<0.000000e+00> : vector<8x8xf32>
    %465 = tpu.matmul %282, %464, %cst_301 {dimension_numbers = #tpu.dot_dimension_numbers<[1], [0], [0], [1], [0, 0, 1, 1], [], []>} : vector<8x40xf32>, vector<40x8xf32>, vector<8x8xf32> -> vector<8x8xf32>
    %c4_302 = arith.constant 4 : index
    %c0_303 = arith.constant 0 : index
    %c0_304 = arith.constant 0 : index
    %466 = vector.load %arg21[%c4_302, %c0_303, %c0_304] : memref<5x1x8xf32, #tpu.memory_space<vmem>>, vector<1x1x8xf32>
    %467 = vector.shape_cast %466 : vector<1x1x8xf32> to vector<1x8xf32>
    %468 = vector.broadcast %467 : vector<1x8xf32> to vector<8x8xf32>
    %469 = arith.addf %465, %468 : vector<8x8xf32>
    %c4_305 = arith.constant 4 : index
    %c0_306 = arith.constant 0 : index
    %c0_307 = arith.constant 0 : index
    %470 = vector.load %arg22[%c4_305, %c0_306, %c0_307] : memref<5x40x8xf32, #tpu.memory_space<vmem>>, vector<1x40x8xf32>
    %471 = vector.shape_cast %470 : vector<1x40x8xf32> to vector<40x8xf32>
    %cst_308 = arith.constant dense<0.000000e+00> : vector<8x8xf32>
    %472 = tpu.matmul %282, %471, %cst_308 {dimension_numbers = #tpu.dot_dimension_numbers<[1], [0], [0], [1], [0, 0, 1, 1], [], []>} : vector<8x40xf32>, vector<40x8xf32>, vector<8x8xf32> -> vector<8x8xf32>
    %c4_309 = arith.constant 4 : index
    %c0_310 = arith.constant 0 : index
    %c0_311 = arith.constant 0 : index
    %473 = vector.load %arg23[%c4_309, %c0_310, %c0_311] : memref<5x1x8xf32, #tpu.memory_space<vmem>>, vector<1x1x8xf32>
    %474 = vector.shape_cast %473 : vector<1x1x8xf32> to vector<1x8xf32>
    %475 = vector.broadcast %474 : vector<1x8xf32> to vector<8x8xf32>
    %476 = arith.addf %472, %475 : vector<8x8xf32>
    %477 = vector.shape_cast %462 : vector<8x8xf32> to vector<1x8x8xf32>
    %478 = vector.shape_cast %469 : vector<8x8xf32> to vector<1x8x8xf32>
    %479 = vector.shape_cast %476 : vector<8x8xf32> to vector<1x8x8xf32>
    %c4_312 = arith.constant 4 : index
    %c0_313 = arith.constant 0 : index
    %c0_314 = arith.constant 0 : index
    %480 = vector.load %arg24[%c4_312, %c0_313, %c0_314] : memref<5x8x40xf32, #tpu.memory_space<vmem>>, vector<1x8x40xf32>
    %481 = vector.shape_cast %480 : vector<1x8x40xf32> to vector<8x40xf32>
    %482 = vector.shape_cast %477 : vector<1x8x8xf32> to vector<8x8xf32>
    %483 = vector.shape_cast %478 : vector<1x8x8xf32> to vector<8x8xf32>
    %cst_315 = arith.constant dense<0.000000e+00> : vector<8x8xf32>
    %484 = tpu.matmul %482, %483, %cst_315 {dimension_numbers = #tpu.dot_dimension_numbers<[1], [1], [0], [0], [0, 0, 1, 0], [], []>} : vector<8x8xf32>, vector<8x8xf32>, vector<8x8xf32> -> vector<8x8xf32>
    %cst_316 = arith.constant dense<0xFF800000> : vector<8xf32>
    %485 = vector.multi_reduction <maximumf>, %484, %cst_316 [1] : vector<8x8xf32> to vector<8xf32>
    %486 = vector.shape_cast %485 : vector<8xf32> to vector<8x1xf32>
    %487 = vector.broadcast %486 : vector<8x1xf32> to vector<8x8xf32>
    %488 = arith.subf %484, %487 : vector<8x8xf32>
    %489 = math.exp %488 : vector<8x8xf32>
    %cst_317 = arith.constant dense<0.000000e+00> : vector<8xf32>
    %490 = vector.multi_reduction <add>, %489, %cst_317 [1] : vector<8x8xf32> to vector<8xf32>
    %491 = vector.shape_cast %490 : vector<8xf32> to vector<8x1xf32>
    %492 = tpu.reciprocal %491 {approx = true} : vector<8x1xf32> -> vector<8x1xf32>
    %493 = vector.broadcast %492 : vector<8x1xf32> to vector<8x8xf32>
    %494 = arith.mulf %489, %493 : vector<8x8xf32>
    %495 = vector.shape_cast %479 : vector<1x8x8xf32> to vector<8x8xf32>
    %cst_318 = arith.constant dense<0.000000e+00> : vector<8x8xf32>
    %496 = tpu.matmul %494, %495, %cst_318 {dimension_numbers = #tpu.dot_dimension_numbers<[1], [0], [0], [1], [0, 0, 1, 1], [], []>} : vector<8x8xf32>, vector<8x8xf32>, vector<8x8xf32> -> vector<8x8xf32>
    %cst_319 = arith.constant dense<0.000000e+00> : vector<8x40xf32>
    %497 = tpu.matmul %496, %481, %cst_319 {dimension_numbers = #tpu.dot_dimension_numbers<[1], [0], [0], [1], [0, 0, 1, 1], [], []>} : vector<8x8xf32>, vector<8x40xf32>, vector<8x40xf32> -> vector<8x40xf32>
    %498 = arith.addf %455, %497 : vector<8x40xf32>
    %c0_320 = arith.constant 0 : index
    %c0_321 = arith.constant 0 : index
    %499 = vector.load %arg25[%c0_320, %c0_321] : memref<1x40xf32, #tpu.memory_space<vmem>>, vector<1x40xf32>
    %500 = vector.broadcast %499 : vector<1x40xf32> to vector<8x40xf32>
    %501 = arith.addf %498, %500 : vector<8x40xf32>
    %502 = arith.addf %282, %501 : vector<8x40xf32>
    %c0_322 = arith.constant 0 : index
    %c0_323 = arith.constant 0 : index
    %503 = vector.load %arg30[%c0_322, %c0_323] : memref<1x40xf32, #tpu.memory_space<vmem>>, vector<1x40xf32>
    %c0_324 = arith.constant 0 : index
    %c0_325 = arith.constant 0 : index
    %504 = vector.load %arg31[%c0_324, %c0_325] : memref<1x40xf32, #tpu.memory_space<vmem>>, vector<1x40xf32>
    %cst_326 = arith.constant dense<0.000000e+00> : vector<8xf32>
    %505 = vector.multi_reduction <add>, %502, %cst_326 [1] : vector<8x40xf32> to vector<8xf32>
    %506 = vector.shape_cast %505 : vector<8xf32> to vector<8x1xf32>
    %cst_327 = arith.constant 4.000000e+01 : f32
    %507 = vector.broadcast %cst_327 : f32 to vector<8x1xf32>
    %508 = arith.divf %506, %507 : vector<8x1xf32>
    %509 = vector.broadcast %508 : vector<8x1xf32> to vector<8x40xf32>
    %510 = arith.subf %502, %509 : vector<8x40xf32>
    %511 = arith.mulf %510, %510 : vector<8x40xf32>
    %cst_328 = arith.constant dense<0.000000e+00> : vector<8xf32>
    %512 = vector.multi_reduction <add>, %511, %cst_328 [1] : vector<8x40xf32> to vector<8xf32>
    %513 = vector.shape_cast %512 : vector<8xf32> to vector<8x1xf32>
    %cst_329 = arith.constant 4.000000e+01 : f32
    %514 = vector.broadcast %cst_329 : f32 to vector<8x1xf32>
    %515 = arith.divf %513, %514 : vector<8x1xf32>
    %516 = vector.broadcast %508 : vector<8x1xf32> to vector<8x40xf32>
    %517 = arith.subf %502, %516 : vector<8x40xf32>
    %cst_330 = arith.constant 9.99999974E-6 : f32
    %518 = vector.broadcast %cst_330 : f32 to vector<8x1xf32>
    %519 = arith.addf %515, %518 : vector<8x1xf32>
    %520 = math.rsqrt %519 : vector<8x1xf32>
    %521 = vector.broadcast %520 : vector<8x1xf32> to vector<8x40xf32>
    %522 = arith.mulf %517, %521 : vector<8x40xf32>
    %523 = vector.broadcast %503 : vector<1x40xf32> to vector<8x40xf32>
    %524 = arith.mulf %522, %523 : vector<8x40xf32>
    %525 = vector.broadcast %504 : vector<1x40xf32> to vector<8x40xf32>
    %526 = arith.addf %524, %525 : vector<8x40xf32>
    %c0_331 = arith.constant 0 : index
    %c0_332 = arith.constant 0 : index
    %527 = vector.load %arg26[%c0_331, %c0_332] : memref<40x2048xf32, #tpu.memory_space<vmem>>, vector<40x2048xf32>
    %cst_333 = arith.constant dense<0.000000e+00> : vector<8x2048xf32>
    %528 = tpu.matmul %526, %527, %cst_333 {dimension_numbers = #tpu.dot_dimension_numbers<[1], [0], [0], [1], [0, 0, 1, 1], [], []>} : vector<8x40xf32>, vector<40x2048xf32>, vector<8x2048xf32> -> vector<8x2048xf32>
    %c0_334 = arith.constant 0 : index
    %c0_335 = arith.constant 0 : index
    %529 = vector.load %arg27[%c0_334, %c0_335] : memref<1x2048xf32, #tpu.memory_space<vmem>>, vector<1x2048xf32>
    %530 = vector.broadcast %529 : vector<1x2048xf32> to vector<8x2048xf32>
    %531 = arith.addf %528, %530 : vector<8x2048xf32>
    %cst_336 = arith.constant 0.000000e+00 : f32
    %532 = vector.broadcast %cst_336 : f32 to vector<8x2048xf32>
    %533 = arith.maximumf %531, %532 : vector<8x2048xf32>
    %c0_337 = arith.constant 0 : index
    %c0_338 = arith.constant 0 : index
    %534 = vector.load %arg28[%c0_337, %c0_338] : memref<2048x40xf32, #tpu.memory_space<vmem>>, vector<2048x40xf32>
    %cst_339 = arith.constant dense<0.000000e+00> : vector<8x40xf32>
    %535 = tpu.matmul %533, %534, %cst_339 {dimension_numbers = #tpu.dot_dimension_numbers<[1], [0], [0], [1], [0, 0, 1, 1], [], []>} : vector<8x2048xf32>, vector<2048x40xf32>, vector<8x40xf32> -> vector<8x40xf32>
    %c0_340 = arith.constant 0 : index
    %c0_341 = arith.constant 0 : index
    %536 = vector.load %arg29[%c0_340, %c0_341] : memref<1x40xf32, #tpu.memory_space<vmem>>, vector<1x40xf32>
    %537 = vector.broadcast %536 : vector<1x40xf32> to vector<8x40xf32>
    %538 = arith.addf %535, %537 : vector<8x40xf32>
    %539 = arith.addf %526, %538 : vector<8x40xf32>
    %c0_342 = arith.constant 0 : index
    %c0_343 = arith.constant 0 : index
    %540 = vector.load %arg32[%c0_342, %c0_343] : memref<1x40xf32, #tpu.memory_space<vmem>>, vector<1x40xf32>
    %c0_344 = arith.constant 0 : index
    %c0_345 = arith.constant 0 : index
    %541 = vector.load %arg33[%c0_344, %c0_345] : memref<1x40xf32, #tpu.memory_space<vmem>>, vector<1x40xf32>
    %cst_346 = arith.constant dense<0.000000e+00> : vector<8xf32>
    %542 = vector.multi_reduction <add>, %539, %cst_346 [1] : vector<8x40xf32> to vector<8xf32>
    %543 = vector.shape_cast %542 : vector<8xf32> to vector<8x1xf32>
    %cst_347 = arith.constant 4.000000e+01 : f32
    %544 = vector.broadcast %cst_347 : f32 to vector<8x1xf32>
    %545 = arith.divf %543, %544 : vector<8x1xf32>
    %546 = vector.broadcast %545 : vector<8x1xf32> to vector<8x40xf32>
    %547 = arith.subf %539, %546 : vector<8x40xf32>
    %548 = arith.mulf %547, %547 : vector<8x40xf32>
    %cst_348 = arith.constant dense<0.000000e+00> : vector<8xf32>
    %549 = vector.multi_reduction <add>, %548, %cst_348 [1] : vector<8x40xf32> to vector<8xf32>
    %550 = vector.shape_cast %549 : vector<8xf32> to vector<8x1xf32>
    %cst_349 = arith.constant 4.000000e+01 : f32
    %551 = vector.broadcast %cst_349 : f32 to vector<8x1xf32>
    %552 = arith.divf %550, %551 : vector<8x1xf32>
    %553 = vector.broadcast %545 : vector<8x1xf32> to vector<8x40xf32>
    %554 = arith.subf %539, %553 : vector<8x40xf32>
    %cst_350 = arith.constant 9.99999974E-6 : f32
    %555 = vector.broadcast %cst_350 : f32 to vector<8x1xf32>
    %556 = arith.addf %552, %555 : vector<8x1xf32>
    %557 = math.rsqrt %556 : vector<8x1xf32>
    %558 = vector.broadcast %557 : vector<8x1xf32> to vector<8x40xf32>
    %559 = arith.mulf %554, %558 : vector<8x40xf32>
    %560 = vector.broadcast %540 : vector<1x40xf32> to vector<8x40xf32>
    %561 = arith.mulf %559, %560 : vector<8x40xf32>
    %562 = vector.broadcast %541 : vector<1x40xf32> to vector<8x40xf32>
    %563 = arith.addf %561, %562 : vector<8x40xf32>
    %cst_351 = arith.constant 0.000000e+00 : f32
    %564 = vector.broadcast %cst_351 : f32 to vector<8x40xf32>
    %c0_352 = arith.constant 0 : index
    %c0_353 = arith.constant 0 : index
    %c0_354 = arith.constant 0 : index
    %565 = vector.load %arg34[%c0_352, %c0_353, %c0_354] : memref<5x40x8xf32, #tpu.memory_space<vmem>>, vector<1x40x8xf32>
    %566 = vector.shape_cast %565 : vector<1x40x8xf32> to vector<40x8xf32>
    %cst_355 = arith.constant dense<0.000000e+00> : vector<8x8xf32>
    %567 = tpu.matmul %563, %566, %cst_355 {dimension_numbers = #tpu.dot_dimension_numbers<[1], [0], [0], [1], [0, 0, 1, 1], [], []>} : vector<8x40xf32>, vector<40x8xf32>, vector<8x8xf32> -> vector<8x8xf32>
    %c0_356 = arith.constant 0 : index
    %c0_357 = arith.constant 0 : index
    %c0_358 = arith.constant 0 : index
    %568 = vector.load %arg35[%c0_356, %c0_357, %c0_358] : memref<5x1x8xf32, #tpu.memory_space<vmem>>, vector<1x1x8xf32>
    %569 = vector.shape_cast %568 : vector<1x1x8xf32> to vector<1x8xf32>
    %570 = vector.broadcast %569 : vector<1x8xf32> to vector<8x8xf32>
    %571 = arith.addf %567, %570 : vector<8x8xf32>
    %c0_359 = arith.constant 0 : index
    %c0_360 = arith.constant 0 : index
    %c0_361 = arith.constant 0 : index
    %572 = vector.load %arg36[%c0_359, %c0_360, %c0_361] : memref<5x40x8xf32, #tpu.memory_space<vmem>>, vector<1x40x8xf32>
    %573 = vector.shape_cast %572 : vector<1x40x8xf32> to vector<40x8xf32>
    %cst_362 = arith.constant dense<0.000000e+00> : vector<8x8xf32>
    %574 = tpu.matmul %563, %573, %cst_362 {dimension_numbers = #tpu.dot_dimension_numbers<[1], [0], [0], [1], [0, 0, 1, 1], [], []>} : vector<8x40xf32>, vector<40x8xf32>, vector<8x8xf32> -> vector<8x8xf32>
    %c0_363 = arith.constant 0 : index
    %c0_364 = arith.constant 0 : index
    %c0_365 = arith.constant 0 : index
    %575 = vector.load %arg37[%c0_363, %c0_364, %c0_365] : memref<5x1x8xf32, #tpu.memory_space<vmem>>, vector<1x1x8xf32>
    %576 = vector.shape_cast %575 : vector<1x1x8xf32> to vector<1x8xf32>
    %577 = vector.broadcast %576 : vector<1x8xf32> to vector<8x8xf32>
    %578 = arith.addf %574, %577 : vector<8x8xf32>
    %c0_366 = arith.constant 0 : index
    %c0_367 = arith.constant 0 : index
    %c0_368 = arith.constant 0 : index
    %579 = vector.load %arg38[%c0_366, %c0_367, %c0_368] : memref<5x40x8xf32, #tpu.memory_space<vmem>>, vector<1x40x8xf32>
    %580 = vector.shape_cast %579 : vector<1x40x8xf32> to vector<40x8xf32>
    %cst_369 = arith.constant dense<0.000000e+00> : vector<8x8xf32>
    %581 = tpu.matmul %563, %580, %cst_369 {dimension_numbers = #tpu.dot_dimension_numbers<[1], [0], [0], [1], [0, 0, 1, 1], [], []>} : vector<8x40xf32>, vector<40x8xf32>, vector<8x8xf32> -> vector<8x8xf32>
    %c0_370 = arith.constant 0 : index
    %c0_371 = arith.constant 0 : index
    %c0_372 = arith.constant 0 : index
    %582 = vector.load %arg39[%c0_370, %c0_371, %c0_372] : memref<5x1x8xf32, #tpu.memory_space<vmem>>, vector<1x1x8xf32>
    %583 = vector.shape_cast %582 : vector<1x1x8xf32> to vector<1x8xf32>
    %584 = vector.broadcast %583 : vector<1x8xf32> to vector<8x8xf32>
    %585 = arith.addf %581, %584 : vector<8x8xf32>
    %586 = vector.shape_cast %571 : vector<8x8xf32> to vector<1x8x8xf32>
    %587 = vector.shape_cast %578 : vector<8x8xf32> to vector<1x8x8xf32>
    %588 = vector.shape_cast %585 : vector<8x8xf32> to vector<1x8x8xf32>
    %c0_373 = arith.constant 0 : index
    %c0_374 = arith.constant 0 : index
    %c0_375 = arith.constant 0 : index
    %589 = vector.load %arg40[%c0_373, %c0_374, %c0_375] : memref<5x8x40xf32, #tpu.memory_space<vmem>>, vector<1x8x40xf32>
    %590 = vector.shape_cast %589 : vector<1x8x40xf32> to vector<8x40xf32>
    %591 = vector.shape_cast %586 : vector<1x8x8xf32> to vector<8x8xf32>
    %592 = vector.shape_cast %587 : vector<1x8x8xf32> to vector<8x8xf32>
    %cst_376 = arith.constant dense<0.000000e+00> : vector<8x8xf32>
    %593 = tpu.matmul %591, %592, %cst_376 {dimension_numbers = #tpu.dot_dimension_numbers<[1], [1], [0], [0], [0, 0, 1, 0], [], []>} : vector<8x8xf32>, vector<8x8xf32>, vector<8x8xf32> -> vector<8x8xf32>
    %cst_377 = arith.constant dense<0xFF800000> : vector<8xf32>
    %594 = vector.multi_reduction <maximumf>, %593, %cst_377 [1] : vector<8x8xf32> to vector<8xf32>
    %595 = vector.shape_cast %594 : vector<8xf32> to vector<8x1xf32>
    %596 = vector.broadcast %595 : vector<8x1xf32> to vector<8x8xf32>
    %597 = arith.subf %593, %596 : vector<8x8xf32>
    %598 = math.exp %597 : vector<8x8xf32>
    %cst_378 = arith.constant dense<0.000000e+00> : vector<8xf32>
    %599 = vector.multi_reduction <add>, %598, %cst_378 [1] : vector<8x8xf32> to vector<8xf32>
    %600 = vector.shape_cast %599 : vector<8xf32> to vector<8x1xf32>
    %601 = tpu.reciprocal %600 {approx = true} : vector<8x1xf32> -> vector<8x1xf32>
    %602 = vector.broadcast %601 : vector<8x1xf32> to vector<8x8xf32>
    %603 = arith.mulf %598, %602 : vector<8x8xf32>
    %604 = vector.shape_cast %588 : vector<1x8x8xf32> to vector<8x8xf32>
    %cst_379 = arith.constant dense<0.000000e+00> : vector<8x8xf32>
    %605 = tpu.matmul %603, %604, %cst_379 {dimension_numbers = #tpu.dot_dimension_numbers<[1], [0], [0], [1], [0, 0, 1, 1], [], []>} : vector<8x8xf32>, vector<8x8xf32>, vector<8x8xf32> -> vector<8x8xf32>
    %cst_380 = arith.constant dense<0.000000e+00> : vector<8x40xf32>
    %606 = tpu.matmul %605, %590, %cst_380 {dimension_numbers = #tpu.dot_dimension_numbers<[1], [0], [0], [1], [0, 0, 1, 1], [], []>} : vector<8x8xf32>, vector<8x40xf32>, vector<8x40xf32> -> vector<8x40xf32>
    %607 = arith.addf %564, %606 : vector<8x40xf32>
    %c1_381 = arith.constant 1 : index
    %c0_382 = arith.constant 0 : index
    %c0_383 = arith.constant 0 : index
    %608 = vector.load %arg34[%c1_381, %c0_382, %c0_383] : memref<5x40x8xf32, #tpu.memory_space<vmem>>, vector<1x40x8xf32>
    %609 = vector.shape_cast %608 : vector<1x40x8xf32> to vector<40x8xf32>
    %cst_384 = arith.constant dense<0.000000e+00> : vector<8x8xf32>
    %610 = tpu.matmul %563, %609, %cst_384 {dimension_numbers = #tpu.dot_dimension_numbers<[1], [0], [0], [1], [0, 0, 1, 1], [], []>} : vector<8x40xf32>, vector<40x8xf32>, vector<8x8xf32> -> vector<8x8xf32>
    %c1_385 = arith.constant 1 : index
    %c0_386 = arith.constant 0 : index
    %c0_387 = arith.constant 0 : index
    %611 = vector.load %arg35[%c1_385, %c0_386, %c0_387] : memref<5x1x8xf32, #tpu.memory_space<vmem>>, vector<1x1x8xf32>
    %612 = vector.shape_cast %611 : vector<1x1x8xf32> to vector<1x8xf32>
    %613 = vector.broadcast %612 : vector<1x8xf32> to vector<8x8xf32>
    %614 = arith.addf %610, %613 : vector<8x8xf32>
    %c1_388 = arith.constant 1 : index
    %c0_389 = arith.constant 0 : index
    %c0_390 = arith.constant 0 : index
    %615 = vector.load %arg36[%c1_388, %c0_389, %c0_390] : memref<5x40x8xf32, #tpu.memory_space<vmem>>, vector<1x40x8xf32>
    %616 = vector.shape_cast %615 : vector<1x40x8xf32> to vector<40x8xf32>
    %cst_391 = arith.constant dense<0.000000e+00> : vector<8x8xf32>
    %617 = tpu.matmul %563, %616, %cst_391 {dimension_numbers = #tpu.dot_dimension_numbers<[1], [0], [0], [1], [0, 0, 1, 1], [], []>} : vector<8x40xf32>, vector<40x8xf32>, vector<8x8xf32> -> vector<8x8xf32>
    %c1_392 = arith.constant 1 : index
    %c0_393 = arith.constant 0 : index
    %c0_394 = arith.constant 0 : index
    %618 = vector.load %arg37[%c1_392, %c0_393, %c0_394] : memref<5x1x8xf32, #tpu.memory_space<vmem>>, vector<1x1x8xf32>
    %619 = vector.shape_cast %618 : vector<1x1x8xf32> to vector<1x8xf32>
    %620 = vector.broadcast %619 : vector<1x8xf32> to vector<8x8xf32>
    %621 = arith.addf %617, %620 : vector<8x8xf32>
    %c1_395 = arith.constant 1 : index
    %c0_396 = arith.constant 0 : index
    %c0_397 = arith.constant 0 : index
    %622 = vector.load %arg38[%c1_395, %c0_396, %c0_397] : memref<5x40x8xf32, #tpu.memory_space<vmem>>, vector<1x40x8xf32>
    %623 = vector.shape_cast %622 : vector<1x40x8xf32> to vector<40x8xf32>
    %cst_398 = arith.constant dense<0.000000e+00> : vector<8x8xf32>
    %624 = tpu.matmul %563, %623, %cst_398 {dimension_numbers = #tpu.dot_dimension_numbers<[1], [0], [0], [1], [0, 0, 1, 1], [], []>} : vector<8x40xf32>, vector<40x8xf32>, vector<8x8xf32> -> vector<8x8xf32>
    %c1_399 = arith.constant 1 : index
    %c0_400 = arith.constant 0 : index
    %c0_401 = arith.constant 0 : index
    %625 = vector.load %arg39[%c1_399, %c0_400, %c0_401] : memref<5x1x8xf32, #tpu.memory_space<vmem>>, vector<1x1x8xf32>
    %626 = vector.shape_cast %625 : vector<1x1x8xf32> to vector<1x8xf32>
    %627 = vector.broadcast %626 : vector<1x8xf32> to vector<8x8xf32>
    %628 = arith.addf %624, %627 : vector<8x8xf32>
    %629 = vector.shape_cast %614 : vector<8x8xf32> to vector<1x8x8xf32>
    %630 = vector.shape_cast %621 : vector<8x8xf32> to vector<1x8x8xf32>
    %631 = vector.shape_cast %628 : vector<8x8xf32> to vector<1x8x8xf32>
    %c1_402 = arith.constant 1 : index
    %c0_403 = arith.constant 0 : index
    %c0_404 = arith.constant 0 : index
    %632 = vector.load %arg40[%c1_402, %c0_403, %c0_404] : memref<5x8x40xf32, #tpu.memory_space<vmem>>, vector<1x8x40xf32>
    %633 = vector.shape_cast %632 : vector<1x8x40xf32> to vector<8x40xf32>
    %634 = vector.shape_cast %629 : vector<1x8x8xf32> to vector<8x8xf32>
    %635 = vector.shape_cast %630 : vector<1x8x8xf32> to vector<8x8xf32>
    %cst_405 = arith.constant dense<0.000000e+00> : vector<8x8xf32>
    %636 = tpu.matmul %634, %635, %cst_405 {dimension_numbers = #tpu.dot_dimension_numbers<[1], [1], [0], [0], [0, 0, 1, 0], [], []>} : vector<8x8xf32>, vector<8x8xf32>, vector<8x8xf32> -> vector<8x8xf32>
    %cst_406 = arith.constant dense<0xFF800000> : vector<8xf32>
    %637 = vector.multi_reduction <maximumf>, %636, %cst_406 [1] : vector<8x8xf32> to vector<8xf32>
    %638 = vector.shape_cast %637 : vector<8xf32> to vector<8x1xf32>
    %639 = vector.broadcast %638 : vector<8x1xf32> to vector<8x8xf32>
    %640 = arith.subf %636, %639 : vector<8x8xf32>
    %641 = math.exp %640 : vector<8x8xf32>
    %cst_407 = arith.constant dense<0.000000e+00> : vector<8xf32>
    %642 = vector.multi_reduction <add>, %641, %cst_407 [1] : vector<8x8xf32> to vector<8xf32>
    %643 = vector.shape_cast %642 : vector<8xf32> to vector<8x1xf32>
    %644 = tpu.reciprocal %643 {approx = true} : vector<8x1xf32> -> vector<8x1xf32>
    %645 = vector.broadcast %644 : vector<8x1xf32> to vector<8x8xf32>
    %646 = arith.mulf %641, %645 : vector<8x8xf32>
    %647 = vector.shape_cast %631 : vector<1x8x8xf32> to vector<8x8xf32>
    %cst_408 = arith.constant dense<0.000000e+00> : vector<8x8xf32>
    %648 = tpu.matmul %646, %647, %cst_408 {dimension_numbers = #tpu.dot_dimension_numbers<[1], [0], [0], [1], [0, 0, 1, 1], [], []>} : vector<8x8xf32>, vector<8x8xf32>, vector<8x8xf32> -> vector<8x8xf32>
    %cst_409 = arith.constant dense<0.000000e+00> : vector<8x40xf32>
    %649 = tpu.matmul %648, %633, %cst_409 {dimension_numbers = #tpu.dot_dimension_numbers<[1], [0], [0], [1], [0, 0, 1, 1], [], []>} : vector<8x8xf32>, vector<8x40xf32>, vector<8x40xf32> -> vector<8x40xf32>
    %650 = arith.addf %607, %649 : vector<8x40xf32>
    %c2_410 = arith.constant 2 : index
    %c0_411 = arith.constant 0 : index
    %c0_412 = arith.constant 0 : index
    %651 = vector.load %arg34[%c2_410, %c0_411, %c0_412] : memref<5x40x8xf32, #tpu.memory_space<vmem>>, vector<1x40x8xf32>
    %652 = vector.shape_cast %651 : vector<1x40x8xf32> to vector<40x8xf32>
    %cst_413 = arith.constant dense<0.000000e+00> : vector<8x8xf32>
    %653 = tpu.matmul %563, %652, %cst_413 {dimension_numbers = #tpu.dot_dimension_numbers<[1], [0], [0], [1], [0, 0, 1, 1], [], []>} : vector<8x40xf32>, vector<40x8xf32>, vector<8x8xf32> -> vector<8x8xf32>
    %c2_414 = arith.constant 2 : index
    %c0_415 = arith.constant 0 : index
    %c0_416 = arith.constant 0 : index
    %654 = vector.load %arg35[%c2_414, %c0_415, %c0_416] : memref<5x1x8xf32, #tpu.memory_space<vmem>>, vector<1x1x8xf32>
    %655 = vector.shape_cast %654 : vector<1x1x8xf32> to vector<1x8xf32>
    %656 = vector.broadcast %655 : vector<1x8xf32> to vector<8x8xf32>
    %657 = arith.addf %653, %656 : vector<8x8xf32>
    %c2_417 = arith.constant 2 : index
    %c0_418 = arith.constant 0 : index
    %c0_419 = arith.constant 0 : index
    %658 = vector.load %arg36[%c2_417, %c0_418, %c0_419] : memref<5x40x8xf32, #tpu.memory_space<vmem>>, vector<1x40x8xf32>
    %659 = vector.shape_cast %658 : vector<1x40x8xf32> to vector<40x8xf32>
    %cst_420 = arith.constant dense<0.000000e+00> : vector<8x8xf32>
    %660 = tpu.matmul %563, %659, %cst_420 {dimension_numbers = #tpu.dot_dimension_numbers<[1], [0], [0], [1], [0, 0, 1, 1], [], []>} : vector<8x40xf32>, vector<40x8xf32>, vector<8x8xf32> -> vector<8x8xf32>
    %c2_421 = arith.constant 2 : index
    %c0_422 = arith.constant 0 : index
    %c0_423 = arith.constant 0 : index
    %661 = vector.load %arg37[%c2_421, %c0_422, %c0_423] : memref<5x1x8xf32, #tpu.memory_space<vmem>>, vector<1x1x8xf32>
    %662 = vector.shape_cast %661 : vector<1x1x8xf32> to vector<1x8xf32>
    %663 = vector.broadcast %662 : vector<1x8xf32> to vector<8x8xf32>
    %664 = arith.addf %660, %663 : vector<8x8xf32>
    %c2_424 = arith.constant 2 : index
    %c0_425 = arith.constant 0 : index
    %c0_426 = arith.constant 0 : index
    %665 = vector.load %arg38[%c2_424, %c0_425, %c0_426] : memref<5x40x8xf32, #tpu.memory_space<vmem>>, vector<1x40x8xf32>
    %666 = vector.shape_cast %665 : vector<1x40x8xf32> to vector<40x8xf32>
    %cst_427 = arith.constant dense<0.000000e+00> : vector<8x8xf32>
    %667 = tpu.matmul %563, %666, %cst_427 {dimension_numbers = #tpu.dot_dimension_numbers<[1], [0], [0], [1], [0, 0, 1, 1], [], []>} : vector<8x40xf32>, vector<40x8xf32>, vector<8x8xf32> -> vector<8x8xf32>
    %c2_428 = arith.constant 2 : index
    %c0_429 = arith.constant 0 : index
    %c0_430 = arith.constant 0 : index
    %668 = vector.load %arg39[%c2_428, %c0_429, %c0_430] : memref<5x1x8xf32, #tpu.memory_space<vmem>>, vector<1x1x8xf32>
    %669 = vector.shape_cast %668 : vector<1x1x8xf32> to vector<1x8xf32>
    %670 = vector.broadcast %669 : vector<1x8xf32> to vector<8x8xf32>
    %671 = arith.addf %667, %670 : vector<8x8xf32>
    %672 = vector.shape_cast %657 : vector<8x8xf32> to vector<1x8x8xf32>
    %673 = vector.shape_cast %664 : vector<8x8xf32> to vector<1x8x8xf32>
    %674 = vector.shape_cast %671 : vector<8x8xf32> to vector<1x8x8xf32>
    %c2_431 = arith.constant 2 : index
    %c0_432 = arith.constant 0 : index
    %c0_433 = arith.constant 0 : index
    %675 = vector.load %arg40[%c2_431, %c0_432, %c0_433] : memref<5x8x40xf32, #tpu.memory_space<vmem>>, vector<1x8x40xf32>
    %676 = vector.shape_cast %675 : vector<1x8x40xf32> to vector<8x40xf32>
    %677 = vector.shape_cast %672 : vector<1x8x8xf32> to vector<8x8xf32>
    %678 = vector.shape_cast %673 : vector<1x8x8xf32> to vector<8x8xf32>
    %cst_434 = arith.constant dense<0.000000e+00> : vector<8x8xf32>
    %679 = tpu.matmul %677, %678, %cst_434 {dimension_numbers = #tpu.dot_dimension_numbers<[1], [1], [0], [0], [0, 0, 1, 0], [], []>} : vector<8x8xf32>, vector<8x8xf32>, vector<8x8xf32> -> vector<8x8xf32>
    %cst_435 = arith.constant dense<0xFF800000> : vector<8xf32>
    %680 = vector.multi_reduction <maximumf>, %679, %cst_435 [1] : vector<8x8xf32> to vector<8xf32>
    %681 = vector.shape_cast %680 : vector<8xf32> to vector<8x1xf32>
    %682 = vector.broadcast %681 : vector<8x1xf32> to vector<8x8xf32>
    %683 = arith.subf %679, %682 : vector<8x8xf32>
    %684 = math.exp %683 : vector<8x8xf32>
    %cst_436 = arith.constant dense<0.000000e+00> : vector<8xf32>
    %685 = vector.multi_reduction <add>, %684, %cst_436 [1] : vector<8x8xf32> to vector<8xf32>
    %686 = vector.shape_cast %685 : vector<8xf32> to vector<8x1xf32>
    %687 = tpu.reciprocal %686 {approx = true} : vector<8x1xf32> -> vector<8x1xf32>
    %688 = vector.broadcast %687 : vector<8x1xf32> to vector<8x8xf32>
    %689 = arith.mulf %684, %688 : vector<8x8xf32>
    %690 = vector.shape_cast %674 : vector<1x8x8xf32> to vector<8x8xf32>
    %cst_437 = arith.constant dense<0.000000e+00> : vector<8x8xf32>
    %691 = tpu.matmul %689, %690, %cst_437 {dimension_numbers = #tpu.dot_dimension_numbers<[1], [0], [0], [1], [0, 0, 1, 1], [], []>} : vector<8x8xf32>, vector<8x8xf32>, vector<8x8xf32> -> vector<8x8xf32>
    %cst_438 = arith.constant dense<0.000000e+00> : vector<8x40xf32>
    %692 = tpu.matmul %691, %676, %cst_438 {dimension_numbers = #tpu.dot_dimension_numbers<[1], [0], [0], [1], [0, 0, 1, 1], [], []>} : vector<8x8xf32>, vector<8x40xf32>, vector<8x40xf32> -> vector<8x40xf32>
    %693 = arith.addf %650, %692 : vector<8x40xf32>
    %c3_439 = arith.constant 3 : index
    %c0_440 = arith.constant 0 : index
    %c0_441 = arith.constant 0 : index
    %694 = vector.load %arg34[%c3_439, %c0_440, %c0_441] : memref<5x40x8xf32, #tpu.memory_space<vmem>>, vector<1x40x8xf32>
    %695 = vector.shape_cast %694 : vector<1x40x8xf32> to vector<40x8xf32>
    %cst_442 = arith.constant dense<0.000000e+00> : vector<8x8xf32>
    %696 = tpu.matmul %563, %695, %cst_442 {dimension_numbers = #tpu.dot_dimension_numbers<[1], [0], [0], [1], [0, 0, 1, 1], [], []>} : vector<8x40xf32>, vector<40x8xf32>, vector<8x8xf32> -> vector<8x8xf32>
    %c3_443 = arith.constant 3 : index
    %c0_444 = arith.constant 0 : index
    %c0_445 = arith.constant 0 : index
    %697 = vector.load %arg35[%c3_443, %c0_444, %c0_445] : memref<5x1x8xf32, #tpu.memory_space<vmem>>, vector<1x1x8xf32>
    %698 = vector.shape_cast %697 : vector<1x1x8xf32> to vector<1x8xf32>
    %699 = vector.broadcast %698 : vector<1x8xf32> to vector<8x8xf32>
    %700 = arith.addf %696, %699 : vector<8x8xf32>
    %c3_446 = arith.constant 3 : index
    %c0_447 = arith.constant 0 : index
    %c0_448 = arith.constant 0 : index
    %701 = vector.load %arg36[%c3_446, %c0_447, %c0_448] : memref<5x40x8xf32, #tpu.memory_space<vmem>>, vector<1x40x8xf32>
    %702 = vector.shape_cast %701 : vector<1x40x8xf32> to vector<40x8xf32>
    %cst_449 = arith.constant dense<0.000000e+00> : vector<8x8xf32>
    %703 = tpu.matmul %563, %702, %cst_449 {dimension_numbers = #tpu.dot_dimension_numbers<[1], [0], [0], [1], [0, 0, 1, 1], [], []>} : vector<8x40xf32>, vector<40x8xf32>, vector<8x8xf32> -> vector<8x8xf32>
    %c3_450 = arith.constant 3 : index
    %c0_451 = arith.constant 0 : index
    %c0_452 = arith.constant 0 : index
    %704 = vector.load %arg37[%c3_450, %c0_451, %c0_452] : memref<5x1x8xf32, #tpu.memory_space<vmem>>, vector<1x1x8xf32>
    %705 = vector.shape_cast %704 : vector<1x1x8xf32> to vector<1x8xf32>
    %706 = vector.broadcast %705 : vector<1x8xf32> to vector<8x8xf32>
    %707 = arith.addf %703, %706 : vector<8x8xf32>
    %c3_453 = arith.constant 3 : index
    %c0_454 = arith.constant 0 : index
    %c0_455 = arith.constant 0 : index
    %708 = vector.load %arg38[%c3_453, %c0_454, %c0_455] : memref<5x40x8xf32, #tpu.memory_space<vmem>>, vector<1x40x8xf32>
    %709 = vector.shape_cast %708 : vector<1x40x8xf32> to vector<40x8xf32>
    %cst_456 = arith.constant dense<0.000000e+00> : vector<8x8xf32>
    %710 = tpu.matmul %563, %709, %cst_456 {dimension_numbers = #tpu.dot_dimension_numbers<[1], [0], [0], [1], [0, 0, 1, 1], [], []>} : vector<8x40xf32>, vector<40x8xf32>, vector<8x8xf32> -> vector<8x8xf32>
    %c3_457 = arith.constant 3 : index
    %c0_458 = arith.constant 0 : index
    %c0_459 = arith.constant 0 : index
    %711 = vector.load %arg39[%c3_457, %c0_458, %c0_459] : memref<5x1x8xf32, #tpu.memory_space<vmem>>, vector<1x1x8xf32>
    %712 = vector.shape_cast %711 : vector<1x1x8xf32> to vector<1x8xf32>
    %713 = vector.broadcast %712 : vector<1x8xf32> to vector<8x8xf32>
    %714 = arith.addf %710, %713 : vector<8x8xf32>
    %715 = vector.shape_cast %700 : vector<8x8xf32> to vector<1x8x8xf32>
    %716 = vector.shape_cast %707 : vector<8x8xf32> to vector<1x8x8xf32>
    %717 = vector.shape_cast %714 : vector<8x8xf32> to vector<1x8x8xf32>
    %c3_460 = arith.constant 3 : index
    %c0_461 = arith.constant 0 : index
    %c0_462 = arith.constant 0 : index
    %718 = vector.load %arg40[%c3_460, %c0_461, %c0_462] : memref<5x8x40xf32, #tpu.memory_space<vmem>>, vector<1x8x40xf32>
    %719 = vector.shape_cast %718 : vector<1x8x40xf32> to vector<8x40xf32>
    %720 = vector.shape_cast %715 : vector<1x8x8xf32> to vector<8x8xf32>
    %721 = vector.shape_cast %716 : vector<1x8x8xf32> to vector<8x8xf32>
    %cst_463 = arith.constant dense<0.000000e+00> : vector<8x8xf32>
    %722 = tpu.matmul %720, %721, %cst_463 {dimension_numbers = #tpu.dot_dimension_numbers<[1], [1], [0], [0], [0, 0, 1, 0], [], []>} : vector<8x8xf32>, vector<8x8xf32>, vector<8x8xf32> -> vector<8x8xf32>
    %cst_464 = arith.constant dense<0xFF800000> : vector<8xf32>
    %723 = vector.multi_reduction <maximumf>, %722, %cst_464 [1] : vector<8x8xf32> to vector<8xf32>
    %724 = vector.shape_cast %723 : vector<8xf32> to vector<8x1xf32>
    %725 = vector.broadcast %724 : vector<8x1xf32> to vector<8x8xf32>
    %726 = arith.subf %722, %725 : vector<8x8xf32>
    %727 = math.exp %726 : vector<8x8xf32>
    %cst_465 = arith.constant dense<0.000000e+00> : vector<8xf32>
    %728 = vector.multi_reduction <add>, %727, %cst_465 [1] : vector<8x8xf32> to vector<8xf32>
    %729 = vector.shape_cast %728 : vector<8xf32> to vector<8x1xf32>
    %730 = tpu.reciprocal %729 {approx = true} : vector<8x1xf32> -> vector<8x1xf32>
    %731 = vector.broadcast %730 : vector<8x1xf32> to vector<8x8xf32>
    %732 = arith.mulf %727, %731 : vector<8x8xf32>
    %733 = vector.shape_cast %717 : vector<1x8x8xf32> to vector<8x8xf32>
    %cst_466 = arith.constant dense<0.000000e+00> : vector<8x8xf32>
    %734 = tpu.matmul %732, %733, %cst_466 {dimension_numbers = #tpu.dot_dimension_numbers<[1], [0], [0], [1], [0, 0, 1, 1], [], []>} : vector<8x8xf32>, vector<8x8xf32>, vector<8x8xf32> -> vector<8x8xf32>
    %cst_467 = arith.constant dense<0.000000e+00> : vector<8x40xf32>
    %735 = tpu.matmul %734, %719, %cst_467 {dimension_numbers = #tpu.dot_dimension_numbers<[1], [0], [0], [1], [0, 0, 1, 1], [], []>} : vector<8x8xf32>, vector<8x40xf32>, vector<8x40xf32> -> vector<8x40xf32>
    %736 = arith.addf %693, %735 : vector<8x40xf32>
    %c4_468 = arith.constant 4 : index
    %c0_469 = arith.constant 0 : index
    %c0_470 = arith.constant 0 : index
    %737 = vector.load %arg34[%c4_468, %c0_469, %c0_470] : memref<5x40x8xf32, #tpu.memory_space<vmem>>, vector<1x40x8xf32>
    %738 = vector.shape_cast %737 : vector<1x40x8xf32> to vector<40x8xf32>
    %cst_471 = arith.constant dense<0.000000e+00> : vector<8x8xf32>
    %739 = tpu.matmul %563, %738, %cst_471 {dimension_numbers = #tpu.dot_dimension_numbers<[1], [0], [0], [1], [0, 0, 1, 1], [], []>} : vector<8x40xf32>, vector<40x8xf32>, vector<8x8xf32> -> vector<8x8xf32>
    %c4_472 = arith.constant 4 : index
    %c0_473 = arith.constant 0 : index
    %c0_474 = arith.constant 0 : index
    %740 = vector.load %arg35[%c4_472, %c0_473, %c0_474] : memref<5x1x8xf32, #tpu.memory_space<vmem>>, vector<1x1x8xf32>
    %741 = vector.shape_cast %740 : vector<1x1x8xf32> to vector<1x8xf32>
    %742 = vector.broadcast %741 : vector<1x8xf32> to vector<8x8xf32>
    %743 = arith.addf %739, %742 : vector<8x8xf32>
    %c4_475 = arith.constant 4 : index
    %c0_476 = arith.constant 0 : index
    %c0_477 = arith.constant 0 : index
    %744 = vector.load %arg36[%c4_475, %c0_476, %c0_477] : memref<5x40x8xf32, #tpu.memory_space<vmem>>, vector<1x40x8xf32>
    %745 = vector.shape_cast %744 : vector<1x40x8xf32> to vector<40x8xf32>
    %cst_478 = arith.constant dense<0.000000e+00> : vector<8x8xf32>
    %746 = tpu.matmul %563, %745, %cst_478 {dimension_numbers = #tpu.dot_dimension_numbers<[1], [0], [0], [1], [0, 0, 1, 1], [], []>} : vector<8x40xf32>, vector<40x8xf32>, vector<8x8xf32> -> vector<8x8xf32>
    %c4_479 = arith.constant 4 : index
    %c0_480 = arith.constant 0 : index
    %c0_481 = arith.constant 0 : index
    %747 = vector.load %arg37[%c4_479, %c0_480, %c0_481] : memref<5x1x8xf32, #tpu.memory_space<vmem>>, vector<1x1x8xf32>
    %748 = vector.shape_cast %747 : vector<1x1x8xf32> to vector<1x8xf32>
    %749 = vector.broadcast %748 : vector<1x8xf32> to vector<8x8xf32>
    %750 = arith.addf %746, %749 : vector<8x8xf32>
    %c4_482 = arith.constant 4 : index
    %c0_483 = arith.constant 0 : index
    %c0_484 = arith.constant 0 : index
    %751 = vector.load %arg38[%c4_482, %c0_483, %c0_484] : memref<5x40x8xf32, #tpu.memory_space<vmem>>, vector<1x40x8xf32>
    %752 = vector.shape_cast %751 : vector<1x40x8xf32> to vector<40x8xf32>
    %cst_485 = arith.constant dense<0.000000e+00> : vector<8x8xf32>
    %753 = tpu.matmul %563, %752, %cst_485 {dimension_numbers = #tpu.dot_dimension_numbers<[1], [0], [0], [1], [0, 0, 1, 1], [], []>} : vector<8x40xf32>, vector<40x8xf32>, vector<8x8xf32> -> vector<8x8xf32>
    %c4_486 = arith.constant 4 : index
    %c0_487 = arith.constant 0 : index
    %c0_488 = arith.constant 0 : index
    %754 = vector.load %arg39[%c4_486, %c0_487, %c0_488] : memref<5x1x8xf32, #tpu.memory_space<vmem>>, vector<1x1x8xf32>
    %755 = vector.shape_cast %754 : vector<1x1x8xf32> to vector<1x8xf32>
    %756 = vector.broadcast %755 : vector<1x8xf32> to vector<8x8xf32>
    %757 = arith.addf %753, %756 : vector<8x8xf32>
    %758 = vector.shape_cast %743 : vector<8x8xf32> to vector<1x8x8xf32>
    %759 = vector.shape_cast %750 : vector<8x8xf32> to vector<1x8x8xf32>
    %760 = vector.shape_cast %757 : vector<8x8xf32> to vector<1x8x8xf32>
    %c4_489 = arith.constant 4 : index
    %c0_490 = arith.constant 0 : index
    %c0_491 = arith.constant 0 : index
    %761 = vector.load %arg40[%c4_489, %c0_490, %c0_491] : memref<5x8x40xf32, #tpu.memory_space<vmem>>, vector<1x8x40xf32>
    %762 = vector.shape_cast %761 : vector<1x8x40xf32> to vector<8x40xf32>
    %763 = vector.shape_cast %758 : vector<1x8x8xf32> to vector<8x8xf32>
    %764 = vector.shape_cast %759 : vector<1x8x8xf32> to vector<8x8xf32>
    %cst_492 = arith.constant dense<0.000000e+00> : vector<8x8xf32>
    %765 = tpu.matmul %763, %764, %cst_492 {dimension_numbers = #tpu.dot_dimension_numbers<[1], [1], [0], [0], [0, 0, 1, 0], [], []>} : vector<8x8xf32>, vector<8x8xf32>, vector<8x8xf32> -> vector<8x8xf32>
    %cst_493 = arith.constant dense<0xFF800000> : vector<8xf32>
    %766 = vector.multi_reduction <maximumf>, %765, %cst_493 [1] : vector<8x8xf32> to vector<8xf32>
    %767 = vector.shape_cast %766 : vector<8xf32> to vector<8x1xf32>
    %768 = vector.broadcast %767 : vector<8x1xf32> to vector<8x8xf32>
    %769 = arith.subf %765, %768 : vector<8x8xf32>
    %770 = math.exp %769 : vector<8x8xf32>
    %cst_494 = arith.constant dense<0.000000e+00> : vector<8xf32>
    %771 = vector.multi_reduction <add>, %770, %cst_494 [1] : vector<8x8xf32> to vector<8xf32>
    %772 = vector.shape_cast %771 : vector<8xf32> to vector<8x1xf32>
    %773 = tpu.reciprocal %772 {approx = true} : vector<8x1xf32> -> vector<8x1xf32>
    %774 = vector.broadcast %773 : vector<8x1xf32> to vector<8x8xf32>
    %775 = arith.mulf %770, %774 : vector<8x8xf32>
    %776 = vector.shape_cast %760 : vector<1x8x8xf32> to vector<8x8xf32>
    %cst_495 = arith.constant dense<0.000000e+00> : vector<8x8xf32>
    %777 = tpu.matmul %775, %776, %cst_495 {dimension_numbers = #tpu.dot_dimension_numbers<[1], [0], [0], [1], [0, 0, 1, 1], [], []>} : vector<8x8xf32>, vector<8x8xf32>, vector<8x8xf32> -> vector<8x8xf32>
    %cst_496 = arith.constant dense<0.000000e+00> : vector<8x40xf32>
    %778 = tpu.matmul %777, %762, %cst_496 {dimension_numbers = #tpu.dot_dimension_numbers<[1], [0], [0], [1], [0, 0, 1, 1], [], []>} : vector<8x8xf32>, vector<8x40xf32>, vector<8x40xf32> -> vector<8x40xf32>
    %779 = arith.addf %736, %778 : vector<8x40xf32>
    %c0_497 = arith.constant 0 : index
    %c0_498 = arith.constant 0 : index
    %780 = vector.load %arg41[%c0_497, %c0_498] : memref<1x40xf32, #tpu.memory_space<vmem>>, vector<1x40xf32>
    %781 = vector.broadcast %780 : vector<1x40xf32> to vector<8x40xf32>
    %782 = arith.addf %779, %781 : vector<8x40xf32>
    %783 = arith.addf %563, %782 : vector<8x40xf32>
    %c0_499 = arith.constant 0 : index
    %c0_500 = arith.constant 0 : index
    %784 = vector.load %arg46[%c0_499, %c0_500] : memref<1x40xf32, #tpu.memory_space<vmem>>, vector<1x40xf32>
    %c0_501 = arith.constant 0 : index
    %c0_502 = arith.constant 0 : index
    %785 = vector.load %arg47[%c0_501, %c0_502] : memref<1x40xf32, #tpu.memory_space<vmem>>, vector<1x40xf32>
    %cst_503 = arith.constant dense<0.000000e+00> : vector<8xf32>
    %786 = vector.multi_reduction <add>, %783, %cst_503 [1] : vector<8x40xf32> to vector<8xf32>
    %787 = vector.shape_cast %786 : vector<8xf32> to vector<8x1xf32>
    %cst_504 = arith.constant 4.000000e+01 : f32
    %788 = vector.broadcast %cst_504 : f32 to vector<8x1xf32>
    %789 = arith.divf %787, %788 : vector<8x1xf32>
    %790 = vector.broadcast %789 : vector<8x1xf32> to vector<8x40xf32>
    %791 = arith.subf %783, %790 : vector<8x40xf32>
    %792 = arith.mulf %791, %791 : vector<8x40xf32>
    %cst_505 = arith.constant dense<0.000000e+00> : vector<8xf32>
    %793 = vector.multi_reduction <add>, %792, %cst_505 [1] : vector<8x40xf32> to vector<8xf32>
    %794 = vector.shape_cast %793 : vector<8xf32> to vector<8x1xf32>
    %cst_506 = arith.constant 4.000000e+01 : f32
    %795 = vector.broadcast %cst_506 : f32 to vector<8x1xf32>
    %796 = arith.divf %794, %795 : vector<8x1xf32>
    %797 = vector.broadcast %789 : vector<8x1xf32> to vector<8x40xf32>
    %798 = arith.subf %783, %797 : vector<8x40xf32>
    %cst_507 = arith.constant 9.99999974E-6 : f32
    %799 = vector.broadcast %cst_507 : f32 to vector<8x1xf32>
    %800 = arith.addf %796, %799 : vector<8x1xf32>
    %801 = math.rsqrt %800 : vector<8x1xf32>
    %802 = vector.broadcast %801 : vector<8x1xf32> to vector<8x40xf32>
    %803 = arith.mulf %798, %802 : vector<8x40xf32>
    %804 = vector.broadcast %784 : vector<1x40xf32> to vector<8x40xf32>
    %805 = arith.mulf %803, %804 : vector<8x40xf32>
    %806 = vector.broadcast %785 : vector<1x40xf32> to vector<8x40xf32>
    %807 = arith.addf %805, %806 : vector<8x40xf32>
    %c0_508 = arith.constant 0 : index
    %c0_509 = arith.constant 0 : index
    %808 = vector.load %arg42[%c0_508, %c0_509] : memref<40x2048xf32, #tpu.memory_space<vmem>>, vector<40x2048xf32>
    %cst_510 = arith.constant dense<0.000000e+00> : vector<8x2048xf32>
    %809 = tpu.matmul %807, %808, %cst_510 {dimension_numbers = #tpu.dot_dimension_numbers<[1], [0], [0], [1], [0, 0, 1, 1], [], []>} : vector<8x40xf32>, vector<40x2048xf32>, vector<8x2048xf32> -> vector<8x2048xf32>
    %c0_511 = arith.constant 0 : index
    %c0_512 = arith.constant 0 : index
    %810 = vector.load %arg43[%c0_511, %c0_512] : memref<1x2048xf32, #tpu.memory_space<vmem>>, vector<1x2048xf32>
    %811 = vector.broadcast %810 : vector<1x2048xf32> to vector<8x2048xf32>
    %812 = arith.addf %809, %811 : vector<8x2048xf32>
    %cst_513 = arith.constant 0.000000e+00 : f32
    %813 = vector.broadcast %cst_513 : f32 to vector<8x2048xf32>
    %814 = arith.maximumf %812, %813 : vector<8x2048xf32>
    %c0_514 = arith.constant 0 : index
    %c0_515 = arith.constant 0 : index
    %815 = vector.load %arg44[%c0_514, %c0_515] : memref<2048x40xf32, #tpu.memory_space<vmem>>, vector<2048x40xf32>
    %cst_516 = arith.constant dense<0.000000e+00> : vector<8x40xf32>
    %816 = tpu.matmul %814, %815, %cst_516 {dimension_numbers = #tpu.dot_dimension_numbers<[1], [0], [0], [1], [0, 0, 1, 1], [], []>} : vector<8x2048xf32>, vector<2048x40xf32>, vector<8x40xf32> -> vector<8x40xf32>
    %c0_517 = arith.constant 0 : index
    %c0_518 = arith.constant 0 : index
    %817 = vector.load %arg45[%c0_517, %c0_518] : memref<1x40xf32, #tpu.memory_space<vmem>>, vector<1x40xf32>
    %818 = vector.broadcast %817 : vector<1x40xf32> to vector<8x40xf32>
    %819 = arith.addf %816, %818 : vector<8x40xf32>
    %820 = arith.addf %807, %819 : vector<8x40xf32>
    %c0_519 = arith.constant 0 : index
    %c0_520 = arith.constant 0 : index
    %821 = vector.load %arg48[%c0_519, %c0_520] : memref<1x40xf32, #tpu.memory_space<vmem>>, vector<1x40xf32>
    %c0_521 = arith.constant 0 : index
    %c0_522 = arith.constant 0 : index
    %822 = vector.load %arg49[%c0_521, %c0_522] : memref<1x40xf32, #tpu.memory_space<vmem>>, vector<1x40xf32>
    %cst_523 = arith.constant dense<0.000000e+00> : vector<8xf32>
    %823 = vector.multi_reduction <add>, %820, %cst_523 [1] : vector<8x40xf32> to vector<8xf32>
    %824 = vector.shape_cast %823 : vector<8xf32> to vector<8x1xf32>
    %cst_524 = arith.constant 4.000000e+01 : f32
    %825 = vector.broadcast %cst_524 : f32 to vector<8x1xf32>
    %826 = arith.divf %824, %825 : vector<8x1xf32>
    %827 = vector.broadcast %826 : vector<8x1xf32> to vector<8x40xf32>
    %828 = arith.subf %820, %827 : vector<8x40xf32>
    %829 = arith.mulf %828, %828 : vector<8x40xf32>
    %cst_525 = arith.constant dense<0.000000e+00> : vector<8xf32>
    %830 = vector.multi_reduction <add>, %829, %cst_525 [1] : vector<8x40xf32> to vector<8xf32>
    %831 = vector.shape_cast %830 : vector<8xf32> to vector<8x1xf32>
    %cst_526 = arith.constant 4.000000e+01 : f32
    %832 = vector.broadcast %cst_526 : f32 to vector<8x1xf32>
    %833 = arith.divf %831, %832 : vector<8x1xf32>
    %834 = vector.broadcast %826 : vector<8x1xf32> to vector<8x40xf32>
    %835 = arith.subf %820, %834 : vector<8x40xf32>
    %cst_527 = arith.constant 9.99999974E-6 : f32
    %836 = vector.broadcast %cst_527 : f32 to vector<8x1xf32>
    %837 = arith.addf %833, %836 : vector<8x1xf32>
    %838 = math.rsqrt %837 : vector<8x1xf32>
    %839 = vector.broadcast %838 : vector<8x1xf32> to vector<8x40xf32>
    %840 = arith.mulf %835, %839 : vector<8x40xf32>
    %841 = vector.broadcast %821 : vector<1x40xf32> to vector<8x40xf32>
    %842 = arith.mulf %840, %841 : vector<8x40xf32>
    %843 = vector.broadcast %822 : vector<1x40xf32> to vector<8x40xf32>
    %844 = arith.addf %842, %843 : vector<8x40xf32>
    %845 = vector.shape_cast %844 : vector<8x40xf32> to vector<1x8x40xf32>
    %cst_528 = arith.constant dense<0.000000e+00> : vector<1x40xf32>
    %846 = vector.multi_reduction <add>, %845, %cst_528 [1] : vector<1x8x40xf32> to vector<1x40xf32>
    %cst_529 = arith.constant 8.000000e+00 : f32
    %847 = vector.broadcast %cst_529 : f32 to vector<1x40xf32>
    %848 = arith.divf %846, %847 : vector<1x40xf32>
    %cst_530 = arith.constant dense<0xFF800000> : vector<1x40xf32>
    %849 = vector.multi_reduction <maximumf>, %845, %cst_530 [1] : vector<1x8x40xf32> to vector<1x40xf32>
    %cst_531 = arith.constant dense<0x7F800000> : vector<1x40xf32>
    %850 = vector.multi_reduction <minimumf>, %845, %cst_531 [1] : vector<1x8x40xf32> to vector<1x40xf32>
    %c0_532 = arith.constant 0 : index
    %c0_533 = arith.constant 0 : index
    %851 = vector.load %arg50[%c0_532, %c0_533] : memref<40x10xf32, #tpu.memory_space<vmem>>, vector<40x10xf32>
    %cst_534 = arith.constant dense<0.000000e+00> : vector<1x10xf32>
    %852 = tpu.matmul %848, %851, %cst_534 {dimension_numbers = #tpu.dot_dimension_numbers<[1], [0], [0], [1], [0, 0, 1, 1], [], []>} : vector<1x40xf32>, vector<40x10xf32>, vector<1x10xf32> -> vector<1x10xf32>
    %c0_535 = arith.constant 0 : index
    %c0_536 = arith.constant 0 : index
    %853 = vector.load %arg51[%c0_535, %c0_536] : memref<40x10xf32, #tpu.memory_space<vmem>>, vector<40x10xf32>
    %cst_537 = arith.constant dense<0.000000e+00> : vector<1x10xf32>
    %854 = tpu.matmul %849, %853, %cst_537 {dimension_numbers = #tpu.dot_dimension_numbers<[1], [0], [0], [1], [0, 0, 1, 1], [], []>} : vector<1x40xf32>, vector<40x10xf32>, vector<1x10xf32> -> vector<1x10xf32>
    %855 = arith.addf %852, %854 : vector<1x10xf32>
    %c0_538 = arith.constant 0 : index
    %c0_539 = arith.constant 0 : index
    %856 = vector.load %arg52[%c0_538, %c0_539] : memref<40x10xf32, #tpu.memory_space<vmem>>, vector<40x10xf32>
    %cst_540 = arith.constant dense<0.000000e+00> : vector<1x10xf32>
    %857 = tpu.matmul %850, %856, %cst_540 {dimension_numbers = #tpu.dot_dimension_numbers<[1], [0], [0], [1], [0, 0, 1, 1], [], []>} : vector<1x40xf32>, vector<40x10xf32>, vector<1x10xf32> -> vector<1x10xf32>
    %858 = arith.addf %855, %857 : vector<1x10xf32>
    %c0_541 = arith.constant 0 : index
    %c0_542 = arith.constant 0 : index
    %859 = vector.load %arg53[%c0_541, %c0_542] : memref<1x10xf32, #tpu.memory_space<vmem>>, vector<1x10xf32>
    %860 = arith.addf %858, %859 : vector<1x10xf32>
    %861 = vector.shape_cast %860 : vector<1x10xf32> to vector<1x1x10xf32>
    %c0_543 = arith.constant 0 : index
    %c0_544 = arith.constant 0 : index
    %c0_545 = arith.constant 0 : index
    %862 = vector.load %arg54[%c0_543, %c0_544, %c0_545] : memref<1x1x10xf32, #tpu.memory_space<vmem>>, vector<1x1x10xf32>
    tpu.vector_store %arg54[%c0_543, %c0_544, %c0_545], %861 {strides = array<i32>} : memref<1x1x10xf32, #tpu.memory_space<vmem>>, vector<1x1x10xf32>,
    return
  }
  func.func @transform_0(%arg0: i32) -> (i32, i32, i32) {
    %c0_i32 = arith.constant 0 : i32
    %c0_i32_0 = arith.constant 0 : i32
    %c0_i32_1 = arith.constant 0 : i32
    return %arg0, %c0_i32, %c0_i32_0 : i32, i32, i32
  }
  func.func @transform_1(%arg0: i32) -> (i32, i32, i32) {
    %c0_i32 = arith.constant 0 : i32
    %c0_i32_0 = arith.constant 0 : i32
    %c0_i32_1 = arith.constant 0 : i32
    %c0_i32_2 = arith.constant 0 : i32
    return %c0_i32, %c0_i32_0, %c0_i32_1 : i32, i32, i32
  }
  func.func @transform_2(%arg0: i32) -> (i32, i32, i32) {
    %c0_i32 = arith.constant 0 : i32
    %c0_i32_0 = arith.constant 0 : i32
    %c0_i32_1 = arith.constant 0 : i32
    %c0_i32_2 = arith.constant 0 : i32
    return %c0_i32, %c0_i32_0, %c0_i32_1 : i32, i32, i32
  }
  func.func @transform_3(%arg0: i32) -> (i32, i32, i32) {
    %c0_i32 = arith.constant 0 : i32
    %c0_i32_0 = arith.constant 0 : i32
    %c0_i32_1 = arith.constant 0 : i32
    %c0_i32_2 = arith.constant 0 : i32
    return %c0_i32, %c0_i32_0, %c0_i32_1 : i32, i32, i32
  }
  func.func @transform_4(%arg0: i32) -> (i32, i32, i32) {
    %c0_i32 = arith.constant 0 : i32
    %c0_i32_0 = arith.constant 0 : i32
    %c0_i32_1 = arith.constant 0 : i32
    %c0_i32_2 = arith.constant 0 : i32
    return %c0_i32, %c0_i32_0, %c0_i32_1 : i32, i32, i32
  }
  func.func @transform_5(%arg0: i32) -> (i32, i32, i32) {
    %c0_i32 = arith.constant 0 : i32
    %c0_i32_0 = arith.constant 0 : i32
    %c0_i32_1 = arith.constant 0 : i32
    %c0_i32_2 = arith.constant 0 : i32
    return %c0_i32, %c0_i32_0, %c0_i32_1 : i32, i32, i32
  }
  func.func @transform_6(%arg0: i32) -> (i32, i32, i32) {
    %c0_i32 = arith.constant 0 : i32
    %c0_i32_0 = arith.constant 0 : i32
    %c0_i32_1 = arith.constant 0 : i32
    %c0_i32_2 = arith.constant 0 : i32
    return %c0_i32, %c0_i32_0, %c0_i32_1 : i32, i32, i32
  }
  func.func @transform_7(%arg0: i32) -> (i32, i32, i32) {
    %c0_i32 = arith.constant 0 : i32
    %c0_i32_0 = arith.constant 0 : i32
    %c0_i32_1 = arith.constant 0 : i32
    %c0_i32_2 = arith.constant 0 : i32
    return %c0_i32, %c0_i32_0, %c0_i32_1 : i32, i32, i32
  }
  func.func @transform_8(%arg0: i32) -> (i32, i32) {
    %c0_i32 = arith.constant 0 : i32
    %c0_i32_0 = arith.constant 0 : i32
    %c0_i32_1 = arith.constant 0 : i32
    return %c0_i32, %c0_i32_0 : i32, i32
  }
  func.func @transform_9(%arg0: i32) -> (i32, i32) {
    %c0_i32 = arith.constant 0 : i32
    %c0_i32_0 = arith.constant 0 : i32
    %c0_i32_1 = arith.constant 0 : i32
    return %c0_i32, %c0_i32_0 : i32, i32
  }
  func.func @transform_10(%arg0: i32) -> (i32, i32) {
    %c0_i32 = arith.constant 0 : i32
    %c0_i32_0 = arith.constant 0 : i32
    %c0_i32_1 = arith.constant 0 : i32
    return %c0_i32, %c0_i32_0 : i32, i32
  }
  func.func @transform_11(%arg0: i32) -> (i32, i32) {
    %c0_i32 = arith.constant 0 : i32
    %c0_i32_0 = arith.constant 0 : i32
    %c0_i32_1 = arith.constant 0 : i32
    return %c0_i32, %c0_i32_0 : i32, i32
  }
  func.func @transform_12(%arg0: i32) -> (i32, i32) {
    %c0_i32 = arith.constant 0 : i32
    %c0_i32_0 = arith.constant 0 : i32
    %c0_i32_1 = arith.constant 0 : i32
    return %c0_i32, %c0_i32_0 : i32, i32
  }
  func.func @transform_13(%arg0: i32) -> (i32, i32) {
    %c0_i32 = arith.constant 0 : i32
    %c0_i32_0 = arith.constant 0 : i32
    %c0_i32_1 = arith.constant 0 : i32
    return %c0_i32, %c0_i32_0 : i32, i32
  }
  func.func @transform_14(%arg0: i32) -> (i32, i32) {
    %c0_i32 = arith.constant 0 : i32
    %c0_i32_0 = arith.constant 0 : i32
    %c0_i32_1 = arith.constant 0 : i32
    return %c0_i32, %c0_i32_0 : i32, i32
  }
  func.func @transform_15(%arg0: i32) -> (i32, i32) {
    %c0_i32 = arith.constant 0 : i32
    %c0_i32_0 = arith.constant 0 : i32
    %c0_i32_1 = arith.constant 0 : i32
    return %c0_i32, %c0_i32_0 : i32, i32
  }
  func.func @transform_16(%arg0: i32) -> (i32, i32) {
    %c0_i32 = arith.constant 0 : i32
    %c0_i32_0 = arith.constant 0 : i32
    %c0_i32_1 = arith.constant 0 : i32
    return %c0_i32, %c0_i32_0 : i32, i32
  }
  func.func @transform_17(%arg0: i32) -> (i32, i32, i32) {
    %c0_i32 = arith.constant 0 : i32
    %c0_i32_0 = arith.constant 0 : i32
    %c0_i32_1 = arith.constant 0 : i32
    %c0_i32_2 = arith.constant 0 : i32
    return %c0_i32, %c0_i32_0, %c0_i32_1 : i32, i32, i32
  }
  func.func @transform_18(%arg0: i32) -> (i32, i32, i32) {
    %c0_i32 = arith.constant 0 : i32
    %c0_i32_0 = arith.constant 0 : i32
    %c0_i32_1 = arith.constant 0 : i32
    %c0_i32_2 = arith.constant 0 : i32
    return %c0_i32, %c0_i32_0, %c0_i32_1 : i32, i32, i32
  }
  func.func @transform_19(%arg0: i32) -> (i32, i32, i32) {
    %c0_i32 = arith.constant 0 : i32
    %c0_i32_0 = arith.constant 0 : i32
    %c0_i32_1 = arith.constant 0 : i32
    %c0_i32_2 = arith.constant 0 : i32
    return %c0_i32, %c0_i32_0, %c0_i32_1 : i32, i32, i32
  }
  func.func @transform_20(%arg0: i32) -> (i32, i32, i32) {
    %c0_i32 = arith.constant 0 : i32
    %c0_i32_0 = arith.constant 0 : i32
    %c0_i32_1 = arith.constant 0 : i32
    %c0_i32_2 = arith.constant 0 : i32
    return %c0_i32, %c0_i32_0, %c0_i32_1 : i32, i32, i32
  }
  func.func @transform_21(%arg0: i32) -> (i32, i32, i32) {
    %c0_i32 = arith.constant 0 : i32
    %c0_i32_0 = arith.constant 0 : i32
    %c0_i32_1 = arith.constant 0 : i32
    %c0_i32_2 = arith.constant 0 : i32
    return %c0_i32, %c0_i32_0, %c0_i32_1 : i32, i32, i32
  }
  func.func @transform_22(%arg0: i32) -> (i32, i32, i32) {
    %c0_i32 = arith.constant 0 : i32
    %c0_i32_0 = arith.constant 0 : i32
    %c0_i32_1 = arith.constant 0 : i32
    %c0_i32_2 = arith.constant 0 : i32
    return %c0_i32, %c0_i32_0, %c0_i32_1 : i32, i32, i32
  }
  func.func @transform_23(%arg0: i32) -> (i32, i32, i32) {
    %c0_i32 = arith.constant 0 : i32
    %c0_i32_0 = arith.constant 0 : i32
    %c0_i32_1 = arith.constant 0 : i32
    %c0_i32_2 = arith.constant 0 : i32
    return %c0_i32, %c0_i32_0, %c0_i32_1 : i32, i32, i32
  }
  func.func @transform_24(%arg0: i32) -> (i32, i32) {
    %c0_i32 = arith.constant 0 : i32
    %c0_i32_0 = arith.constant 0 : i32
    %c0_i32_1 = arith.constant 0 : i32
    return %c0_i32, %c0_i32_0 : i32, i32
  }
  func.func @transform_25(%arg0: i32) -> (i32, i32) {
    %c0_i32 = arith.constant 0 : i32
    %c0_i32_0 = arith.constant 0 : i32
    %c0_i32_1 = arith.constant 0 : i32
    return %c0_i32, %c0_i32_0 : i32, i32
  }
  func.func @transform_26(%arg0: i32) -> (i32, i32) {
    %c0_i32 = arith.constant 0 : i32
    %c0_i32_0 = arith.constant 0 : i32
    %c0_i32_1 = arith.constant 0 : i32
    return %c0_i32, %c0_i32_0 : i32, i32
  }
  func.func @transform_27(%arg0: i32) -> (i32, i32) {
    %c0_i32 = arith.constant 0 : i32
    %c0_i32_0 = arith.constant 0 : i32
    %c0_i32_1 = arith.constant 0 : i32
    return %c0_i32, %c0_i32_0 : i32, i32
  }
  func.func @transform_28(%arg0: i32) -> (i32, i32) {
    %c0_i32 = arith.constant 0 : i32
    %c0_i32_0 = arith.constant 0 : i32
    %c0_i32_1 = arith.constant 0 : i32
    return %c0_i32, %c0_i32_0 : i32, i32
  }
  func.func @transform_29(%arg0: i32) -> (i32, i32) {
    %c0_i32 = arith.constant 0 : i32
    %c0_i32_0 = arith.constant 0 : i32
    %c0_i32_1 = arith.constant 0 : i32
    return %c0_i32, %c0_i32_0 : i32, i32
  }
  func.func @transform_30(%arg0: i32) -> (i32, i32) {
    %c0_i32 = arith.constant 0 : i32
    %c0_i32_0 = arith.constant 0 : i32
    %c0_i32_1 = arith.constant 0 : i32
    return %c0_i32, %c0_i32_0 : i32, i32
  }
  func.func @transform_31(%arg0: i32) -> (i32, i32) {
    %c0_i32 = arith.constant 0 : i32
    %c0_i32_0 = arith.constant 0 : i32
    %c0_i32_1 = arith.constant 0 : i32
    return %c0_i32, %c0_i32_0 : i32, i32
  }
  func.func @transform_32(%arg0: i32) -> (i32, i32) {
    %c0_i32 = arith.constant 0 : i32
    %c0_i32_0 = arith.constant 0 : i32
    %c0_i32_1 = arith.constant 0 : i32
    return %c0_i32, %c0_i32_0 : i32, i32
  }
  func.func @transform_33(%arg0: i32) -> (i32, i32, i32) {
    %c0_i32 = arith.constant 0 : i32
    %c0_i32_0 = arith.constant 0 : i32
    %c0_i32_1 = arith.constant 0 : i32
    %c0_i32_2 = arith.constant 0 : i32
    return %c0_i32, %c0_i32_0, %c0_i32_1 : i32, i32, i32
  }
  func.func @transform_34(%arg0: i32) -> (i32, i32, i32) {
    %c0_i32 = arith.constant 0 : i32
    %c0_i32_0 = arith.constant 0 : i32
    %c0_i32_1 = arith.constant 0 : i32
    %c0_i32_2 = arith.constant 0 : i32
    return %c0_i32, %c0_i32_0, %c0_i32_1 : i32, i32, i32
  }
  func.func @transform_35(%arg0: i32) -> (i32, i32, i32) {
    %c0_i32 = arith.constant 0 : i32
    %c0_i32_0 = arith.constant 0 : i32
    %c0_i32_1 = arith.constant 0 : i32
    %c0_i32_2 = arith.constant 0 : i32
    return %c0_i32, %c0_i32_0, %c0_i32_1 : i32, i32, i32
  }
  func.func @transform_36(%arg0: i32) -> (i32, i32, i32) {
    %c0_i32 = arith.constant 0 : i32
    %c0_i32_0 = arith.constant 0 : i32
    %c0_i32_1 = arith.constant 0 : i32
    %c0_i32_2 = arith.constant 0 : i32
    return %c0_i32, %c0_i32_0, %c0_i32_1 : i32, i32, i32
  }
  func.func @transform_37(%arg0: i32) -> (i32, i32, i32) {
    %c0_i32 = arith.constant 0 : i32
    %c0_i32_0 = arith.constant 0 : i32
    %c0_i32_1 = arith.constant 0 : i32
    %c0_i32_2 = arith.constant 0 : i32
    return %c0_i32, %c0_i32_0, %c0_i32_1 : i32, i32, i32
  }
  func.func @transform_38(%arg0: i32) -> (i32, i32, i32) {
    %c0_i32 = arith.constant 0 : i32
    %c0_i32_0 = arith.constant 0 : i32
    %c0_i32_1 = arith.constant 0 : i32
    %c0_i32_2 = arith.constant 0 : i32
    return %c0_i32, %c0_i32_0, %c0_i32_1 : i32, i32, i32
  }
  func.func @transform_39(%arg0: i32) -> (i32, i32, i32) {
    %c0_i32 = arith.constant 0 : i32
    %c0_i32_0 = arith.constant 0 : i32
    %c0_i32_1 = arith.constant 0 : i32
    %c0_i32_2 = arith.constant 0 : i32
    return %c0_i32, %c0_i32_0, %c0_i32_1 : i32, i32, i32
  }
  func.func @transform_40(%arg0: i32) -> (i32, i32) {
    %c0_i32 = arith.constant 0 : i32
    %c0_i32_0 = arith.constant 0 : i32
    %c0_i32_1 = arith.constant 0 : i32
    return %c0_i32, %c0_i32_0 : i32, i32
  }
  func.func @transform_41(%arg0: i32) -> (i32, i32) {
    %c0_i32 = arith.constant 0 : i32
    %c0_i32_0 = arith.constant 0 : i32
    %c0_i32_1 = arith.constant 0 : i32
    return %c0_i32, %c0_i32_0 : i32, i32
  }
  func.func @transform_42(%arg0: i32) -> (i32, i32) {
    %c0_i32 = arith.constant 0 : i32
    %c0_i32_0 = arith.constant 0 : i32
    %c0_i32_1 = arith.constant 0 : i32
    return %c0_i32, %c0_i32_0 : i32, i32
  }
  func.func @transform_43(%arg0: i32) -> (i32, i32) {
    %c0_i32 = arith.constant 0 : i32
    %c0_i32_0 = arith.constant 0 : i32
    %c0_i32_1 = arith.constant 0 : i32
    return %c0_i32, %c0_i32_0 : i32, i32
  }
  func.func @transform_44(%arg0: i32) -> (i32, i32) {
    %c0_i32 = arith.constant 0 : i32
    %c0_i32_0 = arith.constant 0 : i32
    %c0_i32_1 = arith.constant 0 : i32
    return %c0_i32, %c0_i32_0 : i32, i32
  }
  func.func @transform_45(%arg0: i32) -> (i32, i32) {
    %c0_i32 = arith.constant 0 : i32
    %c0_i32_0 = arith.constant 0 : i32
    %c0_i32_1 = arith.constant 0 : i32
    return %c0_i32, %c0_i32_0 : i32, i32
  }
  func.func @transform_46(%arg0: i32) -> (i32, i32) {
    %c0_i32 = arith.constant 0 : i32
    %c0_i32_0 = arith.constant 0 : i32
    %c0_i32_1 = arith.constant 0 : i32
    return %c0_i32, %c0_i32_0 : i32, i32
  }
  func.func @transform_47(%arg0: i32) -> (i32, i32) {
    %c0_i32 = arith.constant 0 : i32
    %c0_i32_0 = arith.constant 0 : i32
    %c0_i32_1 = arith.constant 0 : i32
    return %c0_i32, %c0_i32_0 : i32, i32
  }
  func.func @transform_48(%arg0: i32) -> (i32, i32) {
    %c0_i32 = arith.constant 0 : i32
    %c0_i32_0 = arith.constant 0 : i32
    %c0_i32_1 = arith.constant 0 : i32
    return %c0_i32, %c0_i32_0 : i32, i32
  }
  func.func @transform_49(%arg0: i32) -> (i32, i32) {
    %c0_i32 = arith.constant 0 : i32
    %c0_i32_0 = arith.constant 0 : i32
    %c0_i32_1 = arith.constant 0 : i32
    return %c0_i32, %c0_i32_0 : i32, i32
  }
  func.func @transform_50(%arg0: i32) -> (i32, i32) {
    %c0_i32 = arith.constant 0 : i32
    %c0_i32_0 = arith.constant 0 : i32
    %c0_i32_1 = arith.constant 0 : i32
    return %c0_i32, %c0_i32_0 : i32, i32
  }
  func.func @transform_51(%arg0: i32) -> (i32, i32) {
    %c0_i32 = arith.constant 0 : i32
    %c0_i32_0 = arith.constant 0 : i32
    %c0_i32_1 = arith.constant 0 : i32
    return %c0_i32, %c0_i32_0 : i32, i32
  }
  func.func @transform_52(%arg0: i32) -> (i32, i32) {
    %c0_i32 = arith.constant 0 : i32
    %c0_i32_0 = arith.constant 0 : i32
    %c0_i32_1 = arith.constant 0 : i32
    return %c0_i32, %c0_i32_0 : i32, i32
  }
  func.func @transform_53(%arg0: i32) -> (i32, i32, i32) {
    %c0_i32 = arith.constant 0 : i32
    %c0_i32_0 = arith.constant 0 : i32
    %c0_i32_1 = arith.constant 0 : i32
    return %arg0, %c0_i32, %c0_i32_0 : i32, i32, i32
  }
}

</mosaic_0001>

<llo_original>
// kernel: transformer_classifier_forward.1
$region0: #{transformer_classifier_forward.1}
  #allocation0 [shape = 'u32[]', space=smem, size = 0x4, offset = 0x4, fixed_abs, tag = 'smem constant byte address 0x4 - core index']
  #allocation1 [shape = 'u32[72,128]{1,0:T(1,128)}', space=vmem, size = 0x9000, scoped, tag = 'internal scratch']
  %s0 = inlined_call_operand.smem [shape: u32[54], index: -1, kind: input, shape index: {}]
  %s1 = sld [smem:[%s0]]
  %s2 = scalar_lea.smem %s0, 1
  %s3 = sld [smem:[%s2]]
  %s4 = scalar_lea.smem %s0, 2
  %s5 = sld [smem:[%s4]]
  %s6 = scalar_lea.smem %s0, 3
  %s7 = sld [smem:[%s6]]
  %s8 = scalar_lea.smem %s0, 4
  %s9 = sld [smem:[%s8]]
  %s10 = scalar_lea.smem %s0, 5
  %s11 = sld [smem:[%s10]]
  %s12 = scalar_lea.smem %s0, 6
  %s13 = sld [smem:[%s12]]
  %s14 = scalar_lea.smem %s0, 7
  %s15 = sld [smem:[%s14]]
  %s16 = scalar_lea.smem %s0, 8
  %s17 = sld [smem:[%s16]]
  %s18 = scalar_lea.smem %s0, 9
  %s19 = sld [smem:[%s18]]
  %s20 = scalar_lea.smem %s0, 10
  %s21 = sld [smem:[%s20]]
  %s22 = scalar_lea.smem %s0, 11
  %s23 = sld [smem:[%s22]]
  %s24 = scalar_lea.smem %s0, 12
  %s25 = sld [smem:[%s24]]
  %s26 = scalar_lea.smem %s0, 13
  %s27 = sld [smem:[%s26]]
  %s28 = scalar_lea.smem %s0, 14
  %s29 = sld [smem:[%s28]]
  %s30 = scalar_lea.smem %s0, 15
  %s31 = sld [smem:[%s30]]
  %s32 = scalar_lea.smem %s0, 16
  %s33 = sld [smem:[%s32]]
  %s34 = scalar_lea.smem %s0, 17
  %s35 = sld [smem:[%s34]]
  %s36 = scalar_lea.smem %s0, 18
  %s37 = sld [smem:[%s36]]
  %s38 = scalar_lea.smem %s0, 19
  %s39 = sld [smem:[%s38]]
  %s40 = scalar_lea.smem %s0, 20
  %s41 = sld [smem:[%s40]]
  %s42 = scalar_lea.smem %s0, 21
  %s43 = sld [smem:[%s42]]
  %s44 = scalar_lea.smem %s0, 22
  %s45 = sld [smem:[%s44]]
  %s46 = scalar_lea.smem %s0, 23
  %s47 = sld [smem:[%s46]]
  %s48 = scalar_lea.smem %s0, 24
  %s49 = sld [smem:[%s48]]
  %s50 = scalar_lea.smem %s0, 25
  %s51 = sld [smem:[%s50]]
  %s52 = scalar_lea.smem %s0, 26
  %s53 = sld [smem:[%s52]]
  %s54 = scalar_lea.smem %s0, 27
  %s55 = sld [smem:[%s54]]
  %s56 = scalar_lea.smem %s0, 28
  %s57 = sld [smem:[%s56]]
  %s58 = scalar_lea.smem %s0, 29
  %s59 = sld [smem:[%s58]]
  %s60 = scalar_lea.smem %s0, 30
  %s61 = sld [smem:[%s60]]
  %s62 = scalar_lea.smem %s0, 31
  %s63 = sld [smem:[%s62]]
  %s64 = scalar_lea.smem %s0, 32
  %s65 = sld [smem:[%s64]]
  %s66 = scalar_lea.smem %s0, 33
  %s67 = sld [smem:[%s66]]
  %s68 = scalar_lea.smem %s0, 34
  %s69 = sld [smem:[%s68]]
  %s70 = scalar_lea.smem %s0, 35
  %s71 = sld [smem:[%s70]]
  %s72 = scalar_lea.smem %s0, 36
  %s73 = sld [smem:[%s72]]
  %s74 = scalar_lea.smem %s0, 37
  %s75 = sld [smem:[%s74]]
  %s76 = scalar_lea.smem %s0, 38
  %s77 = sld [smem:[%s76]]
  %s78 = scalar_lea.smem %s0, 39
  %s79 = sld [smem:[%s78]]
  %s80 = scalar_lea.smem %s0, 40
  %s81 = sld [smem:[%s80]]
  %s82 = scalar_lea.smem %s0, 41
  %s83 = sld [smem:[%s82]]
  %s84 = scalar_lea.smem %s0, 42
  %s85 = sld [smem:[%s84]]
  %s86 = scalar_lea.smem %s0, 43
  %s87 = sld [smem:[%s86]]
  %s88 = scalar_lea.smem %s0, 44
  %s89 = sld [smem:[%s88]]
  %s90 = scalar_lea.smem %s0, 45
  %s91 = sld [smem:[%s90]]
  %s92 = scalar_lea.smem %s0, 46
  %s93 = sld [smem:[%s92]]
  %s94 = scalar_lea.smem %s0, 47
  %s95 = sld [smem:[%s94]]
  %s96 = scalar_lea.smem %s0, 48
  %s97 = sld [smem:[%s96]]
  %s98 = scalar_lea.smem %s0, 49
  %s99 = sld [smem:[%s98]]
  %s100 = scalar_lea.smem %s0, 50
  %s101 = sld [smem:[%s100]]
  %s102 = scalar_lea.smem %s0, 51
  %s103 = sld [smem:[%s102]]
  %s104 = scalar_lea.smem %s0, 52
  %s105 = sld [smem:[%s104]]
  %s106 = scalar_lea.smem %s0, 53
  %s107 = sld [smem:[%s106]]
  %s108 = sld [smem:[#allocation0]]
  $region245: #{transformer_classifier_forward.1} parent=0
    _
  %s110 = ssub.s32 1, %s108
  %s111 = scalar_select 0, %s110, %s108
  $region1: #{transformer_classifier_forward.1} parent=0
    #allocation2 [shape = 'u8[1024]{0}', space=vmem, size = 0x400, scoped, tag = 'output window, operand 0']
    #allocation3 [shape = 's32[2]{0}', space=sflag, size = 0x8, scoped, tag = 'scoped memory for transformer_classifier_forward.1']
    %112 = vsyncpa [#allocation3], 0
    %s113 = scalar_lea.sflag [#allocation3], 1
    %114 = vsyncpa %s113, 0
    loop: start=0, step=1, limit=4
    $region2: #{transformer_classifier_forward.1} parent=1 // loop_pre_header
      _
    $region3: #{transformer_classifier_forward.1} parent=1 // loop_header
      %s116 = sphi 0, %s120
      %p117 = scmp.ge.s32.totalorder %s116, 4
      %s126 = sphi 0, %s128
      %s129 = sphi 0, %s126
      %s130 = sphi 0, %s129
      %s146 = sphi 0, %s130
      %s150 = sphi 0, %s150
      %s152 = sphi 0, %s150
      %s153 = sphi 0, %s152
      %s167 = sphi 0, %s153
      %s171 = sphi 0, %s171
      %s173 = sphi 0, %s171
      %s174 = sphi 0, %s173
      %s188 = sphi 0, %s174
      %s192 = sphi 0, %s192
      %s194 = sphi 0, %s192
      %s195 = sphi 0, %s194
      %s209 = sphi 0, %s195
      %s213 = sphi 0, %s213
      %s215 = sphi 0, %s213
      %s216 = sphi 0, %s215
      %s230 = sphi 0, %s216
      %s234 = sphi 0, %s234
      %s236 = sphi 0, %s234
      %s237 = sphi 0, %s236
      %s251 = sphi 0, %s237
      %s255 = sphi 0, %s255
      %s257 = sphi 0, %s255
      %s258 = sphi 0, %s257
      %s272 = sphi 0, %s258
      %s276 = sphi 0, %s276
      %s278 = sphi 0, %s276
      %s279 = sphi 0, %s278
      %s293 = sphi 0, %s279
      %s297 = sphi 0, %s297
      %s299 = sphi 0, %s297
      %s300 = sphi 0, %s299
      %s314 = sphi 0, %s300
      %s318 = sphi 0, %s318
      %s320 = sphi 0, %s318
      %s321 = sphi 0, %s320
      %s335 = sphi 0, %s321
      %s339 = sphi 0, %s339
      %s341 = sphi 0, %s339
      %s342 = sphi 0, %s341
      %s356 = sphi 0, %s342
      %s360 = sphi 0, %s360
      %s362 = sphi 0, %s360
      %s363 = sphi 0, %s362
      %s377 = sphi 0, %s363
      %s381 = sphi 0, %s381
      %s383 = sphi 0, %s381
      %s384 = sphi 0, %s383
      %s398 = sphi 0, %s384
      %s402 = sphi 0, %s402
      %s404 = sphi 0, %s402
      %s405 = sphi 0, %s404
      %s419 = sphi 0, %s405
      %s423 = sphi 0, %s423
      %s425 = sphi 0, %s423
      %s426 = sphi 0, %s425
      %s440 = sphi 0, %s426
      %s444 = sphi 0, %s444
      %s446 = sphi 0, %s444
      %s447 = sphi 0, %s446
      %s461 = sphi 0, %s447
      %s465 = sphi 0, %s465
      %s467 = sphi 0, %s465
      %s468 = sphi 0, %s467
      %s482 = sphi 0, %s468
      %s486 = sphi 0, %s486
      %s488 = sphi 0, %s486
      %s489 = sphi 0, %s488
      %s503 = sphi 0, %s489
      %s507 = sphi 0, %s507
      %s509 = sphi 0, %s507
      %s510 = sphi 0, %s509
      %s524 = sphi 0, %s510
      %s528 = sphi 0, %s528
      %s530 = sphi 0, %s528
      %s531 = sphi 0, %s530
      %s545 = sphi 0, %s531
      %s549 = sphi 0, %s549
      %s551 = sphi 0, %s549
      %s552 = sphi 0, %s551
      %s566 = sphi 0, %s552
      %s570 = sphi 0, %s570
      %s572 = sphi 0, %s570
      %s573 = sphi 0, %s572
      %s587 = sphi 0, %s573
      %s591 = sphi 0, %s591
      %s593 = sphi 0, %s591
      %s594 = sphi 0, %s593
      %s608 = sphi 0, %s594
      %s612 = sphi 0, %s612
      %s614 = sphi 0, %s612
      %s615 = sphi 0, %s614
      %s629 = sphi 0, %s615
      %s633 = sphi 0, %s633
      %s635 = sphi 0, %s633
      %s636 = sphi 0, %s635
      %s650 = sphi 0, %s636
      %s654 = sphi 0, %s654
      %s656 = sphi 0, %s654
      %s657 = sphi 0, %s656
      %s671 = sphi 0, %s657
      %s675 = sphi 0, %s675
      %s677 = sphi 0, %s675
      %s678 = sphi 0, %s677
      %s692 = sphi 0, %s678
      %s696 = sphi 0, %s696
      %s698 = sphi 0, %s696
      %s699 = sphi 0, %s698
      %s713 = sphi 0, %s699
      %s717 = sphi 0, %s717
      %s719 = sphi 0, %s717
      %s720 = sphi 0, %s719
      %s734 = sphi 0, %s720
      %s738 = sphi 0, %s738
      %s740 = sphi 0, %s738
      %s741 = sphi 0, %s740
      %s755 = sphi 0, %s741
      %s759 = sphi 0, %s759
      %s761 = sphi 0, %s759
      %s762 = sphi 0, %s761
      %s776 = sphi 0, %s762
      %s780 = sphi 0, %s780
      %s782 = sphi 0, %s780
      %s783 = sphi 0, %s782
      %s797 = sphi 0, %s783
      %s801 = sphi 0, %s801
      %s803 = sphi 0, %s801
      %s804 = sphi 0, %s803
      %s818 = sphi 0, %s804
      %s822 = sphi 0, %s822
      %s824 = sphi 0, %s822
      %s825 = sphi 0, %s824
      %s839 = sphi 0, %s825
      %s843 = sphi 0, %s843
      %s845 = sphi 0, %s843
      %s846 = sphi 0, %s845
      %s860 = sphi 0, %s846
      %s864 = sphi 0, %s864
      %s866 = sphi 0, %s864
      %s867 = sphi 0, %s866
      %s881 = sphi 0, %s867
      %s885 = sphi 0, %s885
      %s887 = sphi 0, %s885
      %s888 = sphi 0, %s887
      %s902 = sphi 0, %s888
      %s906 = sphi 0, %s906
      %s908 = sphi 0, %s906
      %s909 = sphi 0, %s908
      %s923 = sphi 0, %s909
      %s927 = sphi 0, %s927
      %s929 = sphi 0, %s927
      %s930 = sphi 0, %s929
      %s944 = sphi 0, %s930
      %s948 = sphi 0, %s948
      %s950 = sphi 0, %s948
      %s951 = sphi 0, %s950
      %s965 = sphi 0, %s951
      %s969 = sphi 0, %s969
      %s971 = sphi 0, %s969
      %s972 = sphi 0, %s971
      %s986 = sphi 0, %s972
      %s990 = sphi 0, %s990
      %s992 = sphi 0, %s990
      %s993 = sphi 0, %s992
      %s1007 = sphi 0, %s993
      %s1011 = sphi 0, %s1011
      %s1013 = sphi 0, %s1011
      %s1014 = sphi 0, %s1013
      %s1028 = sphi 0, %s1014
      %s1032 = sphi 0, %s1032
      %s1034 = sphi 0, %s1032
      %s1035 = sphi 0, %s1034
      %s1049 = sphi 0, %s1035
      %s1053 = sphi 0, %s1053
      %s1055 = sphi 0, %s1053
      %s1056 = sphi 0, %s1055
      %s1070 = sphi 0, %s1056
      %s1074 = sphi 0, %s1074
      %s1076 = sphi 0, %s1074
      %s1077 = sphi 0, %s1076
      %s1091 = sphi 0, %s1077
      %s1095 = sphi 0, %s1095
      %s1097 = sphi 0, %s1095
      %s1098 = sphi 0, %s1097
      %s1112 = sphi 0, %s1098
      %s1116 = sphi 0, %s1116
      %s1118 = sphi 0, %s1116
      %s1119 = sphi 0, %s1118
      %s1133 = sphi 0, %s1119
      %s1137 = sphi 0, %s1137
      %s1139 = sphi 0, %s1137
      %s1140 = sphi 0, %s1139
      %s1154 = sphi 0, %s1140
      %s1158 = sphi 0, %s1158
      %s1160 = sphi 0, %s1158
      %s1161 = sphi 0, %s1160
      %s1175 = sphi 0, %s1161
      %s1179 = sphi 0, %s1179
      %s1181 = sphi 0, %s1179
      %s1182 = sphi 0, %s1181
      %s1196 = sphi 0, %s1182
      %s1200 = sphi 0, %s1200
      %s1202 = sphi 0, %s1200
      %s1203 = sphi 0, %s1202
      %s1217 = sphi 0, %s1203
      %s1221 = sphi 0, %s1221
      %s1223 = sphi 0, %s1221
      %s1224 = sphi 0, %s1223
      %s1238 = sphi 0, %s1224
      %s1244 = sphi 0, %s1246
      %s1247 = sphi 0, %s1244
      %s1248 = sphi 0, %s1247
      %s1264 = sphi 0, %s1248
    $region4: #{transformer_classifier_forward.1} parent=1 // loop_header_branch
      %119 = sbr.rel (%p117) target = $region8
    $region5: #{transformer_classifier_forward.1} parent=1 // loop_body
      %s121 = ssub.s32 %s116, 1
      %s122 = ssub.s32 %s116, 2
      %s123 = sadd.s32 %s116, 1
      %s124 = ssub.s32 %s116, %s123
      %p125 = scmp.eq.s32.totalorder %s124, 0
      %s127 = sadd.s32 %s126, 1
      %s128 = scalar_select %p125, %s126, %s127
      %p131 = pneg %p125
      %p132 = scmp.eq.s32.totalorder %s116, 1
      %p133 = por %p131, %p132
      %p134 = scmp.ne.s32.totalorder %s126, %s129
      %p135 = scmp.eq.s32.totalorder %s116, 0
      %p136 = por %p134, %p135
      %p137 = scmp.ne.s32.totalorder %s126, %s129
      %p138 = scmp.eq.s32.totalorder %s121, 1
      %p139 = por %p137, %p138
      %p140 = scmp.ne.s32.totalorder %s129, %s130
      %p141 = scmp.eq.s32.totalorder %s121, 0
      %p142 = por %p140, %p141
      %p143 = scmp.ne.s32.totalorder %s129, %s130
      %p144 = scmp.eq.s32.totalorder %s122, 1
      %p145 = por %p143, %p144
      %p147 = scmp.ne.s32.totalorder %s130, %s146
      %p148 = scmp.eq.s32.totalorder %s122, 0
      %p149 = por %p147, %p148
      %s151 = sadd.s32 %s150, 1
      %p154 = scmp.eq.s32.totalorder %s116, 1
      %p155 = scmp.ne.s32.totalorder %s150, %s152
      %p156 = scmp.eq.s32.totalorder %s116, 0
      %p157 = por %p155, %p156
      %p158 = scmp.ne.s32.totalorder %s150, %s152
      %p159 = scmp.eq.s32.totalorder %s121, 1
      %p160 = por %p158, %p159
      %p161 = scmp.ne.s32.totalorder %s152, %s153
      %p162 = scmp.eq.s32.totalorder %s121, 0
      %p163 = por %p161, %p162
      %p164 = scmp.ne.s32.totalorder %s152, %s153
      %p165 = scmp.eq.s32.totalorder %s122, 1
      %p166 = por %p164, %p165
      %p168 = scmp.ne.s32.totalorder %s153, %s167
      %p169 = scmp.eq.s32.totalorder %s122, 0
      %p170 = por %p168, %p169
      %s172 = sadd.s32 %s171, 1
      %p175 = scmp.eq.s32.totalorder %s116, 1
      %p176 = scmp.ne.s32.totalorder %s171, %s173
      %p177 = scmp.eq.s32.totalorder %s116, 0
      %p178 = por %p176, %p177
      %p179 = scmp.ne.s32.totalorder %s171, %s173
      %p180 = scmp.eq.s32.totalorder %s121, 1
      %p181 = por %p179, %p180
      %p182 = scmp.ne.s32.totalorder %s173, %s174
      %p183 = scmp.eq.s32.totalorder %s121, 0
      %p184 = por %p182, %p183
      %p185 = scmp.ne.s32.totalorder %s173, %s174
      %p186 = scmp.eq.s32.totalorder %s122, 1
      %p187 = por %p185, %p186
      %p189 = scmp.ne.s32.totalorder %s174, %s188
      %p190 = scmp.eq.s32.totalorder %s122, 0
      %p191 = por %p189, %p190
      %s193 = sadd.s32 %s192, 1
      %p196 = scmp.eq.s32.totalorder %s116, 1
      %p197 = scmp.ne.s32.totalorder %s192, %s194
      %p198 = scmp.eq.s32.totalorder %s116, 0
      %p199 = por %p197, %p198
      %p200 = scmp.ne.s32.totalorder %s192, %s194
      %p201 = scmp.eq.s32.totalorder %s121, 1
      %p202 = por %p200, %p201
      %p203 = scmp.ne.s32.totalorder %s194, %s195
      %p204 = scmp.eq.s32.totalorder %s121, 0
      %p205 = por %p203, %p204
      %p206 = scmp.ne.s32.totalorder %s194, %s195
      %p207 = scmp.eq.s32.totalorder %s122, 1
      %p208 = por %p206, %p207
      %p210 = scmp.ne.s32.totalorder %s195, %s209
      %p211 = scmp.eq.s32.totalorder %s122, 0
      %p212 = por %p210, %p211
      %s214 = sadd.s32 %s213, 1
      %p217 = scmp.eq.s32.totalorder %s116, 1
      %p218 = scmp.ne.s32.totalorder %s213, %s215
      %p219 = scmp.eq.s32.totalorder %s116, 0
      %p220 = por %p218, %p219
      %p221 = scmp.ne.s32.totalorder %s213, %s215
      %p222 = scmp.eq.s32.totalorder %s121, 1
      %p223 = por %p221, %p222
      %p224 = scmp.ne.s32.totalorder %s215, %s216
      %p225 = scmp.eq.s32.totalorder %s121, 0
      %p226 = por %p224, %p225
      %p227 = scmp.ne.s32.totalorder %s215, %s216
      %p228 = scmp.eq.s32.totalorder %s122, 1
      %p229 = por %p227, %p228
      %p231 = scmp.ne.s32.totalorder %s216, %s230
      %p232 = scmp.eq.s32.totalorder %s122, 0
      %p233 = por %p231, %p232
      %s235 = sadd.s32 %s234, 1
      %p238 = scmp.eq.s32.totalorder %s116, 1
      %p239 = scmp.ne.s32.totalorder %s234, %s236
      %p240 = scmp.eq.s32.totalorder %s116, 0
      %p241 = por %p239, %p240
      %p242 = scmp.ne.s32.totalorder %s234, %s236
      %p243 = scmp.eq.s32.totalorder %s121, 1
      %p244 = por %p242, %p243
      %p245 = scmp.ne.s32.totalorder %s236, %s237
      %p246 = scmp.eq.s32.totalorder %s121, 0
      %p247 = por %p245, %p246
      %p248 = scmp.ne.s32.totalorder %s236, %s237
      %p249 = scmp.eq.s32.totalorder %s122, 1
      %p250 = por %p248, %p249
      %p252 = scmp.ne.s32.totalorder %s237, %s251
      %p253 = scmp.eq.s32.totalorder %s122, 0
      %p254 = por %p252, %p253
      %s256 = sadd.s32 %s255, 1
      %p259 = scmp.eq.s32.totalorder %s116, 1
      %p260 = scmp.ne.s32.totalorder %s255, %s257
      %p261 = scmp.eq.s32.totalorder %s116, 0
      %p262 = por %p260, %p261
      %p263 = scmp.ne.s32.totalorder %s255, %s257
      %p264 = scmp.eq.s32.totalorder %s121, 1
      %p265 = por %p263, %p264
      %p266 = scmp.ne.s32.totalorder %s257, %s258
      %p267 = scmp.eq.s32.totalorder %s121, 0
      %p268 = por %p266, %p267
      %p269 = scmp.ne.s32.totalorder %s257, %s258
      %p270 = scmp.eq.s32.totalorder %s122, 1
      %p271 = por %p269, %p270
      %p273 = scmp.ne.s32.totalorder %s258, %s272
      %p274 = scmp.eq.s32.totalorder %s122, 0
      %p275 = por %p273, %p274
      %s277 = sadd.s32 %s276, 1
      %p280 = scmp.eq.s32.totalorder %s116, 1
      %p281 = scmp.ne.s32.totalorder %s276, %s278
      %p282 = scmp.eq.s32.totalorder %s116, 0
      %p283 = por %p281, %p282
      %p284 = scmp.ne.s32.totalorder %s276, %s278
      %p285 = scmp.eq.s32.totalorder %s121, 1
      %p286 = por %p284, %p285
      %p287 = scmp.ne.s32.totalorder %s278, %s279
      %p288 = scmp.eq.s32.totalorder %s121, 0
      %p289 = por %p287, %p288
      %p290 = scmp.ne.s32.totalorder %s278, %s279
      %p291 = scmp.eq.s32.totalorder %s122, 1
      %p292 = por %p290, %p291
      %p294 = scmp.ne.s32.totalorder %s279, %s293
      %p295 = scmp.eq.s32.totalorder %s122, 0
      %p296 = por %p294, %p295
      %s298 = sadd.s32 %s297, 1
      %p301 = scmp.eq.s32.totalorder %s116, 1
      %p302 = scmp.ne.s32.totalorder %s297, %s299
      %p303 = scmp.eq.s32.totalorder %s116, 0
      %p304 = por %p302, %p303
      %p305 = scmp.ne.s32.totalorder %s297, %s299
      %p306 = scmp.eq.s32.totalorder %s121, 1
      %p307 = por %p305, %p306
      %p308 = scmp.ne.s32.totalorder %s299, %s300
      %p309 = scmp.eq.s32.totalorder %s121, 0
      %p310 = por %p308, %p309
      %p311 = scmp.ne.s32.totalorder %s299, %s300
      %p312 = scmp.eq.s32.totalorder %s122, 1
      %p313 = por %p311, %p312
      %p315 = scmp.ne.s32.totalorder %s300, %s314
      %p316 = scmp.eq.s32.totalorder %s122, 0
      %p317 = por %p315, %p316
      %s319 = sadd.s32 %s318, 1
      %p322 = scmp.eq.s32.totalorder %s116, 1
      %p323 = scmp.ne.s32.totalorder %s318, %s320
      %p324 = scmp.eq.s32.totalorder %s116, 0
      %p325 = por %p323, %p324
      %p326 = scmp.ne.s32.totalorder %s318, %s320
      %p327 = scmp.eq.s32.totalorder %s121, 1
      %p328 = por %p326, %p327
      %p329 = scmp.ne.s32.totalorder %s320, %s321
      %p330 = scmp.eq.s32.totalorder %s121, 0
      %p331 = por %p329, %p330
      %p332 = scmp.ne.s32.totalorder %s320, %s321
      %p333 = scmp.eq.s32.totalorder %s122, 1
      %p334 = por %p332, %p333
      %p336 = scmp.ne.s32.totalorder %s321, %s335
      %p337 = scmp.eq.s32.totalorder %s122, 0
      %p338 = por %p336, %p337
      %s340 = sadd.s32 %s339, 1
      %p343 = scmp.eq.s32.totalorder %s116, 1
      %p344 = scmp.ne.s32.totalorder %s339, %s341
      %p345 = scmp.eq.s32.totalorder %s116, 0
      %p346 = por %p344, %p345
      %p347 = scmp.ne.s32.totalorder %s339, %s341
      %p348 = scmp.eq.s32.totalorder %s121, 1
      %p349 = por %p347, %p348
      %p350 = scmp.ne.s32.totalorder %s341, %s342
      %p351 = scmp.eq.s32.totalorder %s121, 0
      %p352 = por %p350, %p351
      %p353 = scmp.ne.s32.totalorder %s341, %s342
      %p354 = scmp.eq.s32.totalorder %s122, 1
      %p355 = por %p353, %p354
      %p357 = scmp.ne.s32.totalorder %s342, %s356
      %p358 = scmp.eq.s32.totalorder %s122, 0
      %p359 = por %p357, %p358
      %s361 = sadd.s32 %s360, 1
      %p364 = scmp.eq.s32.totalorder %s116, 1
      %p365 = scmp.ne.s32.totalorder %s360, %s362
      %p366 = scmp.eq.s32.totalorder %s116, 0
      %p367 = por %p365, %p366
      %p368 = scmp.ne.s32.totalorder %s360, %s362
      %p369 = scmp.eq.s32.totalorder %s121, 1
      %p370 = por %p368, %p369
      %p371 = scmp.ne.s32.totalorder %s362, %s363
      %p372 = scmp.eq.s32.totalorder %s121, 0
      %p373 = por %p371, %p372
      %p374 = scmp.ne.s32.totalorder %s362, %s363
      %p375 = scmp.eq.s32.totalorder %s122, 1
      %p376 = por %p374, %p375
      %p378 = scmp.ne.s32.totalorder %s363, %s377
      %p379 = scmp.eq.s32.totalorder %s122, 0
      %p380 = por %p378, %p379
      %s382 = sadd.s32 %s381, 1
      %p385 = scmp.eq.s32.totalorder %s116, 1
      %p386 = scmp.ne.s32.totalorder %s381, %s383
      %p387 = scmp.eq.s32.totalorder %s116, 0
      %p388 = por %p386, %p387
      %p389 = scmp.ne.s32.totalorder %s381, %s383
      %p390 = scmp.eq.s32.totalorder %s121, 1
      %p391 = por %p389, %p390
      %p392 = scmp.ne.s32.totalorder %s383, %s384
      %p393 = scmp.eq.s32.totalorder %s121, 0
      %p394 = por %p392, %p393
      %p395 = scmp.ne.s32.totalorder %s383, %s384
      %p396 = scmp.eq.s32.totalorder %s122, 1
      %p397 = por %p395, %p396
      %p399 = scmp.ne.s32.totalorder %s384, %s398
      %p400 = scmp.eq.s32.totalorder %s122, 0
      %p401 = por %p399, %p400
      %s403 = sadd.s32 %s402, 1
      %p406 = scmp.eq.s32.totalorder %s116, 1
      %p407 = scmp.ne.s32.totalorder %s402, %s404
      %p408 = scmp.eq.s32.totalorder %s116, 0
      %p409 = por %p407, %p408
      %p410 = scmp.ne.s32.totalorder %s402, %s404
      %p411 = scmp.eq.s32.totalorder %s121, 1
      %p412 = por %p410, %p411
      %p413 = scmp.ne.s32.totalorder %s404, %s405
      %p414 = scmp.eq.s32.totalorder %s121, 0
      %p415 = por %p413, %p414
      %p416 = scmp.ne.s32.totalorder %s404, %s405
      %p417 = scmp.eq.s32.totalorder %s122, 1
      %p418 = por %p416, %p417
      %p420 = scmp.ne.s32.totalorder %s405, %s419
      %p421 = scmp.eq.s32.totalorder %s122, 0
      %p422 = por %p420, %p421
      %s424 = sadd.s32 %s423, 1
      %p427 = scmp.eq.s32.totalorder %s116, 1
      %p428 = scmp.ne.s32.totalorder %s423, %s425
      %p429 = scmp.eq.s32.totalorder %s116, 0
      %p430 = por %p428, %p429
      %p431 = scmp.ne.s32.totalorder %s423, %s425
      %p432 = scmp.eq.s32.totalorder %s121, 1
      %p433 = por %p431, %p432
      %p434 = scmp.ne.s32.totalorder %s425, %s426
      %p435 = scmp.eq.s32.totalorder %s121, 0
      %p436 = por %p434, %p435
      %p437 = scmp.ne.s32.totalorder %s425, %s426
      %p438 = scmp.eq.s32.totalorder %s122, 1
      %p439 = por %p437, %p438
      %p441 = scmp.ne.s32.totalorder %s426, %s440
      %p442 = scmp.eq.s32.totalorder %s122, 0
      %p443 = por %p441, %p442
      %s445 = sadd.s32 %s444, 1
      %p448 = scmp.eq.s32.totalorder %s116, 1
      %p449 = scmp.ne.s32.totalorder %s444, %s446
      %p450 = scmp.eq.s32.totalorder %s116, 0
      %p451 = por %p449, %p450
      %p452 = scmp.ne.s32.totalorder %s444, %s446
      %p453 = scmp.eq.s32.totalorder %s121, 1
      %p454 = por %p452, %p453
      %p455 = scmp.ne.s32.totalorder %s446, %s447
      %p456 = scmp.eq.s32.totalorder %s121, 0
      %p457 = por %p455, %p456
      %p458 = scmp.ne.s32.totalorder %s446, %s447
      %p459 = scmp.eq.s32.totalorder %s122, 1
      %p460 = por %p458, %p459
      %p462 = scmp.ne.s32.totalorder %s447, %s461
      %p463 = scmp.eq.s32.totalorder %s122, 0
      %p464 = por %p462, %p463
      %s466 = sadd.s32 %s465, 1
      %p469 = scmp.eq.s32.totalorder %s116, 1
      %p470 = scmp.ne.s32.totalorder %s465, %s467
      %p471 = scmp.eq.s32.totalorder %s116, 0
      %p472 = por %p470, %p471
      %p473 = scmp.ne.s32.totalorder %s465, %s467
      %p474 = scmp.eq.s32.totalorder %s121, 1
      %p475 = por %p473, %p474
      %p476 = scmp.ne.s32.totalorder %s467, %s468
      %p477 = scmp.eq.s32.totalorder %s121, 0
      %p478 = por %p476, %p477
      %p479 = scmp.ne.s32.totalorder %s467, %s468
      %p480 = scmp.eq.s32.totalorder %s122, 1
      %p481 = por %p479, %p480
      %p483 = scmp.ne.s32.totalorder %s468, %s482
      %p484 = scmp.eq.s32.totalorder %s122, 0
      %p485 = por %p483, %p484
      %s487 = sadd.s32 %s486, 1
      %p490 = scmp.eq.s32.totalorder %s116, 1
      %p491 = scmp.ne.s32.totalorder %s486, %s488
      %p492 = scmp.eq.s32.totalorder %s116, 0
      %p493 = por %p491, %p492
      %p494 = scmp.ne.s32.totalorder %s486, %s488
      %p495 = scmp.eq.s32.totalorder %s121, 1
      %p496 = por %p494, %p495
      %p497 = scmp.ne.s32.totalorder %s488, %s489
      %p498 = scmp.eq.s32.totalorder %s121, 0
      %p499 = por %p497, %p498
      %p500 = scmp.ne.s32.totalorder %s488, %s489
      %p501 = scmp.eq.s32.totalorder %s122, 1
      %p502 = por %p500, %p501
      %p504 = scmp.ne.s32.totalorder %s489, %s503
      %p505 = scmp.eq.s32.totalorder %s122, 0
      %p506 = por %p504, %p505
      %s508 = sadd.s32 %s507, 1
      %p511 = scmp.eq.s32.totalorder %s116, 1
      %p512 = scmp.ne.s32.totalorder %s507, %s509
      %p513 = scmp.eq.s32.totalorder %s116, 0
      %p514 = por %p512, %p513
      %p515 = scmp.ne.s32.totalorder %s507, %s509
      %p516 = scmp.eq.s32.totalorder %s121, 1
      %p517 = por %p515, %p516
      %p518 = scmp.ne.s32.totalorder %s509, %s510
      %p519 = scmp.eq.s32.totalorder %s121, 0
      %p520 = por %p518, %p519
      %p521 = scmp.ne.s32.totalorder %s509, %s510
      %p522 = scmp.eq.s32.totalorder %s122, 1
      %p523 = por %p521, %p522
      %p525 = scmp.ne.s32.totalorder %s510, %s524
      %p526 = scmp.eq.s32.totalorder %s122, 0
      %p527 = por %p525, %p526
      %s529 = sadd.s32 %s528, 1
      %p532 = scmp.eq.s32.totalorder %s116, 1
      %p533 = scmp.ne.s32.totalorder %s528, %s530
      %p534 = scmp.eq.s32.totalorder %s116, 0
      %p535 = por %p533, %p534
      %p536 = scmp.ne.s32.totalorder %s528, %s530
      %p537 = scmp.eq.s32.totalorder %s121, 1
      %p538 = por %p536, %p537
      %p539 = scmp.ne.s32.totalorder %s530, %s531
      %p540 = scmp.eq.s32.totalorder %s121, 0
      %p541 = por %p539, %p540
      %p542 = scmp.ne.s32.totalorder %s530, %s531
      %p543 = scmp.eq.s32.totalorder %s122, 1
      %p544 = por %p542, %p543
      %p546 = scmp.ne.s32.totalorder %s531, %s545
      %p547 = scmp.eq.s32.totalorder %s122, 0
      %p548 = por %p546, %p547
      %s550 = sadd.s32 %s549, 1
      %p553 = scmp.eq.s32.totalorder %s116, 1
      %p554 = scmp.ne.s32.totalorder %s549, %s551
      %p555 = scmp.eq.s32.totalorder %s116, 0
      %p556 = por %p554, %p555
      %p557 = scmp.ne.s32.totalorder %s549, %s551
      %p558 = scmp.eq.s32.totalorder %s121, 1
      %p559 = por %p557, %p558
      %p560 = scmp.ne.s32.totalorder %s551, %s552
      %p561 = scmp.eq.s32.totalorder %s121, 0
      %p562 = por %p560, %p561
      %p563 = scmp.ne.s32.totalorder %s551, %s552
      %p564 = scmp.eq.s32.totalorder %s122, 1
      %p565 = por %p563, %p564
      %p567 = scmp.ne.s32.totalorder %s552, %s566
      %p568 = scmp.eq.s32.totalorder %s122, 0
      %p569 = por %p567, %p568
      %s571 = sadd.s32 %s570, 1
      %p574 = scmp.eq.s32.totalorder %s116, 1
      %p575 = scmp.ne.s32.totalorder %s570, %s572
      %p576 = scmp.eq.s32.totalorder %s116, 0
      %p577 = por %p575, %p576
      %p578 = scmp.ne.s32.totalorder %s570, %s572
      %p579 = scmp.eq.s32.totalorder %s121, 1
      %p580 = por %p578, %p579
      %p581 = scmp.ne.s32.totalorder %s572, %s573
      %p582 = scmp.eq.s32.totalorder %s121, 0
      %p583 = por %p581, %p582
      %p584 = scmp.ne.s32.totalorder %s572, %s573
      %p585 = scmp.eq.s32.totalorder %s122, 1
      %p586 = por %p584, %p585
      %p588 = scmp.ne.s32.totalorder %s573, %s587
      %p589 = scmp.eq.s32.totalorder %s122, 0
      %p590 = por %p588, %p589
      %s592 = sadd.s32 %s591, 1
      %p595 = scmp.eq.s32.totalorder %s116, 1
      %p596 = scmp.ne.s32.totalorder %s591, %s593
      %p597 = scmp.eq.s32.totalorder %s116, 0
      %p598 = por %p596, %p597
      %p599 = scmp.ne.s32.totalorder %s591, %s593
      %p600 = scmp.eq.s32.totalorder %s121, 1
      %p601 = por %p599, %p600
      %p602 = scmp.ne.s32.totalorder %s593, %s594
      %p603 = scmp.eq.s32.totalorder %s121, 0
      %p604 = por %p602, %p603
      %p605 = scmp.ne.s32.totalorder %s593, %s594
      %p606 = scmp.eq.s32.totalorder %s122, 1
      %p607 = por %p605, %p606
      %p609 = scmp.ne.s32.totalorder %s594, %s608
      %p610 = scmp.eq.s32.totalorder %s122, 0
      %p611 = por %p609, %p610
      %s613 = sadd.s32 %s612, 1
      %p616 = scmp.eq.s32.totalorder %s116, 1
      %p617 = scmp.ne.s32.totalorder %s612, %s614
      %p618 = scmp.eq.s32.totalorder %s116, 0
      %p619 = por %p617, %p618
      %p620 = scmp.ne.s32.totalorder %s612, %s614
      %p621 = scmp.eq.s32.totalorder %s121, 1
      %p622 = por %p620, %p621
      %p623 = scmp.ne.s32.totalorder %s614, %s615
      %p624 = scmp.eq.s32.totalorder %s121, 0
      %p625 = por %p623, %p624
      %p626 = scmp.ne.s32.totalorder %s614, %s615
      %p627 = scmp.eq.s32.totalorder %s122, 1
      %p628 = por %p626, %p627
      %p630 = scmp.ne.s32.totalorder %s615, %s629
      %p631 = scmp.eq.s32.totalorder %s122, 0
      %p632 = por %p630, %p631
      %s634 = sadd.s32 %s633, 1
      %p637 = scmp.eq.s32.totalorder %s116, 1
      %p638 = scmp.ne.s32.totalorder %s633, %s635
      %p639 = scmp.eq.s32.totalorder %s116, 0
      %p640 = por %p638, %p639
      %p641 = scmp.ne.s32.totalorder %s633, %s635
      %p642 = scmp.eq.s32.totalorder %s121, 1
      %p643 = por %p641, %p642
      %p644 = scmp.ne.s32.totalorder %s635, %s636
      %p645 = scmp.eq.s32.totalorder %s121, 0
      %p646 = por %p644, %p645
      %p647 = scmp.ne.s32.totalorder %s635, %s636
      %p648 = scmp.eq.s32.totalorder %s122, 1
      %p649 = por %p647, %p648
      %p651 = scmp.ne.s32.totalorder %s636, %s650
      %p652 = scmp.eq.s32.totalorder %s122, 0
      %p653 = por %p651, %p652
      %s655 = sadd.s32 %s654, 1
      %p658 = scmp.eq.s32.totalorder %s116, 1
      %p659 = scmp.ne.s32.totalorder %s654, %s656
      %p660 = scmp.eq.s32.totalorder %s116, 0
      %p661 = por %p659, %p660
      %p662 = scmp.ne.s32.totalorder %s654, %s656
      %p663 = scmp.eq.s32.totalorder %s121, 1
      %p664 = por %p662, %p663
      %p665 = scmp.ne.s32.totalorder %s656, %s657
      %p666 = scmp.eq.s32.totalorder %s121, 0
      %p667 = por %p665, %p666
      %p668 = scmp.ne.s32.totalorder %s656, %s657
      %p669 = scmp.eq.s32.totalorder %s122, 1
      %p670 = por %p668, %p669
      %p672 = scmp.ne.s32.totalorder %s657, %s671
      %p673 = scmp.eq.s32.totalorder %s122, 0
      %p674 = por %p672, %p673
      %s676 = sadd.s32 %s675, 1
      %p679 = scmp.eq.s32.totalorder %s116, 1
      %p680 = scmp.ne.s32.totalorder %s675, %s677
      %p681 = scmp.eq.s32.totalorder %s116, 0
      %p682 = por %p680, %p681
      %p683 = scmp.ne.s32.totalorder %s675, %s677
      %p684 = scmp.eq.s32.totalorder %s121, 1
      %p685 = por %p683, %p684
      %p686 = scmp.ne.s32.totalorder %s677, %s678
      %p687 = scmp.eq.s32.totalorder %s121, 0
      %p688 = por %p686, %p687
      %p689 = scmp.ne.s32.totalorder %s677, %s678
      %p690 = scmp.eq.s32.totalorder %s122, 1
      %p691 = por %p689, %p690
      %p693 = scmp.ne.s32.totalorder %s678, %s692
      %p694 = scmp.eq.s32.totalorder %s122, 0
      %p695 = por %p693, %p694
      %s697 = sadd.s32 %s696, 1
      %p700 = scmp.eq.s32.totalorder %s116, 1
      %p701 = scmp.ne.s32.totalorder %s696, %s698
      %p702 = scmp.eq.s32.totalorder %s116, 0
      %p703 = por %p701, %p702
      %p704 = scmp.ne.s32.totalorder %s696, %s698
      %p705 = scmp.eq.s32.totalorder %s121, 1
      %p706 = por %p704, %p705
      %p707 = scmp.ne.s32.totalorder %s698, %s699
      %p708 = scmp.eq.s32.totalorder %s121, 0
      %p709 = por %p707, %p708
      %p710 = scmp.ne.s32.totalorder %s698, %s699
      %p711 = scmp.eq.s32.totalorder %s122, 1
      %p712 = por %p710, %p711
      %p714 = scmp.ne.s32.totalorder %s699, %s713
      %p715 = scmp.eq.s32.totalorder %s122, 0
      %p716 = por %p714, %p715
      %s718 = sadd.s32 %s717, 1
      %p721 = scmp.eq.s32.totalorder %s116, 1
      %p722 = scmp.ne.s32.totalorder %s717, %s719
      %p723 = scmp.eq.s32.totalorder %s116, 0
      %p724 = por %p722, %p723
      %p725 = scmp.ne.s32.totalorder %s717, %s719
      %p726 = scmp.eq.s32.totalorder %s121, 1
      %p727 = por %p725, %p726
      %p728 = scmp.ne.s32.totalorder %s719, %s720
      %p729 = scmp.eq.s32.totalorder %s121, 0
      %p730 = por %p728, %p729
      %p731 = scmp.ne.s32.totalorder %s719, %s720
      %p732 = scmp.eq.s32.totalorder %s122, 1
      %p733 = por %p731, %p732
      %p735 = scmp.ne.s32.totalorder %s720, %s734
      %p736 = scmp.eq.s32.totalorder %s122, 0
      %p737 = por %p735, %p736
      %s739 = sadd.s32 %s738, 1
      %p742 = scmp.eq.s32.totalorder %s116, 1
      %p743 = scmp.ne.s32.totalorder %s738, %s740
      %p744 = scmp.eq.s32.totalorder %s116, 0
      %p745 = por %p743, %p744
      %p746 = scmp.ne.s32.totalorder %s738, %s740
      %p747 = scmp.eq.s32.totalorder %s121, 1
      %p748 = por %p746, %p747
      %p749 = scmp.ne.s32.totalorder %s740, %s741
      %p750 = scmp.eq.s32.totalorder %s121, 0
      %p751 = por %p749, %p750
      %p752 = scmp.ne.s32.totalorder %s740, %s741
      %p753 = scmp.eq.s32.totalorder %s122, 1
      %p754 = por %p752, %p753
      %p756 = scmp.ne.s32.totalorder %s741, %s755
      %p757 = scmp.eq.s32.totalorder %s122, 0
      %p758 = por %p756, %p757
      %s760 = sadd.s32 %s759, 1
      %p763 = scmp.eq.s32.totalorder %s116, 1
      %p764 = scmp.ne.s32.totalorder %s759, %s761
      %p765 = scmp.eq.s32.totalorder %s116, 0
      %p766 = por %p764, %p765
      %p767 = scmp.ne.s32.totalorder %s759, %s761
      %p768 = scmp.eq.s32.totalorder %s121, 1
      %p769 = por %p767, %p768
      %p770 = scmp.ne.s32.totalorder %s761, %s762
      %p771 = scmp.eq.s32.totalorder %s121, 0
      %p772 = por %p770, %p771
      %p773 = scmp.ne.s32.totalorder %s761, %s762
      %p774 = scmp.eq.s32.totalorder %s122, 1
      %p775 = por %p773, %p774
      %p777 = scmp.ne.s32.totalorder %s762, %s776
      %p778 = scmp.eq.s32.totalorder %s122, 0
      %p779 = por %p777, %p778
      %s781 = sadd.s32 %s780, 1
      %p784 = scmp.eq.s32.totalorder %s116, 1
      %p785 = scmp.ne.s32.totalorder %s780, %s782
      %p786 = scmp.eq.s32.totalorder %s116, 0
      %p787 = por %p785, %p786
      %p788 = scmp.ne.s32.totalorder %s780, %s782
      %p789 = scmp.eq.s32.totalorder %s121, 1
      %p790 = por %p788, %p789
      %p791 = scmp.ne.s32.totalorder %s782, %s783
      %p792 = scmp.eq.s32.totalorder %s121, 0
      %p793 = por %p791, %p792
      %p794 = scmp.ne.s32.totalorder %s782, %s783
      %p795 = scmp.eq.s32.totalorder %s122, 1
      %p796 = por %p794, %p795
      %p798 = scmp.ne.s32.totalorder %s783, %s797
      %p799 = scmp.eq.s32.totalorder %s122, 0
      %p800 = por %p798, %p799
      %s802 = sadd.s32 %s801, 1
      %p805 = scmp.eq.s32.totalorder %s116, 1
      %p806 = scmp.ne.s32.totalorder %s801, %s803
      %p807 = scmp.eq.s32.totalorder %s116, 0
      %p808 = por %p806, %p807
      %p809 = scmp.ne.s32.totalorder %s801, %s803
      %p810 = scmp.eq.s32.totalorder %s121, 1
      %p811 = por %p809, %p810
      %p812 = scmp.ne.s32.totalorder %s803, %s804
      %p813 = scmp.eq.s32.totalorder %s121, 0
      %p814 = por %p812, %p813
      %p815 = scmp.ne.s32.totalorder %s803, %s804
      %p816 = scmp.eq.s32.totalorder %s122, 1
      %p817 = por %p815, %p816
      %p819 = scmp.ne.s32.totalorder %s804, %s818
      %p820 = scmp.eq.s32.totalorder %s122, 0
      %p821 = por %p819, %p820
      %s823 = sadd.s32 %s822, 1
      %p826 = scmp.eq.s32.totalorder %s116, 1
      %p827 = scmp.ne.s32.totalorder %s822, %s824
      %p828 = scmp.eq.s32.totalorder %s116, 0
      %p829 = por %p827, %p828
      %p830 = scmp.ne.s32.totalorder %s822, %s824
      %p831 = scmp.eq.s32.totalorder %s121, 1
      %p832 = por %p830, %p831
      %p833 = scmp.ne.s32.totalorder %s824, %s825
      %p834 = scmp.eq.s32.totalorder %s121, 0
      %p835 = por %p833, %p834
      %p836 = scmp.ne.s32.totalorder %s824, %s825
      %p837 = scmp.eq.s32.totalorder %s122, 1
      %p838 = por %p836, %p837
      %p840 = scmp.ne.s32.totalorder %s825, %s839
      %p841 = scmp.eq.s32.totalorder %s122, 0
      %p842 = por %p840, %p841
      %s844 = sadd.s32 %s843, 1
      %p847 = scmp.eq.s32.totalorder %s116, 1
      %p848 = scmp.ne.s32.totalorder %s843, %s845
      %p849 = scmp.eq.s32.totalorder %s116, 0
      %p850 = por %p848, %p849
      %p851 = scmp.ne.s32.totalorder %s843, %s845
      %p852 = scmp.eq.s32.totalorder %s121, 1
      %p853 = por %p851, %p852
      %p854 = scmp.ne.s32.totalorder %s845, %s846
      %p855 = scmp.eq.s32.totalorder %s121, 0
      %p856 = por %p854, %p855
      %p857 = scmp.ne.s32.totalorder %s845, %s846
      %p858 = scmp.eq.s32.totalorder %s122, 1
      %p859 = por %p857, %p858
      %p861 = scmp.ne.s32.totalorder %s846, %s860
      %p862 = scmp.eq.s32.totalorder %s122, 0
      %p863 = por %p861, %p862
      %s865 = sadd.s32 %s864, 1
      %p868 = scmp.eq.s32.totalorder %s116, 1
      %p869 = scmp.ne.s32.totalorder %s864, %s866
      %p870 = scmp.eq.s32.totalorder %s116, 0
      %p871 = por %p869, %p870
      %p872 = scmp.ne.s32.totalorder %s864, %s866
      %p873 = scmp.eq.s32.totalorder %s121, 1
      %p874 = por %p872, %p873
      %p875 = scmp.ne.s32.totalorder %s866, %s867
      %p876 = scmp.eq.s32.totalorder %s121, 0
      %p877 = por %p875, %p876
      %p878 = scmp.ne.s32.totalorder %s866, %s867
      %p879 = scmp.eq.s32.totalorder %s122, 1
      %p880 = por %p878, %p879
      %p882 = scmp.ne.s32.totalorder %s867, %s881
      %p883 = scmp.eq.s32.totalorder %s122, 0
      %p884 = por %p882, %p883
      %s886 = sadd.s32 %s885, 1
      %p889 = scmp.eq.s32.totalorder %s116, 1
      %p890 = scmp.ne.s32.totalorder %s885, %s887
      %p891 = scmp.eq.s32.totalorder %s116, 0
      %p892 = por %p890, %p891
      %p893 = scmp.ne.s32.totalorder %s885, %s887
      %p894 = scmp.eq.s32.totalorder %s121, 1
      %p895 = por %p893, %p894
      %p896 = scmp.ne.s32.totalorder %s887, %s888
      %p897 = scmp.eq.s32.totalorder %s121, 0
      %p898 = por %p896, %p897
      %p899 = scmp.ne.s32.totalorder %s887, %s888
      %p900 = scmp.eq.s32.totalorder %s122, 1
      %p901 = por %p899, %p900
      %p903 = scmp.ne.s32.totalorder %s888, %s902
      %p904 = scmp.eq.s32.totalorder %s122, 0
      %p905 = por %p903, %p904
      %s907 = sadd.s32 %s906, 1
      %p910 = scmp.eq.s32.totalorder %s116, 1
      %p911 = scmp.ne.s32.totalorder %s906, %s908
      %p912 = scmp.eq.s32.totalorder %s116, 0
      %p913 = por %p911, %p912
      %p914 = scmp.ne.s32.totalorder %s906, %s908
      %p915 = scmp.eq.s32.totalorder %s121, 1
      %p916 = por %p914, %p915
      %p917 = scmp.ne.s32.totalorder %s908, %s909
      %p918 = scmp.eq.s32.totalorder %s121, 0
      %p919 = por %p917, %p918
      %p920 = scmp.ne.s32.totalorder %s908, %s909
      %p921 = scmp.eq.s32.totalorder %s122, 1
      %p922 = por %p920, %p921
      %p924 = scmp.ne.s32.totalorder %s909, %s923
      %p925 = scmp.eq.s32.totalorder %s122, 0
      %p926 = por %p924, %p925
      %s928 = sadd.s32 %s927, 1
      %p931 = scmp.eq.s32.totalorder %s116, 1
      %p932 = scmp.ne.s32.totalorder %s927, %s929
      %p933 = scmp.eq.s32.totalorder %s116, 0
      %p934 = por %p932, %p933
      %p935 = scmp.ne.s32.totalorder %s927, %s929
      %p936 = scmp.eq.s32.totalorder %s121, 1
      %p937 = por %p935, %p936
      %p938 = scmp.ne.s32.totalorder %s929, %s930
      %p939 = scmp.eq.s32.totalorder %s121, 0
      %p940 = por %p938, %p939
      %p941 = scmp.ne.s32.totalorder %s929, %s930
      %p942 = scmp.eq.s32.totalorder %s122, 1
      %p943 = por %p941, %p942
      %p945 = scmp.ne.s32.totalorder %s930, %s944
      %p946 = scmp.eq.s32.totalorder %s122, 0
      %p947 = por %p945, %p946
      %s949 = sadd.s32 %s948, 1
      %p952 = scmp.eq.s32.totalorder %s116, 1
      %p953 = scmp.ne.s32.totalorder %s948, %s950
      %p954 = scmp.eq.s32.totalorder %s116, 0
      %p955 = por %p953, %p954
      %p956 = scmp.ne.s32.totalorder %s948, %s950
      %p957 = scmp.eq.s32.totalorder %s121, 1
      %p958 = por %p956, %p957
      %p959 = scmp.ne.s32.totalorder %s950, %s951
      %p960 = scmp.eq.s32.totalorder %s121, 0
      %p961 = por %p959, %p960
      %p962 = scmp.ne.s32.totalorder %s950, %s951
      %p963 = scmp.eq.s32.totalorder %s122, 1
      %p964 = por %p962, %p963
      %p966 = scmp.ne.s32.totalorder %s951, %s965
      %p967 = scmp.eq.s32.totalorder %s122, 0
      %p968 = por %p966, %p967
      %s970 = sadd.s32 %s969, 1
      %p973 = scmp.eq.s32.totalorder %s116, 1
      %p974 = scmp.ne.s32.totalorder %s969, %s971
      %p975 = scmp.eq.s32.totalorder %s116, 0
      %p976 = por %p974, %p975
      %p977 = scmp.ne.s32.totalorder %s969, %s971
      %p978 = scmp.eq.s32.totalorder %s121, 1
      %p979 = por %p977, %p978
      %p980 = scmp.ne.s32.totalorder %s971, %s972
      %p981 = scmp.eq.s32.totalorder %s121, 0
      %p982 = por %p980, %p981
      %p983 = scmp.ne.s32.totalorder %s971, %s972
      %p984 = scmp.eq.s32.totalorder %s122, 1
      %p985 = por %p983, %p984
      %p987 = scmp.ne.s32.totalorder %s972, %s986
      %p988 = scmp.eq.s32.totalorder %s122, 0
      %p989 = por %p987, %p988
      %s991 = sadd.s32 %s990, 1
      %p994 = scmp.eq.s32.totalorder %s116, 1
      %p995 = scmp.ne.s32.totalorder %s990, %s992
      %p996 = scmp.eq.s32.totalorder %s116, 0
      %p997 = por %p995, %p996
      %p998 = scmp.ne.s32.totalorder %s990, %s992
      %p999 = scmp.eq.s32.totalorder %s121, 1
      %p1000 = por %p998, %p999
      %p1001 = scmp.ne.s32.totalorder %s992, %s993
      %p1002 = scmp.eq.s32.totalorder %s121, 0
      %p1003 = por %p1001, %p1002
      %p1004 = scmp.ne.s32.totalorder %s992, %s993
      %p1005 = scmp.eq.s32.totalorder %s122, 1
      %p1006 = por %p1004, %p1005
      %p1008 = scmp.ne.s32.totalorder %s993, %s1007
      %p1009 = scmp.eq.s32.totalorder %s122, 0
      %p1010 = por %p1008, %p1009
      %s1012 = sadd.s32 %s1011, 1
      %p1015 = scmp.eq.s32.totalorder %s116, 1
      %p1016 = scmp.ne.s32.totalorder %s1011, %s1013
      %p1017 = scmp.eq.s32.totalorder %s116, 0
      %p1018 = por %p1016, %p1017
      %p1019 = scmp.ne.s32.totalorder %s1011, %s1013
      %p1020 = scmp.eq.s32.totalorder %s121, 1
      %p1021 = por %p1019, %p1020
      %p1022 = scmp.ne.s32.totalorder %s1013, %s1014
      %p1023 = scmp.eq.s32.totalorder %s121, 0
      %p1024 = por %p1022, %p1023
      %p1025 = scmp.ne.s32.totalorder %s1013, %s1014
      %p1026 = scmp.eq.s32.totalorder %s122, 1
      %p1027 = por %p1025, %p1026
      %p1029 = scmp.ne.s32.totalorder %s1014, %s1028
      %p1030 = scmp.eq.s32.totalorder %s122, 0
      %p1031 = por %p1029, %p1030
      %s1033 = sadd.s32 %s1032, 1
      %p1036 = scmp.eq.s32.totalorder %s116, 1
      %p1037 = scmp.ne.s32.totalorder %s1032, %s1034
      %p1038 = scmp.eq.s32.totalorder %s116, 0
      %p1039 = por %p1037, %p1038
      %p1040 = scmp.ne.s32.totalorder %s1032, %s1034
      %p1041 = scmp.eq.s32.totalorder %s121, 1
      %p1042 = por %p1040, %p1041
      %p1043 = scmp.ne.s32.totalorder %s1034, %s1035
      %p1044 = scmp.eq.s32.totalorder %s121, 0
      %p1045 = por %p1043, %p1044
      %p1046 = scmp.ne.s32.totalorder %s1034, %s1035
      %p1047 = scmp.eq.s32.totalorder %s122, 1
      %p1048 = por %p1046, %p1047
      %p1050 = scmp.ne.s32.totalorder %s1035, %s1049
      %p1051 = scmp.eq.s32.totalorder %s122, 0
      %p1052 = por %p1050, %p1051
      %s1054 = sadd.s32 %s1053, 1
      %p1057 = scmp.eq.s32.totalorder %s116, 1
      %p1058 = scmp.ne.s32.totalorder %s1053, %s1055
      %p1059 = scmp.eq.s32.totalorder %s116, 0
      %p1060 = por %p1058, %p1059
      %p1061 = scmp.ne.s32.totalorder %s1053, %s1055
      %p1062 = scmp.eq.s32.totalorder %s121, 1
      %p1063 = por %p1061, %p1062
      %p1064 = scmp.ne.s32.totalorder %s1055, %s1056
      %p1065 = scmp.eq.s32.totalorder %s121, 0
      %p1066 = por %p1064, %p1065
      %p1067 = scmp.ne.s32.totalorder %s1055, %s1056
      %p1068 = scmp.eq.s32.totalorder %s122, 1
      %p1069 = por %p1067, %p1068
      %p1071 = scmp.ne.s32.totalorder %s1056, %s1070
      %p1072 = scmp.eq.s32.totalorder %s122, 0
      %p1073 = por %p1071, %p1072
      %s1075 = sadd.s32 %s1074, 1
      %p1078 = scmp.eq.s32.totalorder %s116, 1
      %p1079 = scmp.ne.s32.totalorder %s1074, %s1076
      %p1080 = scmp.eq.s32.totalorder %s116, 0
      %p1081 = por %p1079, %p1080
      %p1082 = scmp.ne.s32.totalorder %s1074, %s1076
      %p1083 = scmp.eq.s32.totalorder %s121, 1
      %p1084 = por %p1082, %p1083
      %p1085 = scmp.ne.s32.totalorder %s1076, %s1077
      %p1086 = scmp.eq.s32.totalorder %s121, 0
      %p1087 = por %p1085, %p1086
      %p1088 = scmp.ne.s32.totalorder %s1076, %s1077
      %p1089 = scmp.eq.s32.totalorder %s122, 1
      %p1090 = por %p1088, %p1089
      %p1092 = scmp.ne.s32.totalorder %s1077, %s1091
      %p1093 = scmp.eq.s32.totalorder %s122, 0
      %p1094 = por %p1092, %p1093
      %s1096 = sadd.s32 %s1095, 1
      %p1099 = scmp.eq.s32.totalorder %s116, 1
      %p1100 = scmp.ne.s32.totalorder %s1095, %s1097
      %p1101 = scmp.eq.s32.totalorder %s116, 0
      %p1102 = por %p1100, %p1101
      %p1103 = scmp.ne.s32.totalorder %s1095, %s1097
      %p1104 = scmp.eq.s32.totalorder %s121, 1
      %p1105 = por %p1103, %p1104
      %p1106 = scmp.ne.s32.totalorder %s1097, %s1098
      %p1107 = scmp.eq.s32.totalorder %s121, 0
      %p1108 = por %p1106, %p1107
      %p1109 = scmp.ne.s32.totalorder %s1097, %s1098
      %p1110 = scmp.eq.s32.totalorder %s122, 1
      %p1111 = por %p1109, %p1110
      %p1113 = scmp.ne.s32.totalorder %s1098, %s1112
      %p1114 = scmp.eq.s32.totalorder %s122, 0
      %p1115 = por %p1113, %p1114
      %s1117 = sadd.s32 %s1116, 1
      %p1120 = scmp.eq.s32.totalorder %s116, 1
      %p1121 = scmp.ne.s32.totalorder %s1116, %s1118
      %p1122 = scmp.eq.s32.totalorder %s116, 0
      %p1123 = por %p1121, %p1122
      %p1124 = scmp.ne.s32.totalorder %s1116, %s1118
      %p1125 = scmp.eq.s32.totalorder %s121, 1
      %p1126 = por %p1124, %p1125
      %p1127 = scmp.ne.s32.totalorder %s1118, %s1119
      %p1128 = scmp.eq.s32.totalorder %s121, 0
      %p1129 = por %p1127, %p1128
      %p1130 = scmp.ne.s32.totalorder %s1118, %s1119
      %p1131 = scmp.eq.s32.totalorder %s122, 1
      %p1132 = por %p1130, %p1131
      %p1134 = scmp.ne.s32.totalorder %s1119, %s1133
      %p1135 = scmp.eq.s32.totalorder %s122, 0
      %p1136 = por %p1134, %p1135
      %s1138 = sadd.s32 %s1137, 1
      %p1141 = scmp.eq.s32.totalorder %s116, 1
      %p1142 = scmp.ne.s32.totalorder %s1137, %s1139
      %p1143 = scmp.eq.s32.totalorder %s116, 0
      %p1144 = por %p1142, %p1143
      %p1145 = scmp.ne.s32.totalorder %s1137, %s1139
      %p1146 = scmp.eq.s32.totalorder %s121, 1
      %p1147 = por %p1145, %p1146
      %p1148 = scmp.ne.s32.totalorder %s1139, %s1140
      %p1149 = scmp.eq.s32.totalorder %s121, 0
      %p1150 = por %p1148, %p1149
      %p1151 = scmp.ne.s32.totalorder %s1139, %s1140
      %p1152 = scmp.eq.s32.totalorder %s122, 1
      %p1153 = por %p1151, %p1152
      %p1155 = scmp.ne.s32.totalorder %s1140, %s1154
      %p1156 = scmp.eq.s32.totalorder %s122, 0
      %p1157 = por %p1155, %p1156
      %s1159 = sadd.s32 %s1158, 1
      %p1162 = scmp.eq.s32.totalorder %s116, 1
      %p1163 = scmp.ne.s32.totalorder %s1158, %s1160
      %p1164 = scmp.eq.s32.totalorder %s116, 0
      %p1165 = por %p1163, %p1164
      %p1166 = scmp.ne.s32.totalorder %s1158, %s1160
      %p1167 = scmp.eq.s32.totalorder %s121, 1
      %p1168 = por %p1166, %p1167
      %p1169 = scmp.ne.s32.totalorder %s1160, %s1161
      %p1170 = scmp.eq.s32.totalorder %s121, 0
      %p1171 = por %p1169, %p1170
      %p1172 = scmp.ne.s32.totalorder %s1160, %s1161
      %p1173 = scmp.eq.s32.totalorder %s122, 1
      %p1174 = por %p1172, %p1173
      %p1176 = scmp.ne.s32.totalorder %s1161, %s1175
      %p1177 = scmp.eq.s32.totalorder %s122, 0
      %p1178 = por %p1176, %p1177
      %s1180 = sadd.s32 %s1179, 1
      %p1183 = scmp.eq.s32.totalorder %s116, 1
      %p1184 = scmp.ne.s32.totalorder %s1179, %s1181
      %p1185 = scmp.eq.s32.totalorder %s116, 0
      %p1186 = por %p1184, %p1185
      %p1187 = scmp.ne.s32.totalorder %s1179, %s1181
      %p1188 = scmp.eq.s32.totalorder %s121, 1
      %p1189 = por %p1187, %p1188
      %p1190 = scmp.ne.s32.totalorder %s1181, %s1182
      %p1191 = scmp.eq.s32.totalorder %s121, 0
      %p1192 = por %p1190, %p1191
      %p1193 = scmp.ne.s32.totalorder %s1181, %s1182
      %p1194 = scmp.eq.s32.totalorder %s122, 1
      %p1195 = por %p1193, %p1194
      %p1197 = scmp.ne.s32.totalorder %s1182, %s1196
      %p1198 = scmp.eq.s32.totalorder %s122, 0
      %p1199 = por %p1197, %p1198
      %s1201 = sadd.s32 %s1200, 1
      %p1204 = scmp.eq.s32.totalorder %s116, 1
      %p1205 = scmp.ne.s32.totalorder %s1200, %s1202
      %p1206 = scmp.eq.s32.totalorder %s116, 0
      %p1207 = por %p1205, %p1206
      %p1208 = scmp.ne.s32.totalorder %s1200, %s1202
      %p1209 = scmp.eq.s32.totalorder %s121, 1
      %p1210 = por %p1208, %p1209
      %p1211 = scmp.ne.s32.totalorder %s1202, %s1203
      %p1212 = scmp.eq.s32.totalorder %s121, 0
      %p1213 = por %p1211, %p1212
      %p1214 = scmp.ne.s32.totalorder %s1202, %s1203
      %p1215 = scmp.eq.s32.totalorder %s122, 1
      %p1216 = por %p1214, %p1215
      %p1218 = scmp.ne.s32.totalorder %s1203, %s1217
      %p1219 = scmp.eq.s32.totalorder %s122, 0
      %p1220 = por %p1218, %p1219
      %s1222 = sadd.s32 %s1221, 1
      %p1225 = scmp.eq.s32.totalorder %s116, 1
      %p1226 = scmp.ne.s32.totalorder %s1221, %s1223
      %p1227 = scmp.eq.s32.totalorder %s116, 0
      %p1228 = por %p1226, %p1227
      %p1229 = scmp.ne.s32.totalorder %s1221, %s1223
      %p1230 = scmp.eq.s32.totalorder %s121, 1
      %p1231 = por %p1229, %p1230
      %p1232 = scmp.ne.s32.totalorder %s1223, %s1224
      %p1233 = scmp.eq.s32.totalorder %s121, 0
      %p1234 = por %p1232, %p1233
      %p1235 = scmp.ne.s32.totalorder %s1223, %s1224
      %p1236 = scmp.eq.s32.totalorder %s122, 1
      %p1237 = por %p1235, %p1236
      %p1239 = scmp.ne.s32.totalorder %s1224, %s1238
      %p1240 = scmp.eq.s32.totalorder %s122, 0
      %p1241 = por %p1239, %p1240
      %s1242 = ssub.s32 %s116, %s123
      %p1243 = scmp.eq.s32.totalorder %s1242, 0
      %s1245 = sadd.s32 %s1244, 1
      %s1246 = scalar_select %p1243, %s1244, %s1245
      %p1249 = pneg %p1243
      %p1250 = scmp.eq.s32.totalorder %s116, 1
      %p1251 = por %p1249, %p1250
      %p1252 = scmp.ne.s32.totalorder %s1244, %s1247
      %p1253 = scmp.eq.s32.totalorder %s116, 0
      %p1254 = por %p1252, %p1253
      %p1255 = scmp.ne.s32.totalorder %s1244, %s1247
      %p1256 = scmp.eq.s32.totalorder %s121, 1
      %p1257 = por %p1255, %p1256
      %p1258 = scmp.ne.s32.totalorder %s1247, %s1248
      %p1259 = scmp.eq.s32.totalorder %s121, 0
      %p1260 = por %p1258, %p1259
      %p1261 = scmp.ne.s32.totalorder %s1247, %s1248
      %p1262 = scmp.eq.s32.totalorder %s122, 1
      %p1263 = por %p1261, %p1262
      %p1265 = scmp.ne.s32.totalorder %s1248, %s1264
      %p1266 = scmp.eq.s32.totalorder %s122, 0
      %p1267 = por %p1265, %p1266
      %p1268 = scmp.le.s32.totalorder 1, %s116
      %p1269 = scmp.lt.s32.totalorder %s116, 3
      %p1270 = pnand %p1268, %p1269
      %p1271 = pneg %p1270
      // Predicated region
      $region9: #{transformer_classifier_forward.1} parent=5 // pred_check
        _
      $region10: #{transformer_classifier_forward.1} parent=5 // pred_check_branch
        %1273 = sbr.rel (%p1270) target = $region12
      $region11: #{transformer_classifier_forward.1} parent=5 // pred_region
        %s1274 = ssub.s32 %s116, 1
        // Predicated region
        $region13: #{transformer_classifier_forward.1} parent=11 // pred_check
          %p1275 = pneg %p163
        $region14: #{transformer_classifier_forward.1} parent=11 // pred_check_branch
          %1277 = sbr.rel (%p1275) target = $region16
        $region15: #{transformer_classifier_forward.1} parent=11 // pred_region
          _
        $region16: #{transformer_classifier_forward.1} parent=11 // pred_fallthru
          _
        // Predicated region
        $region17: #{transformer_classifier_forward.1} parent=11 // pred_check
          %p1278 = pneg %p184
        $region18: #{transformer_classifier_forward.1} parent=11 // pred_check_branch
          %1280 = sbr.rel (%p1278) target = $region20
        $region19: #{transformer_classifier_forward.1} parent=11 // pred_region
          _
        $region20: #{transformer_classifier_forward.1} parent=11 // pred_fallthru
          _
        // Predicated region
        $region21: #{transformer_classifier_forward.1} parent=11 // pred_check
          %p1281 = pneg %p205
        $region22: #{transformer_classifier_forward.1} parent=11 // pred_check_branch
          %1283 = sbr.rel (%p1281) target = $region24
        $region23: #{transformer_classifier_forward.1} parent=11 // pred_region
          _
        $region24: #{transformer_classifier_forward.1} parent=11 // pred_fallthru
          _
        // Predicated region
        $region25: #{transformer_classifier_forward.1} parent=11 // pred_check
          %p1284 = pneg %p226
        $region26: #{transformer_classifier_forward.1} parent=11 // pred_check_branch
          %1286 = sbr.rel (%p1284) target = $region28
        $region27: #{transformer_classifier_forward.1} parent=11 // pred_region
          _
        $region28: #{transformer_classifier_forward.1} parent=11 // pred_fallthru
          _
        // Predicated region
        $region29: #{transformer_classifier_forward.1} parent=11 // pred_check
          %p1287 = pneg %p247
        $region30: #{transformer_classifier_forward.1} parent=11 // pred_check_branch
          %1289 = sbr.rel (%p1287) target = $region32
        $region31: #{transformer_classifier_forward.1} parent=11 // pred_region
          _
        $region32: #{transformer_classifier_forward.1} parent=11 // pred_fallthru
          _
        // Predicated region
        $region33: #{transformer_classifier_forward.1} parent=11 // pred_check
          %p1290 = pneg %p268
        $region34: #{transformer_classifier_forward.1} parent=11 // pred_check_branch
          %1292 = sbr.rel (%p1290) target = $region36
        $region35: #{transformer_classifier_forward.1} parent=11 // pred_region
          _
        $region36: #{transformer_classifier_forward.1} parent=11 // pred_fallthru
          _
        // Predicated region
        $region37: #{transformer_classifier_forward.1} parent=11 // pred_check
          %p1293 = pneg %p289
        $region38: #{transformer_classifier_forward.1} parent=11 // pred_check_branch
          %1295 = sbr.rel (%p1293) target = $region40
        $region39: #{transformer_classifier_forward.1} parent=11 // pred_region
          _
        $region40: #{transformer_classifier_forward.1} parent=11 // pred_fallthru
          _
        // Predicated region
        $region41: #{transformer_classifier_forward.1} parent=11 // pred_check
          %p1296 = pneg %p310
        $region42: #{transformer_classifier_forward.1} parent=11 // pred_check_branch
          %1298 = sbr.rel (%p1296) target = $region44
        $region43: #{transformer_classifier_forward.1} parent=11 // pred_region
          _
        $region44: #{transformer_classifier_forward.1} parent=11 // pred_fallthru
          _
        // Predicated region
        $region45: #{transformer_classifier_forward.1} parent=11 // pred_check
          %p1299 = pneg %p331
        $region46: #{transformer_classifier_forward.1} parent=11 // pred_check_branch
          %1301 = sbr.rel (%p1299) target = $region48
        $region47: #{transformer_classifier_forward.1} parent=11 // pred_region
          _
        $region48: #{transformer_classifier_forward.1} parent=11 // pred_fallthru
          _
        // Predicated region
        $region49: #{transformer_classifier_forward.1} parent=11 // pred_check
          %p1302 = pneg %p352
        $region50: #{transformer_classifier_forward.1} parent=11 // pred_check_branch
          %1304 = sbr.rel (%p1302) target = $region52
        $region51: #{transformer_classifier_forward.1} parent=11 // pred_region
          _
        $region52: #{transformer_classifier_forward.1} parent=11 // pred_fallthru
          _
        // Predicated region
        $region53: #{transformer_classifier_forward.1} parent=11 // pred_check
          %p1305 = pneg %p373
        $region54: #{transformer_classifier_forward.1} parent=11 // pred_check_branch
          %1307 = sbr.rel (%p1305) target = $region56
        $region55: #{transformer_classifier_forward.1} parent=11 // pred_region
          _
        $region56: #{transformer_classifier_forward.1} parent=11 // pred_fallthru
          _
        // Predicated region
        $region57: #{transformer_classifier_forward.1} parent=11 // pred_check
          %p1308 = pneg %p394
        $region58: #{transformer_classifier_forward.1} parent=11 // pred_check_branch
          %1310 = sbr.rel (%p1308) target = $region60
        $region59: #{transformer_classifier_forward.1} parent=11 // pred_region
          _
        $region60: #{transformer_classifier_forward.1} parent=11 // pred_fallthru
          _
        // Predicated region
        $region61: #{transformer_classifier_forward.1} parent=11 // pred_check
          %p1311 = pneg %p415
        $region62: #{transformer_classifier_forward.1} parent=11 // pred_check_branch
          %1313 = sbr.rel (%p1311) target = $region64
        $region63: #{transformer_classifier_forward.1} parent=11 // pred_region
          _
        $region64: #{transformer_classifier_forward.1} parent=11 // pred_fallthru
          _
        // Predicated region
        $region65: #{transformer_classifier_forward.1} parent=11 // pred_check
          %p1314 = pneg %p436
        $region66: #{transformer_classifier_forward.1} parent=11 // pred_check_branch
          %1316 = sbr.rel (%p1314) target = $region68
        $region67: #{transformer_classifier_forward.1} parent=11 // pred_region
          _
        $region68: #{transformer_classifier_forward.1} parent=11 // pred_fallthru
          _
        // Predicated region
        $region69: #{transformer_classifier_forward.1} parent=11 // pred_check
          %p1317 = pneg %p457
        $region70: #{transformer_classifier_forward.1} parent=11 // pred_check_branch
          %1319 = sbr.rel (%p1317) target = $region72
        $region71: #{transformer_classifier_forward.1} parent=11 // pred_region
          _
        $region72: #{transformer_classifier_forward.1} parent=11 // pred_fallthru
          _
        // Predicated region
        $region73: #{transformer_classifier_forward.1} parent=11 // pred_check
          %p1320 = pneg %p478
        $region74: #{transformer_classifier_forward.1} parent=11 // pred_check_branch
          %1322 = sbr.rel (%p1320) target = $region76
        $region75: #{transformer_classifier_forward.1} parent=11 // pred_region
          _
        $region76: #{transformer_classifier_forward.1} parent=11 // pred_fallthru
          _
        // Predicated region
        $region77: #{transformer_classifier_forward.1} parent=11 // pred_check
          %p1323 = pneg %p499
        $region78: #{transformer_classifier_forward.1} parent=11 // pred_check_branch
          %1325 = sbr.rel (%p1323) target = $region80
        $region79: #{transformer_classifier_forward.1} parent=11 // pred_region
          _
        $region80: #{transformer_classifier_forward.1} parent=11 // pred_fallthru
          _
        // Predicated region
        $region81: #{transformer_classifier_forward.1} parent=11 // pred_check
          %p1326 = pneg %p520
        $region82: #{transformer_classifier_forward.1} parent=11 // pred_check_branch
          %1328 = sbr.rel (%p1326) target = $region84
        $region83: #{transformer_classifier_forward.1} parent=11 // pred_region
          _
        $region84: #{transformer_classifier_forward.1} parent=11 // pred_fallthru
          _
        // Predicated region
        $region85: #{transformer_classifier_forward.1} parent=11 // pred_check
          %p1329 = pneg %p541
        $region86: #{transformer_classifier_forward.1} parent=11 // pred_check_branch
          %1331 = sbr.rel (%p1329) target = $region88
        $region87: #{transformer_classifier_forward.1} parent=11 // pred_region
          _
        $region88: #{transformer_classifier_forward.1} parent=11 // pred_fallthru
          _
        // Predicated region
        $region89: #{transformer_classifier_forward.1} parent=11 // pred_check
          %p1332 = pneg %p562
        $region90: #{transformer_classifier_forward.1} parent=11 // pred_check_branch
          %1334 = sbr.rel (%p1332) target = $region92
        $region91: #{transformer_classifier_forward.1} parent=11 // pred_region
          _
        $region92: #{transformer_classifier_forward.1} parent=11 // pred_fallthru
          _
        // Predicated region
        $region93: #{transformer_classifier_forward.1} parent=11 // pred_check
          %p1335 = pneg %p583
        $region94: #{transformer_classifier_forward.1} parent=11 // pred_check_branch
          %1337 = sbr.rel (%p1335) target = $region96
        $region95: #{transformer_classifier_forward.1} parent=11 // pred_region
          _
        $region96: #{transformer_classifier_forward.1} parent=11 // pred_fallthru
          _
        // Predicated region
        $region97: #{transformer_classifier_forward.1} parent=11 // pred_check
          %p1338 = pneg %p604
        $region98: #{transformer_classifier_forward.1} parent=11 // pred_check_branch
          %1340 = sbr.rel (%p1338) target = $region100
        $region99: #{transformer_classifier_forward.1} parent=11 // pred_region
          _
        $region100: #{transformer_classifier_forward.1} parent=11 // pred_fallthru
          _
        // Predicated region
        $region101: #{transformer_classifier_forward.1} parent=11 // pred_check
          %p1341 = pneg %p625
        $region102: #{transformer_classifier_forward.1} parent=11 // pred_check_branch
          %1343 = sbr.rel (%p1341) target = $region104
        $region103: #{transformer_classifier_forward.1} parent=11 // pred_region
          _
        $region104: #{transformer_classifier_forward.1} parent=11 // pred_fallthru
          _
        // Predicated region
        $region105: #{transformer_classifier_forward.1} parent=11 // pred_check
          %p1344 = pneg %p646
        $region106: #{transformer_classifier_forward.1} parent=11 // pred_check_branch
          %1346 = sbr.rel (%p1344) target = $region108
        $region107: #{transformer_classifier_forward.1} parent=11 // pred_region
          _
        $region108: #{transformer_classifier_forward.1} parent=11 // pred_fallthru
          _
        // Predicated region
        $region109: #{transformer_classifier_forward.1} parent=11 // pred_check
          %p1347 = pneg %p667
        $region110: #{transformer_classifier_forward.1} parent=11 // pred_check_branch
          %1349 = sbr.rel (%p1347) target = $region112
        $region111: #{transformer_classifier_forward.1} parent=11 // pred_region
          _
        $region112: #{transformer_classifier_forward.1} parent=11 // pred_fallthru
          _
        // Predicated region
        $region113: #{transformer_classifier_forward.1} parent=11 // pred_check
          %p1350 = pneg %p688
        $region114: #{transformer_classifier_forward.1} parent=11 // pred_check_branch
          %1352 = sbr.rel (%p1350) target = $region116
        $region115: #{transformer_classifier_forward.1} parent=11 // pred_region
          _
        $region116: #{transformer_classifier_forward.1} parent=11 // pred_fallthru
          _
        // Predicated region
        $region117: #{transformer_classifier_forward.1} parent=11 // pred_check
          %p1353 = pneg %p709
        $region118: #{transformer_classifier_forward.1} parent=11 // pred_check_branch
          %1355 = sbr.rel (%p1353) target = $region120
        $region119: #{transformer_classifier_forward.1} parent=11 // pred_region
          _
        $region120: #{transformer_classifier_forward.1} parent=11 // pred_fallthru
          _
        // Predicated region
        $region121: #{transformer_classifier_forward.1} parent=11 // pred_check
          %p1356 = pneg %p730
        $region122: #{transformer_classifier_forward.1} parent=11 // pred_check_branch
          %1358 = sbr.rel (%p1356) target = $region124
        $region123: #{transformer_classifier_forward.1} parent=11 // pred_region
          _
        $region124: #{transformer_classifier_forward.1} parent=11 // pred_fallthru
          _
        // Predicated region
        $region125: #{transformer_classifier_forward.1} parent=11 // pred_check
          %p1359 = pneg %p751
        $region126: #{transformer_classifier_forward.1} parent=11 // pred_check_branch
          %1361 = sbr.rel (%p1359) target = $region128
        $region127: #{transformer_classifier_forward.1} parent=11 // pred_region
          _
        $region128: #{transformer_classifier_forward.1} parent=11 // pred_fallthru
          _
        // Predicated region
        $region129: #{transformer_classifier_forward.1} parent=11 // pred_check
          %p1362 = pneg %p772
        $region130: #{transformer_classifier_forward.1} parent=11 // pred_check_branch
          %1364 = sbr.rel (%p1362) target = $region132
        $region131: #{transformer_classifier_forward.1} parent=11 // pred_region
          _
        $region132: #{transformer_classifier_forward.1} parent=11 // pred_fallthru
          _
        // Predicated region
        $region133: #{transformer_classifier_forward.1} parent=11 // pred_check
          %p1365 = pneg %p793
        $region134: #{transformer_classifier_forward.1} parent=11 // pred_check_branch
          %1367 = sbr.rel (%p1365) target = $region136
        $region135: #{transformer_classifier_forward.1} parent=11 // pred_region
          _
        $region136: #{transformer_classifier_forward.1} parent=11 // pred_fallthru
          _
        // Predicated region
        $region137: #{transformer_classifier_forward.1} parent=11 // pred_check
          %p1368 = pneg %p814
        $region138: #{transformer_classifier_forward.1} parent=11 // pred_check_branch
          %1370 = sbr.rel (%p1368) target = $region140
        $region139: #{transformer_classifier_forward.1} parent=11 // pred_region
          _
        $region140: #{transformer_classifier_forward.1} parent=11 // pred_fallthru
          _
        // Predicated region
        $region141: #{transformer_classifier_forward.1} parent=11 // pred_check
          %p1371 = pneg %p835
        $region142: #{transformer_classifier_forward.1} parent=11 // pred_check_branch
          %1373 = sbr.rel (%p1371) target = $region144
        $region143: #{transformer_classifier_forward.1} parent=11 // pred_region
          _
        $region144: #{transformer_classifier_forward.1} parent=11 // pred_fallthru
          _
        // Predicated region
        $region145: #{transformer_classifier_forward.1} parent=11 // pred_check
          %p1374 = pneg %p856
        $region146: #{transformer_classifier_forward.1} parent=11 // pred_check_branch
          %1376 = sbr.rel (%p1374) target = $region148
        $region147: #{transformer_classifier_forward.1} parent=11 // pred_region
          _
        $region148: #{transformer_classifier_forward.1} parent=11 // pred_fallthru
          _
        // Predicated region
        $region149: #{transformer_classifier_forward.1} parent=11 // pred_check
          %p1377 = pneg %p877
        $region150: #{transformer_classifier_forward.1} parent=11 // pred_check_branch
          %1379 = sbr.rel (%p1377) target = $region152
        $region151: #{transformer_classifier_forward.1} parent=11 // pred_region
          _
        $region152: #{transformer_classifier_forward.1} parent=11 // pred_fallthru
          _
        // Predicated region
        $region153: #{transformer_classifier_forward.1} parent=11 // pred_check
          %p1380 = pneg %p898
        $region154: #{transformer_classifier_forward.1} parent=11 // pred_check_branch
          %1382 = sbr.rel (%p1380) target = $region156
        $region155: #{transformer_classifier_forward.1} parent=11 // pred_region
          _
        $region156: #{transformer_classifier_forward.1} parent=11 // pred_fallthru
          _
        // Predicated region
        $region157: #{transformer_classifier_forward.1} parent=11 // pred_check
          %p1383 = pneg %p919
        $region158: #{transformer_classifier_forward.1} parent=11 // pred_check_branch
          %1385 = sbr.rel (%p1383) target = $region160
        $region159: #{transformer_classifier_forward.1} parent=11 // pred_region
          _
        $region160: #{transformer_classifier_forward.1} parent=11 // pred_fallthru
          _
        // Predicated region
        $region161: #{transformer_classifier_forward.1} parent=11 // pred_check
          %p1386 = pneg %p940
        $region162: #{transformer_classifier_forward.1} parent=11 // pred_check_branch
          %1388 = sbr.rel (%p1386) target = $region164
        $region163: #{transformer_classifier_forward.1} parent=11 // pred_region
          _
        $region164: #{transformer_classifier_forward.1} parent=11 // pred_fallthru
          _
        // Predicated region
        $region165: #{transformer_classifier_forward.1} parent=11 // pred_check
          %p1389 = pneg %p961
        $region166: #{transformer_classifier_forward.1} parent=11 // pred_check_branch
          %1391 = sbr.rel (%p1389) target = $region168
        $region167: #{transformer_classifier_forward.1} parent=11 // pred_region
          _
        $region168: #{transformer_classifier_forward.1} parent=11 // pred_fallthru
          _
        // Predicated region
        $region169: #{transformer_classifier_forward.1} parent=11 // pred_check
          %p1392 = pneg %p982
        $region170: #{transformer_classifier_forward.1} parent=11 // pred_check_branch
          %1394 = sbr.rel (%p1392) target = $region172
        $region171: #{transformer_classifier_forward.1} parent=11 // pred_region
          _
        $region172: #{transformer_classifier_forward.1} parent=11 // pred_fallthru
          _
        // Predicated region
        $region173: #{transformer_classifier_forward.1} parent=11 // pred_check
          %p1395 = pneg %p1003
        $region174: #{transformer_classifier_forward.1} parent=11 // pred_check_branch
          %1397 = sbr.rel (%p1395) target = $region176
        $region175: #{transformer_classifier_forward.1} parent=11 // pred_region
          _
        $region176: #{transformer_classifier_forward.1} parent=11 // pred_fallthru
          _
        // Predicated region
        $region177: #{transformer_classifier_forward.1} parent=11 // pred_check
          %p1398 = pneg %p1024
        $region178: #{transformer_classifier_forward.1} parent=11 // pred_check_branch
          %1400 = sbr.rel (%p1398) target = $region180
        $region179: #{transformer_classifier_forward.1} parent=11 // pred_region
          _
        $region180: #{transformer_classifier_forward.1} parent=11 // pred_fallthru
          _
        // Predicated region
        $region181: #{transformer_classifier_forward.1} parent=11 // pred_check
          %p1401 = pneg %p1045
        $region182: #{transformer_classifier_forward.1} parent=11 // pred_check_branch
          %1403 = sbr.rel (%p1401) target = $region184
        $region183: #{transformer_classifier_forward.1} parent=11 // pred_region
          _
        $region184: #{transformer_classifier_forward.1} parent=11 // pred_fallthru
          _
        // Predicated region
        $region185: #{transformer_classifier_forward.1} parent=11 // pred_check
          %p1404 = pneg %p1066
        $region186: #{transformer_classifier_forward.1} parent=11 // pred_check_branch
          %1406 = sbr.rel (%p1404) target = $region188
        $region187: #{transformer_classifier_forward.1} parent=11 // pred_region
          _
        $region188: #{transformer_classifier_forward.1} parent=11 // pred_fallthru
          _
        // Predicated region
        $region189: #{transformer_classifier_forward.1} parent=11 // pred_check
          %p1407 = pneg %p1087
        $region190: #{transformer_classifier_forward.1} parent=11 // pred_check_branch
          %1409 = sbr.rel (%p1407) target = $region192
        $region191: #{transformer_classifier_forward.1} parent=11 // pred_region
          _
        $region192: #{transformer_classifier_forward.1} parent=11 // pred_fallthru
          _
        // Predicated region
        $region193: #{transformer_classifier_forward.1} parent=11 // pred_check
          %p1410 = pneg %p1108
        $region194: #{transformer_classifier_forward.1} parent=11 // pred_check_branch
          %1412 = sbr.rel (%p1410) target = $region196
        $region195: #{transformer_classifier_forward.1} parent=11 // pred_region
          _
        $region196: #{transformer_classifier_forward.1} parent=11 // pred_fallthru
          _
        // Predicated region
        $region197: #{transformer_classifier_forward.1} parent=11 // pred_check
          %p1413 = pneg %p1129
        $region198: #{transformer_classifier_forward.1} parent=11 // pred_check_branch
          %1415 = sbr.rel (%p1413) target = $region200
        $region199: #{transformer_classifier_forward.1} parent=11 // pred_region
          _
        $region200: #{transformer_classifier_forward.1} parent=11 // pred_fallthru
          _
        // Predicated region
        $region201: #{transformer_classifier_forward.1} parent=11 // pred_check
          %p1416 = pneg %p1150
        $region202: #{transformer_classifier_forward.1} parent=11 // pred_check_branch
          %1418 = sbr.rel (%p1416) target = $region204
        $region203: #{transformer_classifier_forward.1} parent=11 // pred_region
          _
        $region204: #{transformer_classifier_forward.1} parent=11 // pred_fallthru
          _
        // Predicated region
        $region205: #{transformer_classifier_forward.1} parent=11 // pred_check
          %p1419 = pneg %p1171
        $region206: #{transformer_classifier_forward.1} parent=11 // pred_check_branch
          %1421 = sbr.rel (%p1419) target = $region208
        $region207: #{transformer_classifier_forward.1} parent=11 // pred_region
          _
        $region208: #{transformer_classifier_forward.1} parent=11 // pred_fallthru
          _
        // Predicated region
        $region209: #{transformer_classifier_forward.1} parent=11 // pred_check
          %p1422 = pneg %p1192
        $region210: #{transformer_classifier_forward.1} parent=11 // pred_check_branch
          %1424 = sbr.rel (%p1422) target = $region212
        $region211: #{transformer_classifier_forward.1} parent=11 // pred_region
          _
        $region212: #{transformer_classifier_forward.1} parent=11 // pred_fallthru
          _
        // Predicated region
        $region213: #{transformer_classifier_forward.1} parent=11 // pred_check
          %p1425 = pneg %p1213
        $region214: #{transformer_classifier_forward.1} parent=11 // pred_check_branch
          %1427 = sbr.rel (%p1425) target = $region216
        $region215: #{transformer_classifier_forward.1} parent=11 // pred_region
          _
        $region216: #{transformer_classifier_forward.1} parent=11 // pred_fallthru
          _
        // Predicated region
        $region217: #{transformer_classifier_forward.1} parent=11 // pred_check
          %p1428 = pneg %p1234
        $region218: #{transformer_classifier_forward.1} parent=11 // pred_check_branch
          %1430 = sbr.rel (%p1428) target = $region220
        $region219: #{transformer_classifier_forward.1} parent=11 // pred_region
          _
        $region220: #{transformer_classifier_forward.1} parent=11 // pred_fallthru
          _
      $region12: #{transformer_classifier_forward.1} parent=5 // pred_fallthru
        _
      %p1431 = scmp.lt.s32.totalorder %s116, 2
      // Predicated region
      $region221: #{transformer_classifier_forward.1} parent=5 // pred_check
        %p1432 = pneg %p1431
      $region222: #{transformer_classifier_forward.1} parent=5 // pred_check_branch
        %1434 = sbr.rel (%p1432) target = $region224
      $region223: #{transformer_classifier_forward.1} parent=5 // pred_region
        // Predicated region
        $region225: #{transformer_classifier_forward.1} parent=223 // pred_check
          %p1435 = pneg %p136
        $region226: #{transformer_classifier_forward.1} parent=223 // pred_check_branch
          %1437 = sbr.rel (%p1435) target = $region228
        $region227: #{transformer_classifier_forward.1} parent=223 // pred_region
          %p1438 = scmp.lt.s32.totalorder %s116, 1
          %s1439 = scalar_select %p1438, %s116, 1
          %s1440 = smul.addr %s1439, 8
          %s1441 = scalar_lea.vmem %s1, %s1440
        $region228: #{transformer_classifier_forward.1} parent=223 // pred_fallthru
          _
      $region224: #{transformer_classifier_forward.1} parent=5 // pred_fallthru
        _
      %p1442 = scmp.le.s32.totalorder 1, %s116
      %p1443 = scmp.lt.s32.totalorder %s116, 3
      %p1444 = pnand %p1442, %p1443
      %p1445 = pneg %p1444
      // Predicated region
      $region229: #{transformer_classifier_forward.1} parent=5 // pred_check
        _
      $region230: #{transformer_classifier_forward.1} parent=5 // pred_check_branch
        %1447 = sbr.rel (%p1444) target = $region232
      $region231: #{transformer_classifier_forward.1} parent=5 // pred_region
        %s1448 = ssub.s32 %s116, 1
        %p1449 = scmp.lt.s32.totalorder %s121, 1
        %s1450 = scalar_select %p1449, %s121, 1
        %s1451 = smul.addr %s1450, 8
        %s1452 = scalar_lea.vmem %s1, %s1451
        %p1453 = pneg %p142
        %p1454 = pneg %p139
        %p1455 = pneg %p163
        %p1456 = pneg %p160
        %p1457 = pneg %p184
        %p1458 = pneg %p181
        %p1459 = pneg %p205
        %p1460 = pneg %p202
        %p1461 = pneg %p226
        %p1462 = pneg %p223
        %p1463 = pneg %p247
        %p1464 = pneg %p244
        %p1465 = pneg %p268
        %p1466 = pneg %p265
        %p1467 = pneg %p289
        %p1468 = pneg %p286
        %p1469 = pneg %p310
        %p1470 = pneg %p307
        %p1471 = pneg %p331
        %p1472 = pneg %p328
        %p1473 = pneg %p352
        %p1474 = pneg %p349
        %p1475 = pneg %p373
        %p1476 = pneg %p370
        %p1477 = pneg %p394
        %p1478 = pneg %p391
        %p1479 = pneg %p415
        %p1480 = pneg %p412
        %p1481 = pneg %p436
        %p1482 = pneg %p433
        %p1483 = pneg %p457
        %p1484 = pneg %p454
        %p1485 = pneg %p478
        %p1486 = pneg %p475
        %p1487 = pneg %p499
        %p1488 = pneg %p496
        %p1489 = pneg %p520
        %p1490 = pneg %p517
        %p1491 = pneg %p541
        %p1492 = pneg %p538
        %p1493 = pneg %p562
        %p1494 = pneg %p559
        %p1495 = pneg %p583
        %p1496 = pneg %p580
        %p1497 = pneg %p604
        %p1498 = pneg %p601
        %p1499 = pneg %p625
        %p1500 = pneg %p622
        %p1501 = pneg %p646
        %p1502 = pneg %p643
        %p1503 = pneg %p667
        %p1504 = pneg %p664
        %p1505 = pneg %p688
        %p1506 = pneg %p685
        %p1507 = pneg %p709
        %p1508 = pneg %p706
        %p1509 = pneg %p730
        %p1510 = pneg %p727
        %p1511 = pneg %p751
        %p1512 = pneg %p748
        %p1513 = pneg %p772
        %p1514 = pneg %p769
        %p1515 = pneg %p793
        %p1516 = pneg %p790
        %p1517 = pneg %p814
        %p1518 = pneg %p811
        %p1519 = pneg %p835
        %p1520 = pneg %p832
        %p1521 = pneg %p856
        %p1522 = pneg %p853
        %p1523 = pneg %p877
        %p1524 = pneg %p874
        %p1525 = pneg %p898
        %p1526 = pneg %p895
        %p1527 = pneg %p919
        %p1528 = pneg %p916
        %p1529 = pneg %p940
        %p1530 = pneg %p937
        %p1531 = pneg %p961
        %p1532 = pneg %p958
        %p1533 = pneg %p982
        %p1534 = pneg %p979
        %p1535 = pneg %p1003
        %p1536 = pneg %p1000
        %p1537 = pneg %p1024
        %p1538 = pneg %p1021
        %p1539 = pneg %p1045
        %p1540 = pneg %p1042
        %p1541 = pneg %p1066
        %p1542 = pneg %p1063
        %p1543 = pneg %p1087
        %p1544 = pneg %p1084
        %p1545 = pneg %p1108
        %p1546 = pneg %p1105
        %p1547 = pneg %p1129
        %p1548 = pneg %p1126
        %p1549 = pneg %p1150
        %p1550 = pneg %p1147
        %p1551 = pneg %p1171
        %p1552 = pneg %p1168
        %p1553 = pneg %p1192
        %p1554 = pneg %p1189
        %p1555 = pneg %p1213
        %p1556 = pneg %p1210
        %p1557 = pneg %p1234
        %p1558 = pneg %p1231
        %p1559 = pneg %p1260
        %p1560 = pneg %p1257
        %s1561 = sand.u32 %s1247, 1
        %s1562 = scalar_lea.sflag [#allocation3], %s1561
        %s1563 = sand.u32 %s1247, 1
        %s1564 = scalar_lea.vmem [#allocation2], %s1563
        %p1565 = scmp.lt.s32.totalorder %s121, 1
        %s1566 = scalar_select %p1565, %s121, 1
        %s1567 = smul.addr %s1566, 8
        %s1568 = scalar_lea.vmem %s1, %s1567
        %v1569 = vld [vmem:[%s1568] sm:$0xff]
        %v1570 = vld [vmem:[%s3] sm:$0xff]
        %v1571 = vld [vmem:[%s3 + $0x8] sm:$0xff]
        %v1572 = vld [vmem:[%s3 + $0x10] sm:$0xff]
        %v1573 = vld [vmem:[%s3 + $0x18] sm:$0xff]
        %v1574 = vld [vmem:[%s3 + $0x20] sm:$0xff]
        %v1575 = vld [vmem:[%s5] sm:$0x1]
        %v1577 = vperm.slane %v1575, 0
        %vm1579 = vcmask 326656
        %v1581 = vsel %vm1579, %v1569, 0
        %1583 = vmatpush.msra.mxu0 0.0
        %1584 = vmatpush.msra.mxu0 0.0
        %1585 = vmatpush.msra.mxu0 0.0
        %1586 = vmatpush.msra.mxu0 0.0
        %1587 = vmatpush.msra.mxu0 0.0
        %1588 = vmatpush.msra.mxu0 0.0
        %1589 = vmatpush.msra.mxu0 0.0
        %1590 = vmatpush.msra.mxu0 0.0
        %1591 = vmatpush.msra.mxu0 0.0
        %1592 = vmatpush.msra.mxu0 0.0
        %1593 = vmatpush.msra.mxu0 0.0
        %1594 = vmatpush.msra.mxu0 %v1574
        %1595 = vmatpush.msra.mxu0 %v1573
        %1596 = vmatpush.msra.mxu0 %v1572
        %1597 = vmatpush.msra.mxu0 %v1571
        %1598 = vmatpush.msra.mxu0 %v1570
        %1599 = vmatmul.f32.gmra.mxu0 %v1581
        %v1600 = vpop.f32.mrf.mxu0
        %v1601 = vadd.f32 %v1577, %v1600
        %1602 = vdwg.mxu0
        %v1603 = vld [vmem:[%s7] sm:$0xff]
        %v1604 = vld [vmem:[%s7 + $0x8] sm:$0xff]
        %v1605 = vld [vmem:[%s7 + $0x10] sm:$0xff]
        %v1606 = vld [vmem:[%s7 + $0x18] sm:$0xff]
        %v1607 = vld [vmem:[%s7 + $0x20] sm:$0xff]
        %v1608 = vld [vmem:[%s9] sm:$0x1]
        %v1610 = vperm.slane %v1608, 0
        %1612 = vmatpush.msra.mxu0 0.0
        %1613 = vmatpush.msra.mxu0 0.0
        %1614 = vmatpush.msra.mxu0 0.0
        %1615 = vmatpush.msra.mxu0 0.0
        %1616 = vmatpush.msra.mxu0 0.0
        %1617 = vmatpush.msra.mxu0 0.0
        %1618 = vmatpush.msra.mxu0 0.0
        %1619 = vmatpush.msra.mxu0 0.0
        %1620 = vmatpush.msra.mxu0 0.0
        %1621 = vmatpush.msra.mxu0 0.0
        %1622 = vmatpush.msra.mxu0 0.0
        %1623 = vmatpush.msra.mxu0 %v1607
        %1624 = vmatpush.msra.mxu0 %v1606
        %1625 = vmatpush.msra.mxu0 %v1605
        %1626 = vmatpush.msra.mxu0 %v1604
        %1627 = vmatpush.msra.mxu0 %v1603
        %1628 = vmatmul.f32.gmra.mxu0 %v1581
        %v1629 = vpop.f32.mrf.mxu0
        %v1630 = vadd.f32 %v1610, %v1629
        %1631 = vdwg.mxu0
        %v1632 = vld [vmem:[%s11] sm:$0xff]
        %v1633 = vld [vmem:[%s11 + $0x8] sm:$0xff]
        %v1634 = vld [vmem:[%s11 + $0x10] sm:$0xff]
        %v1635 = vld [vmem:[%s11 + $0x18] sm:$0xff]
        %v1636 = vld [vmem:[%s11 + $0x20] sm:$0xff]
        %v1637 = vld [vmem:[%s13] sm:$0x1]
        %v1639 = vperm.slane %v1637, 0
        %1641 = vmatpush.msra.mxu0 0.0
        %1642 = vmatpush.msra.mxu0 0.0
        %1643 = vmatpush.msra.mxu0 0.0
        %1644 = vmatpush.msra.mxu0 0.0
        %1645 = vmatpush.msra.mxu0 0.0
        %1646 = vmatpush.msra.mxu0 0.0
        %1647 = vmatpush.msra.mxu0 0.0
        %1648 = vmatpush.msra.mxu0 0.0
        %1649 = vmatpush.msra.mxu0 0.0
        %1650 = vmatpush.msra.mxu0 0.0
        %1651 = vmatpush.msra.mxu0 0.0
        %1652 = vmatpush.msra.mxu0 %v1636
        %1653 = vmatpush.msra.mxu0 %v1635
        %1654 = vmatpush.msra.mxu0 %v1634
        %1655 = vmatpush.msra.mxu0 %v1633
        %1656 = vmatpush.msra.mxu0 %v1632
        %1657 = vmatmul.f32.gmra.mxu0 %v1581
        %v1658 = vpop.f32.mrf.mxu0
        %v1659 = vadd.f32 %v1639, %v1658
        %1660 = vdwg.mxu0
        %v1661 = vld [vmem:[%s15] sm:$0xff]
        %vm1662 = vcmask 64512
        %v1664 = vsel %vm1662, %v1601, 0
        %v1667 = vsel %vm1662, %v1630, 0
        %1669 = vmatpush.xpose.msra.mxu0 0.0
        %1670 = vmatpush.xpose.msra.mxu0 0.0
        %1671 = vmatpush.xpose.msra.mxu0 0.0
        %1672 = vmatpush.xpose.msra.mxu0 0.0
        %1673 = vmatpush.xpose.msra.mxu0 0.0
        %1674 = vmatpush.xpose.msra.mxu0 0.0
        %1675 = vmatpush.xpose.msra.mxu0 0.0
        %1676 = vmatpush.xpose.msra.mxu0 0.0
        %1677 = vmatpush.xpose.msra.mxu0 0.0
        %1678 = vmatpush.xpose.msra.mxu0 0.0
        %1679 = vmatpush.xpose.msra.mxu0 0.0
        %1680 = vmatpush.xpose.msra.mxu0 0.0
        %1681 = vmatpush.xpose.msra.mxu0 0.0
        %1682 = vmatpush.xpose.msra.mxu0 0.0
        %1683 = vmatpush.xpose.msra.mxu0 0.0
        %1684 = vmatpush.xpose.msra.mxu0 %v1667
        %1685 = vmatmul.f32.gmra.mxu0 %v1664
        %v1686 = vpop.f32.mrf.mxu0
        %v1687 = vadd.f32 0.0, %v1686
        %1688 = vdwg.mxu0
        %v1689 = vsel %vm1662, %v1687, -inf
        %1690 = vmax.xlane.f32.xlu0 %v1689
        %v1691 = vpop.xlane.xlu0 %1690
        %v1692 = vsub.f32 %v1687, %v1691
        %v1693 = vmul.f32 %v1692, 1.442695
        %v1694 = vpow.pop %v1693
        %v1695 = vsel %vm1662, %v1694, 0.0
        %1696 = vadd.xlane.f32.xlu0 %v1695
        %v1697 = vpop.xlane.xlu0 %1696
        %v1698 = vrcp.pop %v1697
        %v1699 = vmul.f32 %v1694, %v1698
        %v1701 = vsel %vm1662, %v1699, 0
        %1703 = vmatpush.msra.mxu0 0.0
        %1704 = vmatpush.msra.mxu0 0.0
        %1705 = vmatpush.msra.mxu0 0.0
        %1706 = vmatpush.msra.mxu0 0.0
        %1707 = vmatpush.msra.mxu0 0.0
        %1708 = vmatpush.msra.mxu0 0.0
        %1709 = vmatpush.msra.mxu0 0.0
        %1710 = vmatpush.msra.mxu0 0.0
        %1711 = vmatpush.msra.mxu0 0.0
        %1712 = vmatpush.msra.mxu0 0.0
        %1713 = vmatpush.msra.mxu0 0.0
        %1714 = vmatpush.msra.mxu0 0.0
        %1715 = vmatpush.msra.mxu0 0.0
        %1716 = vmatpush.msra.mxu0 0.0
        %1717 = vmatpush.msra.mxu0 0.0
        %1718 = vmatpush.msra.mxu0 %v1659
        %1719 = vmatmul.f32.gmra.mxu0 %v1701
        %v1720 = vpop.f32.mrf.mxu0
        %v1721 = vadd.f32 0.0, %v1720
        %1722 = vdwg.mxu0
        %s1723 = scalar_lea.vmem %s3, 40
        %v1724 = vld [vmem:[%s1723] sm:$0xff]
        %v1725 = vld [vmem:[%s1723 + $0x8] sm:$0xff]
        %v1726 = vld [vmem:[%s1723 + $0x10] sm:$0xff]
        %v1727 = vld [vmem:[%s1723 + $0x18] sm:$0xff]
        %v1728 = vld [vmem:[%s1723 + $0x20] sm:$0xff]
        %s1729 = scalar_lea.vmem %s5, 1
        %v1730 = vld [vmem:[%s1729] sm:$0x1]
        %v1732 = vperm.slane %v1730, 0
        %1734 = vmatpush.msra.mxu0 0.0
        %1735 = vmatpush.msra.mxu0 0.0
        %1736 = vmatpush.msra.mxu0 0.0
        %1737 = vmatpush.msra.mxu0 0.0
        %1738 = vmatpush.msra.mxu0 0.0
        %1739 = vmatpush.msra.mxu0 0.0
        %1740 = vmatpush.msra.mxu0 0.0
        %1741 = vmatpush.msra.mxu0 0.0
        %1742 = vmatpush.msra.mxu0 0.0
        %1743 = vmatpush.msra.mxu0 0.0
        %1744 = vmatpush.msra.mxu0 0.0
        %1745 = vmatpush.msra.mxu0 %v1728
        %1746 = vmatpush.msra.mxu0 %v1727
        %1747 = vmatpush.msra.mxu0 %v1726
        %1748 = vmatpush.msra.mxu0 %v1725
        %1749 = vmatpush.msra.mxu0 %v1724
        %1750 = vmatmul.f32.gmra.mxu0 %v1581
        %v1751 = vpop.f32.mrf.mxu0
        %v1752 = vadd.f32 %v1732, %v1751
        %1753 = vdwg.mxu0
        %s1754 = scalar_lea.vmem %s7, 40
        %v1755 = vld [vmem:[%s1754] sm:$0xff]
        %v1756 = vld [vmem:[%s1754 + $0x8] sm:$0xff]
        %v1757 = vld [vmem:[%s1754 + $0x10] sm:$0xff]
        %v1758 = vld [vmem:[%s1754 + $0x18] sm:$0xff]
        %v1759 = vld [vmem:[%s1754 + $0x20] sm:$0xff]
        %s1760 = scalar_lea.vmem %s9, 1
        %v1761 = vld [vmem:[%s1760] sm:$0x1]
        %v1763 = vperm.slane %v1761, 0
        %1765 = vmatpush.msra.mxu0 0.0
        %1766 = vmatpush.msra.mxu0 0.0
        %1767 = vmatpush.msra.mxu0 0.0
        %1768 = vmatpush.msra.mxu0 0.0
        %1769 = vmatpush.msra.mxu0 0.0
        %1770 = vmatpush.msra.mxu0 0.0
        %1771 = vmatpush.msra.mxu0 0.0
        %1772 = vmatpush.msra.mxu0 0.0
        %1773 = vmatpush.msra.mxu0 0.0
        %1774 = vmatpush.msra.mxu0 0.0
        %1775 = vmatpush.msra.mxu0 0.0
        %1776 = vmatpush.msra.mxu0 %v1759
        %1777 = vmatpush.msra.mxu0 %v1758
        %1778 = vmatpush.msra.mxu0 %v1757
        %1779 = vmatpush.msra.mxu0 %v1756
        %1780 = vmatpush.msra.mxu0 %v1755
        %1781 = vmatmul.f32.gmra.mxu0 %v1581
        %v1782 = vpop.f32.mrf.mxu0
        %v1783 = vadd.f32 %v1763, %v1782
        %1784 = vdwg.mxu0
        %s1785 = scalar_lea.vmem %s11, 40
        %v1786 = vld [vmem:[%s1785] sm:$0xff]
        %v1787 = vld [vmem:[%s1785 + $0x8] sm:$0xff]
        %v1788 = vld [vmem:[%s1785 + $0x10] sm:$0xff]
        %v1789 = vld [vmem:[%s1785 + $0x18] sm:$0xff]
        %v1790 = vld [vmem:[%s1785 + $0x20] sm:$0xff]
        %s1791 = scalar_lea.vmem %s13, 1
        %v1792 = vld [vmem:[%s1791] sm:$0x1]
        %v1794 = vperm.slane %v1792, 0
        %1796 = vmatpush.msra.mxu0 0.0
        %1797 = vmatpush.msra.mxu0 0.0
        %1798 = vmatpush.msra.mxu0 0.0
        %1799 = vmatpush.msra.mxu0 0.0
        %1800 = vmatpush.msra.mxu0 0.0
        %1801 = vmatpush.msra.mxu0 0.0
        %1802 = vmatpush.msra.mxu0 0.0
        %1803 = vmatpush.msra.mxu0 0.0
        %1804 = vmatpush.msra.mxu0 0.0
        %1805 = vmatpush.msra.mxu0 0.0
        %1806 = vmatpush.msra.mxu0 0.0
        %1807 = vmatpush.msra.mxu0 %v1790
        %1808 = vmatpush.msra.mxu0 %v1789
        %1809 = vmatpush.msra.mxu0 %v1788
        %1810 = vmatpush.msra.mxu0 %v1787
        %1811 = vmatpush.msra.mxu0 %v1786
        %1812 = vmatmul.f32.gmra.mxu0 %v1581
        %v1813 = vpop.f32.mrf.mxu0
        %v1814 = vadd.f32 %v1794, %v1813
        %1815 = vdwg.mxu0
        %s1816 = scalar_lea.vmem %s15, 8
        %v1817 = vld [vmem:[%s1816] sm:$0xff]
        %v1819 = vsel %vm1662, %v1752, 0
        %v1822 = vsel %vm1662, %v1783, 0
        %1824 = vmatpush.xpose.msra.mxu0 0.0
        %1825 = vmatpush.xpose.msra.mxu0 0.0
        %1826 = vmatpush.xpose.msra.mxu0 0.0
        %1827 = vmatpush.xpose.msra.mxu0 0.0
        %1828 = vmatpush.xpose.msra.mxu0 0.0
        %1829 = vmatpush.xpose.msra.mxu0 0.0
        %1830 = vmatpush.xpose.msra.mxu0 0.0
        %1831 = vmatpush.xpose.msra.mxu0 0.0
        %1832 = vmatpush.xpose.msra.mxu0 0.0
        %1833 = vmatpush.xpose.msra.mxu0 0.0
        %1834 = vmatpush.xpose.msra.mxu0 0.0
        %1835 = vmatpush.xpose.msra.mxu0 0.0
        %1836 = vmatpush.xpose.msra.mxu0 0.0
        %1837 = vmatpush.xpose.msra.mxu0 0.0
        %1838 = vmatpush.xpose.msra.mxu0 0.0
        %1839 = vmatpush.xpose.msra.mxu0 %v1822
        %1840 = vmatmul.f32.gmra.mxu0 %v1819
        %v1841 = vpop.f32.mrf.mxu0
        %v1842 = vadd.f32 0.0, %v1841
        %1843 = vdwg.mxu0
        %v1844 = vsel %vm1662, %v1842, -inf
        %1845 = vmax.xlane.f32.xlu0 %v1844
        %v1846 = vpop.xlane.xlu0 %1845
        %v1847 = vsub.f32 %v1842, %v1846
        %v1848 = vmul.f32 %v1847, 1.442695
        %v1849 = vpow.pop %v1848
        %v1850 = vsel %vm1662, %v1849, 0.0
        %1851 = vadd.xlane.f32.xlu0 %v1850
        %v1852 = vpop.xlane.xlu0 %1851
        %v1853 = vrcp.pop %v1852
        %v1854 = vmul.f32 %v1849, %v1853
        %v1856 = vsel %vm1662, %v1854, 0
        %1858 = vmatpush.msra.mxu0 0.0
        %1859 = vmatpush.msra.mxu0 0.0
        %1860 = vmatpush.msra.mxu0 0.0
        %1861 = vmatpush.msra.mxu0 0.0
        %1862 = vmatpush.msra.mxu0 0.0
        %1863 = vmatpush.msra.mxu0 0.0
        %1864 = vmatpush.msra.mxu0 0.0
        %1865 = vmatpush.msra.mxu0 0.0
        %1866 = vmatpush.msra.mxu0 0.0
        %1867 = vmatpush.msra.mxu0 0.0
        %1868 = vmatpush.msra.mxu0 0.0
        %1869 = vmatpush.msra.mxu0 0.0
        %1870 = vmatpush.msra.mxu0 0.0
        %1871 = vmatpush.msra.mxu0 0.0
        %1872 = vmatpush.msra.mxu0 0.0
        %1873 = vmatpush.msra.mxu0 %v1814
        %1874 = vmatmul.f32.gmra.mxu0 %v1856
        %v1875 = vpop.f32.mrf.mxu0
        %v1876 = vadd.f32 0.0, %v1875
        %1877 = vdwg.mxu0
        %v1879 = vsel %vm1662, %v1876, 0
        %1881 = vmatpush.msra.mxu0 0.0
        %1882 = vmatpush.msra.mxu0 0.0
        %1883 = vmatpush.msra.mxu0 0.0
        %1884 = vmatpush.msra.mxu0 0.0
        %1885 = vmatpush.msra.mxu0 0.0
        %1886 = vmatpush.msra.mxu0 0.0
        %1887 = vmatpush.msra.mxu0 0.0
        %1888 = vmatpush.msra.mxu0 0.0
        %1889 = vmatpush.msra.mxu0 0.0
        %1890 = vmatpush.msra.mxu0 0.0
        %1891 = vmatpush.msra.mxu0 0.0
        %1892 = vmatpush.msra.mxu0 0.0
        %1893 = vmatpush.msra.mxu0 0.0
        %1894 = vmatpush.msra.mxu0 0.0
        %1895 = vmatpush.msra.mxu0 0.0
        %1896 = vmatpush.msra.mxu0 %v1817
        %1897 = vmatmul.f32.gmra.mxu0 %v1879
        %v1898 = vpop.f32.mrf.mxu0
        %v1899 = vadd.f32 0.0, %v1898
        %1900 = vdwg.mxu0
        %v1902 = vsel %vm1662, %v1721, 0
        %1904 = vmatpush.msra.mxu0 0.0
        %1905 = vmatpush.msra.mxu0 0.0
        %1906 = vmatpush.msra.mxu0 0.0
        %1907 = vmatpush.msra.mxu0 0.0
        %1908 = vmatpush.msra.mxu0 0.0
        %1909 = vmatpush.msra.mxu0 0.0
        %1910 = vmatpush.msra.mxu0 0.0
        %1911 = vmatpush.msra.mxu0 0.0
        %1912 = vmatpush.msra.mxu0 0.0
        %1913 = vmatpush.msra.mxu0 0.0
        %1914 = vmatpush.msra.mxu0 0.0
        %1915 = vmatpush.msra.mxu0 0.0
        %1916 = vmatpush.msra.mxu0 0.0
        %1917 = vmatpush.msra.mxu0 0.0
        %1918 = vmatpush.msra.mxu0 0.0
        %1919 = vmatpush.msra.mxu0 %v1661
        %1920 = vmatmul.f32.gmra.mxu0 %v1902
        %v1921 = vpop.f32.mrf.mxu0
        %v1922 = vadd.f32 %v1899, %v1921
        %1923 = vdwg.mxu0
        %s1924 = scalar_lea.vmem %s3, 80
        %v1925 = vld [vmem:[%s1924] sm:$0xff]
        %v1926 = vld [vmem:[%s1924 + $0x8] sm:$0xff]
        %v1927 = vld [vmem:[%s1924 + $0x10] sm:$0xff]
        %v1928 = vld [vmem:[%s1924 + $0x18] sm:$0xff]
        %v1929 = vld [vmem:[%s1924 + $0x20] sm:$0xff]
        %s1930 = scalar_lea.vmem %s5, 2
        %v1931 = vld [vmem:[%s1930] sm:$0x1]
        %v1933 = vperm.slane %v1931, 0
        %1935 = vmatpush.msra.mxu0 0.0
        %1936 = vmatpush.msra.mxu0 0.0
        %1937 = vmatpush.msra.mxu0 0.0
        %1938 = vmatpush.msra.mxu0 0.0
        %1939 = vmatpush.msra.mxu0 0.0
        %1940 = vmatpush.msra.mxu0 0.0
        %1941 = vmatpush.msra.mxu0 0.0
        %1942 = vmatpush.msra.mxu0 0.0
        %1943 = vmatpush.msra.mxu0 0.0
        %1944 = vmatpush.msra.mxu0 0.0
        %1945 = vmatpush.msra.mxu0 0.0
        %1946 = vmatpush.msra.mxu0 %v1929
        %1947 = vmatpush.msra.mxu0 %v1928
        %1948 = vmatpush.msra.mxu0 %v1927
        %1949 = vmatpush.msra.mxu0 %v1926
        %1950 = vmatpush.msra.mxu0 %v1925
        %1951 = vmatmul.f32.gmra.mxu0 %v1581
        %v1952 = vpop.f32.mrf.mxu0
        %v1953 = vadd.f32 %v1933, %v1952
        %1954 = vdwg.mxu0
        %s1955 = scalar_lea.vmem %s7, 80
        %v1956 = vld [vmem:[%s1955] sm:$0xff]
        %v1957 = vld [vmem:[%s1955 + $0x8] sm:$0xff]
        %v1958 = vld [vmem:[%s1955 + $0x10] sm:$0xff]
        %v1959 = vld [vmem:[%s1955 + $0x18] sm:$0xff]
        %v1960 = vld [vmem:[%s1955 + $0x20] sm:$0xff]
        %s1961 = scalar_lea.vmem %s9, 2
        %v1962 = vld [vmem:[%s1961] sm:$0x1]
        %v1964 = vperm.slane %v1962, 0
        %1966 = vmatpush.msra.mxu0 0.0
        %1967 = vmatpush.msra.mxu0 0.0
        %1968 = vmatpush.msra.mxu0 0.0
        %1969 = vmatpush.msra.mxu0 0.0
        %1970 = vmatpush.msra.mxu0 0.0
        %1971 = vmatpush.msra.mxu0 0.0
        %1972 = vmatpush.msra.mxu0 0.0
        %1973 = vmatpush.msra.mxu0 0.0
        %1974 = vmatpush.msra.mxu0 0.0
        %1975 = vmatpush.msra.mxu0 0.0
        %1976 = vmatpush.msra.mxu0 0.0
        %1977 = vmatpush.msra.mxu0 %v1960
        %1978 = vmatpush.msra.mxu0 %v1959
        %1979 = vmatpush.msra.mxu0 %v1958
        %1980 = vmatpush.msra.mxu0 %v1957
        %1981 = vmatpush.msra.mxu0 %v1956
        %1982 = vmatmul.f32.gmra.mxu0 %v1581
        %v1983 = vpop.f32.mrf.mxu0
        %v1984 = vadd.f32 %v1964, %v1983
        %1985 = vdwg.mxu0
        %s1986 = scalar_lea.vmem %s11, 80
        %v1987 = vld [vmem:[%s1986] sm:$0xff]
        %v1988 = vld [vmem:[%s1986 + $0x8] sm:$0xff]
        %v1989 = vld [vmem:[%s1986 + $0x10] sm:$0xff]
        %v1990 = vld [vmem:[%s1986 + $0x18] sm:$0xff]
        %v1991 = vld [vmem:[%s1986 + $0x20] sm:$0xff]
        %s1992 = scalar_lea.vmem %s13, 2
        %v1993 = vld [vmem:[%s1992] sm:$0x1]
        %v1995 = vperm.slane %v1993, 0
        %1997 = vmatpush.msra.mxu0 0.0
        %1998 = vmatpush.msra.mxu0 0.0
        %1999 = vmatpush.msra.mxu0 0.0
        %2000 = vmatpush.msra.mxu0 0.0
        %2001 = vmatpush.msra.mxu0 0.0
        %2002 = vmatpush.msra.mxu0 0.0
        %2003 = vmatpush.msra.mxu0 0.0
        %2004 = vmatpush.msra.mxu0 0.0
        %2005 = vmatpush.msra.mxu0 0.0
        %2006 = vmatpush.msra.mxu0 0.0
        %2007 = vmatpush.msra.mxu0 0.0
        %2008 = vmatpush.msra.mxu0 %v1991
        %2009 = vmatpush.msra.mxu0 %v1990
        %2010 = vmatpush.msra.mxu0 %v1989
        %2011 = vmatpush.msra.mxu0 %v1988
        %2012 = vmatpush.msra.mxu0 %v1987
        %2013 = vmatmul.f32.gmra.mxu0 %v1581
        %v2014 = vpop.f32.mrf.mxu0
        %v2015 = vadd.f32 %v1995, %v2014
        %2016 = vdwg.mxu0
        %s2017 = scalar_lea.vmem %s15, 16
        %v2018 = vld [vmem:[%s2017] sm:$0xff]
        %v2020 = vsel %vm1662, %v1953, 0
        %v2023 = vsel %vm1662, %v1984, 0
        %2025 = vmatpush.xpose.msra.mxu0 0.0
        %2026 = vmatpush.xpose.msra.mxu0 0.0
        %2027 = vmatpush.xpose.msra.mxu0 0.0
        %2028 = vmatpush.xpose.msra.mxu0 0.0
        %2029 = vmatpush.xpose.msra.mxu0 0.0
        %2030 = vmatpush.xpose.msra.mxu0 0.0
        %2031 = vmatpush.xpose.msra.mxu0 0.0
        %2032 = vmatpush.xpose.msra.mxu0 0.0
        %2033 = vmatpush.xpose.msra.mxu0 0.0
        %2034 = vmatpush.xpose.msra.mxu0 0.0
        %2035 = vmatpush.xpose.msra.mxu0 0.0
        %2036 = vmatpush.xpose.msra.mxu0 0.0
        %2037 = vmatpush.xpose.msra.mxu0 0.0
        %2038 = vmatpush.xpose.msra.mxu0 0.0
        %2039 = vmatpush.xpose.msra.mxu0 0.0
        %2040 = vmatpush.xpose.msra.mxu0 %v2023
        %2041 = vmatmul.f32.gmra.mxu0 %v2020
        %v2042 = vpop.f32.mrf.mxu0
        %v2043 = vadd.f32 0.0, %v2042
        %2044 = vdwg.mxu0
        %v2045 = vsel %vm1662, %v2043, -inf
        %2046 = vmax.xlane.f32.xlu0 %v2045
        %v2047 = vpop.xlane.xlu0 %2046
        %v2048 = vsub.f32 %v2043, %v2047
        %v2049 = vmul.f32 %v2048, 1.442695
        %v2050 = vpow.pop %v2049
        %v2051 = vsel %vm1662, %v2050, 0.0
        %2052 = vadd.xlane.f32.xlu0 %v2051
        %v2053 = vpop.xlane.xlu0 %2052
        %v2054 = vrcp.pop %v2053
        %v2055 = vmul.f32 %v2050, %v2054
        %v2057 = vsel %vm1662, %v2055, 0
        %2059 = vmatpush.msra.mxu0 0.0
        %2060 = vmatpush.msra.mxu0 0.0
        %2061 = vmatpush.msra.mxu0 0.0
        %2062 = vmatpush.msra.mxu0 0.0
        %2063 = vmatpush.msra.mxu0 0.0
        %2064 = vmatpush.msra.mxu0 0.0
        %2065 = vmatpush.msra.mxu0 0.0
        %2066 = vmatpush.msra.mxu0 0.0
        %2067 = vmatpush.msra.mxu0 0.0
        %2068 = vmatpush.msra.mxu0 0.0
        %2069 = vmatpush.msra.mxu0 0.0
        %2070 = vmatpush.msra.mxu0 0.0
        %2071 = vmatpush.msra.mxu0 0.0
        %2072 = vmatpush.msra.mxu0 0.0
        %2073 = vmatpush.msra.mxu0 0.0
        %2074 = vmatpush.msra.mxu0 %v2015
        %2075 = vmatmul.f32.gmra.mxu0 %v2057
        %v2076 = vpop.f32.mrf.mxu0
        %v2077 = vadd.f32 0.0, %v2076
        %2078 = vdwg.mxu0
        %v2080 = vsel %vm1662, %v2077, 0
        %2082 = vmatpush.msra.mxu0 0.0
        %2083 = vmatpush.msra.mxu0 0.0
        %2084 = vmatpush.msra.mxu0 0.0
        %2085 = vmatpush.msra.mxu0 0.0
        %2086 = vmatpush.msra.mxu0 0.0
        %2087 = vmatpush.msra.mxu0 0.0
        %2088 = vmatpush.msra.mxu0 0.0
        %2089 = vmatpush.msra.mxu0 0.0
        %2090 = vmatpush.msra.mxu0 0.0
        %2091 = vmatpush.msra.mxu0 0.0
        %2092 = vmatpush.msra.mxu0 0.0
        %2093 = vmatpush.msra.mxu0 0.0
        %2094 = vmatpush.msra.mxu0 0.0
        %2095 = vmatpush.msra.mxu0 0.0
        %2096 = vmatpush.msra.mxu0 0.0
        %2097 = vmatpush.msra.mxu0 %v2018
        %2098 = vmatmul.f32.gmra.mxu0 %v2080
        %v2099 = vpop.f32.mrf.mxu0
        %v2100 = vadd.f32 0.0, %v2099
        %2101 = vdwg.mxu0
        %v2102 = vadd.f32 %v1922, %v2100
        %s2103 = scalar_lea.vmem %s3, 120
        %v2104 = vld [vmem:[%s2103] sm:$0xff]
        %v2105 = vld [vmem:[%s2103 + $0x8] sm:$0xff]
        %v2106 = vld [vmem:[%s2103 + $0x10] sm:$0xff]
        %v2107 = vld [vmem:[%s2103 + $0x18] sm:$0xff]
        %v2108 = vld [vmem:[%s2103 + $0x20] sm:$0xff]
        %s2109 = scalar_lea.vmem %s5, 3
        %v2110 = vld [vmem:[%s2109] sm:$0x1]
        %v2112 = vperm.slane %v2110, 0
        %2114 = vmatpush.msra.mxu0 0.0
        %2115 = vmatpush.msra.mxu0 0.0
        %2116 = vmatpush.msra.mxu0 0.0
        %2117 = vmatpush.msra.mxu0 0.0
        %2118 = vmatpush.msra.mxu0 0.0
        %2119 = vmatpush.msra.mxu0 0.0
        %2120 = vmatpush.msra.mxu0 0.0
        %2121 = vmatpush.msra.mxu0 0.0
        %2122 = vmatpush.msra.mxu0 0.0
        %2123 = vmatpush.msra.mxu0 0.0
        %2124 = vmatpush.msra.mxu0 0.0
        %2125 = vmatpush.msra.mxu0 %v2108
        %2126 = vmatpush.msra.mxu0 %v2107
        %2127 = vmatpush.msra.mxu0 %v2106
        %2128 = vmatpush.msra.mxu0 %v2105
        %2129 = vmatpush.msra.mxu0 %v2104
        %2130 = vmatmul.f32.gmra.mxu0 %v1581
        %v2131 = vpop.f32.mrf.mxu0
        %v2132 = vadd.f32 %v2112, %v2131
        %2133 = vdwg.mxu0
        %s2134 = scalar_lea.vmem %s7, 120
        %v2135 = vld [vmem:[%s2134] sm:$0xff]
        %v2136 = vld [vmem:[%s2134 + $0x8] sm:$0xff]
        %v2137 = vld [vmem:[%s2134 + $0x10] sm:$0xff]
        %v2138 = vld [vmem:[%s2134 + $0x18] sm:$0xff]
        %v2139 = vld [vmem:[%s2134 + $0x20] sm:$0xff]
        %s2140 = scalar_lea.vmem %s9, 3
        %v2141 = vld [vmem:[%s2140] sm:$0x1]
        %v2143 = vperm.slane %v2141, 0
        %2145 = vmatpush.msra.mxu0 0.0
        %2146 = vmatpush.msra.mxu0 0.0
        %2147 = vmatpush.msra.mxu0 0.0
        %2148 = vmatpush.msra.mxu0 0.0
        %2149 = vmatpush.msra.mxu0 0.0
        %2150 = vmatpush.msra.mxu0 0.0
        %2151 = vmatpush.msra.mxu0 0.0
        %2152 = vmatpush.msra.mxu0 0.0
        %2153 = vmatpush.msra.mxu0 0.0
        %2154 = vmatpush.msra.mxu0 0.0
        %2155 = vmatpush.msra.mxu0 0.0
        %2156 = vmatpush.msra.mxu0 %v2139
        %2157 = vmatpush.msra.mxu0 %v2138
        %2158 = vmatpush.msra.mxu0 %v2137
        %2159 = vmatpush.msra.mxu0 %v2136
        %2160 = vmatpush.msra.mxu0 %v2135
        %2161 = vmatmul.f32.gmra.mxu0 %v1581
        %v2162 = vpop.f32.mrf.mxu0
        %v2163 = vadd.f32 %v2143, %v2162
        %2164 = vdwg.mxu0
        %s2165 = scalar_lea.vmem %s11, 120
        %v2166 = vld [vmem:[%s2165] sm:$0xff]
        %v2167 = vld [vmem:[%s2165 + $0x8] sm:$0xff]
        %v2168 = vld [vmem:[%s2165 + $0x10] sm:$0xff]
        %v2169 = vld [vmem:[%s2165 + $0x18] sm:$0xff]
        %v2170 = vld [vmem:[%s2165 + $0x20] sm:$0xff]
        %s2171 = scalar_lea.vmem %s13, 3
        %v2172 = vld [vmem:[%s2171] sm:$0x1]
        %v2174 = vperm.slane %v2172, 0
        %2176 = vmatpush.msra.mxu0 0.0
        %2177 = vmatpush.msra.mxu0 0.0
        %2178 = vmatpush.msra.mxu0 0.0
        %2179 = vmatpush.msra.mxu0 0.0
        %2180 = vmatpush.msra.mxu0 0.0
        %2181 = vmatpush.msra.mxu0 0.0
        %2182 = vmatpush.msra.mxu0 0.0
        %2183 = vmatpush.msra.mxu0 0.0
        %2184 = vmatpush.msra.mxu0 0.0
        %2185 = vmatpush.msra.mxu0 0.0
        %2186 = vmatpush.msra.mxu0 0.0
        %2187 = vmatpush.msra.mxu0 %v2170
        %2188 = vmatpush.msra.mxu0 %v2169
        %2189 = vmatpush.msra.mxu0 %v2168
        %2190 = vmatpush.msra.mxu0 %v2167
        %2191 = vmatpush.msra.mxu0 %v2166
        %2192 = vmatmul.f32.gmra.mxu0 %v1581
        %v2193 = vpop.f32.mrf.mxu0
        %v2194 = vadd.f32 %v2174, %v2193
        %2195 = vdwg.mxu0
        %s2196 = scalar_lea.vmem %s15, 24
        %v2197 = vld [vmem:[%s2196] sm:$0xff]
        %v2199 = vsel %vm1662, %v2132, 0
        %v2202 = vsel %vm1662, %v2163, 0
        %2204 = vmatpush.xpose.msra.mxu0 0.0
        %2205 = vmatpush.xpose.msra.mxu0 0.0
        %2206 = vmatpush.xpose.msra.mxu0 0.0
        %2207 = vmatpush.xpose.msra.mxu0 0.0
        %2208 = vmatpush.xpose.msra.mxu0 0.0
        %2209 = vmatpush.xpose.msra.mxu0 0.0
        %2210 = vmatpush.xpose.msra.mxu0 0.0
        %2211 = vmatpush.xpose.msra.mxu0 0.0
        %2212 = vmatpush.xpose.msra.mxu0 0.0
        %2213 = vmatpush.xpose.msra.mxu0 0.0
        %2214 = vmatpush.xpose.msra.mxu0 0.0
        %2215 = vmatpush.xpose.msra.mxu0 0.0
        %2216 = vmatpush.xpose.msra.mxu0 0.0
        %2217 = vmatpush.xpose.msra.mxu0 0.0
        %2218 = vmatpush.xpose.msra.mxu0 0.0
        %2219 = vmatpush.xpose.msra.mxu0 %v2202
        %2220 = vmatmul.f32.gmra.mxu0 %v2199
        %v2221 = vpop.f32.mrf.mxu0
        %v2222 = vadd.f32 0.0, %v2221
        %2223 = vdwg.mxu0
        %v2224 = vsel %vm1662, %v2222, -inf
        %2225 = vmax.xlane.f32.xlu0 %v2224
        %v2226 = vpop.xlane.xlu0 %2225
        %v2227 = vsub.f32 %v2222, %v2226
        %v2228 = vmul.f32 %v2227, 1.442695
        %v2229 = vpow.pop %v2228
        %v2230 = vsel %vm1662, %v2229, 0.0
        %2231 = vadd.xlane.f32.xlu0 %v2230
        %v2232 = vpop.xlane.xlu0 %2231
        %v2233 = vrcp.pop %v2232
        %v2234 = vmul.f32 %v2229, %v2233
        %v2236 = vsel %vm1662, %v2234, 0
        %2238 = vmatpush.msra.mxu0 0.0
        %2239 = vmatpush.msra.mxu0 0.0
        %2240 = vmatpush.msra.mxu0 0.0
        %2241 = vmatpush.msra.mxu0 0.0
        %2242 = vmatpush.msra.mxu0 0.0
        %2243 = vmatpush.msra.mxu0 0.0
        %2244 = vmatpush.msra.mxu0 0.0
        %2245 = vmatpush.msra.mxu0 0.0
        %2246 = vmatpush.msra.mxu0 0.0
        %2247 = vmatpush.msra.mxu0 0.0
        %2248 = vmatpush.msra.mxu0 0.0
        %2249 = vmatpush.msra.mxu0 0.0
        %2250 = vmatpush.msra.mxu0 0.0
        %2251 = vmatpush.msra.mxu0 0.0
        %2252 = vmatpush.msra.mxu0 0.0
        %2253 = vmatpush.msra.mxu0 %v2194
        %2254 = vmatmul.f32.gmra.mxu0 %v2236
        %v2255 = vpop.f32.mrf.mxu0
        %v2256 = vadd.f32 0.0, %v2255
        %2257 = vdwg.mxu0
        %v2259 = vsel %vm1662, %v2256, 0
        %2261 = vmatpush.msra.mxu0 0.0
        %2262 = vmatpush.msra.mxu0 0.0
        %2263 = vmatpush.msra.mxu0 0.0
        %2264 = vmatpush.msra.mxu0 0.0
        %2265 = vmatpush.msra.mxu0 0.0
        %2266 = vmatpush.msra.mxu0 0.0
        %2267 = vmatpush.msra.mxu0 0.0
        %2268 = vmatpush.msra.mxu0 0.0
        %2269 = vmatpush.msra.mxu0 0.0
        %2270 = vmatpush.msra.mxu0 0.0
        %2271 = vmatpush.msra.mxu0 0.0
        %2272 = vmatpush.msra.mxu0 0.0
        %2273 = vmatpush.msra.mxu0 0.0
        %2274 = vmatpush.msra.mxu0 0.0
        %2275 = vmatpush.msra.mxu0 0.0
        %2276 = vmatpush.msra.mxu0 %v2197
        %2277 = vmatmul.f32.gmra.mxu0 %v2259
        %v2278 = vpop.f32.mrf.mxu0
        %v2279 = vadd.f32 0.0, %v2278
        %2280 = vdwg.mxu0
        %v2281 = vadd.f32 %v2102, %v2279
        %s2282 = scalar_lea.vmem %s3, 160
        %v2283 = vld [vmem:[%s2282] sm:$0xff]
        %v2284 = vld [vmem:[%s2282 + $0x8] sm:$0xff]
        %v2285 = vld [vmem:[%s2282 + $0x10] sm:$0xff]
        %v2286 = vld [vmem:[%s2282 + $0x18] sm:$0xff]
        %v2287 = vld [vmem:[%s2282 + $0x20] sm:$0xff]
        %s2288 = scalar_lea.vmem %s5, 4
        %v2289 = vld [vmem:[%s2288] sm:$0x1]
        %v2291 = vperm.slane %v2289, 0
        %2293 = vmatpush.msra.mxu0 0.0
        %2294 = vmatpush.msra.mxu0 0.0
        %2295 = vmatpush.msra.mxu0 0.0
        %2296 = vmatpush.msra.mxu0 0.0
        %2297 = vmatpush.msra.mxu0 0.0
        %2298 = vmatpush.msra.mxu0 0.0
        %2299 = vmatpush.msra.mxu0 0.0
        %2300 = vmatpush.msra.mxu0 0.0
        %2301 = vmatpush.msra.mxu0 0.0
        %2302 = vmatpush.msra.mxu0 0.0
        %2303 = vmatpush.msra.mxu0 0.0
        %2304 = vmatpush.msra.mxu0 %v2287
        %2305 = vmatpush.msra.mxu0 %v2286
        %2306 = vmatpush.msra.mxu0 %v2285
        %2307 = vmatpush.msra.mxu0 %v2284
        %2308 = vmatpush.msra.mxu0 %v2283
        %2309 = vmatmul.f32.gmra.mxu0 %v1581
        %v2310 = vpop.f32.mrf.mxu0
        %v2311 = vadd.f32 %v2291, %v2310
        %2312 = vdwg.mxu0
        %s2313 = scalar_lea.vmem %s7, 160
        %v2314 = vld [vmem:[%s2313] sm:$0xff]
        %v2315 = vld [vmem:[%s2313 + $0x8] sm:$0xff]
        %v2316 = vld [vmem:[%s2313 + $0x10] sm:$0xff]
        %v2317 = vld [vmem:[%s2313 + $0x18] sm:$0xff]
        %v2318 = vld [vmem:[%s2313 + $0x20] sm:$0xff]
        %s2319 = scalar_lea.vmem %s9, 4
        %v2320 = vld [vmem:[%s2319] sm:$0x1]
        %v2322 = vperm.slane %v2320, 0
        %2324 = vmatpush.msra.mxu0 0.0
        %2325 = vmatpush.msra.mxu0 0.0
        %2326 = vmatpush.msra.mxu0 0.0
        %2327 = vmatpush.msra.mxu0 0.0
        %2328 = vmatpush.msra.mxu0 0.0
        %2329 = vmatpush.msra.mxu0 0.0
        %2330 = vmatpush.msra.mxu0 0.0
        %2331 = vmatpush.msra.mxu0 0.0
        %2332 = vmatpush.msra.mxu0 0.0
        %2333 = vmatpush.msra.mxu0 0.0
        %2334 = vmatpush.msra.mxu0 0.0
        %2335 = vmatpush.msra.mxu0 %v2318
        %2336 = vmatpush.msra.mxu0 %v2317
        %2337 = vmatpush.msra.mxu0 %v2316
        %2338 = vmatpush.msra.mxu0 %v2315
        %2339 = vmatpush.msra.mxu0 %v2314
        %2340 = vmatmul.f32.gmra.mxu0 %v1581
        %v2341 = vpop.f32.mrf.mxu0
        %v2342 = vadd.f32 %v2322, %v2341
        %2343 = vdwg.mxu0
        %s2344 = scalar_lea.vmem %s11, 160
        %v2345 = vld [vmem:[%s2344] sm:$0xff]
        %v2346 = vld [vmem:[%s2344 + $0x8] sm:$0xff]
        %v2347 = vld [vmem:[%s2344 + $0x10] sm:$0xff]
        %v2348 = vld [vmem:[%s2344 + $0x18] sm:$0xff]
        %v2349 = vld [vmem:[%s2344 + $0x20] sm:$0xff]
        %s2350 = scalar_lea.vmem %s13, 4
        %v2351 = vld [vmem:[%s2350] sm:$0x1]
        %v2353 = vperm.slane %v2351, 0
        %2355 = vmatpush.msra.mxu0 0.0
        %2356 = vmatpush.msra.mxu0 0.0
        %2357 = vmatpush.msra.mxu0 0.0
        %2358 = vmatpush.msra.mxu0 0.0
        %2359 = vmatpush.msra.mxu0 0.0
        %2360 = vmatpush.msra.mxu0 0.0
        %2361 = vmatpush.msra.mxu0 0.0
        %2362 = vmatpush.msra.mxu0 0.0
        %2363 = vmatpush.msra.mxu0 0.0
        %2364 = vmatpush.msra.mxu0 0.0
        %2365 = vmatpush.msra.mxu0 0.0
        %2366 = vmatpush.msra.mxu0 %v2349
        %2367 = vmatpush.msra.mxu0 %v2348
        %2368 = vmatpush.msra.mxu0 %v2347
        %2369 = vmatpush.msra.mxu0 %v2346
        %2370 = vmatpush.msra.mxu0 %v2345
        %2371 = vmatmul.f32.gmra.mxu0 %v1581
        %v2372 = vpop.f32.mrf.mxu0
        %v2373 = vadd.f32 %v2353, %v2372
        %2374 = vdwg.mxu0
        %s2375 = scalar_lea.vmem %s15, 32
        %v2376 = vld [vmem:[%s2375] sm:$0xff]
        %v2378 = vsel %vm1662, %v2311, 0
        %v2381 = vsel %vm1662, %v2342, 0
        %2383 = vmatpush.xpose.msra.mxu0 0.0
        %2384 = vmatpush.xpose.msra.mxu0 0.0
        %2385 = vmatpush.xpose.msra.mxu0 0.0
        %2386 = vmatpush.xpose.msra.mxu0 0.0
        %2387 = vmatpush.xpose.msra.mxu0 0.0
        %2388 = vmatpush.xpose.msra.mxu0 0.0
        %2389 = vmatpush.xpose.msra.mxu0 0.0
        %2390 = vmatpush.xpose.msra.mxu0 0.0
        %2391 = vmatpush.xpose.msra.mxu0 0.0
        %2392 = vmatpush.xpose.msra.mxu0 0.0
        %2393 = vmatpush.xpose.msra.mxu0 0.0
        %2394 = vmatpush.xpose.msra.mxu0 0.0
        %2395 = vmatpush.xpose.msra.mxu0 0.0
        %2396 = vmatpush.xpose.msra.mxu0 0.0
        %2397 = vmatpush.xpose.msra.mxu0 0.0
        %2398 = vmatpush.xpose.msra.mxu0 %v2381
        %2399 = vmatmul.f32.gmra.mxu0 %v2378
        %v2400 = vpop.f32.mrf.mxu0
        %v2401 = vadd.f32 0.0, %v2400
        %2402 = vdwg.mxu0
        %v2403 = vsel %vm1662, %v2401, -inf
        %2404 = vmax.xlane.f32.xlu0 %v2403
        %v2405 = vpop.xlane.xlu0 %2404
        %v2406 = vsub.f32 %v2401, %v2405
        %v2407 = vmul.f32 %v2406, 1.442695
        %v2408 = vpow.pop %v2407
        %v2409 = vsel %vm1662, %v2408, 0.0
        %2410 = vadd.xlane.f32.xlu0 %v2409
        %v2411 = vpop.xlane.xlu0 %2410
        %v2412 = vrcp.pop %v2411
        %v2413 = vmul.f32 %v2408, %v2412
        %v2415 = vsel %vm1662, %v2413, 0
        %2417 = vmatpush.msra.mxu0 0.0
        %2418 = vmatpush.msra.mxu0 0.0
        %2419 = vmatpush.msra.mxu0 0.0
        %2420 = vmatpush.msra.mxu0 0.0
        %2421 = vmatpush.msra.mxu0 0.0
        %2422 = vmatpush.msra.mxu0 0.0
        %2423 = vmatpush.msra.mxu0 0.0
        %2424 = vmatpush.msra.mxu0 0.0
        %2425 = vmatpush.msra.mxu0 0.0
        %2426 = vmatpush.msra.mxu0 0.0
        %2427 = vmatpush.msra.mxu0 0.0
        %2428 = vmatpush.msra.mxu0 0.0
        %2429 = vmatpush.msra.mxu0 0.0
        %2430 = vmatpush.msra.mxu0 0.0
        %2431 = vmatpush.msra.mxu0 0.0
        %2432 = vmatpush.msra.mxu0 %v2373
        %2433 = vmatmul.f32.gmra.mxu0 %v2415
        %v2434 = vpop.f32.mrf.mxu0
        %v2435 = vadd.f32 0.0, %v2434
        %2436 = vdwg.mxu0
        %v2438 = vsel %vm1662, %v2435, 0
        %2440 = vmatpush.msra.mxu0 0.0
        %2441 = vmatpush.msra.mxu0 0.0
        %2442 = vmatpush.msra.mxu0 0.0
        %2443 = vmatpush.msra.mxu0 0.0
        %2444 = vmatpush.msra.mxu0 0.0
        %2445 = vmatpush.msra.mxu0 0.0
        %2446 = vmatpush.msra.mxu0 0.0
        %2447 = vmatpush.msra.mxu0 0.0
        %2448 = vmatpush.msra.mxu0 0.0
        %2449 = vmatpush.msra.mxu0 0.0
        %2450 = vmatpush.msra.mxu0 0.0
        %2451 = vmatpush.msra.mxu0 0.0
        %2452 = vmatpush.msra.mxu0 0.0
        %2453 = vmatpush.msra.mxu0 0.0
        %2454 = vmatpush.msra.mxu0 0.0
        %2455 = vmatpush.msra.mxu0 %v2376
        %2456 = vmatmul.f32.gmra.mxu0 %v2438
        %v2457 = vpop.f32.mrf.mxu0
        %v2458 = vadd.f32 0.0, %v2457
        %2459 = vdwg.mxu0
        %v2460 = vadd.f32 %v2281, %v2458
        %v2461 = vld [vmem:[%s17] sm:$0x1]
        %v2463 = vperm.slane %v2461, 0
        %v2465 = vadd.f32 %v2460, %v2463
        %v2466 = vadd.f32 %v1569, %v2465
        %v2467 = vld [vmem:[%s27] sm:$0x1]
        %v2468 = vld [vmem:[%s29] sm:$0x1]
        %v2469 = vsel %vm1579, %v2466, 0.0
        %2470 = vadd.xlane.f32.xlu0 %v2469
        %v2471 = vpop.xlane.xlu0 %2470
        %v2472 = vrcp.pop 40.0
        %v2473 = vmul.f32 40.0, %v2472
        %v2474 = vsub.f32 1.0, %v2473
        %v2475 = vmul.f32 %v2472, %v2474
        %v2476 = vadd.f32 %v2472, %v2475
        %vm2477 = vweird.f32 %v2472
        %v2478 = vsel %vm2477, %v2472, %v2476
        %v2479 = vmul.f32 %v2471, %v2478
        %v2480 = vsub.f32 %v2466, %v2479
        %v2481 = vmul.f32 %v2480, %v2480
        %v2482 = vsel %vm1579, %v2481, 0.0
        %2483 = vadd.xlane.f32.xlu0 %v2482
        %v2484 = vpop.xlane.xlu0 %2483
        %v2485 = vmul.f32 %v2484, %v2478
        %v2486 = vadd.f32 %v2485, 1e-05
        %v2487 = vrsqrt.pop %v2486
        %v2488 = vmul.f32 %v2487, %v2486
        %v2489 = vmul.f32 %v2488, %v2487
        %v2490 = vmul.f32 0.5, %v2489
        %v2491 = vsub.f32 1.5, %v2490
        %v2492 = vmul.f32 %v2487, %v2491
        %vm2493 = vweird.f32 %v2486
        %vm2494 = vweird.f32 %v2487
        %vm2495 = vmor %vm2493, %vm2494
        %v2496 = vsel %vm2495, %v2487, %v2492
        %v2497 = vmul.f32 %v2480, %v2496
        %v2499 = vperm.slane %v2467, 0
        %v2501 = vmul.f32 %v2497, %v2499
        %v2503 = vperm.slane %v2468, 0
        %v2505 = vadd.f32 %v2501, %v2503
        %v2506 = vld [vmem:[%s19] sm:$0xff]
        %v2507 = vld [vmem:[%s19 + $0x8] sm:$0xff]
        %v2508 = vld [vmem:[%s19 + $0x10] sm:$0xff]
        %v2509 = vld [vmem:[%s19 + $0x18] sm:$0xff]
        %v2510 = vld [vmem:[%s19 + $0x20] sm:$0xff]
        %v2511 = vld [vmem:[%s19 + $0x28] sm:$0xff]
        %v2512 = vld [vmem:[%s19 + $0x30] sm:$0xff]
        %v2513 = vld [vmem:[%s19 + $0x38] sm:$0xff]
        %v2514 = vld [vmem:[%s19 + $0x40] sm:$0xff]
        %v2515 = vld [vmem:[%s19 + $0x48] sm:$0xff]
        %v2516 = vld [vmem:[%s19 + $0x50] sm:$0xff]
        %v2517 = vld [vmem:[%s19 + $0x58] sm:$0xff]
        %v2518 = vld [vmem:[%s19 + $0x60] sm:$0xff]
        %v2519 = vld [vmem:[%s19 + $0x68] sm:$0xff]
        %v2520 = vld [vmem:[%s19 + $0x70] sm:$0xff]
        %v2521 = vld [vmem:[%s19 + $0x78] sm:$0xff]
        %v2522 = vld [vmem:[%s19 + $0x80] sm:$0xff]
        %v2523 = vld [vmem:[%s19 + $0x88] sm:$0xff]
        %v2524 = vld [vmem:[%s19 + $0x90] sm:$0xff]
        %v2525 = vld [vmem:[%s19 + $0x98] sm:$0xff]
        %v2526 = vld [vmem:[%s19 + $0xa0] sm:$0xff]
        %v2527 = vld [vmem:[%s19 + $0xa8] sm:$0xff]
        %v2528 = vld [vmem:[%s19 + $0xb0] sm:$0xff]
        %v2529 = vld [vmem:[%s19 + $0xb8] sm:$0xff]
        %v2530 = vld [vmem:[%s19 + $0xc0] sm:$0xff]
        %v2531 = vld [vmem:[%s19 + $0xc8] sm:$0xff]
        %v2532 = vld [vmem:[%s19 + $0xd0] sm:$0xff]
        %v2533 = vld [vmem:[%s19 + $0xd8] sm:$0xff]
        %v2534 = vld [vmem:[%s19 + $0xe0] sm:$0xff]
        %v2535 = vld [vmem:[%s19 + $0xe8] sm:$0xff]
        %v2536 = vld [vmem:[%s19 + $0xf0] sm:$0xff]
        %v2537 = vld [vmem:[%s19 + $0xf8] sm:$0xff]
        %v2538 = vld [vmem:[%s19 + $0x100] sm:$0xff]
        %v2539 = vld [vmem:[%s19 + $0x108] sm:$0xff]
        %v2540 = vld [vmem:[%s19 + $0x110] sm:$0xff]
        %v2541 = vld [vmem:[%s19 + $0x118] sm:$0xff]
        %v2542 = vld [vmem:[%s19 + $0x120] sm:$0xff]
        %v2543 = vld [vmem:[%s19 + $0x128] sm:$0xff]
        %v2544 = vld [vmem:[%s19 + $0x130] sm:$0xff]
        %v2545 = vld [vmem:[%s19 + $0x138] sm:$0xff]
        %v2546 = vld [vmem:[%s19 + $0x140] sm:$0xff]
        %v2547 = vld [vmem:[%s19 + $0x148] sm:$0xff]
        %v2548 = vld [vmem:[%s19 + $0x150] sm:$0xff]
        %v2549 = vld [vmem:[%s19 + $0x158] sm:$0xff]
        %v2550 = vld [vmem:[%s19 + $0x160] sm:$0xff]
        %v2551 = vld [vmem:[%s19 + $0x168] sm:$0xff]
        %v2552 = vld [vmem:[%s19 + $0x170] sm:$0xff]
        %v2553 = vld [vmem:[%s19 + $0x178] sm:$0xff]
        %v2554 = vld [vmem:[%s19 + $0x180] sm:$0xff]
        %v2555 = vld [vmem:[%s19 + $0x188] sm:$0xff]
        %v2556 = vld [vmem:[%s19 + $0x190] sm:$0xff]
        %v2557 = vld [vmem:[%s19 + $0x198] sm:$0xff]
        %v2558 = vld [vmem:[%s19 + $0x1a0] sm:$0xff]
        %v2559 = vld [vmem:[%s19 + $0x1a8] sm:$0xff]
        %v2560 = vld [vmem:[%s19 + $0x1b0] sm:$0xff]
        %v2561 = vld [vmem:[%s19 + $0x1b8] sm:$0xff]
        %v2562 = vld [vmem:[%s19 + $0x1c0] sm:$0xff]
        %v2563 = vld [vmem:[%s19 + $0x1c8] sm:$0xff]
        %v2564 = vld [vmem:[%s19 + $0x1d0] sm:$0xff]
        %v2565 = vld [vmem:[%s19 + $0x1d8] sm:$0xff]
        %v2566 = vld [vmem:[%s19 + $0x1e0] sm:$0xff]
        %v2567 = vld [vmem:[%s19 + $0x1e8] sm:$0xff]
        %v2568 = vld [vmem:[%s19 + $0x1f0] sm:$0xff]
        %v2569 = vld [vmem:[%s19 + $0x1f8] sm:$0xff]
        %v2570 = vld [vmem:[%s19 + $0x200] sm:$0xff]
        %v2571 = vld [vmem:[%s19 + $0x208] sm:$0xff]
        %v2572 = vld [vmem:[%s19 + $0x210] sm:$0xff]
        %v2573 = vld [vmem:[%s19 + $0x218] sm:$0xff]
        %v2574 = vld [vmem:[%s19 + $0x220] sm:$0xff]
        %v2575 = vld [vmem:[%s19 + $0x228] sm:$0xff]
        %v2576 = vld [vmem:[%s19 + $0x230] sm:$0xff]
        %v2577 = vld [vmem:[%s19 + $0x238] sm:$0xff]
        %v2578 = vld [vmem:[%s19 + $0x240] sm:$0xff]
        %v2579 = vld [vmem:[%s19 + $0x248] sm:$0xff]
        %v2580 = vld [vmem:[%s19 + $0x250] sm:$0xff]
        %v2581 = vld [vmem:[%s19 + $0x258] sm:$0xff]
        %v2582 = vld [vmem:[%s19 + $0x260] sm:$0xff]
        %v2583 = vld [vmem:[%s19 + $0x268] sm:$0xff]
        %v2584 = vld [vmem:[%s19 + $0x270] sm:$0xff]
        %v2585 = vld [vmem:[%s19 + $0x278] sm:$0xff]
        %v2586 = vld [vmem:[%s21] sm:$0xff]
        %v2587 = vld [vmem:[%s21 + $0x8] sm:$0xff]
        %v2590 = vperm.slane %v2586, 0
        %v2591 = vperm.slane %v2586, 1
        %v2592 = vperm.slane %v2586, 2
        %v2593 = vperm.slane %v2586, 3
        %v2594 = vperm.slane %v2586, 4
        %v2595 = vperm.slane %v2586, 5
        %v2596 = vperm.slane %v2586, 6
        %v2597 = vperm.slane %v2586, 7
        %v2598 = vperm.slane %v2587, 0
        %v2599 = vperm.slane %v2587, 1
        %v2600 = vperm.slane %v2587, 2
        %v2601 = vperm.slane %v2587, 3
        %v2602 = vperm.slane %v2587, 4
        %v2603 = vperm.slane %v2587, 5
        %v2604 = vperm.slane %v2587, 6
        %v2605 = vperm.slane %v2587, 7
        %v2623 = vsel %vm1579, %v2505, 0
        %2625 = vmatpush.msra.mxu0 0.0
        %2626 = vmatpush.msra.mxu0 0.0
        %2627 = vmatpush.msra.mxu0 0.0
        %2628 = vmatpush.msra.mxu0 0.0
        %2629 = vmatpush.msra.mxu0 0.0
        %2630 = vmatpush.msra.mxu0 0.0
        %2631 = vmatpush.msra.mxu0 0.0
        %2632 = vmatpush.msra.mxu0 0.0
        %2633 = vmatpush.msra.mxu0 0.0
        %2634 = vmatpush.msra.mxu0 0.0
        %2635 = vmatpush.msra.mxu0 0.0
        %2636 = vmatpush.msra.mxu0 %v2570
        %2637 = vmatpush.msra.mxu0 %v2554
        %2638 = vmatpush.msra.mxu0 %v2538
        %2639 = vmatpush.msra.mxu0 %v2522
        %2640 = vmatpush.msra.mxu0 %v2506
        %2641 = vmatmul.f32.gmra.mxu0 %v2623
        %v2642 = vpop.f32.mrf.mxu0
        %v2643 = vadd.f32 %v2590, %v2642
        %2644 = vdwg.mxu0
        %2645 = vmatpush.msra.mxu0 0.0
        %2646 = vmatpush.msra.mxu0 0.0
        %2647 = vmatpush.msra.mxu0 0.0
        %2648 = vmatpush.msra.mxu0 0.0
        %2649 = vmatpush.msra.mxu0 0.0
        %2650 = vmatpush.msra.mxu0 0.0
        %2651 = vmatpush.msra.mxu0 0.0
        %2652 = vmatpush.msra.mxu0 0.0
        %2653 = vmatpush.msra.mxu0 0.0
        %2654 = vmatpush.msra.mxu0 0.0
        %2655 = vmatpush.msra.mxu0 0.0
        %2656 = vmatpush.msra.mxu0 %v2571
        %2657 = vmatpush.msra.mxu0 %v2555
        %2658 = vmatpush.msra.mxu0 %v2539
        %2659 = vmatpush.msra.mxu0 %v2523
        %2660 = vmatpush.msra.mxu0 %v2507
        %2661 = vmatmul.f32.gmra.mxu0 %v2623
        %v2662 = vpop.f32.mrf.mxu0
        %v2663 = vadd.f32 %v2591, %v2662
        %2664 = vdwg.mxu0
        %2665 = vmatpush.msra.mxu0 0.0
        %2666 = vmatpush.msra.mxu0 0.0
        %2667 = vmatpush.msra.mxu0 0.0
        %2668 = vmatpush.msra.mxu0 0.0
        %2669 = vmatpush.msra.mxu0 0.0
        %2670 = vmatpush.msra.mxu0 0.0
        %2671 = vmatpush.msra.mxu0 0.0
        %2672 = vmatpush.msra.mxu0 0.0
        %2673 = vmatpush.msra.mxu0 0.0
        %2674 = vmatpush.msra.mxu0 0.0
        %2675 = vmatpush.msra.mxu0 0.0
        %2676 = vmatpush.msra.mxu0 %v2572
        %2677 = vmatpush.msra.mxu0 %v2556
        %2678 = vmatpush.msra.mxu0 %v2540
        %2679 = vmatpush.msra.mxu0 %v2524
        %2680 = vmatpush.msra.mxu0 %v2508
        %2681 = vmatmul.f32.gmra.mxu0 %v2623
        %v2682 = vpop.f32.mrf.mxu0
        %v2683 = vadd.f32 %v2592, %v2682
        %2684 = vdwg.mxu0
        %2685 = vmatpush.msra.mxu0 0.0
        %2686 = vmatpush.msra.mxu0 0.0
        %2687 = vmatpush.msra.mxu0 0.0
        %2688 = vmatpush.msra.mxu0 0.0
        %2689 = vmatpush.msra.mxu0 0.0
        %2690 = vmatpush.msra.mxu0 0.0
        %2691 = vmatpush.msra.mxu0 0.0
        %2692 = vmatpush.msra.mxu0 0.0
        %2693 = vmatpush.msra.mxu0 0.0
        %2694 = vmatpush.msra.mxu0 0.0
        %2695 = vmatpush.msra.mxu0 0.0
        %2696 = vmatpush.msra.mxu0 %v2573
        %2697 = vmatpush.msra.mxu0 %v2557
        %2698 = vmatpush.msra.mxu0 %v2541
        %2699 = vmatpush.msra.mxu0 %v2525
        %2700 = vmatpush.msra.mxu0 %v2509
        %2701 = vmatmul.f32.gmra.mxu0 %v2623
        %v2702 = vpop.f32.mrf.mxu0
        %v2703 = vadd.f32 %v2593, %v2702
        %2704 = vdwg.mxu0
        %2705 = vmatpush.msra.mxu0 0.0
        %2706 = vmatpush.msra.mxu0 0.0
        %2707 = vmatpush.msra.mxu0 0.0
        %2708 = vmatpush.msra.mxu0 0.0
        %2709 = vmatpush.msra.mxu0 0.0
        %2710 = vmatpush.msra.mxu0 0.0
        %2711 = vmatpush.msra.mxu0 0.0
        %2712 = vmatpush.msra.mxu0 0.0
        %2713 = vmatpush.msra.mxu0 0.0
        %2714 = vmatpush.msra.mxu0 0.0
        %2715 = vmatpush.msra.mxu0 0.0
        %2716 = vmatpush.msra.mxu0 %v2574
        %2717 = vmatpush.msra.mxu0 %v2558
        %2718 = vmatpush.msra.mxu0 %v2542
        %2719 = vmatpush.msra.mxu0 %v2526
        %2720 = vmatpush.msra.mxu0 %v2510
        %2721 = vmatmul.f32.gmra.mxu0 %v2623
        %v2722 = vpop.f32.mrf.mxu0
        %v2723 = vadd.f32 %v2594, %v2722
        %2724 = vdwg.mxu0
        %2725 = vmatpush.msra.mxu0 0.0
        %2726 = vmatpush.msra.mxu0 0.0
        %2727 = vmatpush.msra.mxu0 0.0
        %2728 = vmatpush.msra.mxu0 0.0
        %2729 = vmatpush.msra.mxu0 0.0
        %2730 = vmatpush.msra.mxu0 0.0
        %2731 = vmatpush.msra.mxu0 0.0
        %2732 = vmatpush.msra.mxu0 0.0
        %2733 = vmatpush.msra.mxu0 0.0
        %2734 = vmatpush.msra.mxu0 0.0
        %2735 = vmatpush.msra.mxu0 0.0
        %2736 = vmatpush.msra.mxu0 %v2575
        %2737 = vmatpush.msra.mxu0 %v2559
        %2738 = vmatpush.msra.mxu0 %v2543
        %2739 = vmatpush.msra.mxu0 %v2527
        %2740 = vmatpush.msra.mxu0 %v2511
        %2741 = vmatmul.f32.gmra.mxu0 %v2623
        %v2742 = vpop.f32.mrf.mxu0
        %v2743 = vadd.f32 %v2595, %v2742
        %2744 = vdwg.mxu0
        %2745 = vmatpush.msra.mxu0 0.0
        %2746 = vmatpush.msra.mxu0 0.0
        %2747 = vmatpush.msra.mxu0 0.0
        %2748 = vmatpush.msra.mxu0 0.0
        %2749 = vmatpush.msra.mxu0 0.0
        %2750 = vmatpush.msra.mxu0 0.0
        %2751 = vmatpush.msra.mxu0 0.0
        %2752 = vmatpush.msra.mxu0 0.0
        %2753 = vmatpush.msra.mxu0 0.0
        %2754 = vmatpush.msra.mxu0 0.0
        %2755 = vmatpush.msra.mxu0 0.0
        %2756 = vmatpush.msra.mxu0 %v2576
        %2757 = vmatpush.msra.mxu0 %v2560
        %2758 = vmatpush.msra.mxu0 %v2544
        %2759 = vmatpush.msra.mxu0 %v2528
        %2760 = vmatpush.msra.mxu0 %v2512
        %2761 = vmatmul.f32.gmra.mxu0 %v2623
        %v2762 = vpop.f32.mrf.mxu0
        %v2763 = vadd.f32 %v2596, %v2762
        %2764 = vdwg.mxu0
        %2765 = vmatpush.msra.mxu0 0.0
        %2766 = vmatpush.msra.mxu0 0.0
        %2767 = vmatpush.msra.mxu0 0.0
        %2768 = vmatpush.msra.mxu0 0.0
        %2769 = vmatpush.msra.mxu0 0.0
        %2770 = vmatpush.msra.mxu0 0.0
        %2771 = vmatpush.msra.mxu0 0.0
        %2772 = vmatpush.msra.mxu0 0.0
        %2773 = vmatpush.msra.mxu0 0.0
        %2774 = vmatpush.msra.mxu0 0.0
        %2775 = vmatpush.msra.mxu0 0.0
        %2776 = vmatpush.msra.mxu0 %v2577
        %2777 = vmatpush.msra.mxu0 %v2561
        %2778 = vmatpush.msra.mxu0 %v2545
        %2779 = vmatpush.msra.mxu0 %v2529
        %2780 = vmatpush.msra.mxu0 %v2513
        %2781 = vmatmul.f32.gmra.mxu0 %v2623
        %v2782 = vpop.f32.mrf.mxu0
        %v2783 = vadd.f32 %v2597, %v2782
        %2784 = vdwg.mxu0
        %2785 = vmatpush.msra.mxu0 0.0
        %2786 = vmatpush.msra.mxu0 0.0
        %2787 = vmatpush.msra.mxu0 0.0
        %2788 = vmatpush.msra.mxu0 0.0
        %2789 = vmatpush.msra.mxu0 0.0
        %2790 = vmatpush.msra.mxu0 0.0
        %2791 = vmatpush.msra.mxu0 0.0
        %2792 = vmatpush.msra.mxu0 0.0
        %2793 = vmatpush.msra.mxu0 0.0
        %2794 = vmatpush.msra.mxu0 0.0
        %2795 = vmatpush.msra.mxu0 0.0
        %2796 = vmatpush.msra.mxu0 %v2578
        %2797 = vmatpush.msra.mxu0 %v2562
        %2798 = vmatpush.msra.mxu0 %v2546
        %2799 = vmatpush.msra.mxu0 %v2530
        %2800 = vmatpush.msra.mxu0 %v2514
        %2801 = vmatmul.f32.gmra.mxu0 %v2623
        %v2802 = vpop.f32.mrf.mxu0
        %v2803 = vadd.f32 %v2598, %v2802
        %2804 = vdwg.mxu0
        %2805 = vmatpush.msra.mxu0 0.0
        %2806 = vmatpush.msra.mxu0 0.0
        %2807 = vmatpush.msra.mxu0 0.0
        %2808 = vmatpush.msra.mxu0 0.0
        %2809 = vmatpush.msra.mxu0 0.0
        %2810 = vmatpush.msra.mxu0 0.0
        %2811 = vmatpush.msra.mxu0 0.0
        %2812 = vmatpush.msra.mxu0 0.0
        %2813 = vmatpush.msra.mxu0 0.0
        %2814 = vmatpush.msra.mxu0 0.0
        %2815 = vmatpush.msra.mxu0 0.0
        %2816 = vmatpush.msra.mxu0 %v2579
        %2817 = vmatpush.msra.mxu0 %v2563
        %2818 = vmatpush.msra.mxu0 %v2547
        %2819 = vmatpush.msra.mxu0 %v2531
        %2820 = vmatpush.msra.mxu0 %v2515
        %2821 = vmatmul.f32.gmra.mxu0 %v2623
        %v2822 = vpop.f32.mrf.mxu0
        %v2823 = vadd.f32 %v2599, %v2822
        %2824 = vdwg.mxu0
        %2825 = vmatpush.msra.mxu0 0.0
        %2826 = vmatpush.msra.mxu0 0.0
        %2827 = vmatpush.msra.mxu0 0.0
        %2828 = vmatpush.msra.mxu0 0.0
        %2829 = vmatpush.msra.mxu0 0.0
        %2830 = vmatpush.msra.mxu0 0.0
        %2831 = vmatpush.msra.mxu0 0.0
        %2832 = vmatpush.msra.mxu0 0.0
        %2833 = vmatpush.msra.mxu0 0.0
        %2834 = vmatpush.msra.mxu0 0.0
        %2835 = vmatpush.msra.mxu0 0.0
        %2836 = vmatpush.msra.mxu0 %v2580
        %2837 = vmatpush.msra.mxu0 %v2564
        %2838 = vmatpush.msra.mxu0 %v2548
        %2839 = vmatpush.msra.mxu0 %v2532
        %2840 = vmatpush.msra.mxu0 %v2516
        %2841 = vmatmul.f32.gmra.mxu0 %v2623
        %v2842 = vpop.f32.mrf.mxu0
        %v2843 = vadd.f32 %v2600, %v2842
        %2844 = vdwg.mxu0
        %2845 = vmatpush.msra.mxu0 0.0
        %2846 = vmatpush.msra.mxu0 0.0
        %2847 = vmatpush.msra.mxu0 0.0
        %2848 = vmatpush.msra.mxu0 0.0
        %2849 = vmatpush.msra.mxu0 0.0
        %2850 = vmatpush.msra.mxu0 0.0
        %2851 = vmatpush.msra.mxu0 0.0
        %2852 = vmatpush.msra.mxu0 0.0
        %2853 = vmatpush.msra.mxu0 0.0
        %2854 = vmatpush.msra.mxu0 0.0
        %2855 = vmatpush.msra.mxu0 0.0
        %2856 = vmatpush.msra.mxu0 %v2581
        %2857 = vmatpush.msra.mxu0 %v2565
        %2858 = vmatpush.msra.mxu0 %v2549
        %2859 = vmatpush.msra.mxu0 %v2533
        %2860 = vmatpush.msra.mxu0 %v2517
        %2861 = vmatmul.f32.gmra.mxu0 %v2623
        %v2862 = vpop.f32.mrf.mxu0
        %v2863 = vadd.f32 %v2601, %v2862
        %2864 = vdwg.mxu0
        %2865 = vmatpush.msra.mxu0 0.0
        %2866 = vmatpush.msra.mxu0 0.0
        %2867 = vmatpush.msra.mxu0 0.0
        %2868 = vmatpush.msra.mxu0 0.0
        %2869 = vmatpush.msra.mxu0 0.0
        %2870 = vmatpush.msra.mxu0 0.0
        %2871 = vmatpush.msra.mxu0 0.0
        %2872 = vmatpush.msra.mxu0 0.0
        %2873 = vmatpush.msra.mxu0 0.0
        %2874 = vmatpush.msra.mxu0 0.0
        %2875 = vmatpush.msra.mxu0 0.0
        %2876 = vmatpush.msra.mxu0 %v2582
        %2877 = vmatpush.msra.mxu0 %v2566
        %2878 = vmatpush.msra.mxu0 %v2550
        %2879 = vmatpush.msra.mxu0 %v2534
        %2880 = vmatpush.msra.mxu0 %v2518
        %2881 = vmatmul.f32.gmra.mxu0 %v2623
        %v2882 = vpop.f32.mrf.mxu0
        %v2883 = vadd.f32 %v2602, %v2882
        %2884 = vdwg.mxu0
        %2885 = vmatpush.msra.mxu0 0.0
        %2886 = vmatpush.msra.mxu0 0.0
        %2887 = vmatpush.msra.mxu0 0.0
        %2888 = vmatpush.msra.mxu0 0.0
        %2889 = vmatpush.msra.mxu0 0.0
        %2890 = vmatpush.msra.mxu0 0.0
        %2891 = vmatpush.msra.mxu0 0.0
        %2892 = vmatpush.msra.mxu0 0.0
        %2893 = vmatpush.msra.mxu0 0.0
        %2894 = vmatpush.msra.mxu0 0.0
        %2895 = vmatpush.msra.mxu0 0.0
        %2896 = vmatpush.msra.mxu0 %v2583
        %2897 = vmatpush.msra.mxu0 %v2567
        %2898 = vmatpush.msra.mxu0 %v2551
        %2899 = vmatpush.msra.mxu0 %v2535
        %2900 = vmatpush.msra.mxu0 %v2519
        %2901 = vmatmul.f32.gmra.mxu0 %v2623
        %v2902 = vpop.f32.mrf.mxu0
        %v2903 = vadd.f32 %v2603, %v2902
        %2904 = vdwg.mxu0
        %2905 = vmatpush.msra.mxu0 0.0
        %2906 = vmatpush.msra.mxu0 0.0
        %2907 = vmatpush.msra.mxu0 0.0
        %2908 = vmatpush.msra.mxu0 0.0
        %2909 = vmatpush.msra.mxu0 0.0
        %2910 = vmatpush.msra.mxu0 0.0
        %2911 = vmatpush.msra.mxu0 0.0
        %2912 = vmatpush.msra.mxu0 0.0
        %2913 = vmatpush.msra.mxu0 0.0
        %2914 = vmatpush.msra.mxu0 0.0
        %2915 = vmatpush.msra.mxu0 0.0
        %2916 = vmatpush.msra.mxu0 %v2584
        %2917 = vmatpush.msra.mxu0 %v2568
        %2918 = vmatpush.msra.mxu0 %v2552
        %2919 = vmatpush.msra.mxu0 %v2536
        %2920 = vmatpush.msra.mxu0 %v2520
        %2921 = vmatmul.f32.gmra.mxu0 %v2623
        %v2922 = vpop.f32.mrf.mxu0
        %v2923 = vadd.f32 %v2604, %v2922
        %2924 = vdwg.mxu0
        %2925 = vmatpush.msra.mxu0 0.0
        %2926 = vmatpush.msra.mxu0 0.0
        %2927 = vmatpush.msra.mxu0 0.0
        %2928 = vmatpush.msra.mxu0 0.0
        %2929 = vmatpush.msra.mxu0 0.0
        %2930 = vmatpush.msra.mxu0 0.0
        %2931 = vmatpush.msra.mxu0 0.0
        %2932 = vmatpush.msra.mxu0 0.0
        %2933 = vmatpush.msra.mxu0 0.0
        %2934 = vmatpush.msra.mxu0 0.0
        %2935 = vmatpush.msra.mxu0 0.0
        %2936 = vmatpush.msra.mxu0 %v2585
        %2937 = vmatpush.msra.mxu0 %v2569
        %2938 = vmatpush.msra.mxu0 %v2553
        %2939 = vmatpush.msra.mxu0 %v2537
        %2940 = vmatpush.msra.mxu0 %v2521
        %2941 = vmatmul.f32.gmra.mxu0 %v2623
        %v2942 = vpop.f32.mrf.mxu0
        %v2943 = vadd.f32 %v2605, %v2942
        %2944 = vdwg.mxu0
        %v2945 = vmax.f32 %v2643, 0.0
        %v2946 = vmax.f32 %v2663, 0.0
        %v2947 = vmax.f32 %v2683, 0.0
        %v2948 = vmax.f32 %v2703, 0.0
        %v2949 = vmax.f32 %v2723, 0.0
        %v2950 = vmax.f32 %v2743, 0.0
        %v2951 = vmax.f32 %v2763, 0.0
        %v2952 = vmax.f32 %v2783, 0.0
        %v2953 = vmax.f32 %v2803, 0.0
        %v2954 = vmax.f32 %v2823, 0.0
        %v2955 = vmax.f32 %v2843, 0.0
        %v2956 = vmax.f32 %v2863, 0.0
        %v2957 = vmax.f32 %v2883, 0.0
        %v2958 = vmax.f32 %v2903, 0.0
        %v2959 = vmax.f32 %v2923, 0.0
        %v2960 = vmax.f32 %v2943, 0.0
        %v2961 = vld [vmem:[%s23] sm:$0xff]
        %v2962 = vld [vmem:[%s23 + $0x8] sm:$0xff]
        %v2963 = vld [vmem:[%s23 + $0x10] sm:$0xff]
        %v2964 = vld [vmem:[%s23 + $0x18] sm:$0xff]
        %v2965 = vld [vmem:[%s23 + $0x20] sm:$0xff]
        %v2966 = vld [vmem:[%s23 + $0x28] sm:$0xff]
        %v2967 = vld [vmem:[%s23 + $0x30] sm:$0xff]
        %v2968 = vld [vmem:[%s23 + $0x38] sm:$0xff]
        %v2969 = vld [vmem:[%s23 + $0x40] sm:$0xff]
        %v2970 = vld [vmem:[%s23 + $0x48] sm:$0xff]
        %v2971 = vld [vmem:[%s23 + $0x50] sm:$0xff]
        %v2972 = vld [vmem:[%s23 + $0x58] sm:$0xff]
        %v2973 = vld [vmem:[%s23 + $0x60] sm:$0xff]
        %v2974 = vld [vmem:[%s23 + $0x68] sm:$0xff]
        %v2975 = vld [vmem:[%s23 + $0x70] sm:$0xff]
        %v2976 = vld [vmem:[%s23 + $0x78] sm:$0xff]
        %v2977 = vld [vmem:[%s23 + $0x80] sm:$0xff]
        %v2978 = vld [vmem:[%s23 + $0x88] sm:$0xff]
        %v2979 = vld [vmem:[%s23 + $0x90] sm:$0xff]
        %v2980 = vld [vmem:[%s23 + $0x98] sm:$0xff]
        %v2981 = vld [vmem:[%s23 + $0xa0] sm:$0xff]
        %v2982 = vld [vmem:[%s23 + $0xa8] sm:$0xff]
        %v2983 = vld [vmem:[%s23 + $0xb0] sm:$0xff]
        %v2984 = vld [vmem:[%s23 + $0xb8] sm:$0xff]
        %v2985 = vld [vmem:[%s23 + $0xc0] sm:$0xff]
        %v2986 = vld [vmem:[%s23 + $0xc8] sm:$0xff]
        %v2987 = vld [vmem:[%s23 + $0xd0] sm:$0xff]
        %v2988 = vld [vmem:[%s23 + $0xd8] sm:$0xff]
        %v2989 = vld [vmem:[%s23 + $0xe0] sm:$0xff]
        %v2990 = vld [vmem:[%s23 + $0xe8] sm:$0xff]
        %v2991 = vld [vmem:[%s23 + $0xf0] sm:$0xff]
        %v2992 = vld [vmem:[%s23 + $0xf8] sm:$0xff]
        %v2993 = vld [vmem:[%s23 + $0x100] sm:$0xff]
        %v2994 = vld [vmem:[%s23 + $0x108] sm:$0xff]
        %v2995 = vld [vmem:[%s23 + $0x110] sm:$0xff]
        %v2996 = vld [vmem:[%s23 + $0x118] sm:$0xff]
        %v2997 = vld [vmem:[%s23 + $0x120] sm:$0xff]
        %v2998 = vld [vmem:[%s23 + $0x128] sm:$0xff]
        %v2999 = vld [vmem:[%s23 + $0x130] sm:$0xff]
        %v3000 = vld [vmem:[%s23 + $0x138] sm:$0xff]
        %v3001 = vld [vmem:[%s23 + $0x140] sm:$0xff]
        %v3002 = vld [vmem:[%s23 + $0x148] sm:$0xff]
        %v3003 = vld [vmem:[%s23 + $0x150] sm:$0xff]
        %v3004 = vld [vmem:[%s23 + $0x158] sm:$0xff]
        %v3005 = vld [vmem:[%s23 + $0x160] sm:$0xff]
        %v3006 = vld [vmem:[%s23 + $0x168] sm:$0xff]
        %v3007 = vld [vmem:[%s23 + $0x170] sm:$0xff]
        %v3008 = vld [vmem:[%s23 + $0x178] sm:$0xff]
        %v3009 = vld [vmem:[%s23 + $0x180] sm:$0xff]
        %v3010 = vld [vmem:[%s23 + $0x188] sm:$0xff]
        %v3011 = vld [vmem:[%s23 + $0x190] sm:$0xff]
        %v3012 = vld [vmem:[%s23 + $0x198] sm:$0xff]
        %v3013 = vld [vmem:[%s23 + $0x1a0] sm:$0xff]
        %v3014 = vld [vmem:[%s23 + $0x1a8] sm:$0xff]
        %v3015 = vld [vmem:[%s23 + $0x1b0] sm:$0xff]
        %v3016 = vld [vmem:[%s23 + $0x1b8] sm:$0xff]
        %v3017 = vld [vmem:[%s23 + $0x1c0] sm:$0xff]
        %v3018 = vld [vmem:[%s23 + $0x1c8] sm:$0xff]
        %v3019 = vld [vmem:[%s23 + $0x1d0] sm:$0xff]
        %v3020 = vld [vmem:[%s23 + $0x1d8] sm:$0xff]
        %v3021 = vld [vmem:[%s23 + $0x1e0] sm:$0xff]
        %v3022 = vld [vmem:[%s23 + $0x1e8] sm:$0xff]
        %v3023 = vld [vmem:[%s23 + $0x1f0] sm:$0xff]
        %v3024 = vld [vmem:[%s23 + $0x1f8] sm:$0xff]
        %v3025 = vld [vmem:[%s23 + $0x200] sm:$0xff]
        %v3026 = vld [vmem:[%s23 + $0x208] sm:$0xff]
        %v3027 = vld [vmem:[%s23 + $0x210] sm:$0xff]
        %v3028 = vld [vmem:[%s23 + $0x218] sm:$0xff]
        %v3029 = vld [vmem:[%s23 + $0x220] sm:$0xff]
        %v3030 = vld [vmem:[%s23 + $0x228] sm:$0xff]
        %v3031 = vld [vmem:[%s23 + $0x230] sm:$0xff]
        %v3032 = vld [vmem:[%s23 + $0x238] sm:$0xff]
        %v3033 = vld [vmem:[%s23 + $0x240] sm:$0xff]
        %v3034 = vld [vmem:[%s23 + $0x248] sm:$0xff]
        %v3035 = vld [vmem:[%s23 + $0x250] sm:$0xff]
        %v3036 = vld [vmem:[%s23 + $0x258] sm:$0xff]
        %v3037 = vld [vmem:[%s23 + $0x260] sm:$0xff]
        %v3038 = vld [vmem:[%s23 + $0x268] sm:$0xff]
        %v3039 = vld [vmem:[%s23 + $0x270] sm:$0xff]
        %v3040 = vld [vmem:[%s23 + $0x278] sm:$0xff]
        %v3041 = vld [vmem:[%s23 + $0x280] sm:$0xff]
        %v3042 = vld [vmem:[%s23 + $0x288] sm:$0xff]
        %v3043 = vld [vmem:[%s23 + $0x290] sm:$0xff]
        %v3044 = vld [vmem:[%s23 + $0x298] sm:$0xff]
        %v3045 = vld [vmem:[%s23 + $0x2a0] sm:$0xff]
        %v3046 = vld [vmem:[%s23 + $0x2a8] sm:$0xff]
        %v3047 = vld [vmem:[%s23 + $0x2b0] sm:$0xff]
        %v3048 = vld [vmem:[%s23 + $0x2b8] sm:$0xff]
        %v3049 = vld [vmem:[%s23 + $0x2c0] sm:$0xff]
        %v3050 = vld [vmem:[%s23 + $0x2c8] sm:$0xff]
        %v3051 = vld [vmem:[%s23 + $0x2d0] sm:$0xff]
        %v3052 = vld [vmem:[%s23 + $0x2d8] sm:$0xff]
        %v3053 = vld [vmem:[%s23 + $0x2e0] sm:$0xff]
        %v3054 = vld [vmem:[%s23 + $0x2e8] sm:$0xff]
        %v3055 = vld [vmem:[%s23 + $0x2f0] sm:$0xff]
        %v3056 = vld [vmem:[%s23 + $0x2f8] sm:$0xff]
        %v3057 = vld [vmem:[%s23 + $0x300] sm:$0xff]
        %v3058 = vld [vmem:[%s23 + $0x308] sm:$0xff]
        %v3059 = vld [vmem:[%s23 + $0x310] sm:$0xff]
        %v3060 = vld [vmem:[%s23 + $0x318] sm:$0xff]
        %v3061 = vld [vmem:[%s23 + $0x320] sm:$0xff]
        %v3062 = vld [vmem:[%s23 + $0x328] sm:$0xff]
        %v3063 = vld [vmem:[%s23 + $0x330] sm:$0xff]
        %v3064 = vld [vmem:[%s23 + $0x338] sm:$0xff]
        %v3065 = vld [vmem:[%s23 + $0x340] sm:$0xff]
        %v3066 = vld [vmem:[%s23 + $0x348] sm:$0xff]
        %v3067 = vld [vmem:[%s23 + $0x350] sm:$0xff]
        %v3068 = vld [vmem:[%s23 + $0x358] sm:$0xff]
        %v3069 = vld [vmem:[%s23 + $0x360] sm:$0xff]
        %v3070 = vld [vmem:[%s23 + $0x368] sm:$0xff]
        %v3071 = vld [vmem:[%s23 + $0x370] sm:$0xff]
        %v3072 = vld [vmem:[%s23 + $0x378] sm:$0xff]
        %v3073 = vld [vmem:[%s23 + $0x380] sm:$0xff]
        %v3074 = vld [vmem:[%s23 + $0x388] sm:$0xff]
        %v3075 = vld [vmem:[%s23 + $0x390] sm:$0xff]
        %v3076 = vld [vmem:[%s23 + $0x398] sm:$0xff]
        %v3077 = vld [vmem:[%s23 + $0x3a0] sm:$0xff]
        %v3078 = vld [vmem:[%s23 + $0x3a8] sm:$0xff]
        %v3079 = vld [vmem:[%s23 + $0x3b0] sm:$0xff]
        %v3080 = vld [vmem:[%s23 + $0x3b8] sm:$0xff]
        %v3081 = vld [vmem:[%s23 + $0x3c0] sm:$0xff]
        %v3082 = vld [vmem:[%s23 + $0x3c8] sm:$0xff]
        %v3083 = vld [vmem:[%s23 + $0x3d0] sm:$0xff]
        %v3084 = vld [vmem:[%s23 + $0x3d8] sm:$0xff]
        %v3085 = vld [vmem:[%s23 + $0x3e0] sm:$0xff]
        %v3086 = vld [vmem:[%s23 + $0x3e8] sm:$0xff]
        %v3087 = vld [vmem:[%s23 + $0x3f0] sm:$0xff]
        %v3088 = vld [vmem:[%s23 + $0x3f8] sm:$0xff]
        %v3089 = vld [vmem:[%s23 + $0x400] sm:$0xff]
        %v3090 = vld [vmem:[%s23 + $0x408] sm:$0xff]
        %v3091 = vld [vmem:[%s23 + $0x410] sm:$0xff]
        %v3092 = vld [vmem:[%s23 + $0x418] sm:$0xff]
        %v3093 = vld [vmem:[%s23 + $0x420] sm:$0xff]
        %v3094 = vld [vmem:[%s23 + $0x428] sm:$0xff]
        %v3095 = vld [vmem:[%s23 + $0x430] sm:$0xff]
        %v3096 = vld [vmem:[%s23 + $0x438] sm:$0xff]
        %v3097 = vld [vmem:[%s23 + $0x440] sm:$0xff]
        %v3098 = vld [vmem:[%s23 + $0x448] sm:$0xff]
        %v3099 = vld [vmem:[%s23 + $0x450] sm:$0xff]
        %v3100 = vld [vmem:[%s23 + $0x458] sm:$0xff]
        %v3101 = vld [vmem:[%s23 + $0x460] sm:$0xff]
        %v3102 = vld [vmem:[%s23 + $0x468] sm:$0xff]
        %v3103 = vld [vmem:[%s23 + $0x470] sm:$0xff]
        %v3104 = vld [vmem:[%s23 + $0x478] sm:$0xff]
        %v3105 = vld [vmem:[%s23 + $0x480] sm:$0xff]
        %v3106 = vld [vmem:[%s23 + $0x488] sm:$0xff]
        %v3107 = vld [vmem:[%s23 + $0x490] sm:$0xff]
        %v3108 = vld [vmem:[%s23 + $0x498] sm:$0xff]
        %v3109 = vld [vmem:[%s23 + $0x4a0] sm:$0xff]
        %v3110 = vld [vmem:[%s23 + $0x4a8] sm:$0xff]
        %v3111 = vld [vmem:[%s23 + $0x4b0] sm:$0xff]
        %v3112 = vld [vmem:[%s23 + $0x4b8] sm:$0xff]
        %v3113 = vld [vmem:[%s23 + $0x4c0] sm:$0xff]
        %v3114 = vld [vmem:[%s23 + $0x4c8] sm:$0xff]
        %v3115 = vld [vmem:[%s23 + $0x4d0] sm:$0xff]
        %v3116 = vld [vmem:[%s23 + $0x4d8] sm:$0xff]
        %v3117 = vld [vmem:[%s23 + $0x4e0] sm:$0xff]
        %v3118 = vld [vmem:[%s23 + $0x4e8] sm:$0xff]
        %v3119 = vld [vmem:[%s23 + $0x4f0] sm:$0xff]
        %v3120 = vld [vmem:[%s23 + $0x4f8] sm:$0xff]
        %v3121 = vld [vmem:[%s23 + $0x500] sm:$0xff]
        %v3122 = vld [vmem:[%s23 + $0x508] sm:$0xff]
        %v3123 = vld [vmem:[%s23 + $0x510] sm:$0xff]
        %v3124 = vld [vmem:[%s23 + $0x518] sm:$0xff]
        %v3125 = vld [vmem:[%s23 + $0x520] sm:$0xff]
        %v3126 = vld [vmem:[%s23 + $0x528] sm:$0xff]
        %v3127 = vld [vmem:[%s23 + $0x530] sm:$0xff]
        %v3128 = vld [vmem:[%s23 + $0x538] sm:$0xff]
        %v3129 = vld [vmem:[%s23 + $0x540] sm:$0xff]
        %v3130 = vld [vmem:[%s23 + $0x548] sm:$0xff]
        %v3131 = vld [vmem:[%s23 + $0x550] sm:$0xff]
        %v3132 = vld [vmem:[%s23 + $0x558] sm:$0xff]
        %v3133 = vld [vmem:[%s23 + $0x560] sm:$0xff]
        %v3134 = vld [vmem:[%s23 + $0x568] sm:$0xff]
        %v3135 = vld [vmem:[%s23 + $0x570] sm:$0xff]
        %v3136 = vld [vmem:[%s23 + $0x578] sm:$0xff]
        %v3137 = vld [vmem:[%s23 + $0x580] sm:$0xff]
        %v3138 = vld [vmem:[%s23 + $0x588] sm:$0xff]
        %v3139 = vld [vmem:[%s23 + $0x590] sm:$0xff]
        %v3140 = vld [vmem:[%s23 + $0x598] sm:$0xff]
        %v3141 = vld [vmem:[%s23 + $0x5a0] sm:$0xff]
        %v3142 = vld [vmem:[%s23 + $0x5a8] sm:$0xff]
        %v3143 = vld [vmem:[%s23 + $0x5b0] sm:$0xff]
        %v3144 = vld [vmem:[%s23 + $0x5b8] sm:$0xff]
        %v3145 = vld [vmem:[%s23 + $0x5c0] sm:$0xff]
        %v3146 = vld [vmem:[%s23 + $0x5c8] sm:$0xff]
        %v3147 = vld [vmem:[%s23 + $0x5d0] sm:$0xff]
        %v3148 = vld [vmem:[%s23 + $0x5d8] sm:$0xff]
        %v3149 = vld [vmem:[%s23 + $0x5e0] sm:$0xff]
        %v3150 = vld [vmem:[%s23 + $0x5e8] sm:$0xff]
        %v3151 = vld [vmem:[%s23 + $0x5f0] sm:$0xff]
        %v3152 = vld [vmem:[%s23 + $0x5f8] sm:$0xff]
        %v3153 = vld [vmem:[%s23 + $0x600] sm:$0xff]
        %v3154 = vld [vmem:[%s23 + $0x608] sm:$0xff]
        %v3155 = vld [vmem:[%s23 + $0x610] sm:$0xff]
        %v3156 = vld [vmem:[%s23 + $0x618] sm:$0xff]
        %v3157 = vld [vmem:[%s23 + $0x620] sm:$0xff]
        %v3158 = vld [vmem:[%s23 + $0x628] sm:$0xff]
        %v3159 = vld [vmem:[%s23 + $0x630] sm:$0xff]
        %v3160 = vld [vmem:[%s23 + $0x638] sm:$0xff]
        %v3161 = vld [vmem:[%s23 + $0x640] sm:$0xff]
        %v3162 = vld [vmem:[%s23 + $0x648] sm:$0xff]
        %v3163 = vld [vmem:[%s23 + $0x650] sm:$0xff]
        %v3164 = vld [vmem:[%s23 + $0x658] sm:$0xff]
        %v3165 = vld [vmem:[%s23 + $0x660] sm:$0xff]
        %v3166 = vld [vmem:[%s23 + $0x668] sm:$0xff]
        %v3167 = vld [vmem:[%s23 + $0x670] sm:$0xff]
        %v3168 = vld [vmem:[%s23 + $0x678] sm:$0xff]
        %v3169 = vld [vmem:[%s23 + $0x680] sm:$0xff]
        %v3170 = vld [vmem:[%s23 + $0x688] sm:$0xff]
        %v3171 = vld [vmem:[%s23 + $0x690] sm:$0xff]
        %v3172 = vld [vmem:[%s23 + $0x698] sm:$0xff]
        %v3173 = vld [vmem:[%s23 + $0x6a0] sm:$0xff]
        %v3174 = vld [vmem:[%s23 + $0x6a8] sm:$0xff]
        %v3175 = vld [vmem:[%s23 + $0x6b0] sm:$0xff]
        %v3176 = vld [vmem:[%s23 + $0x6b8] sm:$0xff]
        %v3177 = vld [vmem:[%s23 + $0x6c0] sm:$0xff]
        %v3178 = vld [vmem:[%s23 + $0x6c8] sm:$0xff]
        %v3179 = vld [vmem:[%s23 + $0x6d0] sm:$0xff]
        %v3180 = vld [vmem:[%s23 + $0x6d8] sm:$0xff]
        %v3181 = vld [vmem:[%s23 + $0x6e0] sm:$0xff]
        %v3182 = vld [vmem:[%s23 + $0x6e8] sm:$0xff]
        %v3183 = vld [vmem:[%s23 + $0x6f0] sm:$0xff]
        %v3184 = vld [vmem:[%s23 + $0x6f8] sm:$0xff]
        %v3185 = vld [vmem:[%s23 + $0x700] sm:$0xff]
        %v3186 = vld [vmem:[%s23 + $0x708] sm:$0xff]
        %v3187 = vld [vmem:[%s23 + $0x710] sm:$0xff]
        %v3188 = vld [vmem:[%s23 + $0x718] sm:$0xff]
        %v3189 = vld [vmem:[%s23 + $0x720] sm:$0xff]
        %v3190 = vld [vmem:[%s23 + $0x728] sm:$0xff]
        %v3191 = vld [vmem:[%s23 + $0x730] sm:$0xff]
        %v3192 = vld [vmem:[%s23 + $0x738] sm:$0xff]
        %v3193 = vld [vmem:[%s23 + $0x740] sm:$0xff]
        %v3194 = vld [vmem:[%s23 + $0x748] sm:$0xff]
        %v3195 = vld [vmem:[%s23 + $0x750] sm:$0xff]
        %v3196 = vld [vmem:[%s23 + $0x758] sm:$0xff]
        %v3197 = vld [vmem:[%s23 + $0x760] sm:$0xff]
        %v3198 = vld [vmem:[%s23 + $0x768] sm:$0xff]
        %v3199 = vld [vmem:[%s23 + $0x770] sm:$0xff]
        %v3200 = vld [vmem:[%s23 + $0x778] sm:$0xff]
        %v3201 = vld [vmem:[%s23 + $0x780] sm:$0xff]
        %v3202 = vld [vmem:[%s23 + $0x788] sm:$0xff]
        %v3203 = vld [vmem:[%s23 + $0x790] sm:$0xff]
        %v3204 = vld [vmem:[%s23 + $0x798] sm:$0xff]
        %v3205 = vld [vmem:[%s23 + $0x7a0] sm:$0xff]
        %v3206 = vld [vmem:[%s23 + $0x7a8] sm:$0xff]
        %v3207 = vld [vmem:[%s23 + $0x7b0] sm:$0xff]
        %v3208 = vld [vmem:[%s23 + $0x7b8] sm:$0xff]
        %v3209 = vld [vmem:[%s23 + $0x7c0] sm:$0xff]
        %v3210 = vld [vmem:[%s23 + $0x7c8] sm:$0xff]
        %v3211 = vld [vmem:[%s23 + $0x7d0] sm:$0xff]
        %v3212 = vld [vmem:[%s23 + $0x7d8] sm:$0xff]
        %v3213 = vld [vmem:[%s23 + $0x7e0] sm:$0xff]
        %v3214 = vld [vmem:[%s23 + $0x7e8] sm:$0xff]
        %v3215 = vld [vmem:[%s23 + $0x7f0] sm:$0xff]
        %v3216 = vld [vmem:[%s23 + $0x7f8] sm:$0xff]
        %v3217 = vld [vmem:[%s25] sm:$0x1]
        %v3219 = vperm.slane %v3217, 0
        %3221 = vmatpush.msra.mxu0 %v2976
        %3222 = vmatpush.msra.mxu0 %v2975
        %3223 = vmatpush.msra.mxu0 %v2974
        %3224 = vmatpush.msra.mxu0 %v2973
        %3225 = vmatpush.msra.mxu0 %v2972
        %3226 = vmatpush.msra.mxu0 %v2971
        %3227 = vmatpush.msra.mxu0 %v2970
        %3228 = vmatpush.msra.mxu0 %v2969
        %3229 = vmatpush.msra.mxu0 %v2968
        %3230 = vmatpush.msra.mxu0 %v2967
        %3231 = vmatpush.msra.mxu0 %v2966
        %3232 = vmatpush.msra.mxu0 %v2965
        %3233 = vmatpush.msra.mxu0 %v2964
        %3234 = vmatpush.msra.mxu0 %v2963
        %3235 = vmatpush.msra.mxu0 %v2962
        %3236 = vmatpush.msra.mxu0 %v2961
        %3237 = vmatmul.f32.gmra.mxu0 %v2945
        %v3238 = vpop.f32.mrf.mxu0
        %v3239 = vadd.f32 %v3219, %v3238
        %3240 = vdwg.mxu0
        %3241 = vmatpush.msra.mxu0 %v2992
        %3242 = vmatpush.msra.mxu0 %v2991
        %3243 = vmatpush.msra.mxu0 %v2990
        %3244 = vmatpush.msra.mxu0 %v2989
        %3245 = vmatpush.msra.mxu0 %v2988
        %3246 = vmatpush.msra.mxu0 %v2987
        %3247 = vmatpush.msra.mxu0 %v2986
        %3248 = vmatpush.msra.mxu0 %v2985
        %3249 = vmatpush.msra.mxu0 %v2984
        %3250 = vmatpush.msra.mxu0 %v2983
        %3251 = vmatpush.msra.mxu0 %v2982
        %3252 = vmatpush.msra.mxu0 %v2981
        %3253 = vmatpush.msra.mxu0 %v2980
        %3254 = vmatpush.msra.mxu0 %v2979
        %3255 = vmatpush.msra.mxu0 %v2978
        %3256 = vmatpush.msra.mxu0 %v2977
        %3257 = vmatmul.f32.gmra.mxu0 %v2946
        %v3258 = vpop.f32.mrf.mxu0
        %v3259 = vadd.f32 %v3239, %v3258
        %3260 = vdwg.mxu0
        %3261 = vmatpush.msra.mxu0 %v3008
        %3262 = vmatpush.msra.mxu0 %v3007
        %3263 = vmatpush.msra.mxu0 %v3006
        %3264 = vmatpush.msra.mxu0 %v3005
        %3265 = vmatpush.msra.mxu0 %v3004
        %3266 = vmatpush.msra.mxu0 %v3003
        %3267 = vmatpush.msra.mxu0 %v3002
        %3268 = vmatpush.msra.mxu0 %v3001
        %3269 = vmatpush.msra.mxu0 %v3000
        %3270 = vmatpush.msra.mxu0 %v2999
        %3271 = vmatpush.msra.mxu0 %v2998
        %3272 = vmatpush.msra.mxu0 %v2997
        %3273 = vmatpush.msra.mxu0 %v2996
        %3274 = vmatpush.msra.mxu0 %v2995
        %3275 = vmatpush.msra.mxu0 %v2994
        %3276 = vmatpush.msra.mxu0 %v2993
        %3277 = vmatmul.f32.gmra.mxu0 %v2947
        %v3278 = vpop.f32.mrf.mxu0
        %v3279 = vadd.f32 %v3259, %v3278
        %3280 = vdwg.mxu0
        %3281 = vmatpush.msra.mxu0 %v3024
        %3282 = vmatpush.msra.mxu0 %v3023
        %3283 = vmatpush.msra.mxu0 %v3022
        %3284 = vmatpush.msra.mxu0 %v3021
        %3285 = vmatpush.msra.mxu0 %v3020
        %3286 = vmatpush.msra.mxu0 %v3019
        %3287 = vmatpush.msra.mxu0 %v3018
        %3288 = vmatpush.msra.mxu0 %v3017
        %3289 = vmatpush.msra.mxu0 %v3016
        %3290 = vmatpush.msra.mxu0 %v3015
        %3291 = vmatpush.msra.mxu0 %v3014
        %3292 = vmatpush.msra.mxu0 %v3013
        %3293 = vmatpush.msra.mxu0 %v3012
        %3294 = vmatpush.msra.mxu0 %v3011
        %3295 = vmatpush.msra.mxu0 %v3010
        %3296 = vmatpush.msra.mxu0 %v3009
        %3297 = vmatmul.f32.gmra.mxu0 %v2948
        %v3298 = vpop.f32.mrf.mxu0
        %v3299 = vadd.f32 %v3279, %v3298
        %3300 = vdwg.mxu0
        %3301 = vmatpush.msra.mxu0 %v3040
        %3302 = vmatpush.msra.mxu0 %v3039
        %3303 = vmatpush.msra.mxu0 %v3038
        %3304 = vmatpush.msra.mxu0 %v3037
        %3305 = vmatpush.msra.mxu0 %v3036
        %3306 = vmatpush.msra.mxu0 %v3035
        %3307 = vmatpush.msra.mxu0 %v3034
        %3308 = vmatpush.msra.mxu0 %v3033
        %3309 = vmatpush.msra.mxu0 %v3032
        %3310 = vmatpush.msra.mxu0 %v3031
        %3311 = vmatpush.msra.mxu0 %v3030
        %3312 = vmatpush.msra.mxu0 %v3029
        %3313 = vmatpush.msra.mxu0 %v3028
        %3314 = vmatpush.msra.mxu0 %v3027
        %3315 = vmatpush.msra.mxu0 %v3026
        %3316 = vmatpush.msra.mxu0 %v3025
        %3317 = vmatmul.f32.gmra.mxu0 %v2949
        %v3318 = vpop.f32.mrf.mxu0
        %v3319 = vadd.f32 %v3299, %v3318
        %3320 = vdwg.mxu0
        %3321 = vmatpush.msra.mxu0 %v3056
        %3322 = vmatpush.msra.mxu0 %v3055
        %3323 = vmatpush.msra.mxu0 %v3054
        %3324 = vmatpush.msra.mxu0 %v3053
        %3325 = vmatpush.msra.mxu0 %v3052
        %3326 = vmatpush.msra.mxu0 %v3051
        %3327 = vmatpush.msra.mxu0 %v3050
        %3328 = vmatpush.msra.mxu0 %v3049
        %3329 = vmatpush.msra.mxu0 %v3048
        %3330 = vmatpush.msra.mxu0 %v3047
        %3331 = vmatpush.msra.mxu0 %v3046
        %3332 = vmatpush.msra.mxu0 %v3045
        %3333 = vmatpush.msra.mxu0 %v3044
        %3334 = vmatpush.msra.mxu0 %v3043
        %3335 = vmatpush.msra.mxu0 %v3042
        %3336 = vmatpush.msra.mxu0 %v3041
        %3337 = vmatmul.f32.gmra.mxu0 %v2950
        %v3338 = vpop.f32.mrf.mxu0
        %v3339 = vadd.f32 %v3319, %v3338
        %3340 = vdwg.mxu0
        %3341 = vmatpush.msra.mxu0 %v3072
        %3342 = vmatpush.msra.mxu0 %v3071
        %3343 = vmatpush.msra.mxu0 %v3070
        %3344 = vmatpush.msra.mxu0 %v3069
        %3345 = vmatpush.msra.mxu0 %v3068
        %3346 = vmatpush.msra.mxu0 %v3067
        %3347 = vmatpush.msra.mxu0 %v3066
        %3348 = vmatpush.msra.mxu0 %v3065
        %3349 = vmatpush.msra.mxu0 %v3064
        %3350 = vmatpush.msra.mxu0 %v3063
        %3351 = vmatpush.msra.mxu0 %v3062
        %3352 = vmatpush.msra.mxu0 %v3061
        %3353 = vmatpush.msra.mxu0 %v3060
        %3354 = vmatpush.msra.mxu0 %v3059
        %3355 = vmatpush.msra.mxu0 %v3058
        %3356 = vmatpush.msra.mxu0 %v3057
        %3357 = vmatmul.f32.gmra.mxu0 %v2951
        %v3358 = vpop.f32.mrf.mxu0
        %v3359 = vadd.f32 %v3339, %v3358
        %3360 = vdwg.mxu0
        %3361 = vmatpush.msra.mxu0 %v3088
        %3362 = vmatpush.msra.mxu0 %v3087
        %3363 = vmatpush.msra.mxu0 %v3086
        %3364 = vmatpush.msra.mxu0 %v3085
        %3365 = vmatpush.msra.mxu0 %v3084
        %3366 = vmatpush.msra.mxu0 %v3083
        %3367 = vmatpush.msra.mxu0 %v3082
        %3368 = vmatpush.msra.mxu0 %v3081
        %3369 = vmatpush.msra.mxu0 %v3080
        %3370 = vmatpush.msra.mxu0 %v3079
        %3371 = vmatpush.msra.mxu0 %v3078
        %3372 = vmatpush.msra.mxu0 %v3077
        %3373 = vmatpush.msra.mxu0 %v3076
        %3374 = vmatpush.msra.mxu0 %v3075
        %3375 = vmatpush.msra.mxu0 %v3074
        %3376 = vmatpush.msra.mxu0 %v3073
        %3377 = vmatmul.f32.gmra.mxu0 %v2952
        %v3378 = vpop.f32.mrf.mxu0
        %v3379 = vadd.f32 %v3359, %v3378
        %3380 = vdwg.mxu0
        %3381 = vmatpush.msra.mxu0 %v3104
        %3382 = vmatpush.msra.mxu0 %v3103
        %3383 = vmatpush.msra.mxu0 %v3102
        %3384 = vmatpush.msra.mxu0 %v3101
        %3385 = vmatpush.msra.mxu0 %v3100
        %3386 = vmatpush.msra.mxu0 %v3099
        %3387 = vmatpush.msra.mxu0 %v3098
        %3388 = vmatpush.msra.mxu0 %v3097
        %3389 = vmatpush.msra.mxu0 %v3096
        %3390 = vmatpush.msra.mxu0 %v3095
        %3391 = vmatpush.msra.mxu0 %v3094
        %3392 = vmatpush.msra.mxu0 %v3093
        %3393 = vmatpush.msra.mxu0 %v3092
        %3394 = vmatpush.msra.mxu0 %v3091
        %3395 = vmatpush.msra.mxu0 %v3090
        %3396 = vmatpush.msra.mxu0 %v3089
        %3397 = vmatmul.f32.gmra.mxu0 %v2953
        %v3398 = vpop.f32.mrf.mxu0
        %v3399 = vadd.f32 %v3379, %v3398
        %3400 = vdwg.mxu0
        %3401 = vmatpush.msra.mxu0 %v3120
        %3402 = vmatpush.msra.mxu0 %v3119
        %3403 = vmatpush.msra.mxu0 %v3118
        %3404 = vmatpush.msra.mxu0 %v3117
        %3405 = vmatpush.msra.mxu0 %v3116
        %3406 = vmatpush.msra.mxu0 %v3115
        %3407 = vmatpush.msra.mxu0 %v3114
        %3408 = vmatpush.msra.mxu0 %v3113
        %3409 = vmatpush.msra.mxu0 %v3112
        %3410 = vmatpush.msra.mxu0 %v3111
        %3411 = vmatpush.msra.mxu0 %v3110
        %3412 = vmatpush.msra.mxu0 %v3109
        %3413 = vmatpush.msra.mxu0 %v3108
        %3414 = vmatpush.msra.mxu0 %v3107
        %3415 = vmatpush.msra.mxu0 %v3106
        %3416 = vmatpush.msra.mxu0 %v3105
        %3417 = vmatmul.f32.gmra.mxu0 %v2954
        %v3418 = vpop.f32.mrf.mxu0
        %v3419 = vadd.f32 %v3399, %v3418
        %3420 = vdwg.mxu0
        %3421 = vmatpush.msra.mxu0 %v3136
        %3422 = vmatpush.msra.mxu0 %v3135
        %3423 = vmatpush.msra.mxu0 %v3134
        %3424 = vmatpush.msra.mxu0 %v3133
        %3425 = vmatpush.msra.mxu0 %v3132
        %3426 = vmatpush.msra.mxu0 %v3131
        %3427 = vmatpush.msra.mxu0 %v3130
        %3428 = vmatpush.msra.mxu0 %v3129
        %3429 = vmatpush.msra.mxu0 %v3128
        %3430 = vmatpush.msra.mxu0 %v3127
        %3431 = vmatpush.msra.mxu0 %v3126
        %3432 = vmatpush.msra.mxu0 %v3125
        %3433 = vmatpush.msra.mxu0 %v3124
        %3434 = vmatpush.msra.mxu0 %v3123
        %3435 = vmatpush.msra.mxu0 %v3122
        %3436 = vmatpush.msra.mxu0 %v3121
        %3437 = vmatmul.f32.gmra.mxu0 %v2955
        %v3438 = vpop.f32.mrf.mxu0
        %v3439 = vadd.f32 %v3419, %v3438
        %3440 = vdwg.mxu0
        %3441 = vmatpush.msra.mxu0 %v3152
        %3442 = vmatpush.msra.mxu0 %v3151
        %3443 = vmatpush.msra.mxu0 %v3150
        %3444 = vmatpush.msra.mxu0 %v3149
        %3445 = vmatpush.msra.mxu0 %v3148
        %3446 = vmatpush.msra.mxu0 %v3147
        %3447 = vmatpush.msra.mxu0 %v3146
        %3448 = vmatpush.msra.mxu0 %v3145
        %3449 = vmatpush.msra.mxu0 %v3144
        %3450 = vmatpush.msra.mxu0 %v3143
        %3451 = vmatpush.msra.mxu0 %v3142
        %3452 = vmatpush.msra.mxu0 %v3141
        %3453 = vmatpush.msra.mxu0 %v3140
        %3454 = vmatpush.msra.mxu0 %v3139
        %3455 = vmatpush.msra.mxu0 %v3138
        %3456 = vmatpush.msra.mxu0 %v3137
        %3457 = vmatmul.f32.gmra.mxu0 %v2956
        %v3458 = vpop.f32.mrf.mxu0
        %v3459 = vadd.f32 %v3439, %v3458
        %3460 = vdwg.mxu0
        %3461 = vmatpush.msra.mxu0 %v3168
        %3462 = vmatpush.msra.mxu0 %v3167
        %3463 = vmatpush.msra.mxu0 %v3166
        %3464 = vmatpush.msra.mxu0 %v3165
        %3465 = vmatpush.msra.mxu0 %v3164
        %3466 = vmatpush.msra.mxu0 %v3163
        %3467 = vmatpush.msra.mxu0 %v3162
        %3468 = vmatpush.msra.mxu0 %v3161
        %3469 = vmatpush.msra.mxu0 %v3160
        %3470 = vmatpush.msra.mxu0 %v3159
        %3471 = vmatpush.msra.mxu0 %v3158
        %3472 = vmatpush.msra.mxu0 %v3157
        %3473 = vmatpush.msra.mxu0 %v3156
        %3474 = vmatpush.msra.mxu0 %v3155
        %3475 = vmatpush.msra.mxu0 %v3154
        %3476 = vmatpush.msra.mxu0 %v3153
        %3477 = vmatmul.f32.gmra.mxu0 %v2957
        %v3478 = vpop.f32.mrf.mxu0
        %v3479 = vadd.f32 %v3459, %v3478
        %3480 = vdwg.mxu0
        %3481 = vmatpush.msra.mxu0 %v3184
        %3482 = vmatpush.msra.mxu0 %v3183
        %3483 = vmatpush.msra.mxu0 %v3182
        %3484 = vmatpush.msra.mxu0 %v3181
        %3485 = vmatpush.msra.mxu0 %v3180
        %3486 = vmatpush.msra.mxu0 %v3179
        %3487 = vmatpush.msra.mxu0 %v3178
        %3488 = vmatpush.msra.mxu0 %v3177
        %3489 = vmatpush.msra.mxu0 %v3176
        %3490 = vmatpush.msra.mxu0 %v3175
        %3491 = vmatpush.msra.mxu0 %v3174
        %3492 = vmatpush.msra.mxu0 %v3173
        %3493 = vmatpush.msra.mxu0 %v3172
        %3494 = vmatpush.msra.mxu0 %v3171
        %3495 = vmatpush.msra.mxu0 %v3170
        %3496 = vmatpush.msra.mxu0 %v3169
        %3497 = vmatmul.f32.gmra.mxu0 %v2958
        %v3498 = vpop.f32.mrf.mxu0
        %v3499 = vadd.f32 %v3479, %v3498
        %3500 = vdwg.mxu0
        %3501 = vmatpush.msra.mxu0 %v3200
        %3502 = vmatpush.msra.mxu0 %v3199
        %3503 = vmatpush.msra.mxu0 %v3198
        %3504 = vmatpush.msra.mxu0 %v3197
        %3505 = vmatpush.msra.mxu0 %v3196
        %3506 = vmatpush.msra.mxu0 %v3195
        %3507 = vmatpush.msra.mxu0 %v3194
        %3508 = vmatpush.msra.mxu0 %v3193
        %3509 = vmatpush.msra.mxu0 %v3192
        %3510 = vmatpush.msra.mxu0 %v3191
        %3511 = vmatpush.msra.mxu0 %v3190
        %3512 = vmatpush.msra.mxu0 %v3189
        %3513 = vmatpush.msra.mxu0 %v3188
        %3514 = vmatpush.msra.mxu0 %v3187
        %3515 = vmatpush.msra.mxu0 %v3186
        %3516 = vmatpush.msra.mxu0 %v3185
        %3517 = vmatmul.f32.gmra.mxu0 %v2959
        %v3518 = vpop.f32.mrf.mxu0
        %v3519 = vadd.f32 %v3499, %v3518
        %3520 = vdwg.mxu0
        %3521 = vmatpush.msra.mxu0 %v3216
        %3522 = vmatpush.msra.mxu0 %v3215
        %3523 = vmatpush.msra.mxu0 %v3214
        %3524 = vmatpush.msra.mxu0 %v3213
        %3525 = vmatpush.msra.mxu0 %v3212
        %3526 = vmatpush.msra.mxu0 %v3211
        %3527 = vmatpush.msra.mxu0 %v3210
        %3528 = vmatpush.msra.mxu0 %v3209
        %3529 = vmatpush.msra.mxu0 %v3208
        %3530 = vmatpush.msra.mxu0 %v3207
        %3531 = vmatpush.msra.mxu0 %v3206
        %3532 = vmatpush.msra.mxu0 %v3205
        %3533 = vmatpush.msra.mxu0 %v3204
        %3534 = vmatpush.msra.mxu0 %v3203
        %3535 = vmatpush.msra.mxu0 %v3202
        %3536 = vmatpush.msra.mxu0 %v3201
        %3537 = vmatmul.f32.gmra.mxu0 %v2960
        %v3538 = vpop.f32.mrf.mxu0
        %v3539 = vadd.f32 %v3519, %v3538
        %3540 = vdwg.mxu0
        %v3541 = vadd.f32 %v2505, %v3539
        %v3542 = vld [vmem:[%s31] sm:$0x1]
        %v3543 = vld [vmem:[%s33] sm:$0x1]
        %v3544 = vsel %vm1579, %v3541, 0.0
        %3545 = vadd.xlane.f32.xlu0 %v3544
        %v3546 = vpop.xlane.xlu0 %3545
        %v3547 = vmul.f32 %v3546, %v2478
        %v3548 = vsub.f32 %v3541, %v3547
        %v3549 = vmul.f32 %v3548, %v3548
        %v3550 = vsel %vm1579, %v3549, 0.0
        %3551 = vadd.xlane.f32.xlu0 %v3550
        %v3552 = vpop.xlane.xlu0 %3551
        %v3553 = vmul.f32 %v3552, %v2478
        %v3554 = vadd.f32 %v3553, 1e-05
        %v3555 = vrsqrt.pop %v3554
        %v3556 = vmul.f32 %v3555, %v3554
        %v3557 = vmul.f32 %v3556, %v3555
        %v3558 = vmul.f32 0.5, %v3557
        %v3559 = vsub.f32 1.5, %v3558
        %v3560 = vmul.f32 %v3555, %v3559
        %vm3561 = vweird.f32 %v3554
        %vm3562 = vweird.f32 %v3555
        %vm3563 = vmor %vm3561, %vm3562
        %v3564 = vsel %vm3563, %v3555, %v3560
        %v3565 = vmul.f32 %v3548, %v3564
        %v3567 = vperm.slane %v3542, 0
        %v3569 = vmul.f32 %v3565, %v3567
        %v3571 = vperm.slane %v3543, 0
        %v3573 = vadd.f32 %v3569, %v3571
        %v3574 = vld [vmem:[%s35] sm:$0xff]
        %v3575 = vld [vmem:[%s35 + $0x8] sm:$0xff]
        %v3576 = vld [vmem:[%s35 + $0x10] sm:$0xff]
        %v3577 = vld [vmem:[%s35 + $0x18] sm:$0xff]
        %v3578 = vld [vmem:[%s35 + $0x20] sm:$0xff]
        %v3579 = vld [vmem:[%s37] sm:$0x1]
        %v3581 = vperm.slane %v3579, 0
        %v3584 = vsel %vm1579, %v3573, 0
        %3586 = vmatpush.msra.mxu0 0.0
        %3587 = vmatpush.msra.mxu0 0.0
        %3588 = vmatpush.msra.mxu0 0.0
        %3589 = vmatpush.msra.mxu0 0.0
        %3590 = vmatpush.msra.mxu0 0.0
        %3591 = vmatpush.msra.mxu0 0.0
        %3592 = vmatpush.msra.mxu0 0.0
        %3593 = vmatpush.msra.mxu0 0.0
        %3594 = vmatpush.msra.mxu0 0.0
        %3595 = vmatpush.msra.mxu0 0.0
        %3596 = vmatpush.msra.mxu0 0.0
        %3597 = vmatpush.msra.mxu0 %v3578
        %3598 = vmatpush.msra.mxu0 %v3577
        %3599 = vmatpush.msra.mxu0 %v3576
        %3600 = vmatpush.msra.mxu0 %v3575
        %3601 = vmatpush.msra.mxu0 %v3574
        %3602 = vmatmul.f32.gmra.mxu0 %v3584
        %v3603 = vpop.f32.mrf.mxu0
        %v3604 = vadd.f32 %v3581, %v3603
        %3605 = vdwg.mxu0
        %v3606 = vld [vmem:[%s39] sm:$0xff]
        %v3607 = vld [vmem:[%s39 + $0x8] sm:$0xff]
        %v3608 = vld [vmem:[%s39 + $0x10] sm:$0xff]
        %v3609 = vld [vmem:[%s39 + $0x18] sm:$0xff]
        %v3610 = vld [vmem:[%s39 + $0x20] sm:$0xff]
        %v3611 = vld [vmem:[%s41] sm:$0x1]
        %v3613 = vperm.slane %v3611, 0
        %3615 = vmatpush.msra.mxu0 0.0
        %3616 = vmatpush.msra.mxu0 0.0
        %3617 = vmatpush.msra.mxu0 0.0
        %3618 = vmatpush.msra.mxu0 0.0
        %3619 = vmatpush.msra.mxu0 0.0
        %3620 = vmatpush.msra.mxu0 0.0
        %3621 = vmatpush.msra.mxu0 0.0
        %3622 = vmatpush.msra.mxu0 0.0
        %3623 = vmatpush.msra.mxu0 0.0
        %3624 = vmatpush.msra.mxu0 0.0
        %3625 = vmatpush.msra.mxu0 0.0
        %3626 = vmatpush.msra.mxu0 %v3610
        %3627 = vmatpush.msra.mxu0 %v3609
        %3628 = vmatpush.msra.mxu0 %v3608
        %3629 = vmatpush.msra.mxu0 %v3607
        %3630 = vmatpush.msra.mxu0 %v3606
        %3631 = vmatmul.f32.gmra.mxu0 %v3584
        %v3632 = vpop.f32.mrf.mxu0
        %v3633 = vadd.f32 %v3613, %v3632
        %3634 = vdwg.mxu0
        %v3635 = vld [vmem:[%s43] sm:$0xff]
        %v3636 = vld [vmem:[%s43 + $0x8] sm:$0xff]
        %v3637 = vld [vmem:[%s43 + $0x10] sm:$0xff]
        %v3638 = vld [vmem:[%s43 + $0x18] sm:$0xff]
        %v3639 = vld [vmem:[%s43 + $0x20] sm:$0xff]
        %v3640 = vld [vmem:[%s45] sm:$0x1]
        %v3642 = vperm.slane %v3640, 0
        %3644 = vmatpush.msra.mxu0 0.0
        %3645 = vmatpush.msra.mxu0 0.0
        %3646 = vmatpush.msra.mxu0 0.0
        %3647 = vmatpush.msra.mxu0 0.0
        %3648 = vmatpush.msra.mxu0 0.0
        %3649 = vmatpush.msra.mxu0 0.0
        %3650 = vmatpush.msra.mxu0 0.0
        %3651 = vmatpush.msra.mxu0 0.0
        %3652 = vmatpush.msra.mxu0 0.0
        %3653 = vmatpush.msra.mxu0 0.0
        %3654 = vmatpush.msra.mxu0 0.0
        %3655 = vmatpush.msra.mxu0 %v3639
        %3656 = vmatpush.msra.mxu0 %v3638
        %3657 = vmatpush.msra.mxu0 %v3637
        %3658 = vmatpush.msra.mxu0 %v3636
        %3659 = vmatpush.msra.mxu0 %v3635
        %3660 = vmatmul.f32.gmra.mxu0 %v3584
        %v3661 = vpop.f32.mrf.mxu0
        %v3662 = vadd.f32 %v3642, %v3661
        %3663 = vdwg.mxu0
        %v3664 = vld [vmem:[%s47] sm:$0xff]
        %v3666 = vsel %vm1662, %v3604, 0
        %v3669 = vsel %vm1662, %v3633, 0
        %3671 = vmatpush.xpose.msra.mxu0 0.0
        %3672 = vmatpush.xpose.msra.mxu0 0.0
        %3673 = vmatpush.xpose.msra.mxu0 0.0
        %3674 = vmatpush.xpose.msra.mxu0 0.0
        %3675 = vmatpush.xpose.msra.mxu0 0.0
        %3676 = vmatpush.xpose.msra.mxu0 0.0
        %3677 = vmatpush.xpose.msra.mxu0 0.0
        %3678 = vmatpush.xpose.msra.mxu0 0.0
        %3679 = vmatpush.xpose.msra.mxu0 0.0
        %3680 = vmatpush.xpose.msra.mxu0 0.0
        %3681 = vmatpush.xpose.msra.mxu0 0.0
        %3682 = vmatpush.xpose.msra.mxu0 0.0
        %3683 = vmatpush.xpose.msra.mxu0 0.0
        %3684 = vmatpush.xpose.msra.mxu0 0.0
        %3685 = vmatpush.xpose.msra.mxu0 0.0
        %3686 = vmatpush.xpose.msra.mxu0 %v3669
        %3687 = vmatmul.f32.gmra.mxu0 %v3666
        %v3688 = vpop.f32.mrf.mxu0
        %v3689 = vadd.f32 0.0, %v3688
        %3690 = vdwg.mxu0
        %v3691 = vsel %vm1662, %v3689, -inf
        %3692 = vmax.xlane.f32.xlu0 %v3691
        %v3693 = vpop.xlane.xlu0 %3692
        %v3694 = vsub.f32 %v3689, %v3693
        %v3695 = vmul.f32 %v3694, 1.442695
        %v3696 = vpow.pop %v3695
        %v3697 = vsel %vm1662, %v3696, 0.0
        %3698 = vadd.xlane.f32.xlu0 %v3697
        %v3699 = vpop.xlane.xlu0 %3698
        %v3700 = vrcp.pop %v3699
        %v3701 = vmul.f32 %v3696, %v3700
        %v3703 = vsel %vm1662, %v3701, 0
        %3705 = vmatpush.msra.mxu0 0.0
        %3706 = vmatpush.msra.mxu0 0.0
        %3707 = vmatpush.msra.mxu0 0.0
        %3708 = vmatpush.msra.mxu0 0.0
        %3709 = vmatpush.msra.mxu0 0.0
        %3710 = vmatpush.msra.mxu0 0.0
        %3711 = vmatpush.msra.mxu0 0.0
        %3712 = vmatpush.msra.mxu0 0.0
        %3713 = vmatpush.msra.mxu0 0.0
        %3714 = vmatpush.msra.mxu0 0.0
        %3715 = vmatpush.msra.mxu0 0.0
        %3716 = vmatpush.msra.mxu0 0.0
        %3717 = vmatpush.msra.mxu0 0.0
        %3718 = vmatpush.msra.mxu0 0.0
        %3719 = vmatpush.msra.mxu0 0.0
        %3720 = vmatpush.msra.mxu0 %v3662
        %3721 = vmatmul.f32.gmra.mxu0 %v3703
        %v3722 = vpop.f32.mrf.mxu0
        %v3723 = vadd.f32 0.0, %v3722
        %3724 = vdwg.mxu0
        %s3725 = scalar_lea.vmem %s35, 40
        %v3726 = vld [vmem:[%s3725] sm:$0xff]
        %v3727 = vld [vmem:[%s3725 + $0x8] sm:$0xff]
        %v3728 = vld [vmem:[%s3725 + $0x10] sm:$0xff]
        %v3729 = vld [vmem:[%s3725 + $0x18] sm:$0xff]
        %v3730 = vld [vmem:[%s3725 + $0x20] sm:$0xff]
        %s3731 = scalar_lea.vmem %s37, 1
        %v3732 = vld [vmem:[%s3731] sm:$0x1]
        %v3734 = vperm.slane %v3732, 0
        %3736 = vmatpush.msra.mxu0 0.0
        %3737 = vmatpush.msra.mxu0 0.0
        %3738 = vmatpush.msra.mxu0 0.0
        %3739 = vmatpush.msra.mxu0 0.0
        %3740 = vmatpush.msra.mxu0 0.0
        %3741 = vmatpush.msra.mxu0 0.0
        %3742 = vmatpush.msra.mxu0 0.0
        %3743 = vmatpush.msra.mxu0 0.0
        %3744 = vmatpush.msra.mxu0 0.0
        %3745 = vmatpush.msra.mxu0 0.0
        %3746 = vmatpush.msra.mxu0 0.0
        %3747 = vmatpush.msra.mxu0 %v3730
        %3748 = vmatpush.msra.mxu0 %v3729
        %3749 = vmatpush.msra.mxu0 %v3728
        %3750 = vmatpush.msra.mxu0 %v3727
        %3751 = vmatpush.msra.mxu0 %v3726
        %3752 = vmatmul.f32.gmra.mxu0 %v3584
        %v3753 = vpop.f32.mrf.mxu0
        %v3754 = vadd.f32 %v3734, %v3753
        %3755 = vdwg.mxu0
        %s3756 = scalar_lea.vmem %s39, 40
        %v3757 = vld [vmem:[%s3756] sm:$0xff]
        %v3758 = vld [vmem:[%s3756 + $0x8] sm:$0xff]
        %v3759 = vld [vmem:[%s3756 + $0x10] sm:$0xff]
        %v3760 = vld [vmem:[%s3756 + $0x18] sm:$0xff]
        %v3761 = vld [vmem:[%s3756 + $0x20] sm:$0xff]
        %s3762 = scalar_lea.vmem %s41, 1
        %v3763 = vld [vmem:[%s3762] sm:$0x1]
        %v3765 = vperm.slane %v3763, 0
        %3767 = vmatpush.msra.mxu0 0.0
        %3768 = vmatpush.msra.mxu0 0.0
        %3769 = vmatpush.msra.mxu0 0.0
        %3770 = vmatpush.msra.mxu0 0.0
        %3771 = vmatpush.msra.mxu0 0.0
        %3772 = vmatpush.msra.mxu0 0.0
        %3773 = vmatpush.msra.mxu0 0.0
        %3774 = vmatpush.msra.mxu0 0.0
        %3775 = vmatpush.msra.mxu0 0.0
        %3776 = vmatpush.msra.mxu0 0.0
        %3777 = vmatpush.msra.mxu0 0.0
        %3778 = vmatpush.msra.mxu0 %v3761
        %3779 = vmatpush.msra.mxu0 %v3760
        %3780 = vmatpush.msra.mxu0 %v3759
        %3781 = vmatpush.msra.mxu0 %v3758
        %3782 = vmatpush.msra.mxu0 %v3757
        %3783 = vmatmul.f32.gmra.mxu0 %v3584
        %v3784 = vpop.f32.mrf.mxu0
        %v3785 = vadd.f32 %v3765, %v3784
        %3786 = vdwg.mxu0
        %s3787 = scalar_lea.vmem %s43, 40
        %v3788 = vld [vmem:[%s3787] sm:$0xff]
        %v3789 = vld [vmem:[%s3787 + $0x8] sm:$0xff]
        %v3790 = vld [vmem:[%s3787 + $0x10] sm:$0xff]
        %v3791 = vld [vmem:[%s3787 + $0x18] sm:$0xff]
        %v3792 = vld [vmem:[%s3787 + $0x20] sm:$0xff]
        %s3793 = scalar_lea.vmem %s45, 1
        %v3794 = vld [vmem:[%s3793] sm:$0x1]
        %v3796 = vperm.slane %v3794, 0
        %3798 = vmatpush.msra.mxu0 0.0
        %3799 = vmatpush.msra.mxu0 0.0
        %3800 = vmatpush.msra.mxu0 0.0
        %3801 = vmatpush.msra.mxu0 0.0
        %3802 = vmatpush.msra.mxu0 0.0
        %3803 = vmatpush.msra.mxu0 0.0
        %3804 = vmatpush.msra.mxu0 0.0
        %3805 = vmatpush.msra.mxu0 0.0
        %3806 = vmatpush.msra.mxu0 0.0
        %3807 = vmatpush.msra.mxu0 0.0
        %3808 = vmatpush.msra.mxu0 0.0
        %3809 = vmatpush.msra.mxu0 %v3792
        %3810 = vmatpush.msra.mxu0 %v3791
        %3811 = vmatpush.msra.mxu0 %v3790
        %3812 = vmatpush.msra.mxu0 %v3789
        %3813 = vmatpush.msra.mxu0 %v3788
        %3814 = vmatmul.f32.gmra.mxu0 %v3584
        %v3815 = vpop.f32.mrf.mxu0
        %v3816 = vadd.f32 %v3796, %v3815
        %3817 = vdwg.mxu0
        %s3818 = scalar_lea.vmem %s47, 8
        %v3819 = vld [vmem:[%s3818] sm:$0xff]
        %v3821 = vsel %vm1662, %v3754, 0
        %v3824 = vsel %vm1662, %v3785, 0
        %3826 = vmatpush.xpose.msra.mxu0 0.0
        %3827 = vmatpush.xpose.msra.mxu0 0.0
        %3828 = vmatpush.xpose.msra.mxu0 0.0
        %3829 = vmatpush.xpose.msra.mxu0 0.0
        %3830 = vmatpush.xpose.msra.mxu0 0.0
        %3831 = vmatpush.xpose.msra.mxu0 0.0
        %3832 = vmatpush.xpose.msra.mxu0 0.0
        %3833 = vmatpush.xpose.msra.mxu0 0.0
        %3834 = vmatpush.xpose.msra.mxu0 0.0
        %3835 = vmatpush.xpose.msra.mxu0 0.0
        %3836 = vmatpush.xpose.msra.mxu0 0.0
        %3837 = vmatpush.xpose.msra.mxu0 0.0
        %3838 = vmatpush.xpose.msra.mxu0 0.0
        %3839 = vmatpush.xpose.msra.mxu0 0.0
        %3840 = vmatpush.xpose.msra.mxu0 0.0
        %3841 = vmatpush.xpose.msra.mxu0 %v3824
        %3842 = vmatmul.f32.gmra.mxu0 %v3821
        %v3843 = vpop.f32.mrf.mxu0
        %v3844 = vadd.f32 0.0, %v3843
        %3845 = vdwg.mxu0
        %v3846 = vsel %vm1662, %v3844, -inf
        %3847 = vmax.xlane.f32.xlu0 %v3846
        %v3848 = vpop.xlane.xlu0 %3847
        %v3849 = vsub.f32 %v3844, %v3848
        %v3850 = vmul.f32 %v3849, 1.442695
        %v3851 = vpow.pop %v3850
        %v3852 = vsel %vm1662, %v3851, 0.0
        %3853 = vadd.xlane.f32.xlu0 %v3852
        %v3854 = vpop.xlane.xlu0 %3853
        %v3855 = vrcp.pop %v3854
        %v3856 = vmul.f32 %v3851, %v3855
        %v3858 = vsel %vm1662, %v3856, 0
        %3860 = vmatpush.msra.mxu0 0.0
        %3861 = vmatpush.msra.mxu0 0.0
        %3862 = vmatpush.msra.mxu0 0.0
        %3863 = vmatpush.msra.mxu0 0.0
        %3864 = vmatpush.msra.mxu0 0.0
        %3865 = vmatpush.msra.mxu0 0.0
        %3866 = vmatpush.msra.mxu0 0.0
        %3867 = vmatpush.msra.mxu0 0.0
        %3868 = vmatpush.msra.mxu0 0.0
        %3869 = vmatpush.msra.mxu0 0.0
        %3870 = vmatpush.msra.mxu0 0.0
        %3871 = vmatpush.msra.mxu0 0.0
        %3872 = vmatpush.msra.mxu0 0.0
        %3873 = vmatpush.msra.mxu0 0.0
        %3874 = vmatpush.msra.mxu0 0.0
        %3875 = vmatpush.msra.mxu0 %v3816
        %3876 = vmatmul.f32.gmra.mxu0 %v3858
        %v3877 = vpop.f32.mrf.mxu0
        %v3878 = vadd.f32 0.0, %v3877
        %3879 = vdwg.mxu0
        %v3881 = vsel %vm1662, %v3878, 0
        %3883 = vmatpush.msra.mxu0 0.0
        %3884 = vmatpush.msra.mxu0 0.0
        %3885 = vmatpush.msra.mxu0 0.0
        %3886 = vmatpush.msra.mxu0 0.0
        %3887 = vmatpush.msra.mxu0 0.0
        %3888 = vmatpush.msra.mxu0 0.0
        %3889 = vmatpush.msra.mxu0 0.0
        %3890 = vmatpush.msra.mxu0 0.0
        %3891 = vmatpush.msra.mxu0 0.0
        %3892 = vmatpush.msra.mxu0 0.0
        %3893 = vmatpush.msra.mxu0 0.0
        %3894 = vmatpush.msra.mxu0 0.0
        %3895 = vmatpush.msra.mxu0 0.0
        %3896 = vmatpush.msra.mxu0 0.0
        %3897 = vmatpush.msra.mxu0 0.0
        %3898 = vmatpush.msra.mxu0 %v3819
        %3899 = vmatmul.f32.gmra.mxu0 %v3881
        %v3900 = vpop.f32.mrf.mxu0
        %v3901 = vadd.f32 0.0, %v3900
        %3902 = vdwg.mxu0
        %v3904 = vsel %vm1662, %v3723, 0
        %3906 = vmatpush.msra.mxu0 0.0
        %3907 = vmatpush.msra.mxu0 0.0
        %3908 = vmatpush.msra.mxu0 0.0
        %3909 = vmatpush.msra.mxu0 0.0
        %3910 = vmatpush.msra.mxu0 0.0
        %3911 = vmatpush.msra.mxu0 0.0
        %3912 = vmatpush.msra.mxu0 0.0
        %3913 = vmatpush.msra.mxu0 0.0
        %3914 = vmatpush.msra.mxu0 0.0
        %3915 = vmatpush.msra.mxu0 0.0
        %3916 = vmatpush.msra.mxu0 0.0
        %3917 = vmatpush.msra.mxu0 0.0
        %3918 = vmatpush.msra.mxu0 0.0
        %3919 = vmatpush.msra.mxu0 0.0
        %3920 = vmatpush.msra.mxu0 0.0
        %3921 = vmatpush.msra.mxu0 %v3664
        %3922 = vmatmul.f32.gmra.mxu0 %v3904
        %v3923 = vpop.f32.mrf.mxu0
        %v3924 = vadd.f32 %v3901, %v3923
        %3925 = vdwg.mxu0
        %s3926 = scalar_lea.vmem %s35, 80
        %v3927 = vld [vmem:[%s3926] sm:$0xff]
        %v3928 = vld [vmem:[%s3926 + $0x8] sm:$0xff]
        %v3929 = vld [vmem:[%s3926 + $0x10] sm:$0xff]
        %v3930 = vld [vmem:[%s3926 + $0x18] sm:$0xff]
        %v3931 = vld [vmem:[%s3926 + $0x20] sm:$0xff]
        %s3932 = scalar_lea.vmem %s37, 2
        %v3933 = vld [vmem:[%s3932] sm:$0x1]
        %v3935 = vperm.slane %v3933, 0
        %3937 = vmatpush.msra.mxu0 0.0
        %3938 = vmatpush.msra.mxu0 0.0
        %3939 = vmatpush.msra.mxu0 0.0
        %3940 = vmatpush.msra.mxu0 0.0
        %3941 = vmatpush.msra.mxu0 0.0
        %3942 = vmatpush.msra.mxu0 0.0
        %3943 = vmatpush.msra.mxu0 0.0
        %3944 = vmatpush.msra.mxu0 0.0
        %3945 = vmatpush.msra.mxu0 0.0
        %3946 = vmatpush.msra.mxu0 0.0
        %3947 = vmatpush.msra.mxu0 0.0
        %3948 = vmatpush.msra.mxu0 %v3931
        %3949 = vmatpush.msra.mxu0 %v3930
        %3950 = vmatpush.msra.mxu0 %v3929
        %3951 = vmatpush.msra.mxu0 %v3928
        %3952 = vmatpush.msra.mxu0 %v3927
        %3953 = vmatmul.f32.gmra.mxu0 %v3584
        %v3954 = vpop.f32.mrf.mxu0
        %v3955 = vadd.f32 %v3935, %v3954
        %3956 = vdwg.mxu0
        %s3957 = scalar_lea.vmem %s39, 80
        %v3958 = vld [vmem:[%s3957] sm:$0xff]
        %v3959 = vld [vmem:[%s3957 + $0x8] sm:$0xff]
        %v3960 = vld [vmem:[%s3957 + $0x10] sm:$0xff]
        %v3961 = vld [vmem:[%s3957 + $0x18] sm:$0xff]
        %v3962 = vld [vmem:[%s3957 + $0x20] sm:$0xff]
        %s3963 = scalar_lea.vmem %s41, 2
        %v3964 = vld [vmem:[%s3963] sm:$0x1]
        %v3966 = vperm.slane %v3964, 0
        %3968 = vmatpush.msra.mxu0 0.0
        %3969 = vmatpush.msra.mxu0 0.0
        %3970 = vmatpush.msra.mxu0 0.0
        %3971 = vmatpush.msra.mxu0 0.0
        %3972 = vmatpush.msra.mxu0 0.0
        %3973 = vmatpush.msra.mxu0 0.0
        %3974 = vmatpush.msra.mxu0 0.0
        %3975 = vmatpush.msra.mxu0 0.0
        %3976 = vmatpush.msra.mxu0 0.0
        %3977 = vmatpush.msra.mxu0 0.0
        %3978 = vmatpush.msra.mxu0 0.0
        %3979 = vmatpush.msra.mxu0 %v3962
        %3980 = vmatpush.msra.mxu0 %v3961
        %3981 = vmatpush.msra.mxu0 %v3960
        %3982 = vmatpush.msra.mxu0 %v3959
        %3983 = vmatpush.msra.mxu0 %v3958
        %3984 = vmatmul.f32.gmra.mxu0 %v3584
        %v3985 = vpop.f32.mrf.mxu0
        %v3986 = vadd.f32 %v3966, %v3985
        %3987 = vdwg.mxu0
        %s3988 = scalar_lea.vmem %s43, 80
        %v3989 = vld [vmem:[%s3988] sm:$0xff]
        %v3990 = vld [vmem:[%s3988 + $0x8] sm:$0xff]
        %v3991 = vld [vmem:[%s3988 + $0x10] sm:$0xff]
        %v3992 = vld [vmem:[%s3988 + $0x18] sm:$0xff]
        %v3993 = vld [vmem:[%s3988 + $0x20] sm:$0xff]
        %s3994 = scalar_lea.vmem %s45, 2
        %v3995 = vld [vmem:[%s3994] sm:$0x1]
        %v3997 = vperm.slane %v3995, 0
        %3999 = vmatpush.msra.mxu0 0.0
        %4000 = vmatpush.msra.mxu0 0.0
        %4001 = vmatpush.msra.mxu0 0.0
        %4002 = vmatpush.msra.mxu0 0.0
        %4003 = vmatpush.msra.mxu0 0.0
        %4004 = vmatpush.msra.mxu0 0.0
        %4005 = vmatpush.msra.mxu0 0.0
        %4006 = vmatpush.msra.mxu0 0.0
        %4007 = vmatpush.msra.mxu0 0.0
        %4008 = vmatpush.msra.mxu0 0.0
        %4009 = vmatpush.msra.mxu0 0.0
        %4010 = vmatpush.msra.mxu0 %v3993
        %4011 = vmatpush.msra.mxu0 %v3992
        %4012 = vmatpush.msra.mxu0 %v3991
        %4013 = vmatpush.msra.mxu0 %v3990
        %4014 = vmatpush.msra.mxu0 %v3989
        %4015 = vmatmul.f32.gmra.mxu0 %v3584
        %v4016 = vpop.f32.mrf.mxu0
        %v4017 = vadd.f32 %v3997, %v4016
        %4018 = vdwg.mxu0
        %s4019 = scalar_lea.vmem %s47, 16
        %v4020 = vld [vmem:[%s4019] sm:$0xff]
        %v4022 = vsel %vm1662, %v3955, 0
        %v4025 = vsel %vm1662, %v3986, 0
        %4027 = vmatpush.xpose.msra.mxu0 0.0
        %4028 = vmatpush.xpose.msra.mxu0 0.0
        %4029 = vmatpush.xpose.msra.mxu0 0.0
        %4030 = vmatpush.xpose.msra.mxu0 0.0
        %4031 = vmatpush.xpose.msra.mxu0 0.0
        %4032 = vmatpush.xpose.msra.mxu0 0.0
        %4033 = vmatpush.xpose.msra.mxu0 0.0
        %4034 = vmatpush.xpose.msra.mxu0 0.0
        %4035 = vmatpush.xpose.msra.mxu0 0.0
        %4036 = vmatpush.xpose.msra.mxu0 0.0
        %4037 = vmatpush.xpose.msra.mxu0 0.0
        %4038 = vmatpush.xpose.msra.mxu0 0.0
        %4039 = vmatpush.xpose.msra.mxu0 0.0
        %4040 = vmatpush.xpose.msra.mxu0 0.0
        %4041 = vmatpush.xpose.msra.mxu0 0.0
        %4042 = vmatpush.xpose.msra.mxu0 %v4025
        %4043 = vmatmul.f32.gmra.mxu0 %v4022
        %v4044 = vpop.f32.mrf.mxu0
        %v4045 = vadd.f32 0.0, %v4044
        %4046 = vdwg.mxu0
        %v4047 = vsel %vm1662, %v4045, -inf
        %4048 = vmax.xlane.f32.xlu0 %v4047
        %v4049 = vpop.xlane.xlu0 %4048
        %v4050 = vsub.f32 %v4045, %v4049
        %v4051 = vmul.f32 %v4050, 1.442695
        %v4052 = vpow.pop %v4051
        %v4053 = vsel %vm1662, %v4052, 0.0
        %4054 = vadd.xlane.f32.xlu0 %v4053
        %v4055 = vpop.xlane.xlu0 %4054
        %v4056 = vrcp.pop %v4055
        %v4057 = vmul.f32 %v4052, %v4056
        %v4059 = vsel %vm1662, %v4057, 0
        %4061 = vmatpush.msra.mxu0 0.0
        %4062 = vmatpush.msra.mxu0 0.0
        %4063 = vmatpush.msra.mxu0 0.0
        %4064 = vmatpush.msra.mxu0 0.0
        %4065 = vmatpush.msra.mxu0 0.0
        %4066 = vmatpush.msra.mxu0 0.0
        %4067 = vmatpush.msra.mxu0 0.0
        %4068 = vmatpush.msra.mxu0 0.0
        %4069 = vmatpush.msra.mxu0 0.0
        %4070 = vmatpush.msra.mxu0 0.0
        %4071 = vmatpush.msra.mxu0 0.0
        %4072 = vmatpush.msra.mxu0 0.0
        %4073 = vmatpush.msra.mxu0 0.0
        %4074 = vmatpush.msra.mxu0 0.0
        %4075 = vmatpush.msra.mxu0 0.0
        %4076 = vmatpush.msra.mxu0 %v4017
        %4077 = vmatmul.f32.gmra.mxu0 %v4059
        %v4078 = vpop.f32.mrf.mxu0
        %v4079 = vadd.f32 0.0, %v4078
        %4080 = vdwg.mxu0
        %v4082 = vsel %vm1662, %v4079, 0
        %4084 = vmatpush.msra.mxu0 0.0
        %4085 = vmatpush.msra.mxu0 0.0
        %4086 = vmatpush.msra.mxu0 0.0
        %4087 = vmatpush.msra.mxu0 0.0
        %4088 = vmatpush.msra.mxu0 0.0
        %4089 = vmatpush.msra.mxu0 0.0
        %4090 = vmatpush.msra.mxu0 0.0
        %4091 = vmatpush.msra.mxu0 0.0
        %4092 = vmatpush.msra.mxu0 0.0
        %4093 = vmatpush.msra.mxu0 0.0
        %4094 = vmatpush.msra.mxu0 0.0
        %4095 = vmatpush.msra.mxu0 0.0
        %4096 = vmatpush.msra.mxu0 0.0
        %4097 = vmatpush.msra.mxu0 0.0
        %4098 = vmatpush.msra.mxu0 0.0
        %4099 = vmatpush.msra.mxu0 %v4020
        %4100 = vmatmul.f32.gmra.mxu0 %v4082
        %v4101 = vpop.f32.mrf.mxu0
        %v4102 = vadd.f32 0.0, %v4101
        %4103 = vdwg.mxu0
        %v4104 = vadd.f32 %v3924, %v4102
        %s4105 = scalar_lea.vmem %s35, 120
        %v4106 = vld [vmem:[%s4105] sm:$0xff]
        %v4107 = vld [vmem:[%s4105 + $0x8] sm:$0xff]
        %v4108 = vld [vmem:[%s4105 + $0x10] sm:$0xff]
        %v4109 = vld [vmem:[%s4105 + $0x18] sm:$0xff]
        %v4110 = vld [vmem:[%s4105 + $0x20] sm:$0xff]
        %s4111 = scalar_lea.vmem %s37, 3
        %v4112 = vld [vmem:[%s4111] sm:$0x1]
        %v4114 = vperm.slane %v4112, 0
        %4116 = vmatpush.msra.mxu0 0.0
        %4117 = vmatpush.msra.mxu0 0.0
        %4118 = vmatpush.msra.mxu0 0.0
        %4119 = vmatpush.msra.mxu0 0.0
        %4120 = vmatpush.msra.mxu0 0.0
        %4121 = vmatpush.msra.mxu0 0.0
        %4122 = vmatpush.msra.mxu0 0.0
        %4123 = vmatpush.msra.mxu0 0.0
        %4124 = vmatpush.msra.mxu0 0.0
        %4125 = vmatpush.msra.mxu0 0.0
        %4126 = vmatpush.msra.mxu0 0.0
        %4127 = vmatpush.msra.mxu0 %v4110
        %4128 = vmatpush.msra.mxu0 %v4109
        %4129 = vmatpush.msra.mxu0 %v4108
        %4130 = vmatpush.msra.mxu0 %v4107
        %4131 = vmatpush.msra.mxu0 %v4106
        %4132 = vmatmul.f32.gmra.mxu0 %v3584
        %v4133 = vpop.f32.mrf.mxu0
        %v4134 = vadd.f32 %v4114, %v4133
        %4135 = vdwg.mxu0
        %s4136 = scalar_lea.vmem %s39, 120
        %v4137 = vld [vmem:[%s4136] sm:$0xff]
        %v4138 = vld [vmem:[%s4136 + $0x8] sm:$0xff]
        %v4139 = vld [vmem:[%s4136 + $0x10] sm:$0xff]
        %v4140 = vld [vmem:[%s4136 + $0x18] sm:$0xff]
        %v4141 = vld [vmem:[%s4136 + $0x20] sm:$0xff]
        %s4142 = scalar_lea.vmem %s41, 3
        %v4143 = vld [vmem:[%s4142] sm:$0x1]
        %v4145 = vperm.slane %v4143, 0
        %4147 = vmatpush.msra.mxu0 0.0
        %4148 = vmatpush.msra.mxu0 0.0
        %4149 = vmatpush.msra.mxu0 0.0
        %4150 = vmatpush.msra.mxu0 0.0
        %4151 = vmatpush.msra.mxu0 0.0
        %4152 = vmatpush.msra.mxu0 0.0
        %4153 = vmatpush.msra.mxu0 0.0
        %4154 = vmatpush.msra.mxu0 0.0
        %4155 = vmatpush.msra.mxu0 0.0
        %4156 = vmatpush.msra.mxu0 0.0
        %4157 = vmatpush.msra.mxu0 0.0
        %4158 = vmatpush.msra.mxu0 %v4141
        %4159 = vmatpush.msra.mxu0 %v4140
        %4160 = vmatpush.msra.mxu0 %v4139
        %4161 = vmatpush.msra.mxu0 %v4138
        %4162 = vmatpush.msra.mxu0 %v4137
        %4163 = vmatmul.f32.gmra.mxu0 %v3584
        %v4164 = vpop.f32.mrf.mxu0
        %v4165 = vadd.f32 %v4145, %v4164
        %4166 = vdwg.mxu0
        %s4167 = scalar_lea.vmem %s43, 120
        %v4168 = vld [vmem:[%s4167] sm:$0xff]
        %v4169 = vld [vmem:[%s4167 + $0x8] sm:$0xff]
        %v4170 = vld [vmem:[%s4167 + $0x10] sm:$0xff]
        %v4171 = vld [vmem:[%s4167 + $0x18] sm:$0xff]
        %v4172 = vld [vmem:[%s4167 + $0x20] sm:$0xff]
        %s4173 = scalar_lea.vmem %s45, 3
        %v4174 = vld [vmem:[%s4173] sm:$0x1]
        %v4176 = vperm.slane %v4174, 0
        %4178 = vmatpush.msra.mxu0 0.0
        %4179 = vmatpush.msra.mxu0 0.0
        %4180 = vmatpush.msra.mxu0 0.0
        %4181 = vmatpush.msra.mxu0 0.0
        %4182 = vmatpush.msra.mxu0 0.0
        %4183 = vmatpush.msra.mxu0 0.0
        %4184 = vmatpush.msra.mxu0 0.0
        %4185 = vmatpush.msra.mxu0 0.0
        %4186 = vmatpush.msra.mxu0 0.0
        %4187 = vmatpush.msra.mxu0 0.0
        %4188 = vmatpush.msra.mxu0 0.0
        %4189 = vmatpush.msra.mxu0 %v4172
        %4190 = vmatpush.msra.mxu0 %v4171
        %4191 = vmatpush.msra.mxu0 %v4170
        %4192 = vmatpush.msra.mxu0 %v4169
        %4193 = vmatpush.msra.mxu0 %v4168
        %4194 = vmatmul.f32.gmra.mxu0 %v3584
        %v4195 = vpop.f32.mrf.mxu0
        %v4196 = vadd.f32 %v4176, %v4195
        %4197 = vdwg.mxu0
        %s4198 = scalar_lea.vmem %s47, 24
        %v4199 = vld [vmem:[%s4198] sm:$0xff]
        %v4201 = vsel %vm1662, %v4134, 0
        %v4204 = vsel %vm1662, %v4165, 0
        %4206 = vmatpush.xpose.msra.mxu0 0.0
        %4207 = vmatpush.xpose.msra.mxu0 0.0
        %4208 = vmatpush.xpose.msra.mxu0 0.0
        %4209 = vmatpush.xpose.msra.mxu0 0.0
        %4210 = vmatpush.xpose.msra.mxu0 0.0
        %4211 = vmatpush.xpose.msra.mxu0 0.0
        %4212 = vmatpush.xpose.msra.mxu0 0.0
        %4213 = vmatpush.xpose.msra.mxu0 0.0
        %4214 = vmatpush.xpose.msra.mxu0 0.0
        %4215 = vmatpush.xpose.msra.mxu0 0.0
        %4216 = vmatpush.xpose.msra.mxu0 0.0
        %4217 = vmatpush.xpose.msra.mxu0 0.0
        %4218 = vmatpush.xpose.msra.mxu0 0.0
        %4219 = vmatpush.xpose.msra.mxu0 0.0
        %4220 = vmatpush.xpose.msra.mxu0 0.0
        %4221 = vmatpush.xpose.msra.mxu0 %v4204
        %4222 = vmatmul.f32.gmra.mxu0 %v4201
        %v4223 = vpop.f32.mrf.mxu0
        %v4224 = vadd.f32 0.0, %v4223
        %4225 = vdwg.mxu0
        %v4226 = vsel %vm1662, %v4224, -inf
        %4227 = vmax.xlane.f32.xlu0 %v4226
        %v4228 = vpop.xlane.xlu0 %4227
        %v4229 = vsub.f32 %v4224, %v4228
        %v4230 = vmul.f32 %v4229, 1.442695
        %v4231 = vpow.pop %v4230
        %v4232 = vsel %vm1662, %v4231, 0.0
        %4233 = vadd.xlane.f32.xlu0 %v4232
        %v4234 = vpop.xlane.xlu0 %4233
        %v4235 = vrcp.pop %v4234
        %v4236 = vmul.f32 %v4231, %v4235
        %v4238 = vsel %vm1662, %v4236, 0
        %4240 = vmatpush.msra.mxu0 0.0
        %4241 = vmatpush.msra.mxu0 0.0
        %4242 = vmatpush.msra.mxu0 0.0
        %4243 = vmatpush.msra.mxu0 0.0
        %4244 = vmatpush.msra.mxu0 0.0
        %4245 = vmatpush.msra.mxu0 0.0
        %4246 = vmatpush.msra.mxu0 0.0
        %4247 = vmatpush.msra.mxu0 0.0
        %4248 = vmatpush.msra.mxu0 0.0
        %4249 = vmatpush.msra.mxu0 0.0
        %4250 = vmatpush.msra.mxu0 0.0
        %4251 = vmatpush.msra.mxu0 0.0
        %4252 = vmatpush.msra.mxu0 0.0
        %4253 = vmatpush.msra.mxu0 0.0
        %4254 = vmatpush.msra.mxu0 0.0
        %4255 = vmatpush.msra.mxu0 %v4196
        %4256 = vmatmul.f32.gmra.mxu0 %v4238
        %v4257 = vpop.f32.mrf.mxu0
        %v4258 = vadd.f32 0.0, %v4257
        %4259 = vdwg.mxu0
        %v4261 = vsel %vm1662, %v4258, 0
        %4263 = vmatpush.msra.mxu0 0.0
        %4264 = vmatpush.msra.mxu0 0.0
        %4265 = vmatpush.msra.mxu0 0.0
        %4266 = vmatpush.msra.mxu0 0.0
        %4267 = vmatpush.msra.mxu0 0.0
        %4268 = vmatpush.msra.mxu0 0.0
        %4269 = vmatpush.msra.mxu0 0.0
        %4270 = vmatpush.msra.mxu0 0.0
        %4271 = vmatpush.msra.mxu0 0.0
        %4272 = vmatpush.msra.mxu0 0.0
        %4273 = vmatpush.msra.mxu0 0.0
        %4274 = vmatpush.msra.mxu0 0.0
        %4275 = vmatpush.msra.mxu0 0.0
        %4276 = vmatpush.msra.mxu0 0.0
        %4277 = vmatpush.msra.mxu0 0.0
        %4278 = vmatpush.msra.mxu0 %v4199
        %4279 = vmatmul.f32.gmra.mxu0 %v4261
        %v4280 = vpop.f32.mrf.mxu0
        %v4281 = vadd.f32 0.0, %v4280
        %4282 = vdwg.mxu0
        %v4283 = vadd.f32 %v4104, %v4281
        %s4284 = scalar_lea.vmem %s35, 160
        %v4285 = vld [vmem:[%s4284] sm:$0xff]
        %v4286 = vld [vmem:[%s4284 + $0x8] sm:$0xff]
        %v4287 = vld [vmem:[%s4284 + $0x10] sm:$0xff]
        %v4288 = vld [vmem:[%s4284 + $0x18] sm:$0xff]
        %v4289 = vld [vmem:[%s4284 + $0x20] sm:$0xff]
        %s4290 = scalar_lea.vmem %s37, 4
        %v4291 = vld [vmem:[%s4290] sm:$0x1]
        %v4293 = vperm.slane %v4291, 0
        %4295 = vmatpush.msra.mxu0 0.0
        %4296 = vmatpush.msra.mxu0 0.0
        %4297 = vmatpush.msra.mxu0 0.0
        %4298 = vmatpush.msra.mxu0 0.0
        %4299 = vmatpush.msra.mxu0 0.0
        %4300 = vmatpush.msra.mxu0 0.0
        %4301 = vmatpush.msra.mxu0 0.0
        %4302 = vmatpush.msra.mxu0 0.0
        %4303 = vmatpush.msra.mxu0 0.0
        %4304 = vmatpush.msra.mxu0 0.0
        %4305 = vmatpush.msra.mxu0 0.0
        %4306 = vmatpush.msra.mxu0 %v4289
        %4307 = vmatpush.msra.mxu0 %v4288
        %4308 = vmatpush.msra.mxu0 %v4287
        %4309 = vmatpush.msra.mxu0 %v4286
        %4310 = vmatpush.msra.mxu0 %v4285
        %4311 = vmatmul.f32.gmra.mxu0 %v3584
        %v4312 = vpop.f32.mrf.mxu0
        %v4313 = vadd.f32 %v4293, %v4312
        %4314 = vdwg.mxu0
        %s4315 = scalar_lea.vmem %s39, 160
        %v4316 = vld [vmem:[%s4315] sm:$0xff]
        %v4317 = vld [vmem:[%s4315 + $0x8] sm:$0xff]
        %v4318 = vld [vmem:[%s4315 + $0x10] sm:$0xff]
        %v4319 = vld [vmem:[%s4315 + $0x18] sm:$0xff]
        %v4320 = vld [vmem:[%s4315 + $0x20] sm:$0xff]
        %s4321 = scalar_lea.vmem %s41, 4
        %v4322 = vld [vmem:[%s4321] sm:$0x1]
        %v4324 = vperm.slane %v4322, 0
        %4326 = vmatpush.msra.mxu0 0.0
        %4327 = vmatpush.msra.mxu0 0.0
        %4328 = vmatpush.msra.mxu0 0.0
        %4329 = vmatpush.msra.mxu0 0.0
        %4330 = vmatpush.msra.mxu0 0.0
        %4331 = vmatpush.msra.mxu0 0.0
        %4332 = vmatpush.msra.mxu0 0.0
        %4333 = vmatpush.msra.mxu0 0.0
        %4334 = vmatpush.msra.mxu0 0.0
        %4335 = vmatpush.msra.mxu0 0.0
        %4336 = vmatpush.msra.mxu0 0.0
        %4337 = vmatpush.msra.mxu0 %v4320
        %4338 = vmatpush.msra.mxu0 %v4319
        %4339 = vmatpush.msra.mxu0 %v4318
        %4340 = vmatpush.msra.mxu0 %v4317
        %4341 = vmatpush.msra.mxu0 %v4316
        %4342 = vmatmul.f32.gmra.mxu0 %v3584
        %v4343 = vpop.f32.mrf.mxu0
        %v4344 = vadd.f32 %v4324, %v4343
        %4345 = vdwg.mxu0
        %s4346 = scalar_lea.vmem %s43, 160
        %v4347 = vld [vmem:[%s4346] sm:$0xff]
        %v4348 = vld [vmem:[%s4346 + $0x8] sm:$0xff]
        %v4349 = vld [vmem:[%s4346 + $0x10] sm:$0xff]
        %v4350 = vld [vmem:[%s4346 + $0x18] sm:$0xff]
        %v4351 = vld [vmem:[%s4346 + $0x20] sm:$0xff]
        %s4352 = scalar_lea.vmem %s45, 4
        %v4353 = vld [vmem:[%s4352] sm:$0x1]
        %v4355 = vperm.slane %v4353, 0
        %4357 = vmatpush.msra.mxu0 0.0
        %4358 = vmatpush.msra.mxu0 0.0
        %4359 = vmatpush.msra.mxu0 0.0
        %4360 = vmatpush.msra.mxu0 0.0
        %4361 = vmatpush.msra.mxu0 0.0
        %4362 = vmatpush.msra.mxu0 0.0
        %4363 = vmatpush.msra.mxu0 0.0
        %4364 = vmatpush.msra.mxu0 0.0
        %4365 = vmatpush.msra.mxu0 0.0
        %4366 = vmatpush.msra.mxu0 0.0
        %4367 = vmatpush.msra.mxu0 0.0
        %4368 = vmatpush.msra.mxu0 %v4351
        %4369 = vmatpush.msra.mxu0 %v4350
        %4370 = vmatpush.msra.mxu0 %v4349
        %4371 = vmatpush.msra.mxu0 %v4348
        %4372 = vmatpush.msra.mxu0 %v4347
        %4373 = vmatmul.f32.gmra.mxu0 %v3584
        %v4374 = vpop.f32.mrf.mxu0
        %v4375 = vadd.f32 %v4355, %v4374
        %4376 = vdwg.mxu0
        %s4377 = scalar_lea.vmem %s47, 32
        %v4378 = vld [vmem:[%s4377] sm:$0xff]
        %v4380 = vsel %vm1662, %v4313, 0
        %v4383 = vsel %vm1662, %v4344, 0
        %4385 = vmatpush.xpose.msra.mxu0 0.0
        %4386 = vmatpush.xpose.msra.mxu0 0.0
        %4387 = vmatpush.xpose.msra.mxu0 0.0
        %4388 = vmatpush.xpose.msra.mxu0 0.0
        %4389 = vmatpush.xpose.msra.mxu0 0.0
        %4390 = vmatpush.xpose.msra.mxu0 0.0
        %4391 = vmatpush.xpose.msra.mxu0 0.0
        %4392 = vmatpush.xpose.msra.mxu0 0.0
        %4393 = vmatpush.xpose.msra.mxu0 0.0
        %4394 = vmatpush.xpose.msra.mxu0 0.0
        %4395 = vmatpush.xpose.msra.mxu0 0.0
        %4396 = vmatpush.xpose.msra.mxu0 0.0
        %4397 = vmatpush.xpose.msra.mxu0 0.0
        %4398 = vmatpush.xpose.msra.mxu0 0.0
        %4399 = vmatpush.xpose.msra.mxu0 0.0
        %4400 = vmatpush.xpose.msra.mxu0 %v4383
        %4401 = vmatmul.f32.gmra.mxu0 %v4380
        %v4402 = vpop.f32.mrf.mxu0
        %v4403 = vadd.f32 0.0, %v4402
        %4404 = vdwg.mxu0
        %v4405 = vsel %vm1662, %v4403, -inf
        %4406 = vmax.xlane.f32.xlu0 %v4405
        %v4407 = vpop.xlane.xlu0 %4406
        %v4408 = vsub.f32 %v4403, %v4407
        %v4409 = vmul.f32 %v4408, 1.442695
        %v4410 = vpow.pop %v4409
        %v4411 = vsel %vm1662, %v4410, 0.0
        %4412 = vadd.xlane.f32.xlu0 %v4411
        %v4413 = vpop.xlane.xlu0 %4412
        %v4414 = vrcp.pop %v4413
        %v4415 = vmul.f32 %v4410, %v4414
        %v4417 = vsel %vm1662, %v4415, 0
        %4419 = vmatpush.msra.mxu0 0.0
        %4420 = vmatpush.msra.mxu0 0.0
        %4421 = vmatpush.msra.mxu0 0.0
        %4422 = vmatpush.msra.mxu0 0.0
        %4423 = vmatpush.msra.mxu0 0.0
        %4424 = vmatpush.msra.mxu0 0.0
        %4425 = vmatpush.msra.mxu0 0.0
        %4426 = vmatpush.msra.mxu0 0.0
        %4427 = vmatpush.msra.mxu0 0.0
        %4428 = vmatpush.msra.mxu0 0.0
        %4429 = vmatpush.msra.mxu0 0.0
        %4430 = vmatpush.msra.mxu0 0.0
        %4431 = vmatpush.msra.mxu0 0.0
        %4432 = vmatpush.msra.mxu0 0.0
        %4433 = vmatpush.msra.mxu0 0.0
        %4434 = vmatpush.msra.mxu0 %v4375
        %4435 = vmatmul.f32.gmra.mxu0 %v4417
        %v4436 = vpop.f32.mrf.mxu0
        %v4437 = vadd.f32 0.0, %v4436
        %4438 = vdwg.mxu0
        %v4440 = vsel %vm1662, %v4437, 0
        %4442 = vmatpush.msra.mxu0 0.0
        %4443 = vmatpush.msra.mxu0 0.0
        %4444 = vmatpush.msra.mxu0 0.0
        %4445 = vmatpush.msra.mxu0 0.0
        %4446 = vmatpush.msra.mxu0 0.0
        %4447 = vmatpush.msra.mxu0 0.0
        %4448 = vmatpush.msra.mxu0 0.0
        %4449 = vmatpush.msra.mxu0 0.0
        %4450 = vmatpush.msra.mxu0 0.0
        %4451 = vmatpush.msra.mxu0 0.0
        %4452 = vmatpush.msra.mxu0 0.0
        %4453 = vmatpush.msra.mxu0 0.0
        %4454 = vmatpush.msra.mxu0 0.0
        %4455 = vmatpush.msra.mxu0 0.0
        %4456 = vmatpush.msra.mxu0 0.0
        %4457 = vmatpush.msra.mxu0 %v4378
        %4458 = vmatmul.f32.gmra.mxu0 %v4440
        %v4459 = vpop.f32.mrf.mxu0
        %v4460 = vadd.f32 0.0, %v4459
        %4461 = vdwg.mxu0
        %v4462 = vadd.f32 %v4283, %v4460
        %v4463 = vld [vmem:[%s49] sm:$0x1]
        %v4465 = vperm.slane %v4463, 0
        %v4467 = vadd.f32 %v4462, %v4465
        %v4468 = vadd.f32 %v3573, %v4467
        %v4469 = vld [vmem:[%s59] sm:$0x1]
        %v4470 = vld [vmem:[%s61] sm:$0x1]
        %v4471 = vsel %vm1579, %v4468, 0.0
        %4472 = vadd.xlane.f32.xlu0 %v4471
        %v4473 = vpop.xlane.xlu0 %4472
        %v4474 = vmul.f32 %v4473, %v2478
        %v4475 = vsub.f32 %v4468, %v4474
        %v4476 = vmul.f32 %v4475, %v4475
        %v4477 = vsel %vm1579, %v4476, 0.0
        %4478 = vadd.xlane.f32.xlu0 %v4477
        %v4479 = vpop.xlane.xlu0 %4478
        %v4480 = vmul.f32 %v4479, %v2478
        %v4481 = vadd.f32 %v4480, 1e-05
        %v4482 = vrsqrt.pop %v4481
        %v4483 = vmul.f32 %v4482, %v4481
        %v4484 = vmul.f32 %v4483, %v4482
        %v4485 = vmul.f32 0.5, %v4484
        %v4486 = vsub.f32 1.5, %v4485
        %v4487 = vmul.f32 %v4482, %v4486
        %vm4488 = vweird.f32 %v4481
        %vm4489 = vweird.f32 %v4482
        %vm4490 = vmor %vm4488, %vm4489
        %v4491 = vsel %vm4490, %v4482, %v4487
        %v4492 = vmul.f32 %v4475, %v4491
        %v4494 = vperm.slane %v4469, 0
        %v4496 = vmul.f32 %v4492, %v4494
        %v4498 = vperm.slane %v4470, 0
        %v4500 = vadd.f32 %v4496, %v4498
        %v4501 = vld [vmem:[%s51] sm:$0xff]
        %v4502 = vld [vmem:[%s51 + $0x8] sm:$0xff]
        %v4503 = vld [vmem:[%s51 + $0x10] sm:$0xff]
        %v4504 = vld [vmem:[%s51 + $0x18] sm:$0xff]
        %v4505 = vld [vmem:[%s51 + $0x20] sm:$0xff]
        %v4506 = vld [vmem:[%s51 + $0x28] sm:$0xff]
        %v4507 = vld [vmem:[%s51 + $0x30] sm:$0xff]
        %v4508 = vld [vmem:[%s51 + $0x38] sm:$0xff]
        %v4509 = vld [vmem:[%s51 + $0x40] sm:$0xff]
        %v4510 = vld [vmem:[%s51 + $0x48] sm:$0xff]
        %v4511 = vld [vmem:[%s51 + $0x50] sm:$0xff]
        %v4512 = vld [vmem:[%s51 + $0x58] sm:$0xff]
        %v4513 = vld [vmem:[%s51 + $0x60] sm:$0xff]
        %v4514 = vld [vmem:[%s51 + $0x68] sm:$0xff]
        %v4515 = vld [vmem:[%s51 + $0x70] sm:$0xff]
        %v4516 = vld [vmem:[%s51 + $0x78] sm:$0xff]
        %v4517 = vld [vmem:[%s51 + $0x80] sm:$0xff]
        %v4518 = vld [vmem:[%s51 + $0x88] sm:$0xff]
        %v4519 = vld [vmem:[%s51 + $0x90] sm:$0xff]
        %v4520 = vld [vmem:[%s51 + $0x98] sm:$0xff]
        %v4521 = vld [vmem:[%s51 + $0xa0] sm:$0xff]
        %v4522 = vld [vmem:[%s51 + $0xa8] sm:$0xff]
        %v4523 = vld [vmem:[%s51 + $0xb0] sm:$0xff]
        %v4524 = vld [vmem:[%s51 + $0xb8] sm:$0xff]
        %v4525 = vld [vmem:[%s51 + $0xc0] sm:$0xff]
        %v4526 = vld [vmem:[%s51 + $0xc8] sm:$0xff]
        %v4527 = vld [vmem:[%s51 + $0xd0] sm:$0xff]
        %v4528 = vld [vmem:[%s51 + $0xd8] sm:$0xff]
        %v4529 = vld [vmem:[%s51 + $0xe0] sm:$0xff]
        %v4530 = vld [vmem:[%s51 + $0xe8] sm:$0xff]
        %v4531 = vld [vmem:[%s51 + $0xf0] sm:$0xff]
        %v4532 = vld [vmem:[%s51 + $0xf8] sm:$0xff]
        %v4533 = vld [vmem:[%s51 + $0x100] sm:$0xff]
        %v4534 = vld [vmem:[%s51 + $0x108] sm:$0xff]
        %v4535 = vld [vmem:[%s51 + $0x110] sm:$0xff]
        %v4536 = vld [vmem:[%s51 + $0x118] sm:$0xff]
        %v4537 = vld [vmem:[%s51 + $0x120] sm:$0xff]
        %v4538 = vld [vmem:[%s51 + $0x128] sm:$0xff]
        %v4539 = vld [vmem:[%s51 + $0x130] sm:$0xff]
        %v4540 = vld [vmem:[%s51 + $0x138] sm:$0xff]
        %v4541 = vld [vmem:[%s51 + $0x140] sm:$0xff]
        %v4542 = vld [vmem:[%s51 + $0x148] sm:$0xff]
        %v4543 = vld [vmem:[%s51 + $0x150] sm:$0xff]
        %v4544 = vld [vmem:[%s51 + $0x158] sm:$0xff]
        %v4545 = vld [vmem:[%s51 + $0x160] sm:$0xff]
        %v4546 = vld [vmem:[%s51 + $0x168] sm:$0xff]
        %v4547 = vld [vmem:[%s51 + $0x170] sm:$0xff]
        %v4548 = vld [vmem:[%s51 + $0x178] sm:$0xff]
        %v4549 = vld [vmem:[%s51 + $0x180] sm:$0xff]
        %v4550 = vld [vmem:[%s51 + $0x188] sm:$0xff]
        %v4551 = vld [vmem:[%s51 + $0x190] sm:$0xff]
        %v4552 = vld [vmem:[%s51 + $0x198] sm:$0xff]
        %v4553 = vld [vmem:[%s51 + $0x1a0] sm:$0xff]
        %v4554 = vld [vmem:[%s51 + $0x1a8] sm:$0xff]
        %v4555 = vld [vmem:[%s51 + $0x1b0] sm:$0xff]
        %v4556 = vld [vmem:[%s51 + $0x1b8] sm:$0xff]
        %v4557 = vld [vmem:[%s51 + $0x1c0] sm:$0xff]
        %v4558 = vld [vmem:[%s51 + $0x1c8] sm:$0xff]
        %v4559 = vld [vmem:[%s51 + $0x1d0] sm:$0xff]
        %v4560 = vld [vmem:[%s51 + $0x1d8] sm:$0xff]
        %v4561 = vld [vmem:[%s51 + $0x1e0] sm:$0xff]
        %v4562 = vld [vmem:[%s51 + $0x1e8] sm:$0xff]
        %v4563 = vld [vmem:[%s51 + $0x1f0] sm:$0xff]
        %v4564 = vld [vmem:[%s51 + $0x1f8] sm:$0xff]
        %v4565 = vld [vmem:[%s51 + $0x200] sm:$0xff]
        %v4566 = vld [vmem:[%s51 + $0x208] sm:$0xff]
        %v4567 = vld [vmem:[%s51 + $0x210] sm:$0xff]
        %v4568 = vld [vmem:[%s51 + $0x218] sm:$0xff]
        %v4569 = vld [vmem:[%s51 + $0x220] sm:$0xff]
        %v4570 = vld [vmem:[%s51 + $0x228] sm:$0xff]
        %v4571 = vld [vmem:[%s51 + $0x230] sm:$0xff]
        %v4572 = vld [vmem:[%s51 + $0x238] sm:$0xff]
        %v4573 = vld [vmem:[%s51 + $0x240] sm:$0xff]
        %v4574 = vld [vmem:[%s51 + $0x248] sm:$0xff]
        %v4575 = vld [vmem:[%s51 + $0x250] sm:$0xff]
        %v4576 = vld [vmem:[%s51 + $0x258] sm:$0xff]
        %v4577 = vld [vmem:[%s51 + $0x260] sm:$0xff]
        %v4578 = vld [vmem:[%s51 + $0x268] sm:$0xff]
        %v4579 = vld [vmem:[%s51 + $0x270] sm:$0xff]
        %v4580 = vld [vmem:[%s51 + $0x278] sm:$0xff]
        %v4581 = vld [vmem:[%s53] sm:$0xff]
        %v4582 = vld [vmem:[%s53 + $0x8] sm:$0xff]
        %v4585 = vperm.slane %v4581, 0
        %v4586 = vperm.slane %v4581, 1
        %v4587 = vperm.slane %v4581, 2
        %v4588 = vperm.slane %v4581, 3
        %v4589 = vperm.slane %v4581, 4
        %v4590 = vperm.slane %v4581, 5
        %v4591 = vperm.slane %v4581, 6
        %v4592 = vperm.slane %v4581, 7
        %v4593 = vperm.slane %v4582, 0
        %v4594 = vperm.slane %v4582, 1
        %v4595 = vperm.slane %v4582, 2
        %v4596 = vperm.slane %v4582, 3
        %v4597 = vperm.slane %v4582, 4
        %v4598 = vperm.slane %v4582, 5
        %v4599 = vperm.slane %v4582, 6
        %v4600 = vperm.slane %v4582, 7
        %v4618 = vsel %vm1579, %v4500, 0
        %4620 = vmatpush.msra.mxu0 0.0
        %4621 = vmatpush.msra.mxu0 0.0
        %4622 = vmatpush.msra.mxu0 0.0
        %4623 = vmatpush.msra.mxu0 0.0
        %4624 = vmatpush.msra.mxu0 0.0
        %4625 = vmatpush.msra.mxu0 0.0
        %4626 = vmatpush.msra.mxu0 0.0
        %4627 = vmatpush.msra.mxu0 0.0
        %4628 = vmatpush.msra.mxu0 0.0
        %4629 = vmatpush.msra.mxu0 0.0
        %4630 = vmatpush.msra.mxu0 0.0
        %4631 = vmatpush.msra.mxu0 %v4565
        %4632 = vmatpush.msra.mxu0 %v4549
        %4633 = vmatpush.msra.mxu0 %v4533
        %4634 = vmatpush.msra.mxu0 %v4517
        %4635 = vmatpush.msra.mxu0 %v4501
        %4636 = vmatmul.f32.gmra.mxu0 %v4618
        %v4637 = vpop.f32.mrf.mxu0
        %v4638 = vadd.f32 %v4585, %v4637
        %4639 = vdwg.mxu0
        %4640 = vmatpush.msra.mxu0 0.0
        %4641 = vmatpush.msra.mxu0 0.0
        %4642 = vmatpush.msra.mxu0 0.0
        %4643 = vmatpush.msra.mxu0 0.0
        %4644 = vmatpush.msra.mxu0 0.0
        %4645 = vmatpush.msra.mxu0 0.0
        %4646 = vmatpush.msra.mxu0 0.0
        %4647 = vmatpush.msra.mxu0 0.0
        %4648 = vmatpush.msra.mxu0 0.0
        %4649 = vmatpush.msra.mxu0 0.0
        %4650 = vmatpush.msra.mxu0 0.0
        %4651 = vmatpush.msra.mxu0 %v4566
        %4652 = vmatpush.msra.mxu0 %v4550
        %4653 = vmatpush.msra.mxu0 %v4534
        %4654 = vmatpush.msra.mxu0 %v4518
        %4655 = vmatpush.msra.mxu0 %v4502
        %4656 = vmatmul.f32.gmra.mxu0 %v4618
        %v4657 = vpop.f32.mrf.mxu0
        %v4658 = vadd.f32 %v4586, %v4657
        %4659 = vdwg.mxu0
        %4660 = vmatpush.msra.mxu0 0.0
        %4661 = vmatpush.msra.mxu0 0.0
        %4662 = vmatpush.msra.mxu0 0.0
        %4663 = vmatpush.msra.mxu0 0.0
        %4664 = vmatpush.msra.mxu0 0.0
        %4665 = vmatpush.msra.mxu0 0.0
        %4666 = vmatpush.msra.mxu0 0.0
        %4667 = vmatpush.msra.mxu0 0.0
        %4668 = vmatpush.msra.mxu0 0.0
        %4669 = vmatpush.msra.mxu0 0.0
        %4670 = vmatpush.msra.mxu0 0.0
        %4671 = vmatpush.msra.mxu0 %v4567
        %4672 = vmatpush.msra.mxu0 %v4551
        %4673 = vmatpush.msra.mxu0 %v4535
        %4674 = vmatpush.msra.mxu0 %v4519
        %4675 = vmatpush.msra.mxu0 %v4503
        %4676 = vmatmul.f32.gmra.mxu0 %v4618
        %v4677 = vpop.f32.mrf.mxu0
        %v4678 = vadd.f32 %v4587, %v4677
        %4679 = vdwg.mxu0
        %4680 = vmatpush.msra.mxu0 0.0
        %4681 = vmatpush.msra.mxu0 0.0
        %4682 = vmatpush.msra.mxu0 0.0
        %4683 = vmatpush.msra.mxu0 0.0
        %4684 = vmatpush.msra.mxu0 0.0
        %4685 = vmatpush.msra.mxu0 0.0
        %4686 = vmatpush.msra.mxu0 0.0
        %4687 = vmatpush.msra.mxu0 0.0
        %4688 = vmatpush.msra.mxu0 0.0
        %4689 = vmatpush.msra.mxu0 0.0
        %4690 = vmatpush.msra.mxu0 0.0
        %4691 = vmatpush.msra.mxu0 %v4568
        %4692 = vmatpush.msra.mxu0 %v4552
        %4693 = vmatpush.msra.mxu0 %v4536
        %4694 = vmatpush.msra.mxu0 %v4520
        %4695 = vmatpush.msra.mxu0 %v4504
        %4696 = vmatmul.f32.gmra.mxu0 %v4618
        %v4697 = vpop.f32.mrf.mxu0
        %v4698 = vadd.f32 %v4588, %v4697
        %4699 = vdwg.mxu0
        %4700 = vmatpush.msra.mxu0 0.0
        %4701 = vmatpush.msra.mxu0 0.0
        %4702 = vmatpush.msra.mxu0 0.0
        %4703 = vmatpush.msra.mxu0 0.0
        %4704 = vmatpush.msra.mxu0 0.0
        %4705 = vmatpush.msra.mxu0 0.0
        %4706 = vmatpush.msra.mxu0 0.0
        %4707 = vmatpush.msra.mxu0 0.0
        %4708 = vmatpush.msra.mxu0 0.0
        %4709 = vmatpush.msra.mxu0 0.0
        %4710 = vmatpush.msra.mxu0 0.0
        %4711 = vmatpush.msra.mxu0 %v4569
        %4712 = vmatpush.msra.mxu0 %v4553
        %4713 = vmatpush.msra.mxu0 %v4537
        %4714 = vmatpush.msra.mxu0 %v4521
        %4715 = vmatpush.msra.mxu0 %v4505
        %4716 = vmatmul.f32.gmra.mxu0 %v4618
        %v4717 = vpop.f32.mrf.mxu0
        %v4718 = vadd.f32 %v4589, %v4717
        %4719 = vdwg.mxu0
        %4720 = vmatpush.msra.mxu0 0.0
        %4721 = vmatpush.msra.mxu0 0.0
        %4722 = vmatpush.msra.mxu0 0.0
        %4723 = vmatpush.msra.mxu0 0.0
        %4724 = vmatpush.msra.mxu0 0.0
        %4725 = vmatpush.msra.mxu0 0.0
        %4726 = vmatpush.msra.mxu0 0.0
        %4727 = vmatpush.msra.mxu0 0.0
        %4728 = vmatpush.msra.mxu0 0.0
        %4729 = vmatpush.msra.mxu0 0.0
        %4730 = vmatpush.msra.mxu0 0.0
        %4731 = vmatpush.msra.mxu0 %v4570
        %4732 = vmatpush.msra.mxu0 %v4554
        %4733 = vmatpush.msra.mxu0 %v4538
        %4734 = vmatpush.msra.mxu0 %v4522
        %4735 = vmatpush.msra.mxu0 %v4506
        %4736 = vmatmul.f32.gmra.mxu0 %v4618
        %v4737 = vpop.f32.mrf.mxu0
        %v4738 = vadd.f32 %v4590, %v4737
        %4739 = vdwg.mxu0
        %4740 = vmatpush.msra.mxu0 0.0
        %4741 = vmatpush.msra.mxu0 0.0
        %4742 = vmatpush.msra.mxu0 0.0
        %4743 = vmatpush.msra.mxu0 0.0
        %4744 = vmatpush.msra.mxu0 0.0
        %4745 = vmatpush.msra.mxu0 0.0
        %4746 = vmatpush.msra.mxu0 0.0
        %4747 = vmatpush.msra.mxu0 0.0
        %4748 = vmatpush.msra.mxu0 0.0
        %4749 = vmatpush.msra.mxu0 0.0
        %4750 = vmatpush.msra.mxu0 0.0
        %4751 = vmatpush.msra.mxu0 %v4571
        %4752 = vmatpush.msra.mxu0 %v4555
        %4753 = vmatpush.msra.mxu0 %v4539
        %4754 = vmatpush.msra.mxu0 %v4523
        %4755 = vmatpush.msra.mxu0 %v4507
        %4756 = vmatmul.f32.gmra.mxu0 %v4618
        %v4757 = vpop.f32.mrf.mxu0
        %v4758 = vadd.f32 %v4591, %v4757
        %4759 = vdwg.mxu0
        %4760 = vmatpush.msra.mxu0 0.0
        %4761 = vmatpush.msra.mxu0 0.0
        %4762 = vmatpush.msra.mxu0 0.0
        %4763 = vmatpush.msra.mxu0 0.0
        %4764 = vmatpush.msra.mxu0 0.0
        %4765 = vmatpush.msra.mxu0 0.0
        %4766 = vmatpush.msra.mxu0 0.0
        %4767 = vmatpush.msra.mxu0 0.0
        %4768 = vmatpush.msra.mxu0 0.0
        %4769 = vmatpush.msra.mxu0 0.0
        %4770 = vmatpush.msra.mxu0 0.0
        %4771 = vmatpush.msra.mxu0 %v4572
        %4772 = vmatpush.msra.mxu0 %v4556
        %4773 = vmatpush.msra.mxu0 %v4540
        %4774 = vmatpush.msra.mxu0 %v4524
        %4775 = vmatpush.msra.mxu0 %v4508
        %4776 = vmatmul.f32.gmra.mxu0 %v4618
        %v4777 = vpop.f32.mrf.mxu0
        %v4778 = vadd.f32 %v4592, %v4777
        %4779 = vdwg.mxu0
        %4780 = vmatpush.msra.mxu0 0.0
        %4781 = vmatpush.msra.mxu0 0.0
        %4782 = vmatpush.msra.mxu0 0.0
        %4783 = vmatpush.msra.mxu0 0.0
        %4784 = vmatpush.msra.mxu0 0.0
        %4785 = vmatpush.msra.mxu0 0.0
        %4786 = vmatpush.msra.mxu0 0.0
        %4787 = vmatpush.msra.mxu0 0.0
        %4788 = vmatpush.msra.mxu0 0.0
        %4789 = vmatpush.msra.mxu0 0.0
        %4790 = vmatpush.msra.mxu0 0.0
        %4791 = vmatpush.msra.mxu0 %v4573
        %4792 = vmatpush.msra.mxu0 %v4557
        %4793 = vmatpush.msra.mxu0 %v4541
        %4794 = vmatpush.msra.mxu0 %v4525
        %4795 = vmatpush.msra.mxu0 %v4509
        %4796 = vmatmul.f32.gmra.mxu0 %v4618
        %v4797 = vpop.f32.mrf.mxu0
        %v4798 = vadd.f32 %v4593, %v4797
        %4799 = vdwg.mxu0
        %4800 = vmatpush.msra.mxu0 0.0
        %4801 = vmatpush.msra.mxu0 0.0
        %4802 = vmatpush.msra.mxu0 0.0
        %4803 = vmatpush.msra.mxu0 0.0
        %4804 = vmatpush.msra.mxu0 0.0
        %4805 = vmatpush.msra.mxu0 0.0
        %4806 = vmatpush.msra.mxu0 0.0
        %4807 = vmatpush.msra.mxu0 0.0
        %4808 = vmatpush.msra.mxu0 0.0
        %4809 = vmatpush.msra.mxu0 0.0
        %4810 = vmatpush.msra.mxu0 0.0
        %4811 = vmatpush.msra.mxu0 %v4574
        %4812 = vmatpush.msra.mxu0 %v4558
        %4813 = vmatpush.msra.mxu0 %v4542
        %4814 = vmatpush.msra.mxu0 %v4526
        %4815 = vmatpush.msra.mxu0 %v4510
        %4816 = vmatmul.f32.gmra.mxu0 %v4618
        %v4817 = vpop.f32.mrf.mxu0
        %v4818 = vadd.f32 %v4594, %v4817
        %4819 = vdwg.mxu0
        %4820 = vmatpush.msra.mxu0 0.0
        %4821 = vmatpush.msra.mxu0 0.0
        %4822 = vmatpush.msra.mxu0 0.0
        %4823 = vmatpush.msra.mxu0 0.0
        %4824 = vmatpush.msra.mxu0 0.0
        %4825 = vmatpush.msra.mxu0 0.0
        %4826 = vmatpush.msra.mxu0 0.0
        %4827 = vmatpush.msra.mxu0 0.0
        %4828 = vmatpush.msra.mxu0 0.0
        %4829 = vmatpush.msra.mxu0 0.0
        %4830 = vmatpush.msra.mxu0 0.0
        %4831 = vmatpush.msra.mxu0 %v4575
        %4832 = vmatpush.msra.mxu0 %v4559
        %4833 = vmatpush.msra.mxu0 %v4543
        %4834 = vmatpush.msra.mxu0 %v4527
        %4835 = vmatpush.msra.mxu0 %v4511
        %4836 = vmatmul.f32.gmra.mxu0 %v4618
        %v4837 = vpop.f32.mrf.mxu0
        %v4838 = vadd.f32 %v4595, %v4837
        %4839 = vdwg.mxu0
        %4840 = vmatpush.msra.mxu0 0.0
        %4841 = vmatpush.msra.mxu0 0.0
        %4842 = vmatpush.msra.mxu0 0.0
        %4843 = vmatpush.msra.mxu0 0.0
        %4844 = vmatpush.msra.mxu0 0.0
        %4845 = vmatpush.msra.mxu0 0.0
        %4846 = vmatpush.msra.mxu0 0.0
        %4847 = vmatpush.msra.mxu0 0.0
        %4848 = vmatpush.msra.mxu0 0.0
        %4849 = vmatpush.msra.mxu0 0.0
        %4850 = vmatpush.msra.mxu0 0.0
        %4851 = vmatpush.msra.mxu0 %v4576
        %4852 = vmatpush.msra.mxu0 %v4560
        %4853 = vmatpush.msra.mxu0 %v4544
        %4854 = vmatpush.msra.mxu0 %v4528
        %4855 = vmatpush.msra.mxu0 %v4512
        %4856 = vmatmul.f32.gmra.mxu0 %v4618
        %v4857 = vpop.f32.mrf.mxu0
        %v4858 = vadd.f32 %v4596, %v4857
        %4859 = vdwg.mxu0
        %4860 = vmatpush.msra.mxu0 0.0
        %4861 = vmatpush.msra.mxu0 0.0
        %4862 = vmatpush.msra.mxu0 0.0
        %4863 = vmatpush.msra.mxu0 0.0
        %4864 = vmatpush.msra.mxu0 0.0
        %4865 = vmatpush.msra.mxu0 0.0
        %4866 = vmatpush.msra.mxu0 0.0
        %4867 = vmatpush.msra.mxu0 0.0
        %4868 = vmatpush.msra.mxu0 0.0
        %4869 = vmatpush.msra.mxu0 0.0
        %4870 = vmatpush.msra.mxu0 0.0
        %4871 = vmatpush.msra.mxu0 %v4577
        %4872 = vmatpush.msra.mxu0 %v4561
        %4873 = vmatpush.msra.mxu0 %v4545
        %4874 = vmatpush.msra.mxu0 %v4529
        %4875 = vmatpush.msra.mxu0 %v4513
        %4876 = vmatmul.f32.gmra.mxu0 %v4618
        %v4877 = vpop.f32.mrf.mxu0
        %v4878 = vadd.f32 %v4597, %v4877
        %4879 = vdwg.mxu0
        %4880 = vmatpush.msra.mxu0 0.0
        %4881 = vmatpush.msra.mxu0 0.0
        %4882 = vmatpush.msra.mxu0 0.0
        %4883 = vmatpush.msra.mxu0 0.0
        %4884 = vmatpush.msra.mxu0 0.0
        %4885 = vmatpush.msra.mxu0 0.0
        %4886 = vmatpush.msra.mxu0 0.0
        %4887 = vmatpush.msra.mxu0 0.0
        %4888 = vmatpush.msra.mxu0 0.0
        %4889 = vmatpush.msra.mxu0 0.0
        %4890 = vmatpush.msra.mxu0 0.0
        %4891 = vmatpush.msra.mxu0 %v4578
        %4892 = vmatpush.msra.mxu0 %v4562
        %4893 = vmatpush.msra.mxu0 %v4546
        %4894 = vmatpush.msra.mxu0 %v4530
        %4895 = vmatpush.msra.mxu0 %v4514
        %4896 = vmatmul.f32.gmra.mxu0 %v4618
        %v4897 = vpop.f32.mrf.mxu0
        %v4898 = vadd.f32 %v4598, %v4897
        %4899 = vdwg.mxu0
        %4900 = vmatpush.msra.mxu0 0.0
        %4901 = vmatpush.msra.mxu0 0.0
        %4902 = vmatpush.msra.mxu0 0.0
        %4903 = vmatpush.msra.mxu0 0.0
        %4904 = vmatpush.msra.mxu0 0.0
        %4905 = vmatpush.msra.mxu0 0.0
        %4906 = vmatpush.msra.mxu0 0.0
        %4907 = vmatpush.msra.mxu0 0.0
        %4908 = vmatpush.msra.mxu0 0.0
        %4909 = vmatpush.msra.mxu0 0.0
        %4910 = vmatpush.msra.mxu0 0.0
        %4911 = vmatpush.msra.mxu0 %v4579
        %4912 = vmatpush.msra.mxu0 %v4563
        %4913 = vmatpush.msra.mxu0 %v4547
        %4914 = vmatpush.msra.mxu0 %v4531
        %4915 = vmatpush.msra.mxu0 %v4515
        %4916 = vmatmul.f32.gmra.mxu0 %v4618
        %v4917 = vpop.f32.mrf.mxu0
        %v4918 = vadd.f32 %v4599, %v4917
        %4919 = vdwg.mxu0
        %4920 = vmatpush.msra.mxu0 0.0
        %4921 = vmatpush.msra.mxu0 0.0
        %4922 = vmatpush.msra.mxu0 0.0
        %4923 = vmatpush.msra.mxu0 0.0
        %4924 = vmatpush.msra.mxu0 0.0
        %4925 = vmatpush.msra.mxu0 0.0
        %4926 = vmatpush.msra.mxu0 0.0
        %4927 = vmatpush.msra.mxu0 0.0
        %4928 = vmatpush.msra.mxu0 0.0
        %4929 = vmatpush.msra.mxu0 0.0
        %4930 = vmatpush.msra.mxu0 0.0
        %4931 = vmatpush.msra.mxu0 %v4580
        %4932 = vmatpush.msra.mxu0 %v4564
        %4933 = vmatpush.msra.mxu0 %v4548
        %4934 = vmatpush.msra.mxu0 %v4532
        %4935 = vmatpush.msra.mxu0 %v4516
        %4936 = vmatmul.f32.gmra.mxu0 %v4618
        %v4937 = vpop.f32.mrf.mxu0
        %v4938 = vadd.f32 %v4600, %v4937
        %4939 = vdwg.mxu0
        %v4940 = vmax.f32 %v4638, 0.0
        %v4941 = vmax.f32 %v4658, 0.0
        %v4942 = vmax.f32 %v4678, 0.0
        %v4943 = vmax.f32 %v4698, 0.0
        %v4944 = vmax.f32 %v4718, 0.0
        %v4945 = vmax.f32 %v4738, 0.0
        %v4946 = vmax.f32 %v4758, 0.0
        %v4947 = vmax.f32 %v4778, 0.0
        %v4948 = vmax.f32 %v4798, 0.0
        %v4949 = vmax.f32 %v4818, 0.0
        %v4950 = vmax.f32 %v4838, 0.0
        %v4951 = vmax.f32 %v4858, 0.0
        %v4952 = vmax.f32 %v4878, 0.0
        %v4953 = vmax.f32 %v4898, 0.0
        %v4954 = vmax.f32 %v4918, 0.0
        %v4955 = vmax.f32 %v4938, 0.0
        %v4956 = vld [vmem:[%s55] sm:$0xff]
        %v4957 = vld [vmem:[%s55 + $0x8] sm:$0xff]
        %v4958 = vld [vmem:[%s55 + $0x10] sm:$0xff]
        %v4959 = vld [vmem:[%s55 + $0x18] sm:$0xff]
        %v4960 = vld [vmem:[%s55 + $0x20] sm:$0xff]
        %v4961 = vld [vmem:[%s55 + $0x28] sm:$0xff]
        %v4962 = vld [vmem:[%s55 + $0x30] sm:$0xff]
        %v4963 = vld [vmem:[%s55 + $0x38] sm:$0xff]
        %v4964 = vld [vmem:[%s55 + $0x40] sm:$0xff]
        %v4965 = vld [vmem:[%s55 + $0x48] sm:$0xff]
        %v4966 = vld [vmem:[%s55 + $0x50] sm:$0xff]
        %v4967 = vld [vmem:[%s55 + $0x58] sm:$0xff]
        %v4968 = vld [vmem:[%s55 + $0x60] sm:$0xff]
        %v4969 = vld [vmem:[%s55 + $0x68] sm:$0xff]
        %v4970 = vld [vmem:[%s55 + $0x70] sm:$0xff]
        %v4971 = vld [vmem:[%s55 + $0x78] sm:$0xff]
        %v4972 = vld [vmem:[%s55 + $0x80] sm:$0xff]
        %v4973 = vld [vmem:[%s55 + $0x88] sm:$0xff]
        %v4974 = vld [vmem:[%s55 + $0x90] sm:$0xff]
        %v4975 = vld [vmem:[%s55 + $0x98] sm:$0xff]
        %v4976 = vld [vmem:[%s55 + $0xa0] sm:$0xff]
        %v4977 = vld [vmem:[%s55 + $0xa8] sm:$0xff]
        %v4978 = vld [vmem:[%s55 + $0xb0] sm:$0xff]
        %v4979 = vld [vmem:[%s55 + $0xb8] sm:$0xff]
        %v4980 = vld [vmem:[%s55 + $0xc0] sm:$0xff]
        %v4981 = vld [vmem:[%s55 + $0xc8] sm:$0xff]
        %v4982 = vld [vmem:[%s55 + $0xd0] sm:$0xff]
        %v4983 = vld [vmem:[%s55 + $0xd8] sm:$0xff]
        %v4984 = vld [vmem:[%s55 + $0xe0] sm:$0xff]
        %v4985 = vld [vmem:[%s55 + $0xe8] sm:$0xff]
        %v4986 = vld [vmem:[%s55 + $0xf0] sm:$0xff]
        %v4987 = vld [vmem:[%s55 + $0xf8] sm:$0xff]
        %v4988 = vld [vmem:[%s55 + $0x100] sm:$0xff]
        %v4989 = vld [vmem:[%s55 + $0x108] sm:$0xff]
        %v4990 = vld [vmem:[%s55 + $0x110] sm:$0xff]
        %v4991 = vld [vmem:[%s55 + $0x118] sm:$0xff]
        %v4992 = vld [vmem:[%s55 + $0x120] sm:$0xff]
        %v4993 = vld [vmem:[%s55 + $0x128] sm:$0xff]
        %v4994 = vld [vmem:[%s55 + $0x130] sm:$0xff]
        %v4995 = vld [vmem:[%s55 + $0x138] sm:$0xff]
        %v4996 = vld [vmem:[%s55 + $0x140] sm:$0xff]
        %v4997 = vld [vmem:[%s55 + $0x148] sm:$0xff]
        %v4998 = vld [vmem:[%s55 + $0x150] sm:$0xff]
        %v4999 = vld [vmem:[%s55 + $0x158] sm:$0xff]
        %v5000 = vld [vmem:[%s55 + $0x160] sm:$0xff]
        %v5001 = vld [vmem:[%s55 + $0x168] sm:$0xff]
        %v5002 = vld [vmem:[%s55 + $0x170] sm:$0xff]
        %v5003 = vld [vmem:[%s55 + $0x178] sm:$0xff]
        %v5004 = vld [vmem:[%s55 + $0x180] sm:$0xff]
        %v5005 = vld [vmem:[%s55 + $0x188] sm:$0xff]
        %v5006 = vld [vmem:[%s55 + $0x190] sm:$0xff]
        %v5007 = vld [vmem:[%s55 + $0x198] sm:$0xff]
        %v5008 = vld [vmem:[%s55 + $0x1a0] sm:$0xff]
        %v5009 = vld [vmem:[%s55 + $0x1a8] sm:$0xff]
        %v5010 = vld [vmem:[%s55 + $0x1b0] sm:$0xff]
        %v5011 = vld [vmem:[%s55 + $0x1b8] sm:$0xff]
        %v5012 = vld [vmem:[%s55 + $0x1c0] sm:$0xff]
        %v5013 = vld [vmem:[%s55 + $0x1c8] sm:$0xff]
        %v5014 = vld [vmem:[%s55 + $0x1d0] sm:$0xff]
        %v5015 = vld [vmem:[%s55 + $0x1d8] sm:$0xff]
        %v5016 = vld [vmem:[%s55 + $0x1e0] sm:$0xff]
        %v5017 = vld [vmem:[%s55 + $0x1e8] sm:$0xff]
        %v5018 = vld [vmem:[%s55 + $0x1f0] sm:$0xff]
        %v5019 = vld [vmem:[%s55 + $0x1f8] sm:$0xff]
        %v5020 = vld [vmem:[%s55 + $0x200] sm:$0xff]
        %v5021 = vld [vmem:[%s55 + $0x208] sm:$0xff]
        %v5022 = vld [vmem:[%s55 + $0x210] sm:$0xff]
        %v5023 = vld [vmem:[%s55 + $0x218] sm:$0xff]
        %v5024 = vld [vmem:[%s55 + $0x220] sm:$0xff]
        %v5025 = vld [vmem:[%s55 + $0x228] sm:$0xff]
        %v5026 = vld [vmem:[%s55 + $0x230] sm:$0xff]
        %v5027 = vld [vmem:[%s55 + $0x238] sm:$0xff]
        %v5028 = vld [vmem:[%s55 + $0x240] sm:$0xff]
        %v5029 = vld [vmem:[%s55 + $0x248] sm:$0xff]
        %v5030 = vld [vmem:[%s55 + $0x250] sm:$0xff]
        %v5031 = vld [vmem:[%s55 + $0x258] sm:$0xff]
        %v5032 = vld [vmem:[%s55 + $0x260] sm:$0xff]
        %v5033 = vld [vmem:[%s55 + $0x268] sm:$0xff]
        %v5034 = vld [vmem:[%s55 + $0x270] sm:$0xff]
        %v5035 = vld [vmem:[%s55 + $0x278] sm:$0xff]
        %v5036 = vld [vmem:[%s55 + $0x280] sm:$0xff]
        %v5037 = vld [vmem:[%s55 + $0x288] sm:$0xff]
        %v5038 = vld [vmem:[%s55 + $0x290] sm:$0xff]
        %v5039 = vld [vmem:[%s55 + $0x298] sm:$0xff]
        %v5040 = vld [vmem:[%s55 + $0x2a0] sm:$0xff]
        %v5041 = vld [vmem:[%s55 + $0x2a8] sm:$0xff]
        %v5042 = vld [vmem:[%s55 + $0x2b0] sm:$0xff]
        %v5043 = vld [vmem:[%s55 + $0x2b8] sm:$0xff]
        %v5044 = vld [vmem:[%s55 + $0x2c0] sm:$0xff]
        %v5045 = vld [vmem:[%s55 + $0x2c8] sm:$0xff]
        %v5046 = vld [vmem:[%s55 + $0x2d0] sm:$0xff]
        %v5047 = vld [vmem:[%s55 + $0x2d8] sm:$0xff]
        %v5048 = vld [vmem:[%s55 + $0x2e0] sm:$0xff]
        %v5049 = vld [vmem:[%s55 + $0x2e8] sm:$0xff]
        %v5050 = vld [vmem:[%s55 + $0x2f0] sm:$0xff]
        %v5051 = vld [vmem:[%s55 + $0x2f8] sm:$0xff]
        %v5052 = vld [vmem:[%s55 + $0x300] sm:$0xff]
        %v5053 = vld [vmem:[%s55 + $0x308] sm:$0xff]
        %v5054 = vld [vmem:[%s55 + $0x310] sm:$0xff]
        %v5055 = vld [vmem:[%s55 + $0x318] sm:$0xff]
        %v5056 = vld [vmem:[%s55 + $0x320] sm:$0xff]
        %v5057 = vld [vmem:[%s55 + $0x328] sm:$0xff]
        %v5058 = vld [vmem:[%s55 + $0x330] sm:$0xff]
        %v5059 = vld [vmem:[%s55 + $0x338] sm:$0xff]
        %v5060 = vld [vmem:[%s55 + $0x340] sm:$0xff]
        %v5061 = vld [vmem:[%s55 + $0x348] sm:$0xff]
        %v5062 = vld [vmem:[%s55 + $0x350] sm:$0xff]
        %v5063 = vld [vmem:[%s55 + $0x358] sm:$0xff]
        %v5064 = vld [vmem:[%s55 + $0x360] sm:$0xff]
        %v5065 = vld [vmem:[%s55 + $0x368] sm:$0xff]
        %v5066 = vld [vmem:[%s55 + $0x370] sm:$0xff]
        %v5067 = vld [vmem:[%s55 + $0x378] sm:$0xff]
        %v5068 = vld [vmem:[%s55 + $0x380] sm:$0xff]
        %v5069 = vld [vmem:[%s55 + $0x388] sm:$0xff]
        %v5070 = vld [vmem:[%s55 + $0x390] sm:$0xff]
        %v5071 = vld [vmem:[%s55 + $0x398] sm:$0xff]
        %v5072 = vld [vmem:[%s55 + $0x3a0] sm:$0xff]
        %v5073 = vld [vmem:[%s55 + $0x3a8] sm:$0xff]
        %v5074 = vld [vmem:[%s55 + $0x3b0] sm:$0xff]
        %v5075 = vld [vmem:[%s55 + $0x3b8] sm:$0xff]
        %v5076 = vld [vmem:[%s55 + $0x3c0] sm:$0xff]
        %v5077 = vld [vmem:[%s55 + $0x3c8] sm:$0xff]
        %v5078 = vld [vmem:[%s55 + $0x3d0] sm:$0xff]
        %v5079 = vld [vmem:[%s55 + $0x3d8] sm:$0xff]
        %v5080 = vld [vmem:[%s55 + $0x3e0] sm:$0xff]
        %v5081 = vld [vmem:[%s55 + $0x3e8] sm:$0xff]
        %v5082 = vld [vmem:[%s55 + $0x3f0] sm:$0xff]
        %v5083 = vld [vmem:[%s55 + $0x3f8] sm:$0xff]
        %v5084 = vld [vmem:[%s55 + $0x400] sm:$0xff]
        %v5085 = vld [vmem:[%s55 + $0x408] sm:$0xff]
        %v5086 = vld [vmem:[%s55 + $0x410] sm:$0xff]
        %v5087 = vld [vmem:[%s55 + $0x418] sm:$0xff]
        %v5088 = vld [vmem:[%s55 + $0x420] sm:$0xff]
        %v5089 = vld [vmem:[%s55 + $0x428] sm:$0xff]
        %v5090 = vld [vmem:[%s55 + $0x430] sm:$0xff]
        %v5091 = vld [vmem:[%s55 + $0x438] sm:$0xff]
        %v5092 = vld [vmem:[%s55 + $0x440] sm:$0xff]
        %v5093 = vld [vmem:[%s55 + $0x448] sm:$0xff]
        %v5094 = vld [vmem:[%s55 + $0x450] sm:$0xff]
        %v5095 = vld [vmem:[%s55 + $0x458] sm:$0xff]
        %v5096 = vld [vmem:[%s55 + $0x460] sm:$0xff]
        %v5097 = vld [vmem:[%s55 + $0x468] sm:$0xff]
        %v5098 = vld [vmem:[%s55 + $0x470] sm:$0xff]
        %v5099 = vld [vmem:[%s55 + $0x478] sm:$0xff]
        %v5100 = vld [vmem:[%s55 + $0x480] sm:$0xff]
        %v5101 = vld [vmem:[%s55 + $0x488] sm:$0xff]
        %v5102 = vld [vmem:[%s55 + $0x490] sm:$0xff]
        %v5103 = vld [vmem:[%s55 + $0x498] sm:$0xff]
        %v5104 = vld [vmem:[%s55 + $0x4a0] sm:$0xff]
        %v5105 = vld [vmem:[%s55 + $0x4a8] sm:$0xff]
        %v5106 = vld [vmem:[%s55 + $0x4b0] sm:$0xff]
        %v5107 = vld [vmem:[%s55 + $0x4b8] sm:$0xff]
        %v5108 = vld [vmem:[%s55 + $0x4c0] sm:$0xff]
        %v5109 = vld [vmem:[%s55 + $0x4c8] sm:$0xff]
        %v5110 = vld [vmem:[%s55 + $0x4d0] sm:$0xff]
        %v5111 = vld [vmem:[%s55 + $0x4d8] sm:$0xff]
        %v5112 = vld [vmem:[%s55 + $0x4e0] sm:$0xff]
        %v5113 = vld [vmem:[%s55 + $0x4e8] sm:$0xff]
        %v5114 = vld [vmem:[%s55 + $0x4f0] sm:$0xff]
        %v5115 = vld [vmem:[%s55 + $0x4f8] sm:$0xff]
        %v5116 = vld [vmem:[%s55 + $0x500] sm:$0xff]
        %v5117 = vld [vmem:[%s55 + $0x508] sm:$0xff]
        %v5118 = vld [vmem:[%s55 + $0x510] sm:$0xff]
        %v5119 = vld [vmem:[%s55 + $0x518] sm:$0xff]
        %v5120 = vld [vmem:[%s55 + $0x520] sm:$0xff]
        %v5121 = vld [vmem:[%s55 + $0x528] sm:$0xff]
        %v5122 = vld [vmem:[%s55 + $0x530] sm:$0xff]
        %v5123 = vld [vmem:[%s55 + $0x538] sm:$0xff]
        %v5124 = vld [vmem:[%s55 + $0x540] sm:$0xff]
        %v5125 = vld [vmem:[%s55 + $0x548] sm:$0xff]
        %v5126 = vld [vmem:[%s55 + $0x550] sm:$0xff]
        %v5127 = vld [vmem:[%s55 + $0x558] sm:$0xff]
        %v5128 = vld [vmem:[%s55 + $0x560] sm:$0xff]
        %v5129 = vld [vmem:[%s55 + $0x568] sm:$0xff]
        %v5130 = vld [vmem:[%s55 + $0x570] sm:$0xff]
        %v5131 = vld [vmem:[%s55 + $0x578] sm:$0xff]
        %v5132 = vld [vmem:[%s55 + $0x580] sm:$0xff]
        %v5133 = vld [vmem:[%s55 + $0x588] sm:$0xff]
        %v5134 = vld [vmem:[%s55 + $0x590] sm:$0xff]
        %v5135 = vld [vmem:[%s55 + $0x598] sm:$0xff]
        %v5136 = vld [vmem:[%s55 + $0x5a0] sm:$0xff]
        %v5137 = vld [vmem:[%s55 + $0x5a8] sm:$0xff]
        %v5138 = vld [vmem:[%s55 + $0x5b0] sm:$0xff]
        %v5139 = vld [vmem:[%s55 + $0x5b8] sm:$0xff]
        %v5140 = vld [vmem:[%s55 + $0x5c0] sm:$0xff]
        %v5141 = vld [vmem:[%s55 + $0x5c8] sm:$0xff]
        %v5142 = vld [vmem:[%s55 + $0x5d0] sm:$0xff]
        %v5143 = vld [vmem:[%s55 + $0x5d8] sm:$0xff]
        %v5144 = vld [vmem:[%s55 + $0x5e0] sm:$0xff]
        %v5145 = vld [vmem:[%s55 + $0x5e8] sm:$0xff]
        %v5146 = vld [vmem:[%s55 + $0x5f0] sm:$0xff]
        %v5147 = vld [vmem:[%s55 + $0x5f8] sm:$0xff]
        %v5148 = vld [vmem:[%s55 + $0x600] sm:$0xff]
        %v5149 = vld [vmem:[%s55 + $0x608] sm:$0xff]
        %v5150 = vld [vmem:[%s55 + $0x610] sm:$0xff]
        %v5151 = vld [vmem:[%s55 + $0x618] sm:$0xff]
        %v5152 = vld [vmem:[%s55 + $0x620] sm:$0xff]
        %v5153 = vld [vmem:[%s55 + $0x628] sm:$0xff]
        %v5154 = vld [vmem:[%s55 + $0x630] sm:$0xff]
        %v5155 = vld [vmem:[%s55 + $0x638] sm:$0xff]
        %v5156 = vld [vmem:[%s55 + $0x640] sm:$0xff]
        %v5157 = vld [vmem:[%s55 + $0x648] sm:$0xff]
        %v5158 = vld [vmem:[%s55 + $0x650] sm:$0xff]
        %v5159 = vld [vmem:[%s55 + $0x658] sm:$0xff]
        %v5160 = vld [vmem:[%s55 + $0x660] sm:$0xff]
        %v5161 = vld [vmem:[%s55 + $0x668] sm:$0xff]
        %v5162 = vld [vmem:[%s55 + $0x670] sm:$0xff]
        %v5163 = vld [vmem:[%s55 + $0x678] sm:$0xff]
        %v5164 = vld [vmem:[%s55 + $0x680] sm:$0xff]
        %v5165 = vld [vmem:[%s55 + $0x688] sm:$0xff]
        %v5166 = vld [vmem:[%s55 + $0x690] sm:$0xff]
        %v5167 = vld [vmem:[%s55 + $0x698] sm:$0xff]
        %v5168 = vld [vmem:[%s55 + $0x6a0] sm:$0xff]
        %v5169 = vld [vmem:[%s55 + $0x6a8] sm:$0xff]
        %v5170 = vld [vmem:[%s55 + $0x6b0] sm:$0xff]
        %v5171 = vld [vmem:[%s55 + $0x6b8] sm:$0xff]
        %v5172 = vld [vmem:[%s55 + $0x6c0] sm:$0xff]
        %v5173 = vld [vmem:[%s55 + $0x6c8] sm:$0xff]
        %v5174 = vld [vmem:[%s55 + $0x6d0] sm:$0xff]
        %v5175 = vld [vmem:[%s55 + $0x6d8] sm:$0xff]
        %v5176 = vld [vmem:[%s55 + $0x6e0] sm:$0xff]
        %v5177 = vld [vmem:[%s55 + $0x6e8] sm:$0xff]
        %v5178 = vld [vmem:[%s55 + $0x6f0] sm:$0xff]
        %v5179 = vld [vmem:[%s55 + $0x6f8] sm:$0xff]
        %v5180 = vld [vmem:[%s55 + $0x700] sm:$0xff]
        %v5181 = vld [vmem:[%s55 + $0x708] sm:$0xff]
        %v5182 = vld [vmem:[%s55 + $0x710] sm:$0xff]
        %v5183 = vld [vmem:[%s55 + $0x718] sm:$0xff]
        %v5184 = vld [vmem:[%s55 + $0x720] sm:$0xff]
        %v5185 = vld [vmem:[%s55 + $0x728] sm:$0xff]
        %v5186 = vld [vmem:[%s55 + $0x730] sm:$0xff]
        %v5187 = vld [vmem:[%s55 + $0x738] sm:$0xff]
        %v5188 = vld [vmem:[%s55 + $0x740] sm:$0xff]
        %v5189 = vld [vmem:[%s55 + $0x748] sm:$0xff]
        %v5190 = vld [vmem:[%s55 + $0x750] sm:$0xff]
        %v5191 = vld [vmem:[%s55 + $0x758] sm:$0xff]
        %v5192 = vld [vmem:[%s55 + $0x760] sm:$0xff]
        %v5193 = vld [vmem:[%s55 + $0x768] sm:$0xff]
        %v5194 = vld [vmem:[%s55 + $0x770] sm:$0xff]
        %v5195 = vld [vmem:[%s55 + $0x778] sm:$0xff]
        %v5196 = vld [vmem:[%s55 + $0x780] sm:$0xff]
        %v5197 = vld [vmem:[%s55 + $0x788] sm:$0xff]
        %v5198 = vld [vmem:[%s55 + $0x790] sm:$0xff]
        %v5199 = vld [vmem:[%s55 + $0x798] sm:$0xff]
        %v5200 = vld [vmem:[%s55 + $0x7a0] sm:$0xff]
        %v5201 = vld [vmem:[%s55 + $0x7a8] sm:$0xff]
        %v5202 = vld [vmem:[%s55 + $0x7b0] sm:$0xff]
        %v5203 = vld [vmem:[%s55 + $0x7b8] sm:$0xff]
        %v5204 = vld [vmem:[%s55 + $0x7c0] sm:$0xff]
        %v5205 = vld [vmem:[%s55 + $0x7c8] sm:$0xff]
        %v5206 = vld [vmem:[%s55 + $0x7d0] sm:$0xff]
        %v5207 = vld [vmem:[%s55 + $0x7d8] sm:$0xff]
        %v5208 = vld [vmem:[%s55 + $0x7e0] sm:$0xff]
        %v5209 = vld [vmem:[%s55 + $0x7e8] sm:$0xff]
        %v5210 = vld [vmem:[%s55 + $0x7f0] sm:$0xff]
        %v5211 = vld [vmem:[%s55 + $0x7f8] sm:$0xff]
        %v5212 = vld [vmem:[%s57] sm:$0x1]
        %v5214 = vperm.slane %v5212, 0
        %5216 = vmatpush.msra.mxu0 %v4971
        %5217 = vmatpush.msra.mxu0 %v4970
        %5218 = vmatpush.msra.mxu0 %v4969
        %5219 = vmatpush.msra.mxu0 %v4968
        %5220 = vmatpush.msra.mxu0 %v4967
        %5221 = vmatpush.msra.mxu0 %v4966
        %5222 = vmatpush.msra.mxu0 %v4965
        %5223 = vmatpush.msra.mxu0 %v4964
        %5224 = vmatpush.msra.mxu0 %v4963
        %5225 = vmatpush.msra.mxu0 %v4962
        %5226 = vmatpush.msra.mxu0 %v4961
        %5227 = vmatpush.msra.mxu0 %v4960
        %5228 = vmatpush.msra.mxu0 %v4959
        %5229 = vmatpush.msra.mxu0 %v4958
        %5230 = vmatpush.msra.mxu0 %v4957
        %5231 = vmatpush.msra.mxu0 %v4956
        %5232 = vmatmul.f32.gmra.mxu0 %v4940
        %v5233 = vpop.f32.mrf.mxu0
        %v5234 = vadd.f32 %v5214, %v5233
        %5235 = vdwg.mxu0
        %5236 = vmatpush.msra.mxu0 %v4987
        %5237 = vmatpush.msra.mxu0 %v4986
        %5238 = vmatpush.msra.mxu0 %v4985
        %5239 = vmatpush.msra.mxu0 %v4984
        %5240 = vmatpush.msra.mxu0 %v4983
        %5241 = vmatpush.msra.mxu0 %v4982
        %5242 = vmatpush.msra.mxu0 %v4981
        %5243 = vmatpush.msra.mxu0 %v4980
        %5244 = vmatpush.msra.mxu0 %v4979
        %5245 = vmatpush.msra.mxu0 %v4978
        %5246 = vmatpush.msra.mxu0 %v4977
        %5247 = vmatpush.msra.mxu0 %v4976
        %5248 = vmatpush.msra.mxu0 %v4975
        %5249 = vmatpush.msra.mxu0 %v4974
        %5250 = vmatpush.msra.mxu0 %v4973
        %5251 = vmatpush.msra.mxu0 %v4972
        %5252 = vmatmul.f32.gmra.mxu0 %v4941
        %v5253 = vpop.f32.mrf.mxu0
        %v5254 = vadd.f32 %v5234, %v5253
        %5255 = vdwg.mxu0
        %5256 = vmatpush.msra.mxu0 %v5003
        %5257 = vmatpush.msra.mxu0 %v5002
        %5258 = vmatpush.msra.mxu0 %v5001
        %5259 = vmatpush.msra.mxu0 %v5000
        %5260 = vmatpush.msra.mxu0 %v4999
        %5261 = vmatpush.msra.mxu0 %v4998
        %5262 = vmatpush.msra.mxu0 %v4997
        %5263 = vmatpush.msra.mxu0 %v4996
        %5264 = vmatpush.msra.mxu0 %v4995
        %5265 = vmatpush.msra.mxu0 %v4994
        %5266 = vmatpush.msra.mxu0 %v4993
        %5267 = vmatpush.msra.mxu0 %v4992
        %5268 = vmatpush.msra.mxu0 %v4991
        %5269 = vmatpush.msra.mxu0 %v4990
        %5270 = vmatpush.msra.mxu0 %v4989
        %5271 = vmatpush.msra.mxu0 %v4988
        %5272 = vmatmul.f32.gmra.mxu0 %v4942
        %v5273 = vpop.f32.mrf.mxu0
        %v5274 = vadd.f32 %v5254, %v5273
        %5275 = vdwg.mxu0
        %5276 = vmatpush.msra.mxu0 %v5019
        %5277 = vmatpush.msra.mxu0 %v5018
        %5278 = vmatpush.msra.mxu0 %v5017
        %5279 = vmatpush.msra.mxu0 %v5016
        %5280 = vmatpush.msra.mxu0 %v5015
        %5281 = vmatpush.msra.mxu0 %v5014
        %5282 = vmatpush.msra.mxu0 %v5013
        %5283 = vmatpush.msra.mxu0 %v5012
        %5284 = vmatpush.msra.mxu0 %v5011
        %5285 = vmatpush.msra.mxu0 %v5010
        %5286 = vmatpush.msra.mxu0 %v5009
        %5287 = vmatpush.msra.mxu0 %v5008
        %5288 = vmatpush.msra.mxu0 %v5007
        %5289 = vmatpush.msra.mxu0 %v5006
        %5290 = vmatpush.msra.mxu0 %v5005
        %5291 = vmatpush.msra.mxu0 %v5004
        %5292 = vmatmul.f32.gmra.mxu0 %v4943
        %v5293 = vpop.f32.mrf.mxu0
        %v5294 = vadd.f32 %v5274, %v5293
        %5295 = vdwg.mxu0
        %5296 = vmatpush.msra.mxu0 %v5035
        %5297 = vmatpush.msra.mxu0 %v5034
        %5298 = vmatpush.msra.mxu0 %v5033
        %5299 = vmatpush.msra.mxu0 %v5032
        %5300 = vmatpush.msra.mxu0 %v5031
        %5301 = vmatpush.msra.mxu0 %v5030
        %5302 = vmatpush.msra.mxu0 %v5029
        %5303 = vmatpush.msra.mxu0 %v5028
        %5304 = vmatpush.msra.mxu0 %v5027
        %5305 = vmatpush.msra.mxu0 %v5026
        %5306 = vmatpush.msra.mxu0 %v5025
        %5307 = vmatpush.msra.mxu0 %v5024
        %5308 = vmatpush.msra.mxu0 %v5023
        %5309 = vmatpush.msra.mxu0 %v5022
        %5310 = vmatpush.msra.mxu0 %v5021
        %5311 = vmatpush.msra.mxu0 %v5020
        %5312 = vmatmul.f32.gmra.mxu0 %v4944
        %v5313 = vpop.f32.mrf.mxu0
        %v5314 = vadd.f32 %v5294, %v5313
        %5315 = vdwg.mxu0
        %5316 = vmatpush.msra.mxu0 %v5051
        %5317 = vmatpush.msra.mxu0 %v5050
        %5318 = vmatpush.msra.mxu0 %v5049
        %5319 = vmatpush.msra.mxu0 %v5048
        %5320 = vmatpush.msra.mxu0 %v5047
        %5321 = vmatpush.msra.mxu0 %v5046
        %5322 = vmatpush.msra.mxu0 %v5045
        %5323 = vmatpush.msra.mxu0 %v5044
        %5324 = vmatpush.msra.mxu0 %v5043
        %5325 = vmatpush.msra.mxu0 %v5042
        %5326 = vmatpush.msra.mxu0 %v5041
        %5327 = vmatpush.msra.mxu0 %v5040
        %5328 = vmatpush.msra.mxu0 %v5039
        %5329 = vmatpush.msra.mxu0 %v5038
        %5330 = vmatpush.msra.mxu0 %v5037
        %5331 = vmatpush.msra.mxu0 %v5036
        %5332 = vmatmul.f32.gmra.mxu0 %v4945
        %v5333 = vpop.f32.mrf.mxu0
        %v5334 = vadd.f32 %v5314, %v5333
        %5335 = vdwg.mxu0
        %5336 = vmatpush.msra.mxu0 %v5067
        %5337 = vmatpush.msra.mxu0 %v5066
        %5338 = vmatpush.msra.mxu0 %v5065
        %5339 = vmatpush.msra.mxu0 %v5064
        %5340 = vmatpush.msra.mxu0 %v5063
        %5341 = vmatpush.msra.mxu0 %v5062
        %5342 = vmatpush.msra.mxu0 %v5061
        %5343 = vmatpush.msra.mxu0 %v5060
        %5344 = vmatpush.msra.mxu0 %v5059
        %5345 = vmatpush.msra.mxu0 %v5058
        %5346 = vmatpush.msra.mxu0 %v5057
        %5347 = vmatpush.msra.mxu0 %v5056
        %5348 = vmatpush.msra.mxu0 %v5055
        %5349 = vmatpush.msra.mxu0 %v5054
        %5350 = vmatpush.msra.mxu0 %v5053
        %5351 = vmatpush.msra.mxu0 %v5052
        %5352 = vmatmul.f32.gmra.mxu0 %v4946
        %v5353 = vpop.f32.mrf.mxu0
        %v5354 = vadd.f32 %v5334, %v5353
        %5355 = vdwg.mxu0
        %5356 = vmatpush.msra.mxu0 %v5083
        %5357 = vmatpush.msra.mxu0 %v5082
        %5358 = vmatpush.msra.mxu0 %v5081
        %5359 = vmatpush.msra.mxu0 %v5080
        %5360 = vmatpush.msra.mxu0 %v5079
        %5361 = vmatpush.msra.mxu0 %v5078
        %5362 = vmatpush.msra.mxu0 %v5077
        %5363 = vmatpush.msra.mxu0 %v5076
        %5364 = vmatpush.msra.mxu0 %v5075
        %5365 = vmatpush.msra.mxu0 %v5074
        %5366 = vmatpush.msra.mxu0 %v5073
        %5367 = vmatpush.msra.mxu0 %v5072
        %5368 = vmatpush.msra.mxu0 %v5071
        %5369 = vmatpush.msra.mxu0 %v5070
        %5370 = vmatpush.msra.mxu0 %v5069
        %5371 = vmatpush.msra.mxu0 %v5068
        %5372 = vmatmul.f32.gmra.mxu0 %v4947
        %v5373 = vpop.f32.mrf.mxu0
        %v5374 = vadd.f32 %v5354, %v5373
        %5375 = vdwg.mxu0
        %5376 = vmatpush.msra.mxu0 %v5099
        %5377 = vmatpush.msra.mxu0 %v5098
        %5378 = vmatpush.msra.mxu0 %v5097
        %5379 = vmatpush.msra.mxu0 %v5096
        %5380 = vmatpush.msra.mxu0 %v5095
        %5381 = vmatpush.msra.mxu0 %v5094
        %5382 = vmatpush.msra.mxu0 %v5093
        %5383 = vmatpush.msra.mxu0 %v5092
        %5384 = vmatpush.msra.mxu0 %v5091
        %5385 = vmatpush.msra.mxu0 %v5090
        %5386 = vmatpush.msra.mxu0 %v5089
        %5387 = vmatpush.msra.mxu0 %v5088
        %5388 = vmatpush.msra.mxu0 %v5087
        %5389 = vmatpush.msra.mxu0 %v5086
        %5390 = vmatpush.msra.mxu0 %v5085
        %5391 = vmatpush.msra.mxu0 %v5084
        %5392 = vmatmul.f32.gmra.mxu0 %v4948
        %v5393 = vpop.f32.mrf.mxu0
        %v5394 = vadd.f32 %v5374, %v5393
        %5395 = vdwg.mxu0
        %5396 = vmatpush.msra.mxu0 %v5115
        %5397 = vmatpush.msra.mxu0 %v5114
        %5398 = vmatpush.msra.mxu0 %v5113
        %5399 = vmatpush.msra.mxu0 %v5112
        %5400 = vmatpush.msra.mxu0 %v5111
        %5401 = vmatpush.msra.mxu0 %v5110
        %5402 = vmatpush.msra.mxu0 %v5109
        %5403 = vmatpush.msra.mxu0 %v5108
        %5404 = vmatpush.msra.mxu0 %v5107
        %5405 = vmatpush.msra.mxu0 %v5106
        %5406 = vmatpush.msra.mxu0 %v5105
        %5407 = vmatpush.msra.mxu0 %v5104
        %5408 = vmatpush.msra.mxu0 %v5103
        %5409 = vmatpush.msra.mxu0 %v5102
        %5410 = vmatpush.msra.mxu0 %v5101
        %5411 = vmatpush.msra.mxu0 %v5100
        %5412 = vmatmul.f32.gmra.mxu0 %v4949
        %v5413 = vpop.f32.mrf.mxu0
        %v5414 = vadd.f32 %v5394, %v5413
        %5415 = vdwg.mxu0
        %5416 = vmatpush.msra.mxu0 %v5131
        %5417 = vmatpush.msra.mxu0 %v5130
        %5418 = vmatpush.msra.mxu0 %v5129
        %5419 = vmatpush.msra.mxu0 %v5128
        %5420 = vmatpush.msra.mxu0 %v5127
        %5421 = vmatpush.msra.mxu0 %v5126
        %5422 = vmatpush.msra.mxu0 %v5125
        %5423 = vmatpush.msra.mxu0 %v5124
        %5424 = vmatpush.msra.mxu0 %v5123
        %5425 = vmatpush.msra.mxu0 %v5122
        %5426 = vmatpush.msra.mxu0 %v5121
        %5427 = vmatpush.msra.mxu0 %v5120
        %5428 = vmatpush.msra.mxu0 %v5119
        %5429 = vmatpush.msra.mxu0 %v5118
        %5430 = vmatpush.msra.mxu0 %v5117
        %5431 = vmatpush.msra.mxu0 %v5116
        %5432 = vmatmul.f32.gmra.mxu0 %v4950
        %v5433 = vpop.f32.mrf.mxu0
        %v5434 = vadd.f32 %v5414, %v5433
        %5435 = vdwg.mxu0
        %5436 = vmatpush.msra.mxu0 %v5147
        %5437 = vmatpush.msra.mxu0 %v5146
        %5438 = vmatpush.msra.mxu0 %v5145
        %5439 = vmatpush.msra.mxu0 %v5144
        %5440 = vmatpush.msra.mxu0 %v5143
        %5441 = vmatpush.msra.mxu0 %v5142
        %5442 = vmatpush.msra.mxu0 %v5141
        %5443 = vmatpush.msra.mxu0 %v5140
        %5444 = vmatpush.msra.mxu0 %v5139
        %5445 = vmatpush.msra.mxu0 %v5138
        %5446 = vmatpush.msra.mxu0 %v5137
        %5447 = vmatpush.msra.mxu0 %v5136
        %5448 = vmatpush.msra.mxu0 %v5135
        %5449 = vmatpush.msra.mxu0 %v5134
        %5450 = vmatpush.msra.mxu0 %v5133
        %5451 = vmatpush.msra.mxu0 %v5132
        %5452 = vmatmul.f32.gmra.mxu0 %v4951
        %v5453 = vpop.f32.mrf.mxu0
        %v5454 = vadd.f32 %v5434, %v5453
        %5455 = vdwg.mxu0
        %5456 = vmatpush.msra.mxu0 %v5163
        %5457 = vmatpush.msra.mxu0 %v5162
        %5458 = vmatpush.msra.mxu0 %v5161
        %5459 = vmatpush.msra.mxu0 %v5160
        %5460 = vmatpush.msra.mxu0 %v5159
        %5461 = vmatpush.msra.mxu0 %v5158
        %5462 = vmatpush.msra.mxu0 %v5157
        %5463 = vmatpush.msra.mxu0 %v5156
        %5464 = vmatpush.msra.mxu0 %v5155
        %5465 = vmatpush.msra.mxu0 %v5154
        %5466 = vmatpush.msra.mxu0 %v5153
        %5467 = vmatpush.msra.mxu0 %v5152
        %5468 = vmatpush.msra.mxu0 %v5151
        %5469 = vmatpush.msra.mxu0 %v5150
        %5470 = vmatpush.msra.mxu0 %v5149
        %5471 = vmatpush.msra.mxu0 %v5148
        %5472 = vmatmul.f32.gmra.mxu0 %v4952
        %v5473 = vpop.f32.mrf.mxu0
        %v5474 = vadd.f32 %v5454, %v5473
        %5475 = vdwg.mxu0
        %5476 = vmatpush.msra.mxu0 %v5179
        %5477 = vmatpush.msra.mxu0 %v5178
        %5478 = vmatpush.msra.mxu0 %v5177
        %5479 = vmatpush.msra.mxu0 %v5176
        %5480 = vmatpush.msra.mxu0 %v5175
        %5481 = vmatpush.msra.mxu0 %v5174
        %5482 = vmatpush.msra.mxu0 %v5173
        %5483 = vmatpush.msra.mxu0 %v5172
        %5484 = vmatpush.msra.mxu0 %v5171
        %5485 = vmatpush.msra.mxu0 %v5170
        %5486 = vmatpush.msra.mxu0 %v5169
        %5487 = vmatpush.msra.mxu0 %v5168
        %5488 = vmatpush.msra.mxu0 %v5167
        %5489 = vmatpush.msra.mxu0 %v5166
        %5490 = vmatpush.msra.mxu0 %v5165
        %5491 = vmatpush.msra.mxu0 %v5164
        %5492 = vmatmul.f32.gmra.mxu0 %v4953
        %v5493 = vpop.f32.mrf.mxu0
        %v5494 = vadd.f32 %v5474, %v5493
        %5495 = vdwg.mxu0
        %5496 = vmatpush.msra.mxu0 %v5195
        %5497 = vmatpush.msra.mxu0 %v5194
        %5498 = vmatpush.msra.mxu0 %v5193
        %5499 = vmatpush.msra.mxu0 %v5192
        %5500 = vmatpush.msra.mxu0 %v5191
        %5501 = vmatpush.msra.mxu0 %v5190
        %5502 = vmatpush.msra.mxu0 %v5189
        %5503 = vmatpush.msra.mxu0 %v5188
        %5504 = vmatpush.msra.mxu0 %v5187
        %5505 = vmatpush.msra.mxu0 %v5186
        %5506 = vmatpush.msra.mxu0 %v5185
        %5507 = vmatpush.msra.mxu0 %v5184
        %5508 = vmatpush.msra.mxu0 %v5183
        %5509 = vmatpush.msra.mxu0 %v5182
        %5510 = vmatpush.msra.mxu0 %v5181
        %5511 = vmatpush.msra.mxu0 %v5180
        %5512 = vmatmul.f32.gmra.mxu0 %v4954
        %v5513 = vpop.f32.mrf.mxu0
        %v5514 = vadd.f32 %v5494, %v5513
        %5515 = vdwg.mxu0
        %5516 = vmatpush.msra.mxu0 %v5211
        %5517 = vmatpush.msra.mxu0 %v5210
        %5518 = vmatpush.msra.mxu0 %v5209
        %5519 = vmatpush.msra.mxu0 %v5208
        %5520 = vmatpush.msra.mxu0 %v5207
        %5521 = vmatpush.msra.mxu0 %v5206
        %5522 = vmatpush.msra.mxu0 %v5205
        %5523 = vmatpush.msra.mxu0 %v5204
        %5524 = vmatpush.msra.mxu0 %v5203
        %5525 = vmatpush.msra.mxu0 %v5202
        %5526 = vmatpush.msra.mxu0 %v5201
        %5527 = vmatpush.msra.mxu0 %v5200
        %5528 = vmatpush.msra.mxu0 %v5199
        %5529 = vmatpush.msra.mxu0 %v5198
        %5530 = vmatpush.msra.mxu0 %v5197
        %5531 = vmatpush.msra.mxu0 %v5196
        %5532 = vmatmul.f32.gmra.mxu0 %v4955
        %v5533 = vpop.f32.mrf.mxu0
        %v5534 = vadd.f32 %v5514, %v5533
        %5535 = vdwg.mxu0
        %v5536 = vadd.f32 %v4500, %v5534
        %v5537 = vld [vmem:[%s63] sm:$0x1]
        %v5538 = vld [vmem:[%s65] sm:$0x1]
        %v5539 = vsel %vm1579, %v5536, 0.0
        %5540 = vadd.xlane.f32.xlu0 %v5539
        %v5541 = vpop.xlane.xlu0 %5540
        %v5542 = vmul.f32 %v5541, %v2478
        %v5543 = vsub.f32 %v5536, %v5542
        %v5544 = vmul.f32 %v5543, %v5543
        %v5545 = vsel %vm1579, %v5544, 0.0
        %5546 = vadd.xlane.f32.xlu0 %v5545
        %v5547 = vpop.xlane.xlu0 %5546
        %v5548 = vmul.f32 %v5547, %v2478
        %v5549 = vadd.f32 %v5548, 1e-05
        %v5550 = vrsqrt.pop %v5549
        %v5551 = vmul.f32 %v5550, %v5549
        %v5552 = vmul.f32 %v5551, %v5550
        %v5553 = vmul.f32 0.5, %v5552
        %v5554 = vsub.f32 1.5, %v5553
        %v5555 = vmul.f32 %v5550, %v5554
        %vm5556 = vweird.f32 %v5549
        %vm5557 = vweird.f32 %v5550
        %vm5558 = vmor %vm5556, %vm5557
        %v5559 = vsel %vm5558, %v5550, %v5555
        %v5560 = vmul.f32 %v5543, %v5559
        %v5562 = vperm.slane %v5537, 0
        %v5564 = vmul.f32 %v5560, %v5562
        %v5566 = vperm.slane %v5538, 0
        %v5568 = vadd.f32 %v5564, %v5566
        %v5569 = vld [vmem:[%s67] sm:$0xff]
        %v5570 = vld [vmem:[%s67 + $0x8] sm:$0xff]
        %v5571 = vld [vmem:[%s67 + $0x10] sm:$0xff]
        %v5572 = vld [vmem:[%s67 + $0x18] sm:$0xff]
        %v5573 = vld [vmem:[%s67 + $0x20] sm:$0xff]
        %v5574 = vld [vmem:[%s69] sm:$0x1]
        %v5576 = vperm.slane %v5574, 0
        %v5579 = vsel %vm1579, %v5568, 0
        %5581 = vmatpush.msra.mxu0 0.0
        %5582 = vmatpush.msra.mxu0 0.0
        %5583 = vmatpush.msra.mxu0 0.0
        %5584 = vmatpush.msra.mxu0 0.0
        %5585 = vmatpush.msra.mxu0 0.0
        %5586 = vmatpush.msra.mxu0 0.0
        %5587 = vmatpush.msra.mxu0 0.0
        %5588 = vmatpush.msra.mxu0 0.0
        %5589 = vmatpush.msra.mxu0 0.0
        %5590 = vmatpush.msra.mxu0 0.0
        %5591 = vmatpush.msra.mxu0 0.0
        %5592 = vmatpush.msra.mxu0 %v5573
        %5593 = vmatpush.msra.mxu0 %v5572
        %5594 = vmatpush.msra.mxu0 %v5571
        %5595 = vmatpush.msra.mxu0 %v5570
        %5596 = vmatpush.msra.mxu0 %v5569
        %5597 = vmatmul.f32.gmra.mxu0 %v5579
        %v5598 = vpop.f32.mrf.mxu0
        %v5599 = vadd.f32 %v5576, %v5598
        %5600 = vdwg.mxu0
        %v5601 = vld [vmem:[%s71] sm:$0xff]
        %v5602 = vld [vmem:[%s71 + $0x8] sm:$0xff]
        %v5603 = vld [vmem:[%s71 + $0x10] sm:$0xff]
        %v5604 = vld [vmem:[%s71 + $0x18] sm:$0xff]
        %v5605 = vld [vmem:[%s71 + $0x20] sm:$0xff]
        %v5606 = vld [vmem:[%s73] sm:$0x1]
        %v5608 = vperm.slane %v5606, 0
        %5610 = vmatpush.msra.mxu0 0.0
        %5611 = vmatpush.msra.mxu0 0.0
        %5612 = vmatpush.msra.mxu0 0.0
        %5613 = vmatpush.msra.mxu0 0.0
        %5614 = vmatpush.msra.mxu0 0.0
        %5615 = vmatpush.msra.mxu0 0.0
        %5616 = vmatpush.msra.mxu0 0.0
        %5617 = vmatpush.msra.mxu0 0.0
        %5618 = vmatpush.msra.mxu0 0.0
        %5619 = vmatpush.msra.mxu0 0.0
        %5620 = vmatpush.msra.mxu0 0.0
        %5621 = vmatpush.msra.mxu0 %v5605
        %5622 = vmatpush.msra.mxu0 %v5604
        %5623 = vmatpush.msra.mxu0 %v5603
        %5624 = vmatpush.msra.mxu0 %v5602
        %5625 = vmatpush.msra.mxu0 %v5601
        %5626 = vmatmul.f32.gmra.mxu0 %v5579
        %v5627 = vpop.f32.mrf.mxu0
        %v5628 = vadd.f32 %v5608, %v5627
        %5629 = vdwg.mxu0
        %v5630 = vld [vmem:[%s75] sm:$0xff]
        %v5631 = vld [vmem:[%s75 + $0x8] sm:$0xff]
        %v5632 = vld [vmem:[%s75 + $0x10] sm:$0xff]
        %v5633 = vld [vmem:[%s75 + $0x18] sm:$0xff]
        %v5634 = vld [vmem:[%s75 + $0x20] sm:$0xff]
        %v5635 = vld [vmem:[%s77] sm:$0x1]
        %v5637 = vperm.slane %v5635, 0
        %5639 = vmatpush.msra.mxu0 0.0
        %5640 = vmatpush.msra.mxu0 0.0
        %5641 = vmatpush.msra.mxu0 0.0
        %5642 = vmatpush.msra.mxu0 0.0
        %5643 = vmatpush.msra.mxu0 0.0
        %5644 = vmatpush.msra.mxu0 0.0
        %5645 = vmatpush.msra.mxu0 0.0
        %5646 = vmatpush.msra.mxu0 0.0
        %5647 = vmatpush.msra.mxu0 0.0
        %5648 = vmatpush.msra.mxu0 0.0
        %5649 = vmatpush.msra.mxu0 0.0
        %5650 = vmatpush.msra.mxu0 %v5634
        %5651 = vmatpush.msra.mxu0 %v5633
        %5652 = vmatpush.msra.mxu0 %v5632
        %5653 = vmatpush.msra.mxu0 %v5631
        %5654 = vmatpush.msra.mxu0 %v5630
        %5655 = vmatmul.f32.gmra.mxu0 %v5579
        %v5656 = vpop.f32.mrf.mxu0
        %v5657 = vadd.f32 %v5637, %v5656
        %5658 = vdwg.mxu0
        %v5659 = vld [vmem:[%s79] sm:$0xff]
        %v5661 = vsel %vm1662, %v5599, 0
        %v5664 = vsel %vm1662, %v5628, 0
        %5666 = vmatpush.xpose.msra.mxu0 0.0
        %5667 = vmatpush.xpose.msra.mxu0 0.0
        %5668 = vmatpush.xpose.msra.mxu0 0.0
        %5669 = vmatpush.xpose.msra.mxu0 0.0
        %5670 = vmatpush.xpose.msra.mxu0 0.0
        %5671 = vmatpush.xpose.msra.mxu0 0.0
        %5672 = vmatpush.xpose.msra.mxu0 0.0
        %5673 = vmatpush.xpose.msra.mxu0 0.0
        %5674 = vmatpush.xpose.msra.mxu0 0.0
        %5675 = vmatpush.xpose.msra.mxu0 0.0
        %5676 = vmatpush.xpose.msra.mxu0 0.0
        %5677 = vmatpush.xpose.msra.mxu0 0.0
        %5678 = vmatpush.xpose.msra.mxu0 0.0
        %5679 = vmatpush.xpose.msra.mxu0 0.0
        %5680 = vmatpush.xpose.msra.mxu0 0.0
        %5681 = vmatpush.xpose.msra.mxu0 %v5664
        %5682 = vmatmul.f32.gmra.mxu0 %v5661
        %v5683 = vpop.f32.mrf.mxu0
        %v5684 = vadd.f32 0.0, %v5683
        %5685 = vdwg.mxu0
        %v5686 = vsel %vm1662, %v5684, -inf
        %5687 = vmax.xlane.f32.xlu0 %v5686
        %v5688 = vpop.xlane.xlu0 %5687
        %v5689 = vsub.f32 %v5684, %v5688
        %v5690 = vmul.f32 %v5689, 1.442695
        %v5691 = vpow.pop %v5690
        %v5692 = vsel %vm1662, %v5691, 0.0
        %5693 = vadd.xlane.f32.xlu0 %v5692
        %v5694 = vpop.xlane.xlu0 %5693
        %v5695 = vrcp.pop %v5694
        %v5696 = vmul.f32 %v5691, %v5695
        %v5698 = vsel %vm1662, %v5696, 0
        %5700 = vmatpush.msra.mxu0 0.0
        %5701 = vmatpush.msra.mxu0 0.0
        %5702 = vmatpush.msra.mxu0 0.0
        %5703 = vmatpush.msra.mxu0 0.0
        %5704 = vmatpush.msra.mxu0 0.0
        %5705 = vmatpush.msra.mxu0 0.0
        %5706 = vmatpush.msra.mxu0 0.0
        %5707 = vmatpush.msra.mxu0 0.0
        %5708 = vmatpush.msra.mxu0 0.0
        %5709 = vmatpush.msra.mxu0 0.0
        %5710 = vmatpush.msra.mxu0 0.0
        %5711 = vmatpush.msra.mxu0 0.0
        %5712 = vmatpush.msra.mxu0 0.0
        %5713 = vmatpush.msra.mxu0 0.0
        %5714 = vmatpush.msra.mxu0 0.0
        %5715 = vmatpush.msra.mxu0 %v5657
        %5716 = vmatmul.f32.gmra.mxu0 %v5698
        %v5717 = vpop.f32.mrf.mxu0
        %v5718 = vadd.f32 0.0, %v5717
        %5719 = vdwg.mxu0
        %s5720 = scalar_lea.vmem %s67, 40
        %v5721 = vld [vmem:[%s5720] sm:$0xff]
        %v5722 = vld [vmem:[%s5720 + $0x8] sm:$0xff]
        %v5723 = vld [vmem:[%s5720 + $0x10] sm:$0xff]
        %v5724 = vld [vmem:[%s5720 + $0x18] sm:$0xff]
        %v5725 = vld [vmem:[%s5720 + $0x20] sm:$0xff]
        %s5726 = scalar_lea.vmem %s69, 1
        %v5727 = vld [vmem:[%s5726] sm:$0x1]
        %v5729 = vperm.slane %v5727, 0
        %5731 = vmatpush.msra.mxu0 0.0
        %5732 = vmatpush.msra.mxu0 0.0
        %5733 = vmatpush.msra.mxu0 0.0
        %5734 = vmatpush.msra.mxu0 0.0
        %5735 = vmatpush.msra.mxu0 0.0
        %5736 = vmatpush.msra.mxu0 0.0
        %5737 = vmatpush.msra.mxu0 0.0
        %5738 = vmatpush.msra.mxu0 0.0
        %5739 = vmatpush.msra.mxu0 0.0
        %5740 = vmatpush.msra.mxu0 0.0
        %5741 = vmatpush.msra.mxu0 0.0
        %5742 = vmatpush.msra.mxu0 %v5725
        %5743 = vmatpush.msra.mxu0 %v5724
        %5744 = vmatpush.msra.mxu0 %v5723
        %5745 = vmatpush.msra.mxu0 %v5722
        %5746 = vmatpush.msra.mxu0 %v5721
        %5747 = vmatmul.f32.gmra.mxu0 %v5579
        %v5748 = vpop.f32.mrf.mxu0
        %v5749 = vadd.f32 %v5729, %v5748
        %5750 = vdwg.mxu0
        %s5751 = scalar_lea.vmem %s71, 40
        %v5752 = vld [vmem:[%s5751] sm:$0xff]
        %v5753 = vld [vmem:[%s5751 + $0x8] sm:$0xff]
        %v5754 = vld [vmem:[%s5751 + $0x10] sm:$0xff]
        %v5755 = vld [vmem:[%s5751 + $0x18] sm:$0xff]
        %v5756 = vld [vmem:[%s5751 + $0x20] sm:$0xff]
        %s5757 = scalar_lea.vmem %s73, 1
        %v5758 = vld [vmem:[%s5757] sm:$0x1]
        %v5760 = vperm.slane %v5758, 0
        %5762 = vmatpush.msra.mxu0 0.0
        %5763 = vmatpush.msra.mxu0 0.0
        %5764 = vmatpush.msra.mxu0 0.0
        %5765 = vmatpush.msra.mxu0 0.0
        %5766 = vmatpush.msra.mxu0 0.0
        %5767 = vmatpush.msra.mxu0 0.0
        %5768 = vmatpush.msra.mxu0 0.0
        %5769 = vmatpush.msra.mxu0 0.0
        %5770 = vmatpush.msra.mxu0 0.0
        %5771 = vmatpush.msra.mxu0 0.0
        %5772 = vmatpush.msra.mxu0 0.0
        %5773 = vmatpush.msra.mxu0 %v5756
        %5774 = vmatpush.msra.mxu0 %v5755
        %5775 = vmatpush.msra.mxu0 %v5754
        %5776 = vmatpush.msra.mxu0 %v5753
        %5777 = vmatpush.msra.mxu0 %v5752
        %5778 = vmatmul.f32.gmra.mxu0 %v5579
        %v5779 = vpop.f32.mrf.mxu0
        %v5780 = vadd.f32 %v5760, %v5779
        %5781 = vdwg.mxu0
        %s5782 = scalar_lea.vmem %s75, 40
        %v5783 = vld [vmem:[%s5782] sm:$0xff]
        %v5784 = vld [vmem:[%s5782 + $0x8] sm:$0xff]
        %v5785 = vld [vmem:[%s5782 + $0x10] sm:$0xff]
        %v5786 = vld [vmem:[%s5782 + $0x18] sm:$0xff]
        %v5787 = vld [vmem:[%s5782 + $0x20] sm:$0xff]
        %s5788 = scalar_lea.vmem %s77, 1
        %v5789 = vld [vmem:[%s5788] sm:$0x1]
        %v5791 = vperm.slane %v5789, 0
        %5793 = vmatpush.msra.mxu0 0.0
        %5794 = vmatpush.msra.mxu0 0.0
        %5795 = vmatpush.msra.mxu0 0.0
        %5796 = vmatpush.msra.mxu0 0.0
        %5797 = vmatpush.msra.mxu0 0.0
        %5798 = vmatpush.msra.mxu0 0.0
        %5799 = vmatpush.msra.mxu0 0.0
        %5800 = vmatpush.msra.mxu0 0.0
        %5801 = vmatpush.msra.mxu0 0.0
        %5802 = vmatpush.msra.mxu0 0.0
        %5803 = vmatpush.msra.mxu0 0.0
        %5804 = vmatpush.msra.mxu0 %v5787
        %5805 = vmatpush.msra.mxu0 %v5786
        %5806 = vmatpush.msra.mxu0 %v5785
        %5807 = vmatpush.msra.mxu0 %v5784
        %5808 = vmatpush.msra.mxu0 %v5783
        %5809 = vmatmul.f32.gmra.mxu0 %v5579
        %v5810 = vpop.f32.mrf.mxu0
        %v5811 = vadd.f32 %v5791, %v5810
        %5812 = vdwg.mxu0
        %s5813 = scalar_lea.vmem %s79, 8
        %v5814 = vld [vmem:[%s5813] sm:$0xff]
        %v5816 = vsel %vm1662, %v5749, 0
        %v5819 = vsel %vm1662, %v5780, 0
        %5821 = vmatpush.xpose.msra.mxu0 0.0
        %5822 = vmatpush.xpose.msra.mxu0 0.0
        %5823 = vmatpush.xpose.msra.mxu0 0.0
        %5824 = vmatpush.xpose.msra.mxu0 0.0
        %5825 = vmatpush.xpose.msra.mxu0 0.0
        %5826 = vmatpush.xpose.msra.mxu0 0.0
        %5827 = vmatpush.xpose.msra.mxu0 0.0
        %5828 = vmatpush.xpose.msra.mxu0 0.0
        %5829 = vmatpush.xpose.msra.mxu0 0.0
        %5830 = vmatpush.xpose.msra.mxu0 0.0
        %5831 = vmatpush.xpose.msra.mxu0 0.0
        %5832 = vmatpush.xpose.msra.mxu0 0.0
        %5833 = vmatpush.xpose.msra.mxu0 0.0
        %5834 = vmatpush.xpose.msra.mxu0 0.0
        %5835 = vmatpush.xpose.msra.mxu0 0.0
        %5836 = vmatpush.xpose.msra.mxu0 %v5819
        %5837 = vmatmul.f32.gmra.mxu0 %v5816
        %v5838 = vpop.f32.mrf.mxu0
        %v5839 = vadd.f32 0.0, %v5838
        %5840 = vdwg.mxu0
        %v5841 = vsel %vm1662, %v5839, -inf
        %5842 = vmax.xlane.f32.xlu0 %v5841
        %v5843 = vpop.xlane.xlu0 %5842
        %v5844 = vsub.f32 %v5839, %v5843
        %v5845 = vmul.f32 %v5844, 1.442695
        %v5846 = vpow.pop %v5845
        %v5847 = vsel %vm1662, %v5846, 0.0
        %5848 = vadd.xlane.f32.xlu0 %v5847
        %v5849 = vpop.xlane.xlu0 %5848
        %v5850 = vrcp.pop %v5849
        %v5851 = vmul.f32 %v5846, %v5850
        %v5853 = vsel %vm1662, %v5851, 0
        %5855 = vmatpush.msra.mxu0 0.0
        %5856 = vmatpush.msra.mxu0 0.0
        %5857 = vmatpush.msra.mxu0 0.0
        %5858 = vmatpush.msra.mxu0 0.0
        %5859 = vmatpush.msra.mxu0 0.0
        %5860 = vmatpush.msra.mxu0 0.0
        %5861 = vmatpush.msra.mxu0 0.0
        %5862 = vmatpush.msra.mxu0 0.0
        %5863 = vmatpush.msra.mxu0 0.0
        %5864 = vmatpush.msra.mxu0 0.0
        %5865 = vmatpush.msra.mxu0 0.0
        %5866 = vmatpush.msra.mxu0 0.0
        %5867 = vmatpush.msra.mxu0 0.0
        %5868 = vmatpush.msra.mxu0 0.0
        %5869 = vmatpush.msra.mxu0 0.0
        %5870 = vmatpush.msra.mxu0 %v5811
        %5871 = vmatmul.f32.gmra.mxu0 %v5853
        %v5872 = vpop.f32.mrf.mxu0
        %v5873 = vadd.f32 0.0, %v5872
        %5874 = vdwg.mxu0
        %v5876 = vsel %vm1662, %v5873, 0
        %5878 = vmatpush.msra.mxu0 0.0
        %5879 = vmatpush.msra.mxu0 0.0
        %5880 = vmatpush.msra.mxu0 0.0
        %5881 = vmatpush.msra.mxu0 0.0
        %5882 = vmatpush.msra.mxu0 0.0
        %5883 = vmatpush.msra.mxu0 0.0
        %5884 = vmatpush.msra.mxu0 0.0
        %5885 = vmatpush.msra.mxu0 0.0
        %5886 = vmatpush.msra.mxu0 0.0
        %5887 = vmatpush.msra.mxu0 0.0
        %5888 = vmatpush.msra.mxu0 0.0
        %5889 = vmatpush.msra.mxu0 0.0
        %5890 = vmatpush.msra.mxu0 0.0
        %5891 = vmatpush.msra.mxu0 0.0
        %5892 = vmatpush.msra.mxu0 0.0
        %5893 = vmatpush.msra.mxu0 %v5814
        %5894 = vmatmul.f32.gmra.mxu0 %v5876
        %v5895 = vpop.f32.mrf.mxu0
        %v5896 = vadd.f32 0.0, %v5895
        %5897 = vdwg.mxu0
        %v5899 = vsel %vm1662, %v5718, 0
        %5901 = vmatpush.msra.mxu0 0.0
        %5902 = vmatpush.msra.mxu0 0.0
        %5903 = vmatpush.msra.mxu0 0.0
        %5904 = vmatpush.msra.mxu0 0.0
        %5905 = vmatpush.msra.mxu0 0.0
        %5906 = vmatpush.msra.mxu0 0.0
        %5907 = vmatpush.msra.mxu0 0.0
        %5908 = vmatpush.msra.mxu0 0.0
        %5909 = vmatpush.msra.mxu0 0.0
        %5910 = vmatpush.msra.mxu0 0.0
        %5911 = vmatpush.msra.mxu0 0.0
        %5912 = vmatpush.msra.mxu0 0.0
        %5913 = vmatpush.msra.mxu0 0.0
        %5914 = vmatpush.msra.mxu0 0.0
        %5915 = vmatpush.msra.mxu0 0.0
        %5916 = vmatpush.msra.mxu0 %v5659
        %5917 = vmatmul.f32.gmra.mxu0 %v5899
        %v5918 = vpop.f32.mrf.mxu0
        %v5919 = vadd.f32 %v5896, %v5918
        %5920 = vdwg.mxu0
        %s5921 = scalar_lea.vmem %s67, 80
        %v5922 = vld [vmem:[%s5921] sm:$0xff]
        %v5923 = vld [vmem:[%s5921 + $0x8] sm:$0xff]
        %v5924 = vld [vmem:[%s5921 + $0x10] sm:$0xff]
        %v5925 = vld [vmem:[%s5921 + $0x18] sm:$0xff]
        %v5926 = vld [vmem:[%s5921 + $0x20] sm:$0xff]
        %s5927 = scalar_lea.vmem %s69, 2
        %v5928 = vld [vmem:[%s5927] sm:$0x1]
        %v5930 = vperm.slane %v5928, 0
        %5932 = vmatpush.msra.mxu0 0.0
        %5933 = vmatpush.msra.mxu0 0.0
        %5934 = vmatpush.msra.mxu0 0.0
        %5935 = vmatpush.msra.mxu0 0.0
        %5936 = vmatpush.msra.mxu0 0.0
        %5937 = vmatpush.msra.mxu0 0.0
        %5938 = vmatpush.msra.mxu0 0.0
        %5939 = vmatpush.msra.mxu0 0.0
        %5940 = vmatpush.msra.mxu0 0.0
        %5941 = vmatpush.msra.mxu0 0.0
        %5942 = vmatpush.msra.mxu0 0.0
        %5943 = vmatpush.msra.mxu0 %v5926
        %5944 = vmatpush.msra.mxu0 %v5925
        %5945 = vmatpush.msra.mxu0 %v5924
        %5946 = vmatpush.msra.mxu0 %v5923
        %5947 = vmatpush.msra.mxu0 %v5922
        %5948 = vmatmul.f32.gmra.mxu0 %v5579
        %v5949 = vpop.f32.mrf.mxu0
        %v5950 = vadd.f32 %v5930, %v5949
        %5951 = vdwg.mxu0
        %s5952 = scalar_lea.vmem %s71, 80
        %v5953 = vld [vmem:[%s5952] sm:$0xff]
        %v5954 = vld [vmem:[%s5952 + $0x8] sm:$0xff]
        %v5955 = vld [vmem:[%s5952 + $0x10] sm:$0xff]
        %v5956 = vld [vmem:[%s5952 + $0x18] sm:$0xff]
        %v5957 = vld [vmem:[%s5952 + $0x20] sm:$0xff]
        %s5958 = scalar_lea.vmem %s73, 2
        %v5959 = vld [vmem:[%s5958] sm:$0x1]
        %v5961 = vperm.slane %v5959, 0
        %5963 = vmatpush.msra.mxu0 0.0
        %5964 = vmatpush.msra.mxu0 0.0
        %5965 = vmatpush.msra.mxu0 0.0
        %5966 = vmatpush.msra.mxu0 0.0
        %5967 = vmatpush.msra.mxu0 0.0
        %5968 = vmatpush.msra.mxu0 0.0
        %5969 = vmatpush.msra.mxu0 0.0
        %5970 = vmatpush.msra.mxu0 0.0
        %5971 = vmatpush.msra.mxu0 0.0
        %5972 = vmatpush.msra.mxu0 0.0
        %5973 = vmatpush.msra.mxu0 0.0
        %5974 = vmatpush.msra.mxu0 %v5957
        %5975 = vmatpush.msra.mxu0 %v5956
        %5976 = vmatpush.msra.mxu0 %v5955
        %5977 = vmatpush.msra.mxu0 %v5954
        %5978 = vmatpush.msra.mxu0 %v5953
        %5979 = vmatmul.f32.gmra.mxu0 %v5579
        %v5980 = vpop.f32.mrf.mxu0
        %v5981 = vadd.f32 %v5961, %v5980
        %5982 = vdwg.mxu0
        %s5983 = scalar_lea.vmem %s75, 80
        %v5984 = vld [vmem:[%s5983] sm:$0xff]
        %v5985 = vld [vmem:[%s5983 + $0x8] sm:$0xff]
        %v5986 = vld [vmem:[%s5983 + $0x10] sm:$0xff]
        %v5987 = vld [vmem:[%s5983 + $0x18] sm:$0xff]
        %v5988 = vld [vmem:[%s5983 + $0x20] sm:$0xff]
        %s5989 = scalar_lea.vmem %s77, 2
        %v5990 = vld [vmem:[%s5989] sm:$0x1]
        %v5992 = vperm.slane %v5990, 0
        %5994 = vmatpush.msra.mxu0 0.0
        %5995 = vmatpush.msra.mxu0 0.0
        %5996 = vmatpush.msra.mxu0 0.0
        %5997 = vmatpush.msra.mxu0 0.0
        %5998 = vmatpush.msra.mxu0 0.0
        %5999 = vmatpush.msra.mxu0 0.0
        %6000 = vmatpush.msra.mxu0 0.0
        %6001 = vmatpush.msra.mxu0 0.0
        %6002 = vmatpush.msra.mxu0 0.0
        %6003 = vmatpush.msra.mxu0 0.0
        %6004 = vmatpush.msra.mxu0 0.0
        %6005 = vmatpush.msra.mxu0 %v5988
        %6006 = vmatpush.msra.mxu0 %v5987
        %6007 = vmatpush.msra.mxu0 %v5986
        %6008 = vmatpush.msra.mxu0 %v5985
        %6009 = vmatpush.msra.mxu0 %v5984
        %6010 = vmatmul.f32.gmra.mxu0 %v5579
        %v6011 = vpop.f32.mrf.mxu0
        %v6012 = vadd.f32 %v5992, %v6011
        %6013 = vdwg.mxu0
        %s6014 = scalar_lea.vmem %s79, 16
        %v6015 = vld [vmem:[%s6014] sm:$0xff]
        %v6017 = vsel %vm1662, %v5950, 0
        %v6020 = vsel %vm1662, %v5981, 0
        %6022 = vmatpush.xpose.msra.mxu0 0.0
        %6023 = vmatpush.xpose.msra.mxu0 0.0
        %6024 = vmatpush.xpose.msra.mxu0 0.0
        %6025 = vmatpush.xpose.msra.mxu0 0.0
        %6026 = vmatpush.xpose.msra.mxu0 0.0
        %6027 = vmatpush.xpose.msra.mxu0 0.0
        %6028 = vmatpush.xpose.msra.mxu0 0.0
        %6029 = vmatpush.xpose.msra.mxu0 0.0
        %6030 = vmatpush.xpose.msra.mxu0 0.0
        %6031 = vmatpush.xpose.msra.mxu0 0.0
        %6032 = vmatpush.xpose.msra.mxu0 0.0
        %6033 = vmatpush.xpose.msra.mxu0 0.0
        %6034 = vmatpush.xpose.msra.mxu0 0.0
        %6035 = vmatpush.xpose.msra.mxu0 0.0
        %6036 = vmatpush.xpose.msra.mxu0 0.0
        %6037 = vmatpush.xpose.msra.mxu0 %v6020
        %6038 = vmatmul.f32.gmra.mxu0 %v6017
        %v6039 = vpop.f32.mrf.mxu0
        %v6040 = vadd.f32 0.0, %v6039
        %6041 = vdwg.mxu0
        %v6042 = vsel %vm1662, %v6040, -inf
        %6043 = vmax.xlane.f32.xlu0 %v6042
        %v6044 = vpop.xlane.xlu0 %6043
        %v6045 = vsub.f32 %v6040, %v6044
        %v6046 = vmul.f32 %v6045, 1.442695
        %v6047 = vpow.pop %v6046
        %v6048 = vsel %vm1662, %v6047, 0.0
        %6049 = vadd.xlane.f32.xlu0 %v6048
        %v6050 = vpop.xlane.xlu0 %6049
        %v6051 = vrcp.pop %v6050
        %v6052 = vmul.f32 %v6047, %v6051
        %v6054 = vsel %vm1662, %v6052, 0
        %6056 = vmatpush.msra.mxu0 0.0
        %6057 = vmatpush.msra.mxu0 0.0
        %6058 = vmatpush.msra.mxu0 0.0
        %6059 = vmatpush.msra.mxu0 0.0
        %6060 = vmatpush.msra.mxu0 0.0
        %6061 = vmatpush.msra.mxu0 0.0
        %6062 = vmatpush.msra.mxu0 0.0
        %6063 = vmatpush.msra.mxu0 0.0
        %6064 = vmatpush.msra.mxu0 0.0
        %6065 = vmatpush.msra.mxu0 0.0
        %6066 = vmatpush.msra.mxu0 0.0
        %6067 = vmatpush.msra.mxu0 0.0
        %6068 = vmatpush.msra.mxu0 0.0
        %6069 = vmatpush.msra.mxu0 0.0
        %6070 = vmatpush.msra.mxu0 0.0
        %6071 = vmatpush.msra.mxu0 %v6012
        %6072 = vmatmul.f32.gmra.mxu0 %v6054
        %v6073 = vpop.f32.mrf.mxu0
        %v6074 = vadd.f32 0.0, %v6073
        %6075 = vdwg.mxu0
        %v6077 = vsel %vm1662, %v6074, 0
        %6079 = vmatpush.msra.mxu0 0.0
        %6080 = vmatpush.msra.mxu0 0.0
        %6081 = vmatpush.msra.mxu0 0.0
        %6082 = vmatpush.msra.mxu0 0.0
        %6083 = vmatpush.msra.mxu0 0.0
        %6084 = vmatpush.msra.mxu0 0.0
        %6085 = vmatpush.msra.mxu0 0.0
        %6086 = vmatpush.msra.mxu0 0.0
        %6087 = vmatpush.msra.mxu0 0.0
        %6088 = vmatpush.msra.mxu0 0.0
        %6089 = vmatpush.msra.mxu0 0.0
        %6090 = vmatpush.msra.mxu0 0.0
        %6091 = vmatpush.msra.mxu0 0.0
        %6092 = vmatpush.msra.mxu0 0.0
        %6093 = vmatpush.msra.mxu0 0.0
        %6094 = vmatpush.msra.mxu0 %v6015
        %6095 = vmatmul.f32.gmra.mxu0 %v6077
        %v6096 = vpop.f32.mrf.mxu0
        %v6097 = vadd.f32 0.0, %v6096
        %6098 = vdwg.mxu0
        %v6099 = vadd.f32 %v5919, %v6097
        %s6100 = scalar_lea.vmem %s67, 120
        %v6101 = vld [vmem:[%s6100] sm:$0xff]
        %v6102 = vld [vmem:[%s6100 + $0x8] sm:$0xff]
        %v6103 = vld [vmem:[%s6100 + $0x10] sm:$0xff]
        %v6104 = vld [vmem:[%s6100 + $0x18] sm:$0xff]
        %v6105 = vld [vmem:[%s6100 + $0x20] sm:$0xff]
        %s6106 = scalar_lea.vmem %s69, 3
        %v6107 = vld [vmem:[%s6106] sm:$0x1]
        %v6109 = vperm.slane %v6107, 0
        %6111 = vmatpush.msra.mxu0 0.0
        %6112 = vmatpush.msra.mxu0 0.0
        %6113 = vmatpush.msra.mxu0 0.0
        %6114 = vmatpush.msra.mxu0 0.0
        %6115 = vmatpush.msra.mxu0 0.0
        %6116 = vmatpush.msra.mxu0 0.0
        %6117 = vmatpush.msra.mxu0 0.0
        %6118 = vmatpush.msra.mxu0 0.0
        %6119 = vmatpush.msra.mxu0 0.0
        %6120 = vmatpush.msra.mxu0 0.0
        %6121 = vmatpush.msra.mxu0 0.0
        %6122 = vmatpush.msra.mxu0 %v6105
        %6123 = vmatpush.msra.mxu0 %v6104
        %6124 = vmatpush.msra.mxu0 %v6103
        %6125 = vmatpush.msra.mxu0 %v6102
        %6126 = vmatpush.msra.mxu0 %v6101
        %6127 = vmatmul.f32.gmra.mxu0 %v5579
        %v6128 = vpop.f32.mrf.mxu0
        %v6129 = vadd.f32 %v6109, %v6128
        %6130 = vdwg.mxu0
        %s6131 = scalar_lea.vmem %s71, 120
        %v6132 = vld [vmem:[%s6131] sm:$0xff]
        %v6133 = vld [vmem:[%s6131 + $0x8] sm:$0xff]
        %v6134 = vld [vmem:[%s6131 + $0x10] sm:$0xff]
        %v6135 = vld [vmem:[%s6131 + $0x18] sm:$0xff]
        %v6136 = vld [vmem:[%s6131 + $0x20] sm:$0xff]
        %s6137 = scalar_lea.vmem %s73, 3
        %v6138 = vld [vmem:[%s6137] sm:$0x1]
        %v6140 = vperm.slane %v6138, 0
        %6142 = vmatpush.msra.mxu0 0.0
        %6143 = vmatpush.msra.mxu0 0.0
        %6144 = vmatpush.msra.mxu0 0.0
        %6145 = vmatpush.msra.mxu0 0.0
        %6146 = vmatpush.msra.mxu0 0.0
        %6147 = vmatpush.msra.mxu0 0.0
        %6148 = vmatpush.msra.mxu0 0.0
        %6149 = vmatpush.msra.mxu0 0.0
        %6150 = vmatpush.msra.mxu0 0.0
        %6151 = vmatpush.msra.mxu0 0.0
        %6152 = vmatpush.msra.mxu0 0.0
        %6153 = vmatpush.msra.mxu0 %v6136
        %6154 = vmatpush.msra.mxu0 %v6135
        %6155 = vmatpush.msra.mxu0 %v6134
        %6156 = vmatpush.msra.mxu0 %v6133
        %6157 = vmatpush.msra.mxu0 %v6132
        %6158 = vmatmul.f32.gmra.mxu0 %v5579
        %v6159 = vpop.f32.mrf.mxu0
        %v6160 = vadd.f32 %v6140, %v6159
        %6161 = vdwg.mxu0
        %s6162 = scalar_lea.vmem %s75, 120
        %v6163 = vld [vmem:[%s6162] sm:$0xff]
        %v6164 = vld [vmem:[%s6162 + $0x8] sm:$0xff]
        %v6165 = vld [vmem:[%s6162 + $0x10] sm:$0xff]
        %v6166 = vld [vmem:[%s6162 + $0x18] sm:$0xff]
        %v6167 = vld [vmem:[%s6162 + $0x20] sm:$0xff]
        %s6168 = scalar_lea.vmem %s77, 3
        %v6169 = vld [vmem:[%s6168] sm:$0x1]
        %v6171 = vperm.slane %v6169, 0
        %6173 = vmatpush.msra.mxu0 0.0
        %6174 = vmatpush.msra.mxu0 0.0
        %6175 = vmatpush.msra.mxu0 0.0
        %6176 = vmatpush.msra.mxu0 0.0
        %6177 = vmatpush.msra.mxu0 0.0
        %6178 = vmatpush.msra.mxu0 0.0
        %6179 = vmatpush.msra.mxu0 0.0
        %6180 = vmatpush.msra.mxu0 0.0
        %6181 = vmatpush.msra.mxu0 0.0
        %6182 = vmatpush.msra.mxu0 0.0
        %6183 = vmatpush.msra.mxu0 0.0
        %6184 = vmatpush.msra.mxu0 %v6167
        %6185 = vmatpush.msra.mxu0 %v6166
        %6186 = vmatpush.msra.mxu0 %v6165
        %6187 = vmatpush.msra.mxu0 %v6164
        %6188 = vmatpush.msra.mxu0 %v6163
        %6189 = vmatmul.f32.gmra.mxu0 %v5579
        %v6190 = vpop.f32.mrf.mxu0
        %v6191 = vadd.f32 %v6171, %v6190
        %6192 = vdwg.mxu0
        %s6193 = scalar_lea.vmem %s79, 24
        %v6194 = vld [vmem:[%s6193] sm:$0xff]
        %v6196 = vsel %vm1662, %v6129, 0
        %v6199 = vsel %vm1662, %v6160, 0
        %6201 = vmatpush.xpose.msra.mxu0 0.0
        %6202 = vmatpush.xpose.msra.mxu0 0.0
        %6203 = vmatpush.xpose.msra.mxu0 0.0
        %6204 = vmatpush.xpose.msra.mxu0 0.0
        %6205 = vmatpush.xpose.msra.mxu0 0.0
        %6206 = vmatpush.xpose.msra.mxu0 0.0
        %6207 = vmatpush.xpose.msra.mxu0 0.0
        %6208 = vmatpush.xpose.msra.mxu0 0.0
        %6209 = vmatpush.xpose.msra.mxu0 0.0
        %6210 = vmatpush.xpose.msra.mxu0 0.0
        %6211 = vmatpush.xpose.msra.mxu0 0.0
        %6212 = vmatpush.xpose.msra.mxu0 0.0
        %6213 = vmatpush.xpose.msra.mxu0 0.0
        %6214 = vmatpush.xpose.msra.mxu0 0.0
        %6215 = vmatpush.xpose.msra.mxu0 0.0
        %6216 = vmatpush.xpose.msra.mxu0 %v6199
        %6217 = vmatmul.f32.gmra.mxu0 %v6196
        %v6218 = vpop.f32.mrf.mxu0
        %v6219 = vadd.f32 0.0, %v6218
        %6220 = vdwg.mxu0
        %v6221 = vsel %vm1662, %v6219, -inf
        %6222 = vmax.xlane.f32.xlu0 %v6221
        %v6223 = vpop.xlane.xlu0 %6222
        %v6224 = vsub.f32 %v6219, %v6223
        %v6225 = vmul.f32 %v6224, 1.442695
        %v6226 = vpow.pop %v6225
        %v6227 = vsel %vm1662, %v6226, 0.0
        %6228 = vadd.xlane.f32.xlu0 %v6227
        %v6229 = vpop.xlane.xlu0 %6228
        %v6230 = vrcp.pop %v6229
        %v6231 = vmul.f32 %v6226, %v6230
        %v6233 = vsel %vm1662, %v6231, 0
        %6235 = vmatpush.msra.mxu0 0.0
        %6236 = vmatpush.msra.mxu0 0.0
        %6237 = vmatpush.msra.mxu0 0.0
        %6238 = vmatpush.msra.mxu0 0.0
        %6239 = vmatpush.msra.mxu0 0.0
        %6240 = vmatpush.msra.mxu0 0.0
        %6241 = vmatpush.msra.mxu0 0.0
        %6242 = vmatpush.msra.mxu0 0.0
        %6243 = vmatpush.msra.mxu0 0.0
        %6244 = vmatpush.msra.mxu0 0.0
        %6245 = vmatpush.msra.mxu0 0.0
        %6246 = vmatpush.msra.mxu0 0.0
        %6247 = vmatpush.msra.mxu0 0.0
        %6248 = vmatpush.msra.mxu0 0.0
        %6249 = vmatpush.msra.mxu0 0.0
        %6250 = vmatpush.msra.mxu0 %v6191
        %6251 = vmatmul.f32.gmra.mxu0 %v6233
        %v6252 = vpop.f32.mrf.mxu0
        %v6253 = vadd.f32 0.0, %v6252
        %6254 = vdwg.mxu0
        %v6256 = vsel %vm1662, %v6253, 0
        %6258 = vmatpush.msra.mxu0 0.0
        %6259 = vmatpush.msra.mxu0 0.0
        %6260 = vmatpush.msra.mxu0 0.0
        %6261 = vmatpush.msra.mxu0 0.0
        %6262 = vmatpush.msra.mxu0 0.0
        %6263 = vmatpush.msra.mxu0 0.0
        %6264 = vmatpush.msra.mxu0 0.0
        %6265 = vmatpush.msra.mxu0 0.0
        %6266 = vmatpush.msra.mxu0 0.0
        %6267 = vmatpush.msra.mxu0 0.0
        %6268 = vmatpush.msra.mxu0 0.0
        %6269 = vmatpush.msra.mxu0 0.0
        %6270 = vmatpush.msra.mxu0 0.0
        %6271 = vmatpush.msra.mxu0 0.0
        %6272 = vmatpush.msra.mxu0 0.0
        %6273 = vmatpush.msra.mxu0 %v6194
        %6274 = vmatmul.f32.gmra.mxu0 %v6256
        %v6275 = vpop.f32.mrf.mxu0
        %v6276 = vadd.f32 0.0, %v6275
        %6277 = vdwg.mxu0
        %v6278 = vadd.f32 %v6099, %v6276
        %s6279 = scalar_lea.vmem %s67, 160
        %v6280 = vld [vmem:[%s6279] sm:$0xff]
        %v6281 = vld [vmem:[%s6279 + $0x8] sm:$0xff]
        %v6282 = vld [vmem:[%s6279 + $0x10] sm:$0xff]
        %v6283 = vld [vmem:[%s6279 + $0x18] sm:$0xff]
        %v6284 = vld [vmem:[%s6279 + $0x20] sm:$0xff]
        %s6285 = scalar_lea.vmem %s69, 4
        %v6286 = vld [vmem:[%s6285] sm:$0x1]
        %v6288 = vperm.slane %v6286, 0
        %6290 = vmatpush.msra.mxu0 0.0
        %6291 = vmatpush.msra.mxu0 0.0
        %6292 = vmatpush.msra.mxu0 0.0
        %6293 = vmatpush.msra.mxu0 0.0
        %6294 = vmatpush.msra.mxu0 0.0
        %6295 = vmatpush.msra.mxu0 0.0
        %6296 = vmatpush.msra.mxu0 0.0
        %6297 = vmatpush.msra.mxu0 0.0
        %6298 = vmatpush.msra.mxu0 0.0
        %6299 = vmatpush.msra.mxu0 0.0
        %6300 = vmatpush.msra.mxu0 0.0
        %6301 = vmatpush.msra.mxu0 %v6284
        %6302 = vmatpush.msra.mxu0 %v6283
        %6303 = vmatpush.msra.mxu0 %v6282
        %6304 = vmatpush.msra.mxu0 %v6281
        %6305 = vmatpush.msra.mxu0 %v6280
        %6306 = vmatmul.f32.gmra.mxu0 %v5579
        %v6307 = vpop.f32.mrf.mxu0
        %v6308 = vadd.f32 %v6288, %v6307
        %6309 = vdwg.mxu0
        %s6310 = scalar_lea.vmem %s71, 160
        %v6311 = vld [vmem:[%s6310] sm:$0xff]
        %v6312 = vld [vmem:[%s6310 + $0x8] sm:$0xff]
        %v6313 = vld [vmem:[%s6310 + $0x10] sm:$0xff]
        %v6314 = vld [vmem:[%s6310 + $0x18] sm:$0xff]
        %v6315 = vld [vmem:[%s6310 + $0x20] sm:$0xff]
        %s6316 = scalar_lea.vmem %s73, 4
        %v6317 = vld [vmem:[%s6316] sm:$0x1]
        %v6319 = vperm.slane %v6317, 0
        %6321 = vmatpush.msra.mxu0 0.0
        %6322 = vmatpush.msra.mxu0 0.0
        %6323 = vmatpush.msra.mxu0 0.0
        %6324 = vmatpush.msra.mxu0 0.0
        %6325 = vmatpush.msra.mxu0 0.0
        %6326 = vmatpush.msra.mxu0 0.0
        %6327 = vmatpush.msra.mxu0 0.0
        %6328 = vmatpush.msra.mxu0 0.0
        %6329 = vmatpush.msra.mxu0 0.0
        %6330 = vmatpush.msra.mxu0 0.0
        %6331 = vmatpush.msra.mxu0 0.0
        %6332 = vmatpush.msra.mxu0 %v6315
        %6333 = vmatpush.msra.mxu0 %v6314
        %6334 = vmatpush.msra.mxu0 %v6313
        %6335 = vmatpush.msra.mxu0 %v6312
        %6336 = vmatpush.msra.mxu0 %v6311
        %6337 = vmatmul.f32.gmra.mxu0 %v5579
        %v6338 = vpop.f32.mrf.mxu0
        %v6339 = vadd.f32 %v6319, %v6338
        %6340 = vdwg.mxu0
        %s6341 = scalar_lea.vmem %s75, 160
        %v6342 = vld [vmem:[%s6341] sm:$0xff]
        %v6343 = vld [vmem:[%s6341 + $0x8] sm:$0xff]
        %v6344 = vld [vmem:[%s6341 + $0x10] sm:$0xff]
        %v6345 = vld [vmem:[%s6341 + $0x18] sm:$0xff]
        %v6346 = vld [vmem:[%s6341 + $0x20] sm:$0xff]
        %s6347 = scalar_lea.vmem %s77, 4
        %v6348 = vld [vmem:[%s6347] sm:$0x1]
        %v6350 = vperm.slane %v6348, 0
        %6352 = vmatpush.msra.mxu0 0.0
        %6353 = vmatpush.msra.mxu0 0.0
        %6354 = vmatpush.msra.mxu0 0.0
        %6355 = vmatpush.msra.mxu0 0.0
        %6356 = vmatpush.msra.mxu0 0.0
        %6357 = vmatpush.msra.mxu0 0.0
        %6358 = vmatpush.msra.mxu0 0.0
        %6359 = vmatpush.msra.mxu0 0.0
        %6360 = vmatpush.msra.mxu0 0.0
        %6361 = vmatpush.msra.mxu0 0.0
        %6362 = vmatpush.msra.mxu0 0.0
        %6363 = vmatpush.msra.mxu0 %v6346
        %6364 = vmatpush.msra.mxu0 %v6345
        %6365 = vmatpush.msra.mxu0 %v6344
        %6366 = vmatpush.msra.mxu0 %v6343
        %6367 = vmatpush.msra.mxu0 %v6342
        %6368 = vmatmul.f32.gmra.mxu0 %v5579
        %v6369 = vpop.f32.mrf.mxu0
        %v6370 = vadd.f32 %v6350, %v6369
        %6371 = vdwg.mxu0
        %s6372 = scalar_lea.vmem %s79, 32
        %v6373 = vld [vmem:[%s6372] sm:$0xff]
        %v6375 = vsel %vm1662, %v6308, 0
        %v6378 = vsel %vm1662, %v6339, 0
        %6380 = vmatpush.xpose.msra.mxu0 0.0
        %6381 = vmatpush.xpose.msra.mxu0 0.0
        %6382 = vmatpush.xpose.msra.mxu0 0.0
        %6383 = vmatpush.xpose.msra.mxu0 0.0
        %6384 = vmatpush.xpose.msra.mxu0 0.0
        %6385 = vmatpush.xpose.msra.mxu0 0.0
        %6386 = vmatpush.xpose.msra.mxu0 0.0
        %6387 = vmatpush.xpose.msra.mxu0 0.0
        %6388 = vmatpush.xpose.msra.mxu0 0.0
        %6389 = vmatpush.xpose.msra.mxu0 0.0
        %6390 = vmatpush.xpose.msra.mxu0 0.0
        %6391 = vmatpush.xpose.msra.mxu0 0.0
        %6392 = vmatpush.xpose.msra.mxu0 0.0
        %6393 = vmatpush.xpose.msra.mxu0 0.0
        %6394 = vmatpush.xpose.msra.mxu0 0.0
        %6395 = vmatpush.xpose.msra.mxu0 %v6378
        %6396 = vmatmul.f32.gmra.mxu0 %v6375
        %v6397 = vpop.f32.mrf.mxu0
        %v6398 = vadd.f32 0.0, %v6397
        %6399 = vdwg.mxu0
        %v6400 = vsel %vm1662, %v6398, -inf
        %6401 = vmax.xlane.f32.xlu0 %v6400
        %v6402 = vpop.xlane.xlu0 %6401
        %v6403 = vsub.f32 %v6398, %v6402
        %v6404 = vmul.f32 %v6403, 1.442695
        %v6405 = vpow.pop %v6404
        %v6406 = vsel %vm1662, %v6405, 0.0
        %6407 = vadd.xlane.f32.xlu0 %v6406
        %v6408 = vpop.xlane.xlu0 %6407
        %v6409 = vrcp.pop %v6408
        %v6410 = vmul.f32 %v6405, %v6409
        %v6412 = vsel %vm1662, %v6410, 0
        %6414 = vmatpush.msra.mxu0 0.0
        %6415 = vmatpush.msra.mxu0 0.0
        %6416 = vmatpush.msra.mxu0 0.0
        %6417 = vmatpush.msra.mxu0 0.0
        %6418 = vmatpush.msra.mxu0 0.0
        %6419 = vmatpush.msra.mxu0 0.0
        %6420 = vmatpush.msra.mxu0 0.0
        %6421 = vmatpush.msra.mxu0 0.0
        %6422 = vmatpush.msra.mxu0 0.0
        %6423 = vmatpush.msra.mxu0 0.0
        %6424 = vmatpush.msra.mxu0 0.0
        %6425 = vmatpush.msra.mxu0 0.0
        %6426 = vmatpush.msra.mxu0 0.0
        %6427 = vmatpush.msra.mxu0 0.0
        %6428 = vmatpush.msra.mxu0 0.0
        %6429 = vmatpush.msra.mxu0 %v6370
        %6430 = vmatmul.f32.gmra.mxu0 %v6412
        %v6431 = vpop.f32.mrf.mxu0
        %v6432 = vadd.f32 0.0, %v6431
        %6433 = vdwg.mxu0
        %v6435 = vsel %vm1662, %v6432, 0
        %6437 = vmatpush.msra.mxu0 0.0
        %6438 = vmatpush.msra.mxu0 0.0
        %6439 = vmatpush.msra.mxu0 0.0
        %6440 = vmatpush.msra.mxu0 0.0
        %6441 = vmatpush.msra.mxu0 0.0
        %6442 = vmatpush.msra.mxu0 0.0
        %6443 = vmatpush.msra.mxu0 0.0
        %6444 = vmatpush.msra.mxu0 0.0
        %6445 = vmatpush.msra.mxu0 0.0
        %6446 = vmatpush.msra.mxu0 0.0
        %6447 = vmatpush.msra.mxu0 0.0
        %6448 = vmatpush.msra.mxu0 0.0
        %6449 = vmatpush.msra.mxu0 0.0
        %6450 = vmatpush.msra.mxu0 0.0
        %6451 = vmatpush.msra.mxu0 0.0
        %6452 = vmatpush.msra.mxu0 %v6373
        %6453 = vmatmul.f32.gmra.mxu0 %v6435
        %v6454 = vpop.f32.mrf.mxu0
        %v6455 = vadd.f32 0.0, %v6454
        %6456 = vdwg.mxu0
        %v6457 = vadd.f32 %v6278, %v6455
        %v6458 = vld [vmem:[%s81] sm:$0x1]
        %v6460 = vperm.slane %v6458, 0
        %v6462 = vadd.f32 %v6457, %v6460
        %v6463 = vadd.f32 %v5568, %v6462
        %v6464 = vld [vmem:[%s91] sm:$0x1]
        %v6465 = vld [vmem:[%s93] sm:$0x1]
        %v6466 = vsel %vm1579, %v6463, 0.0
        %6467 = vadd.xlane.f32.xlu0 %v6466
        %v6468 = vpop.xlane.xlu0 %6467
        %v6469 = vmul.f32 %v6468, %v2478
        %v6470 = vsub.f32 %v6463, %v6469
        %v6471 = vmul.f32 %v6470, %v6470
        %v6472 = vsel %vm1579, %v6471, 0.0
        %6473 = vadd.xlane.f32.xlu0 %v6472
        %v6474 = vpop.xlane.xlu0 %6473
        %v6475 = vmul.f32 %v6474, %v2478
        %v6476 = vadd.f32 %v6475, 1e-05
        %v6477 = vrsqrt.pop %v6476
        %v6478 = vmul.f32 %v6477, %v6476
        %v6479 = vmul.f32 %v6478, %v6477
        %v6480 = vmul.f32 0.5, %v6479
        %v6481 = vsub.f32 1.5, %v6480
        %v6482 = vmul.f32 %v6477, %v6481
        %vm6483 = vweird.f32 %v6476
        %vm6484 = vweird.f32 %v6477
        %vm6485 = vmor %vm6483, %vm6484
        %v6486 = vsel %vm6485, %v6477, %v6482
        %v6487 = vmul.f32 %v6470, %v6486
        %v6489 = vperm.slane %v6464, 0
        %v6491 = vmul.f32 %v6487, %v6489
        %v6493 = vperm.slane %v6465, 0
        %v6495 = vadd.f32 %v6491, %v6493
        %v6496 = vld [vmem:[%s83] sm:$0xff]
        %v6497 = vld [vmem:[%s83 + $0x8] sm:$0xff]
        %v6498 = vld [vmem:[%s83 + $0x10] sm:$0xff]
        %v6499 = vld [vmem:[%s83 + $0x18] sm:$0xff]
        %v6500 = vld [vmem:[%s83 + $0x20] sm:$0xff]
        %v6501 = vld [vmem:[%s83 + $0x28] sm:$0xff]
        %v6502 = vld [vmem:[%s83 + $0x30] sm:$0xff]
        %v6503 = vld [vmem:[%s83 + $0x38] sm:$0xff]
        %v6504 = vld [vmem:[%s83 + $0x40] sm:$0xff]
        %v6505 = vld [vmem:[%s83 + $0x48] sm:$0xff]
        %v6506 = vld [vmem:[%s83 + $0x50] sm:$0xff]
        %v6507 = vld [vmem:[%s83 + $0x58] sm:$0xff]
        %v6508 = vld [vmem:[%s83 + $0x60] sm:$0xff]
        %v6509 = vld [vmem:[%s83 + $0x68] sm:$0xff]
        %v6510 = vld [vmem:[%s83 + $0x70] sm:$0xff]
        %v6511 = vld [vmem:[%s83 + $0x78] sm:$0xff]
        %v6512 = vld [vmem:[%s83 + $0x80] sm:$0xff]
        %v6513 = vld [vmem:[%s83 + $0x88] sm:$0xff]
        %v6514 = vld [vmem:[%s83 + $0x90] sm:$0xff]
        %v6515 = vld [vmem:[%s83 + $0x98] sm:$0xff]
        %v6516 = vld [vmem:[%s83 + $0xa0] sm:$0xff]
        %v6517 = vld [vmem:[%s83 + $0xa8] sm:$0xff]
        %v6518 = vld [vmem:[%s83 + $0xb0] sm:$0xff]
        %v6519 = vld [vmem:[%s83 + $0xb8] sm:$0xff]
        %v6520 = vld [vmem:[%s83 + $0xc0] sm:$0xff]
        %v6521 = vld [vmem:[%s83 + $0xc8] sm:$0xff]
        %v6522 = vld [vmem:[%s83 + $0xd0] sm:$0xff]
        %v6523 = vld [vmem:[%s83 + $0xd8] sm:$0xff]
        %v6524 = vld [vmem:[%s83 + $0xe0] sm:$0xff]
        %v6525 = vld [vmem:[%s83 + $0xe8] sm:$0xff]
        %v6526 = vld [vmem:[%s83 + $0xf0] sm:$0xff]
        %v6527 = vld [vmem:[%s83 + $0xf8] sm:$0xff]
        %v6528 = vld [vmem:[%s83 + $0x100] sm:$0xff]
        %v6529 = vld [vmem:[%s83 + $0x108] sm:$0xff]
        %v6530 = vld [vmem:[%s83 + $0x110] sm:$0xff]
        %v6531 = vld [vmem:[%s83 + $0x118] sm:$0xff]
        %v6532 = vld [vmem:[%s83 + $0x120] sm:$0xff]
        %v6533 = vld [vmem:[%s83 + $0x128] sm:$0xff]
        %v6534 = vld [vmem:[%s83 + $0x130] sm:$0xff]
        %v6535 = vld [vmem:[%s83 + $0x138] sm:$0xff]
        %v6536 = vld [vmem:[%s83 + $0x140] sm:$0xff]
        %v6537 = vld [vmem:[%s83 + $0x148] sm:$0xff]
        %v6538 = vld [vmem:[%s83 + $0x150] sm:$0xff]
        %v6539 = vld [vmem:[%s83 + $0x158] sm:$0xff]
        %v6540 = vld [vmem:[%s83 + $0x160] sm:$0xff]
        %v6541 = vld [vmem:[%s83 + $0x168] sm:$0xff]
        %v6542 = vld [vmem:[%s83 + $0x170] sm:$0xff]
        %v6543 = vld [vmem:[%s83 + $0x178] sm:$0xff]
        %v6544 = vld [vmem:[%s83 + $0x180] sm:$0xff]
        %v6545 = vld [vmem:[%s83 + $0x188] sm:$0xff]
        %v6546 = vld [vmem:[%s83 + $0x190] sm:$0xff]
        %v6547 = vld [vmem:[%s83 + $0x198] sm:$0xff]
        %v6548 = vld [vmem:[%s83 + $0x1a0] sm:$0xff]
        %v6549 = vld [vmem:[%s83 + $0x1a8] sm:$0xff]
        %v6550 = vld [vmem:[%s83 + $0x1b0] sm:$0xff]
        %v6551 = vld [vmem:[%s83 + $0x1b8] sm:$0xff]
        %v6552 = vld [vmem:[%s83 + $0x1c0] sm:$0xff]
        %v6553 = vld [vmem:[%s83 + $0x1c8] sm:$0xff]
        %v6554 = vld [vmem:[%s83 + $0x1d0] sm:$0xff]
        %v6555 = vld [vmem:[%s83 + $0x1d8] sm:$0xff]
        %v6556 = vld [vmem:[%s83 + $0x1e0] sm:$0xff]
        %v6557 = vld [vmem:[%s83 + $0x1e8] sm:$0xff]
        %v6558 = vld [vmem:[%s83 + $0x1f0] sm:$0xff]
        %v6559 = vld [vmem:[%s83 + $0x1f8] sm:$0xff]
        %v6560 = vld [vmem:[%s83 + $0x200] sm:$0xff]
        %v6561 = vld [vmem:[%s83 + $0x208] sm:$0xff]
        %v6562 = vld [vmem:[%s83 + $0x210] sm:$0xff]
        %v6563 = vld [vmem:[%s83 + $0x218] sm:$0xff]
        %v6564 = vld [vmem:[%s83 + $0x220] sm:$0xff]
        %v6565 = vld [vmem:[%s83 + $0x228] sm:$0xff]
        %v6566 = vld [vmem:[%s83 + $0x230] sm:$0xff]
        %v6567 = vld [vmem:[%s83 + $0x238] sm:$0xff]
        %v6568 = vld [vmem:[%s83 + $0x240] sm:$0xff]
        %v6569 = vld [vmem:[%s83 + $0x248] sm:$0xff]
        %v6570 = vld [vmem:[%s83 + $0x250] sm:$0xff]
        %v6571 = vld [vmem:[%s83 + $0x258] sm:$0xff]
        %v6572 = vld [vmem:[%s83 + $0x260] sm:$0xff]
        %v6573 = vld [vmem:[%s83 + $0x268] sm:$0xff]
        %v6574 = vld [vmem:[%s83 + $0x270] sm:$0xff]
        %v6575 = vld [vmem:[%s83 + $0x278] sm:$0xff]
        %v6576 = vld [vmem:[%s85] sm:$0xff]
        %v6577 = vld [vmem:[%s85 + $0x8] sm:$0xff]
        %v6580 = vperm.slane %v6576, 0
        %v6581 = vperm.slane %v6576, 1
        %v6582 = vperm.slane %v6576, 2
        %v6583 = vperm.slane %v6576, 3
        %v6584 = vperm.slane %v6576, 4
        %v6585 = vperm.slane %v6576, 5
        %v6586 = vperm.slane %v6576, 6
        %v6587 = vperm.slane %v6576, 7
        %v6588 = vperm.slane %v6577, 0
        %v6589 = vperm.slane %v6577, 1
        %v6590 = vperm.slane %v6577, 2
        %v6591 = vperm.slane %v6577, 3
        %v6592 = vperm.slane %v6577, 4
        %v6593 = vperm.slane %v6577, 5
        %v6594 = vperm.slane %v6577, 6
        %v6595 = vperm.slane %v6577, 7
        %v6613 = vsel %vm1579, %v6495, 0
        %6615 = vmatpush.msra.mxu0 0.0
        %6616 = vmatpush.msra.mxu0 0.0
        %6617 = vmatpush.msra.mxu0 0.0
        %6618 = vmatpush.msra.mxu0 0.0
        %6619 = vmatpush.msra.mxu0 0.0
        %6620 = vmatpush.msra.mxu0 0.0
        %6621 = vmatpush.msra.mxu0 0.0
        %6622 = vmatpush.msra.mxu0 0.0
        %6623 = vmatpush.msra.mxu0 0.0
        %6624 = vmatpush.msra.mxu0 0.0
        %6625 = vmatpush.msra.mxu0 0.0
        %6626 = vmatpush.msra.mxu0 %v6560
        %6627 = vmatpush.msra.mxu0 %v6544
        %6628 = vmatpush.msra.mxu0 %v6528
        %6629 = vmatpush.msra.mxu0 %v6512
        %6630 = vmatpush.msra.mxu0 %v6496
        %6631 = vmatmul.f32.gmra.mxu0 %v6613
        %v6632 = vpop.f32.mrf.mxu0
        %v6633 = vadd.f32 %v6580, %v6632
        %6634 = vdwg.mxu0
        %6635 = vmatpush.msra.mxu0 0.0
        %6636 = vmatpush.msra.mxu0 0.0
        %6637 = vmatpush.msra.mxu0 0.0
        %6638 = vmatpush.msra.mxu0 0.0
        %6639 = vmatpush.msra.mxu0 0.0
        %6640 = vmatpush.msra.mxu0 0.0
        %6641 = vmatpush.msra.mxu0 0.0
        %6642 = vmatpush.msra.mxu0 0.0
        %6643 = vmatpush.msra.mxu0 0.0
        %6644 = vmatpush.msra.mxu0 0.0
        %6645 = vmatpush.msra.mxu0 0.0
        %6646 = vmatpush.msra.mxu0 %v6561
        %6647 = vmatpush.msra.mxu0 %v6545
        %6648 = vmatpush.msra.mxu0 %v6529
        %6649 = vmatpush.msra.mxu0 %v6513
        %6650 = vmatpush.msra.mxu0 %v6497
        %6651 = vmatmul.f32.gmra.mxu0 %v6613
        %v6652 = vpop.f32.mrf.mxu0
        %v6653 = vadd.f32 %v6581, %v6652
        %6654 = vdwg.mxu0
        %6655 = vmatpush.msra.mxu0 0.0
        %6656 = vmatpush.msra.mxu0 0.0
        %6657 = vmatpush.msra.mxu0 0.0
        %6658 = vmatpush.msra.mxu0 0.0
        %6659 = vmatpush.msra.mxu0 0.0
        %6660 = vmatpush.msra.mxu0 0.0
        %6661 = vmatpush.msra.mxu0 0.0
        %6662 = vmatpush.msra.mxu0 0.0
        %6663 = vmatpush.msra.mxu0 0.0
        %6664 = vmatpush.msra.mxu0 0.0
        %6665 = vmatpush.msra.mxu0 0.0
        %6666 = vmatpush.msra.mxu0 %v6562
        %6667 = vmatpush.msra.mxu0 %v6546
        %6668 = vmatpush.msra.mxu0 %v6530
        %6669 = vmatpush.msra.mxu0 %v6514
        %6670 = vmatpush.msra.mxu0 %v6498
        %6671 = vmatmul.f32.gmra.mxu0 %v6613
        %v6672 = vpop.f32.mrf.mxu0
        %v6673 = vadd.f32 %v6582, %v6672
        %6674 = vdwg.mxu0
        %6675 = vmatpush.msra.mxu0 0.0
        %6676 = vmatpush.msra.mxu0 0.0
        %6677 = vmatpush.msra.mxu0 0.0
        %6678 = vmatpush.msra.mxu0 0.0
        %6679 = vmatpush.msra.mxu0 0.0
        %6680 = vmatpush.msra.mxu0 0.0
        %6681 = vmatpush.msra.mxu0 0.0
        %6682 = vmatpush.msra.mxu0 0.0
        %6683 = vmatpush.msra.mxu0 0.0
        %6684 = vmatpush.msra.mxu0 0.0
        %6685 = vmatpush.msra.mxu0 0.0
        %6686 = vmatpush.msra.mxu0 %v6563
        %6687 = vmatpush.msra.mxu0 %v6547
        %6688 = vmatpush.msra.mxu0 %v6531
        %6689 = vmatpush.msra.mxu0 %v6515
        %6690 = vmatpush.msra.mxu0 %v6499
        %6691 = vmatmul.f32.gmra.mxu0 %v6613
        %v6692 = vpop.f32.mrf.mxu0
        %v6693 = vadd.f32 %v6583, %v6692
        %6694 = vdwg.mxu0
        %6695 = vmatpush.msra.mxu0 0.0
        %6696 = vmatpush.msra.mxu0 0.0
        %6697 = vmatpush.msra.mxu0 0.0
        %6698 = vmatpush.msra.mxu0 0.0
        %6699 = vmatpush.msra.mxu0 0.0
        %6700 = vmatpush.msra.mxu0 0.0
        %6701 = vmatpush.msra.mxu0 0.0
        %6702 = vmatpush.msra.mxu0 0.0
        %6703 = vmatpush.msra.mxu0 0.0
        %6704 = vmatpush.msra.mxu0 0.0
        %6705 = vmatpush.msra.mxu0 0.0
        %6706 = vmatpush.msra.mxu0 %v6564
        %6707 = vmatpush.msra.mxu0 %v6548
        %6708 = vmatpush.msra.mxu0 %v6532
        %6709 = vmatpush.msra.mxu0 %v6516
        %6710 = vmatpush.msra.mxu0 %v6500
        %6711 = vmatmul.f32.gmra.mxu0 %v6613
        %v6712 = vpop.f32.mrf.mxu0
        %v6713 = vadd.f32 %v6584, %v6712
        %6714 = vdwg.mxu0
        %6715 = vmatpush.msra.mxu0 0.0
        %6716 = vmatpush.msra.mxu0 0.0
        %6717 = vmatpush.msra.mxu0 0.0
        %6718 = vmatpush.msra.mxu0 0.0
        %6719 = vmatpush.msra.mxu0 0.0
        %6720 = vmatpush.msra.mxu0 0.0
        %6721 = vmatpush.msra.mxu0 0.0
        %6722 = vmatpush.msra.mxu0 0.0
        %6723 = vmatpush.msra.mxu0 0.0
        %6724 = vmatpush.msra.mxu0 0.0
        %6725 = vmatpush.msra.mxu0 0.0
        %6726 = vmatpush.msra.mxu0 %v6565
        %6727 = vmatpush.msra.mxu0 %v6549
        %6728 = vmatpush.msra.mxu0 %v6533
        %6729 = vmatpush.msra.mxu0 %v6517
        %6730 = vmatpush.msra.mxu0 %v6501
        %6731 = vmatmul.f32.gmra.mxu0 %v6613
        %v6732 = vpop.f32.mrf.mxu0
        %v6733 = vadd.f32 %v6585, %v6732
        %6734 = vdwg.mxu0
        %6735 = vmatpush.msra.mxu0 0.0
        %6736 = vmatpush.msra.mxu0 0.0
        %6737 = vmatpush.msra.mxu0 0.0
        %6738 = vmatpush.msra.mxu0 0.0
        %6739 = vmatpush.msra.mxu0 0.0
        %6740 = vmatpush.msra.mxu0 0.0
        %6741 = vmatpush.msra.mxu0 0.0
        %6742 = vmatpush.msra.mxu0 0.0
        %6743 = vmatpush.msra.mxu0 0.0
        %6744 = vmatpush.msra.mxu0 0.0
        %6745 = vmatpush.msra.mxu0 0.0
        %6746 = vmatpush.msra.mxu0 %v6566
        %6747 = vmatpush.msra.mxu0 %v6550
        %6748 = vmatpush.msra.mxu0 %v6534
        %6749 = vmatpush.msra.mxu0 %v6518
        %6750 = vmatpush.msra.mxu0 %v6502
        %6751 = vmatmul.f32.gmra.mxu0 %v6613
        %v6752 = vpop.f32.mrf.mxu0
        %v6753 = vadd.f32 %v6586, %v6752
        %6754 = vdwg.mxu0
        %6755 = vmatpush.msra.mxu0 0.0
        %6756 = vmatpush.msra.mxu0 0.0
        %6757 = vmatpush.msra.mxu0 0.0
        %6758 = vmatpush.msra.mxu0 0.0
        %6759 = vmatpush.msra.mxu0 0.0
        %6760 = vmatpush.msra.mxu0 0.0
        %6761 = vmatpush.msra.mxu0 0.0
        %6762 = vmatpush.msra.mxu0 0.0
        %6763 = vmatpush.msra.mxu0 0.0
        %6764 = vmatpush.msra.mxu0 0.0
        %6765 = vmatpush.msra.mxu0 0.0
        %6766 = vmatpush.msra.mxu0 %v6567
        %6767 = vmatpush.msra.mxu0 %v6551
        %6768 = vmatpush.msra.mxu0 %v6535
        %6769 = vmatpush.msra.mxu0 %v6519
        %6770 = vmatpush.msra.mxu0 %v6503
        %6771 = vmatmul.f32.gmra.mxu0 %v6613
        %v6772 = vpop.f32.mrf.mxu0
        %v6773 = vadd.f32 %v6587, %v6772
        %6774 = vdwg.mxu0
        %6775 = vmatpush.msra.mxu0 0.0
        %6776 = vmatpush.msra.mxu0 0.0
        %6777 = vmatpush.msra.mxu0 0.0
        %6778 = vmatpush.msra.mxu0 0.0
        %6779 = vmatpush.msra.mxu0 0.0
        %6780 = vmatpush.msra.mxu0 0.0
        %6781 = vmatpush.msra.mxu0 0.0
        %6782 = vmatpush.msra.mxu0 0.0
        %6783 = vmatpush.msra.mxu0 0.0
        %6784 = vmatpush.msra.mxu0 0.0
        %6785 = vmatpush.msra.mxu0 0.0
        %6786 = vmatpush.msra.mxu0 %v6568
        %6787 = vmatpush.msra.mxu0 %v6552
        %6788 = vmatpush.msra.mxu0 %v6536
        %6789 = vmatpush.msra.mxu0 %v6520
        %6790 = vmatpush.msra.mxu0 %v6504
        %6791 = vmatmul.f32.gmra.mxu0 %v6613
        %v6792 = vpop.f32.mrf.mxu0
        %v6793 = vadd.f32 %v6588, %v6792
        %6794 = vdwg.mxu0
        %6795 = vmatpush.msra.mxu0 0.0
        %6796 = vmatpush.msra.mxu0 0.0
        %6797 = vmatpush.msra.mxu0 0.0
        %6798 = vmatpush.msra.mxu0 0.0
        %6799 = vmatpush.msra.mxu0 0.0
        %6800 = vmatpush.msra.mxu0 0.0
        %6801 = vmatpush.msra.mxu0 0.0
        %6802 = vmatpush.msra.mxu0 0.0
        %6803 = vmatpush.msra.mxu0 0.0
        %6804 = vmatpush.msra.mxu0 0.0
        %6805 = vmatpush.msra.mxu0 0.0
        %6806 = vmatpush.msra.mxu0 %v6569
        %6807 = vmatpush.msra.mxu0 %v6553
        %6808 = vmatpush.msra.mxu0 %v6537
        %6809 = vmatpush.msra.mxu0 %v6521
        %6810 = vmatpush.msra.mxu0 %v6505
        %6811 = vmatmul.f32.gmra.mxu0 %v6613
        %v6812 = vpop.f32.mrf.mxu0
        %v6813 = vadd.f32 %v6589, %v6812
        %6814 = vdwg.mxu0
        %6815 = vmatpush.msra.mxu0 0.0
        %6816 = vmatpush.msra.mxu0 0.0
        %6817 = vmatpush.msra.mxu0 0.0
        %6818 = vmatpush.msra.mxu0 0.0
        %6819 = vmatpush.msra.mxu0 0.0
        %6820 = vmatpush.msra.mxu0 0.0
        %6821 = vmatpush.msra.mxu0 0.0
        %6822 = vmatpush.msra.mxu0 0.0
        %6823 = vmatpush.msra.mxu0 0.0
        %6824 = vmatpush.msra.mxu0 0.0
        %6825 = vmatpush.msra.mxu0 0.0
        %6826 = vmatpush.msra.mxu0 %v6570
        %6827 = vmatpush.msra.mxu0 %v6554
        %6828 = vmatpush.msra.mxu0 %v6538
        %6829 = vmatpush.msra.mxu0 %v6522
        %6830 = vmatpush.msra.mxu0 %v6506
        %6831 = vmatmul.f32.gmra.mxu0 %v6613
        %v6832 = vpop.f32.mrf.mxu0
        %v6833 = vadd.f32 %v6590, %v6832
        %6834 = vdwg.mxu0
        %6835 = vmatpush.msra.mxu0 0.0
        %6836 = vmatpush.msra.mxu0 0.0
        %6837 = vmatpush.msra.mxu0 0.0
        %6838 = vmatpush.msra.mxu0 0.0
        %6839 = vmatpush.msra.mxu0 0.0
        %6840 = vmatpush.msra.mxu0 0.0
        %6841 = vmatpush.msra.mxu0 0.0
        %6842 = vmatpush.msra.mxu0 0.0
        %6843 = vmatpush.msra.mxu0 0.0
        %6844 = vmatpush.msra.mxu0 0.0
        %6845 = vmatpush.msra.mxu0 0.0
        %6846 = vmatpush.msra.mxu0 %v6571
        %6847 = vmatpush.msra.mxu0 %v6555
        %6848 = vmatpush.msra.mxu0 %v6539
        %6849 = vmatpush.msra.mxu0 %v6523
        %6850 = vmatpush.msra.mxu0 %v6507
        %6851 = vmatmul.f32.gmra.mxu0 %v6613
        %v6852 = vpop.f32.mrf.mxu0
        %v6853 = vadd.f32 %v6591, %v6852
        %6854 = vdwg.mxu0
        %6855 = vmatpush.msra.mxu0 0.0
        %6856 = vmatpush.msra.mxu0 0.0
        %6857 = vmatpush.msra.mxu0 0.0
        %6858 = vmatpush.msra.mxu0 0.0
        %6859 = vmatpush.msra.mxu0 0.0
        %6860 = vmatpush.msra.mxu0 0.0
        %6861 = vmatpush.msra.mxu0 0.0
        %6862 = vmatpush.msra.mxu0 0.0
        %6863 = vmatpush.msra.mxu0 0.0
        %6864 = vmatpush.msra.mxu0 0.0
        %6865 = vmatpush.msra.mxu0 0.0
        %6866 = vmatpush.msra.mxu0 %v6572
        %6867 = vmatpush.msra.mxu0 %v6556
        %6868 = vmatpush.msra.mxu0 %v6540
        %6869 = vmatpush.msra.mxu0 %v6524
        %6870 = vmatpush.msra.mxu0 %v6508
        %6871 = vmatmul.f32.gmra.mxu0 %v6613
        %v6872 = vpop.f32.mrf.mxu0
        %v6873 = vadd.f32 %v6592, %v6872
        %6874 = vdwg.mxu0
        %6875 = vmatpush.msra.mxu0 0.0
        %6876 = vmatpush.msra.mxu0 0.0
        %6877 = vmatpush.msra.mxu0 0.0
        %6878 = vmatpush.msra.mxu0 0.0
        %6879 = vmatpush.msra.mxu0 0.0
        %6880 = vmatpush.msra.mxu0 0.0
        %6881 = vmatpush.msra.mxu0 0.0
        %6882 = vmatpush.msra.mxu0 0.0
        %6883 = vmatpush.msra.mxu0 0.0
        %6884 = vmatpush.msra.mxu0 0.0
        %6885 = vmatpush.msra.mxu0 0.0
        %6886 = vmatpush.msra.mxu0 %v6573
        %6887 = vmatpush.msra.mxu0 %v6557
        %6888 = vmatpush.msra.mxu0 %v6541
        %6889 = vmatpush.msra.mxu0 %v6525
        %6890 = vmatpush.msra.mxu0 %v6509
        %6891 = vmatmul.f32.gmra.mxu0 %v6613
        %v6892 = vpop.f32.mrf.mxu0
        %v6893 = vadd.f32 %v6593, %v6892
        %6894 = vdwg.mxu0
        %6895 = vmatpush.msra.mxu0 0.0
        %6896 = vmatpush.msra.mxu0 0.0
        %6897 = vmatpush.msra.mxu0 0.0
        %6898 = vmatpush.msra.mxu0 0.0
        %6899 = vmatpush.msra.mxu0 0.0
        %6900 = vmatpush.msra.mxu0 0.0
        %6901 = vmatpush.msra.mxu0 0.0
        %6902 = vmatpush.msra.mxu0 0.0
        %6903 = vmatpush.msra.mxu0 0.0
        %6904 = vmatpush.msra.mxu0 0.0
        %6905 = vmatpush.msra.mxu0 0.0
        %6906 = vmatpush.msra.mxu0 %v6574
        %6907 = vmatpush.msra.mxu0 %v6558
        %6908 = vmatpush.msra.mxu0 %v6542
        %6909 = vmatpush.msra.mxu0 %v6526
        %6910 = vmatpush.msra.mxu0 %v6510
        %6911 = vmatmul.f32.gmra.mxu0 %v6613
        %v6912 = vpop.f32.mrf.mxu0
        %v6913 = vadd.f32 %v6594, %v6912
        %6914 = vdwg.mxu0
        %6915 = vmatpush.msra.mxu0 0.0
        %6916 = vmatpush.msra.mxu0 0.0
        %6917 = vmatpush.msra.mxu0 0.0
        %6918 = vmatpush.msra.mxu0 0.0
        %6919 = vmatpush.msra.mxu0 0.0
        %6920 = vmatpush.msra.mxu0 0.0
        %6921 = vmatpush.msra.mxu0 0.0
        %6922 = vmatpush.msra.mxu0 0.0
        %6923 = vmatpush.msra.mxu0 0.0
        %6924 = vmatpush.msra.mxu0 0.0
        %6925 = vmatpush.msra.mxu0 0.0
        %6926 = vmatpush.msra.mxu0 %v6575
        %6927 = vmatpush.msra.mxu0 %v6559
        %6928 = vmatpush.msra.mxu0 %v6543
        %6929 = vmatpush.msra.mxu0 %v6527
        %6930 = vmatpush.msra.mxu0 %v6511
        %6931 = vmatmul.f32.gmra.mxu0 %v6613
        %v6932 = vpop.f32.mrf.mxu0
        %v6933 = vadd.f32 %v6595, %v6932
        %6934 = vdwg.mxu0
        %v6935 = vmax.f32 %v6633, 0.0
        %v6936 = vmax.f32 %v6653, 0.0
        %v6937 = vmax.f32 %v6673, 0.0
        %v6938 = vmax.f32 %v6693, 0.0
        %v6939 = vmax.f32 %v6713, 0.0
        %v6940 = vmax.f32 %v6733, 0.0
        %v6941 = vmax.f32 %v6753, 0.0
        %v6942 = vmax.f32 %v6773, 0.0
        %v6943 = vmax.f32 %v6793, 0.0
        %v6944 = vmax.f32 %v6813, 0.0
        %v6945 = vmax.f32 %v6833, 0.0
        %v6946 = vmax.f32 %v6853, 0.0
        %v6947 = vmax.f32 %v6873, 0.0
        %v6948 = vmax.f32 %v6893, 0.0
        %v6949 = vmax.f32 %v6913, 0.0
        %v6950 = vmax.f32 %v6933, 0.0
        %v6951 = vld [vmem:[%s87] sm:$0xff]
        %v6952 = vld [vmem:[%s87 + $0x8] sm:$0xff]
        %v6953 = vld [vmem:[%s87 + $0x10] sm:$0xff]
        %v6954 = vld [vmem:[%s87 + $0x18] sm:$0xff]
        %v6955 = vld [vmem:[%s87 + $0x20] sm:$0xff]
        %v6956 = vld [vmem:[%s87 + $0x28] sm:$0xff]
        %v6957 = vld [vmem:[%s87 + $0x30] sm:$0xff]
        %v6958 = vld [vmem:[%s87 + $0x38] sm:$0xff]
        %v6959 = vld [vmem:[%s87 + $0x40] sm:$0xff]
        %v6960 = vld [vmem:[%s87 + $0x48] sm:$0xff]
        %v6961 = vld [vmem:[%s87 + $0x50] sm:$0xff]
        %v6962 = vld [vmem:[%s87 + $0x58] sm:$0xff]
        %v6963 = vld [vmem:[%s87 + $0x60] sm:$0xff]
        %v6964 = vld [vmem:[%s87 + $0x68] sm:$0xff]
        %v6965 = vld [vmem:[%s87 + $0x70] sm:$0xff]
        %v6966 = vld [vmem:[%s87 + $0x78] sm:$0xff]
        %v6967 = vld [vmem:[%s87 + $0x80] sm:$0xff]
        %v6968 = vld [vmem:[%s87 + $0x88] sm:$0xff]
        %v6969 = vld [vmem:[%s87 + $0x90] sm:$0xff]
        %v6970 = vld [vmem:[%s87 + $0x98] sm:$0xff]
        %v6971 = vld [vmem:[%s87 + $0xa0] sm:$0xff]
        %v6972 = vld [vmem:[%s87 + $0xa8] sm:$0xff]
        %v6973 = vld [vmem:[%s87 + $0xb0] sm:$0xff]
        %v6974 = vld [vmem:[%s87 + $0xb8] sm:$0xff]
        %v6975 = vld [vmem:[%s87 + $0xc0] sm:$0xff]
        %v6976 = vld [vmem:[%s87 + $0xc8] sm:$0xff]
        %v6977 = vld [vmem:[%s87 + $0xd0] sm:$0xff]
        %v6978 = vld [vmem:[%s87 + $0xd8] sm:$0xff]
        %v6979 = vld [vmem:[%s87 + $0xe0] sm:$0xff]
        %v6980 = vld [vmem:[%s87 + $0xe8] sm:$0xff]
        %v6981 = vld [vmem:[%s87 + $0xf0] sm:$0xff]
        %v6982 = vld [vmem:[%s87 + $0xf8] sm:$0xff]
        %v6983 = vld [vmem:[%s87 + $0x100] sm:$0xff]
        %v6984 = vld [vmem:[%s87 + $0x108] sm:$0xff]
        %v6985 = vld [vmem:[%s87 + $0x110] sm:$0xff]
        %v6986 = vld [vmem:[%s87 + $0x118] sm:$0xff]
        %v6987 = vld [vmem:[%s87 + $0x120] sm:$0xff]
        %v6988 = vld [vmem:[%s87 + $0x128] sm:$0xff]
        %v6989 = vld [vmem:[%s87 + $0x130] sm:$0xff]
        %v6990 = vld [vmem:[%s87 + $0x138] sm:$0xff]
        %v6991 = vld [vmem:[%s87 + $0x140] sm:$0xff]
        %v6992 = vld [vmem:[%s87 + $0x148] sm:$0xff]
        %v6993 = vld [vmem:[%s87 + $0x150] sm:$0xff]
        %v6994 = vld [vmem:[%s87 + $0x158] sm:$0xff]
        %v6995 = vld [vmem:[%s87 + $0x160] sm:$0xff]
        %v6996 = vld [vmem:[%s87 + $0x168] sm:$0xff]
        %v6997 = vld [vmem:[%s87 + $0x170] sm:$0xff]
        %v6998 = vld [vmem:[%s87 + $0x178] sm:$0xff]
        %v6999 = vld [vmem:[%s87 + $0x180] sm:$0xff]
        %v7000 = vld [vmem:[%s87 + $0x188] sm:$0xff]
        %v7001 = vld [vmem:[%s87 + $0x190] sm:$0xff]
        %v7002 = vld [vmem:[%s87 + $0x198] sm:$0xff]
        %v7003 = vld [vmem:[%s87 + $0x1a0] sm:$0xff]
        %v7004 = vld [vmem:[%s87 + $0x1a8] sm:$0xff]
        %v7005 = vld [vmem:[%s87 + $0x1b0] sm:$0xff]
        %v7006 = vld [vmem:[%s87 + $0x1b8] sm:$0xff]
        %v7007 = vld [vmem:[%s87 + $0x1c0] sm:$0xff]
        %v7008 = vld [vmem:[%s87 + $0x1c8] sm:$0xff]
        %v7009 = vld [vmem:[%s87 + $0x1d0] sm:$0xff]
        %v7010 = vld [vmem:[%s87 + $0x1d8] sm:$0xff]
        %v7011 = vld [vmem:[%s87 + $0x1e0] sm:$0xff]
        %v7012 = vld [vmem:[%s87 + $0x1e8] sm:$0xff]
        %v7013 = vld [vmem:[%s87 + $0x1f0] sm:$0xff]
        %v7014 = vld [vmem:[%s87 + $0x1f8] sm:$0xff]
        %v7015 = vld [vmem:[%s87 + $0x200] sm:$0xff]
        %v7016 = vld [vmem:[%s87 + $0x208] sm:$0xff]
        %v7017 = vld [vmem:[%s87 + $0x210] sm:$0xff]
        %v7018 = vld [vmem:[%s87 + $0x218] sm:$0xff]
        %v7019 = vld [vmem:[%s87 + $0x220] sm:$0xff]
        %v7020 = vld [vmem:[%s87 + $0x228] sm:$0xff]
        %v7021 = vld [vmem:[%s87 + $0x230] sm:$0xff]
        %v7022 = vld [vmem:[%s87 + $0x238] sm:$0xff]
        %v7023 = vld [vmem:[%s87 + $0x240] sm:$0xff]
        %v7024 = vld [vmem:[%s87 + $0x248] sm:$0xff]
        %v7025 = vld [vmem:[%s87 + $0x250] sm:$0xff]
        %v7026 = vld [vmem:[%s87 + $0x258] sm:$0xff]
        %v7027 = vld [vmem:[%s87 + $0x260] sm:$0xff]
        %v7028 = vld [vmem:[%s87 + $0x268] sm:$0xff]
        %v7029 = vld [vmem:[%s87 + $0x270] sm:$0xff]
        %v7030 = vld [vmem:[%s87 + $0x278] sm:$0xff]
        %v7031 = vld [vmem:[%s87 + $0x280] sm:$0xff]
        %v7032 = vld [vmem:[%s87 + $0x288] sm:$0xff]
        %v7033 = vld [vmem:[%s87 + $0x290] sm:$0xff]
        %v7034 = vld [vmem:[%s87 + $0x298] sm:$0xff]
        %v7035 = vld [vmem:[%s87 + $0x2a0] sm:$0xff]
        %v7036 = vld [vmem:[%s87 + $0x2a8] sm:$0xff]
        %v7037 = vld [vmem:[%s87 + $0x2b0] sm:$0xff]
        %v7038 = vld [vmem:[%s87 + $0x2b8] sm:$0xff]
        %v7039 = vld [vmem:[%s87 + $0x2c0] sm:$0xff]
        %v7040 = vld [vmem:[%s87 + $0x2c8] sm:$0xff]
        %v7041 = vld [vmem:[%s87 + $0x2d0] sm:$0xff]
        %v7042 = vld [vmem:[%s87 + $0x2d8] sm:$0xff]
        %v7043 = vld [vmem:[%s87 + $0x2e0] sm:$0xff]
        %v7044 = vld [vmem:[%s87 + $0x2e8] sm:$0xff]
        %v7045 = vld [vmem:[%s87 + $0x2f0] sm:$0xff]
        %v7046 = vld [vmem:[%s87 + $0x2f8] sm:$0xff]
        %v7047 = vld [vmem:[%s87 + $0x300] sm:$0xff]
        %v7048 = vld [vmem:[%s87 + $0x308] sm:$0xff]
        %v7049 = vld [vmem:[%s87 + $0x310] sm:$0xff]
        %v7050 = vld [vmem:[%s87 + $0x318] sm:$0xff]
        %v7051 = vld [vmem:[%s87 + $0x320] sm:$0xff]
        %v7052 = vld [vmem:[%s87 + $0x328] sm:$0xff]
        %v7053 = vld [vmem:[%s87 + $0x330] sm:$0xff]
        %v7054 = vld [vmem:[%s87 + $0x338] sm:$0xff]
        %v7055 = vld [vmem:[%s87 + $0x340] sm:$0xff]
        %v7056 = vld [vmem:[%s87 + $0x348] sm:$0xff]
        %v7057 = vld [vmem:[%s87 + $0x350] sm:$0xff]
        %v7058 = vld [vmem:[%s87 + $0x358] sm:$0xff]
        %v7059 = vld [vmem:[%s87 + $0x360] sm:$0xff]
        %v7060 = vld [vmem:[%s87 + $0x368] sm:$0xff]
        %v7061 = vld [vmem:[%s87 + $0x370] sm:$0xff]
        %v7062 = vld [vmem:[%s87 + $0x378] sm:$0xff]
        %v7063 = vld [vmem:[%s87 + $0x380] sm:$0xff]
        %v7064 = vld [vmem:[%s87 + $0x388] sm:$0xff]
        %v7065 = vld [vmem:[%s87 + $0x390] sm:$0xff]
        %v7066 = vld [vmem:[%s87 + $0x398] sm:$0xff]
        %v7067 = vld [vmem:[%s87 + $0x3a0] sm:$0xff]
        %v7068 = vld [vmem:[%s87 + $0x3a8] sm:$0xff]
        %v7069 = vld [vmem:[%s87 + $0x3b0] sm:$0xff]
        %v7070 = vld [vmem:[%s87 + $0x3b8] sm:$0xff]
        %v7071 = vld [vmem:[%s87 + $0x3c0] sm:$0xff]
        %v7072 = vld [vmem:[%s87 + $0x3c8] sm:$0xff]
        %v7073 = vld [vmem:[%s87 + $0x3d0] sm:$0xff]
        %v7074 = vld [vmem:[%s87 + $0x3d8] sm:$0xff]
        %v7075 = vld [vmem:[%s87 + $0x3e0] sm:$0xff]
        %v7076 = vld [vmem:[%s87 + $0x3e8] sm:$0xff]
        %v7077 = vld [vmem:[%s87 + $0x3f0] sm:$0xff]
        %v7078 = vld [vmem:[%s87 + $0x3f8] sm:$0xff]
        %v7079 = vld [vmem:[%s87 + $0x400] sm:$0xff]
        %v7080 = vld [vmem:[%s87 + $0x408] sm:$0xff]
        %v7081 = vld [vmem:[%s87 + $0x410] sm:$0xff]
        %v7082 = vld [vmem:[%s87 + $0x418] sm:$0xff]
        %v7083 = vld [vmem:[%s87 + $0x420] sm:$0xff]
        %v7084 = vld [vmem:[%s87 + $0x428] sm:$0xff]
        %v7085 = vld [vmem:[%s87 + $0x430] sm:$0xff]
        %v7086 = vld [vmem:[%s87 + $0x438] sm:$0xff]
        %v7087 = vld [vmem:[%s87 + $0x440] sm:$0xff]
        %v7088 = vld [vmem:[%s87 + $0x448] sm:$0xff]
        %v7089 = vld [vmem:[%s87 + $0x450] sm:$0xff]
        %v7090 = vld [vmem:[%s87 + $0x458] sm:$0xff]
        %v7091 = vld [vmem:[%s87 + $0x460] sm:$0xff]
        %v7092 = vld [vmem:[%s87 + $0x468] sm:$0xff]
        %v7093 = vld [vmem:[%s87 + $0x470] sm:$0xff]
        %v7094 = vld [vmem:[%s87 + $0x478] sm:$0xff]
        %v7095 = vld [vmem:[%s87 + $0x480] sm:$0xff]
        %v7096 = vld [vmem:[%s87 + $0x488] sm:$0xff]
        %v7097 = vld [vmem:[%s87 + $0x490] sm:$0xff]
        %v7098 = vld [vmem:[%s87 + $0x498] sm:$0xff]
        %v7099 = vld [vmem:[%s87 + $0x4a0] sm:$0xff]
        %v7100 = vld [vmem:[%s87 + $0x4a8] sm:$0xff]
        %v7101 = vld [vmem:[%s87 + $0x4b0] sm:$0xff]
        %v7102 = vld [vmem:[%s87 + $0x4b8] sm:$0xff]
        %v7103 = vld [vmem:[%s87 + $0x4c0] sm:$0xff]
        %v7104 = vld [vmem:[%s87 + $0x4c8] sm:$0xff]
        %v7105 = vld [vmem:[%s87 + $0x4d0] sm:$0xff]
        %v7106 = vld [vmem:[%s87 + $0x4d8] sm:$0xff]
        %v7107 = vld [vmem:[%s87 + $0x4e0] sm:$0xff]
        %v7108 = vld [vmem:[%s87 + $0x4e8] sm:$0xff]
        %v7109 = vld [vmem:[%s87 + $0x4f0] sm:$0xff]
        %v7110 = vld [vmem:[%s87 + $0x4f8] sm:$0xff]
        %v7111 = vld [vmem:[%s87 + $0x500] sm:$0xff]
        %v7112 = vld [vmem:[%s87 + $0x508] sm:$0xff]
        %v7113 = vld [vmem:[%s87 + $0x510] sm:$0xff]
        %v7114 = vld [vmem:[%s87 + $0x518] sm:$0xff]
        %v7115 = vld [vmem:[%s87 + $0x520] sm:$0xff]
        %v7116 = vld [vmem:[%s87 + $0x528] sm:$0xff]
        %v7117 = vld [vmem:[%s87 + $0x530] sm:$0xff]
        %v7118 = vld [vmem:[%s87 + $0x538] sm:$0xff]
        %v7119 = vld [vmem:[%s87 + $0x540] sm:$0xff]
        %v7120 = vld [vmem:[%s87 + $0x548] sm:$0xff]
        %v7121 = vld [vmem:[%s87 + $0x550] sm:$0xff]
        %v7122 = vld [vmem:[%s87 + $0x558] sm:$0xff]
        %v7123 = vld [vmem:[%s87 + $0x560] sm:$0xff]
        %v7124 = vld [vmem:[%s87 + $0x568] sm:$0xff]
        %v7125 = vld [vmem:[%s87 + $0x570] sm:$0xff]
        %v7126 = vld [vmem:[%s87 + $0x578] sm:$0xff]
        %v7127 = vld [vmem:[%s87 + $0x580] sm:$0xff]
        %v7128 = vld [vmem:[%s87 + $0x588] sm:$0xff]
        %v7129 = vld [vmem:[%s87 + $0x590] sm:$0xff]
        %v7130 = vld [vmem:[%s87 + $0x598] sm:$0xff]
        %v7131 = vld [vmem:[%s87 + $0x5a0] sm:$0xff]
        %v7132 = vld [vmem:[%s87 + $0x5a8] sm:$0xff]
        %v7133 = vld [vmem:[%s87 + $0x5b0] sm:$0xff]
        %v7134 = vld [vmem:[%s87 + $0x5b8] sm:$0xff]
        %v7135 = vld [vmem:[%s87 + $0x5c0] sm:$0xff]
        %v7136 = vld [vmem:[%s87 + $0x5c8] sm:$0xff]
        %v7137 = vld [vmem:[%s87 + $0x5d0] sm:$0xff]
        %v7138 = vld [vmem:[%s87 + $0x5d8] sm:$0xff]
        %v7139 = vld [vmem:[%s87 + $0x5e0] sm:$0xff]
        %v7140 = vld [vmem:[%s87 + $0x5e8] sm:$0xff]
        %v7141 = vld [vmem:[%s87 + $0x5f0] sm:$0xff]
        %v7142 = vld [vmem:[%s87 + $0x5f8] sm:$0xff]
        %v7143 = vld [vmem:[%s87 + $0x600] sm:$0xff]
        %v7144 = vld [vmem:[%s87 + $0x608] sm:$0xff]
        %v7145 = vld [vmem:[%s87 + $0x610] sm:$0xff]
        %v7146 = vld [vmem:[%s87 + $0x618] sm:$0xff]
        %v7147 = vld [vmem:[%s87 + $0x620] sm:$0xff]
        %v7148 = vld [vmem:[%s87 + $0x628] sm:$0xff]
        %v7149 = vld [vmem:[%s87 + $0x630] sm:$0xff]
        %v7150 = vld [vmem:[%s87 + $0x638] sm:$0xff]
        %v7151 = vld [vmem:[%s87 + $0x640] sm:$0xff]
        %v7152 = vld [vmem:[%s87 + $0x648] sm:$0xff]
        %v7153 = vld [vmem:[%s87 + $0x650] sm:$0xff]
        %v7154 = vld [vmem:[%s87 + $0x658] sm:$0xff]
        %v7155 = vld [vmem:[%s87 + $0x660] sm:$0xff]
        %v7156 = vld [vmem:[%s87 + $0x668] sm:$0xff]
        %v7157 = vld [vmem:[%s87 + $0x670] sm:$0xff]
        %v7158 = vld [vmem:[%s87 + $0x678] sm:$0xff]
        %v7159 = vld [vmem:[%s87 + $0x680] sm:$0xff]
        %v7160 = vld [vmem:[%s87 + $0x688] sm:$0xff]
        %v7161 = vld [vmem:[%s87 + $0x690] sm:$0xff]
        %v7162 = vld [vmem:[%s87 + $0x698] sm:$0xff]
        %v7163 = vld [vmem:[%s87 + $0x6a0] sm:$0xff]
        %v7164 = vld [vmem:[%s87 + $0x6a8] sm:$0xff]
        %v7165 = vld [vmem:[%s87 + $0x6b0] sm:$0xff]
        %v7166 = vld [vmem:[%s87 + $0x6b8] sm:$0xff]
        %v7167 = vld [vmem:[%s87 + $0x6c0] sm:$0xff]
        %v7168 = vld [vmem:[%s87 + $0x6c8] sm:$0xff]
        %v7169 = vld [vmem:[%s87 + $0x6d0] sm:$0xff]
        %v7170 = vld [vmem:[%s87 + $0x6d8] sm:$0xff]
        %v7171 = vld [vmem:[%s87 + $0x6e0] sm:$0xff]
        %v7172 = vld [vmem:[%s87 + $0x6e8] sm:$0xff]
        %v7173 = vld [vmem:[%s87 + $0x6f0] sm:$0xff]
        %v7174 = vld [vmem:[%s87 + $0x6f8] sm:$0xff]
        %v7175 = vld [vmem:[%s87 + $0x700] sm:$0xff]
        %v7176 = vld [vmem:[%s87 + $0x708] sm:$0xff]
        %v7177 = vld [vmem:[%s87 + $0x710] sm:$0xff]
        %v7178 = vld [vmem:[%s87 + $0x718] sm:$0xff]
        %v7179 = vld [vmem:[%s87 + $0x720] sm:$0xff]
        %v7180 = vld [vmem:[%s87 + $0x728] sm:$0xff]
        %v7181 = vld [vmem:[%s87 + $0x730] sm:$0xff]
        %v7182 = vld [vmem:[%s87 + $0x738] sm:$0xff]
        %v7183 = vld [vmem:[%s87 + $0x740] sm:$0xff]
        %v7184 = vld [vmem:[%s87 + $0x748] sm:$0xff]
        %v7185 = vld [vmem:[%s87 + $0x750] sm:$0xff]
        %v7186 = vld [vmem:[%s87 + $0x758] sm:$0xff]
        %v7187 = vld [vmem:[%s87 + $0x760] sm:$0xff]
        %v7188 = vld [vmem:[%s87 + $0x768] sm:$0xff]
        %v7189 = vld [vmem:[%s87 + $0x770] sm:$0xff]
        %v7190 = vld [vmem:[%s87 + $0x778] sm:$0xff]
        %v7191 = vld [vmem:[%s87 + $0x780] sm:$0xff]
        %v7192 = vld [vmem:[%s87 + $0x788] sm:$0xff]
        %v7193 = vld [vmem:[%s87 + $0x790] sm:$0xff]
        %v7194 = vld [vmem:[%s87 + $0x798] sm:$0xff]
        %v7195 = vld [vmem:[%s87 + $0x7a0] sm:$0xff]
        %v7196 = vld [vmem:[%s87 + $0x7a8] sm:$0xff]
        %v7197 = vld [vmem:[%s87 + $0x7b0] sm:$0xff]
        %v7198 = vld [vmem:[%s87 + $0x7b8] sm:$0xff]
        %v7199 = vld [vmem:[%s87 + $0x7c0] sm:$0xff]
        %v7200 = vld [vmem:[%s87 + $0x7c8] sm:$0xff]
        %v7201 = vld [vmem:[%s87 + $0x7d0] sm:$0xff]
        %v7202 = vld [vmem:[%s87 + $0x7d8] sm:$0xff]
        %v7203 = vld [vmem:[%s87 + $0x7e0] sm:$0xff]
        %v7204 = vld [vmem:[%s87 + $0x7e8] sm:$0xff]
        %v7205 = vld [vmem:[%s87 + $0x7f0] sm:$0xff]
        %v7206 = vld [vmem:[%s87 + $0x7f8] sm:$0xff]
        %v7207 = vld [vmem:[%s89] sm:$0x1]
        %v7209 = vperm.slane %v7207, 0
        %7211 = vmatpush.msra.mxu0 %v6966
        %7212 = vmatpush.msra.mxu0 %v6965
        %7213 = vmatpush.msra.mxu0 %v6964
        %7214 = vmatpush.msra.mxu0 %v6963
        %7215 = vmatpush.msra.mxu0 %v6962
        %7216 = vmatpush.msra.mxu0 %v6961
        %7217 = vmatpush.msra.mxu0 %v6960
        %7218 = vmatpush.msra.mxu0 %v6959
        %7219 = vmatpush.msra.mxu0 %v6958
        %7220 = vmatpush.msra.mxu0 %v6957
        %7221 = vmatpush.msra.mxu0 %v6956
        %7222 = vmatpush.msra.mxu0 %v6955
        %7223 = vmatpush.msra.mxu0 %v6954
        %7224 = vmatpush.msra.mxu0 %v6953
        %7225 = vmatpush.msra.mxu0 %v6952
        %7226 = vmatpush.msra.mxu0 %v6951
        %7227 = vmatmul.f32.gmra.mxu0 %v6935
        %v7228 = vpop.f32.mrf.mxu0
        %v7229 = vadd.f32 %v7209, %v7228
        %7230 = vdwg.mxu0
        %7231 = vmatpush.msra.mxu0 %v6982
        %7232 = vmatpush.msra.mxu0 %v6981
        %7233 = vmatpush.msra.mxu0 %v6980
        %7234 = vmatpush.msra.mxu0 %v6979
        %7235 = vmatpush.msra.mxu0 %v6978
        %7236 = vmatpush.msra.mxu0 %v6977
        %7237 = vmatpush.msra.mxu0 %v6976
        %7238 = vmatpush.msra.mxu0 %v6975
        %7239 = vmatpush.msra.mxu0 %v6974
        %7240 = vmatpush.msra.mxu0 %v6973
        %7241 = vmatpush.msra.mxu0 %v6972
        %7242 = vmatpush.msra.mxu0 %v6971
        %7243 = vmatpush.msra.mxu0 %v6970
        %7244 = vmatpush.msra.mxu0 %v6969
        %7245 = vmatpush.msra.mxu0 %v6968
        %7246 = vmatpush.msra.mxu0 %v6967
        %7247 = vmatmul.f32.gmra.mxu0 %v6936
        %v7248 = vpop.f32.mrf.mxu0
        %v7249 = vadd.f32 %v7229, %v7248
        %7250 = vdwg.mxu0
        %7251 = vmatpush.msra.mxu0 %v6998
        %7252 = vmatpush.msra.mxu0 %v6997
        %7253 = vmatpush.msra.mxu0 %v6996
        %7254 = vmatpush.msra.mxu0 %v6995
        %7255 = vmatpush.msra.mxu0 %v6994
        %7256 = vmatpush.msra.mxu0 %v6993
        %7257 = vmatpush.msra.mxu0 %v6992
        %7258 = vmatpush.msra.mxu0 %v6991
        %7259 = vmatpush.msra.mxu0 %v6990
        %7260 = vmatpush.msra.mxu0 %v6989
        %7261 = vmatpush.msra.mxu0 %v6988
        %7262 = vmatpush.msra.mxu0 %v6987
        %7263 = vmatpush.msra.mxu0 %v6986
        %7264 = vmatpush.msra.mxu0 %v6985
        %7265 = vmatpush.msra.mxu0 %v6984
        %7266 = vmatpush.msra.mxu0 %v6983
        %7267 = vmatmul.f32.gmra.mxu0 %v6937
        %v7268 = vpop.f32.mrf.mxu0
        %v7269 = vadd.f32 %v7249, %v7268
        %7270 = vdwg.mxu0
        %7271 = vmatpush.msra.mxu0 %v7014
        %7272 = vmatpush.msra.mxu0 %v7013
        %7273 = vmatpush.msra.mxu0 %v7012
        %7274 = vmatpush.msra.mxu0 %v7011
        %7275 = vmatpush.msra.mxu0 %v7010
        %7276 = vmatpush.msra.mxu0 %v7009
        %7277 = vmatpush.msra.mxu0 %v7008
        %7278 = vmatpush.msra.mxu0 %v7007
        %7279 = vmatpush.msra.mxu0 %v7006
        %7280 = vmatpush.msra.mxu0 %v7005
        %7281 = vmatpush.msra.mxu0 %v7004
        %7282 = vmatpush.msra.mxu0 %v7003
        %7283 = vmatpush.msra.mxu0 %v7002
        %7284 = vmatpush.msra.mxu0 %v7001
        %7285 = vmatpush.msra.mxu0 %v7000
        %7286 = vmatpush.msra.mxu0 %v6999
        %7287 = vmatmul.f32.gmra.mxu0 %v6938
        %v7288 = vpop.f32.mrf.mxu0
        %v7289 = vadd.f32 %v7269, %v7288
        %7290 = vdwg.mxu0
        %7291 = vmatpush.msra.mxu0 %v7030
        %7292 = vmatpush.msra.mxu0 %v7029
        %7293 = vmatpush.msra.mxu0 %v7028
        %7294 = vmatpush.msra.mxu0 %v7027
        %7295 = vmatpush.msra.mxu0 %v7026
        %7296 = vmatpush.msra.mxu0 %v7025
        %7297 = vmatpush.msra.mxu0 %v7024
        %7298 = vmatpush.msra.mxu0 %v7023
        %7299 = vmatpush.msra.mxu0 %v7022
        %7300 = vmatpush.msra.mxu0 %v7021
        %7301 = vmatpush.msra.mxu0 %v7020
        %7302 = vmatpush.msra.mxu0 %v7019
        %7303 = vmatpush.msra.mxu0 %v7018
        %7304 = vmatpush.msra.mxu0 %v7017
        %7305 = vmatpush.msra.mxu0 %v7016
        %7306 = vmatpush.msra.mxu0 %v7015
        %7307 = vmatmul.f32.gmra.mxu0 %v6939
        %v7308 = vpop.f32.mrf.mxu0
        %v7309 = vadd.f32 %v7289, %v7308
        %7310 = vdwg.mxu0
        %7311 = vmatpush.msra.mxu0 %v7046
        %7312 = vmatpush.msra.mxu0 %v7045
        %7313 = vmatpush.msra.mxu0 %v7044
        %7314 = vmatpush.msra.mxu0 %v7043
        %7315 = vmatpush.msra.mxu0 %v7042
        %7316 = vmatpush.msra.mxu0 %v7041
        %7317 = vmatpush.msra.mxu0 %v7040
        %7318 = vmatpush.msra.mxu0 %v7039
        %7319 = vmatpush.msra.mxu0 %v7038
        %7320 = vmatpush.msra.mxu0 %v7037
        %7321 = vmatpush.msra.mxu0 %v7036
        %7322 = vmatpush.msra.mxu0 %v7035
        %7323 = vmatpush.msra.mxu0 %v7034
        %7324 = vmatpush.msra.mxu0 %v7033
        %7325 = vmatpush.msra.mxu0 %v7032
        %7326 = vmatpush.msra.mxu0 %v7031
        %7327 = vmatmul.f32.gmra.mxu0 %v6940
        %v7328 = vpop.f32.mrf.mxu0
        %v7329 = vadd.f32 %v7309, %v7328
        %7330 = vdwg.mxu0
        %7331 = vmatpush.msra.mxu0 %v7062
        %7332 = vmatpush.msra.mxu0 %v7061
        %7333 = vmatpush.msra.mxu0 %v7060
        %7334 = vmatpush.msra.mxu0 %v7059
        %7335 = vmatpush.msra.mxu0 %v7058
        %7336 = vmatpush.msra.mxu0 %v7057
        %7337 = vmatpush.msra.mxu0 %v7056
        %7338 = vmatpush.msra.mxu0 %v7055
        %7339 = vmatpush.msra.mxu0 %v7054
        %7340 = vmatpush.msra.mxu0 %v7053
        %7341 = vmatpush.msra.mxu0 %v7052
        %7342 = vmatpush.msra.mxu0 %v7051
        %7343 = vmatpush.msra.mxu0 %v7050
        %7344 = vmatpush.msra.mxu0 %v7049
        %7345 = vmatpush.msra.mxu0 %v7048
        %7346 = vmatpush.msra.mxu0 %v7047
        %7347 = vmatmul.f32.gmra.mxu0 %v6941
        %v7348 = vpop.f32.mrf.mxu0
        %v7349 = vadd.f32 %v7329, %v7348
        %7350 = vdwg.mxu0
        %7351 = vmatpush.msra.mxu0 %v7078
        %7352 = vmatpush.msra.mxu0 %v7077
        %7353 = vmatpush.msra.mxu0 %v7076
        %7354 = vmatpush.msra.mxu0 %v7075
        %7355 = vmatpush.msra.mxu0 %v7074
        %7356 = vmatpush.msra.mxu0 %v7073
        %7357 = vmatpush.msra.mxu0 %v7072
        %7358 = vmatpush.msra.mxu0 %v7071
        %7359 = vmatpush.msra.mxu0 %v7070
        %7360 = vmatpush.msra.mxu0 %v7069
        %7361 = vmatpush.msra.mxu0 %v7068
        %7362 = vmatpush.msra.mxu0 %v7067
        %7363 = vmatpush.msra.mxu0 %v7066
        %7364 = vmatpush.msra.mxu0 %v7065
        %7365 = vmatpush.msra.mxu0 %v7064
        %7366 = vmatpush.msra.mxu0 %v7063
        %7367 = vmatmul.f32.gmra.mxu0 %v6942
        %v7368 = vpop.f32.mrf.mxu0
        %v7369 = vadd.f32 %v7349, %v7368
        %7370 = vdwg.mxu0
        %7371 = vmatpush.msra.mxu0 %v7094
        %7372 = vmatpush.msra.mxu0 %v7093
        %7373 = vmatpush.msra.mxu0 %v7092
        %7374 = vmatpush.msra.mxu0 %v7091
        %7375 = vmatpush.msra.mxu0 %v7090
        %7376 = vmatpush.msra.mxu0 %v7089
        %7377 = vmatpush.msra.mxu0 %v7088
        %7378 = vmatpush.msra.mxu0 %v7087
        %7379 = vmatpush.msra.mxu0 %v7086
        %7380 = vmatpush.msra.mxu0 %v7085
        %7381 = vmatpush.msra.mxu0 %v7084
        %7382 = vmatpush.msra.mxu0 %v7083
        %7383 = vmatpush.msra.mxu0 %v7082
        %7384 = vmatpush.msra.mxu0 %v7081
        %7385 = vmatpush.msra.mxu0 %v7080
        %7386 = vmatpush.msra.mxu0 %v7079
        %7387 = vmatmul.f32.gmra.mxu0 %v6943
        %v7388 = vpop.f32.mrf.mxu0
        %v7389 = vadd.f32 %v7369, %v7388
        %7390 = vdwg.mxu0
        %7391 = vmatpush.msra.mxu0 %v7110
        %7392 = vmatpush.msra.mxu0 %v7109
        %7393 = vmatpush.msra.mxu0 %v7108
        %7394 = vmatpush.msra.mxu0 %v7107
        %7395 = vmatpush.msra.mxu0 %v7106
        %7396 = vmatpush.msra.mxu0 %v7105
        %7397 = vmatpush.msra.mxu0 %v7104
        %7398 = vmatpush.msra.mxu0 %v7103
        %7399 = vmatpush.msra.mxu0 %v7102
        %7400 = vmatpush.msra.mxu0 %v7101
        %7401 = vmatpush.msra.mxu0 %v7100
        %7402 = vmatpush.msra.mxu0 %v7099
        %7403 = vmatpush.msra.mxu0 %v7098
        %7404 = vmatpush.msra.mxu0 %v7097
        %7405 = vmatpush.msra.mxu0 %v7096
        %7406 = vmatpush.msra.mxu0 %v7095
        %7407 = vmatmul.f32.gmra.mxu0 %v6944
        %v7408 = vpop.f32.mrf.mxu0
        %v7409 = vadd.f32 %v7389, %v7408
        %7410 = vdwg.mxu0
        %7411 = vmatpush.msra.mxu0 %v7126
        %7412 = vmatpush.msra.mxu0 %v7125
        %7413 = vmatpush.msra.mxu0 %v7124
        %7414 = vmatpush.msra.mxu0 %v7123
        %7415 = vmatpush.msra.mxu0 %v7122
        %7416 = vmatpush.msra.mxu0 %v7121
        %7417 = vmatpush.msra.mxu0 %v7120
        %7418 = vmatpush.msra.mxu0 %v7119
        %7419 = vmatpush.msra.mxu0 %v7118
        %7420 = vmatpush.msra.mxu0 %v7117
        %7421 = vmatpush.msra.mxu0 %v7116
        %7422 = vmatpush.msra.mxu0 %v7115
        %7423 = vmatpush.msra.mxu0 %v7114
        %7424 = vmatpush.msra.mxu0 %v7113
        %7425 = vmatpush.msra.mxu0 %v7112
        %7426 = vmatpush.msra.mxu0 %v7111
        %7427 = vmatmul.f32.gmra.mxu0 %v6945
        %v7428 = vpop.f32.mrf.mxu0
        %v7429 = vadd.f32 %v7409, %v7428
        %7430 = vdwg.mxu0
        %7431 = vmatpush.msra.mxu0 %v7142
        %7432 = vmatpush.msra.mxu0 %v7141
        %7433 = vmatpush.msra.mxu0 %v7140
        %7434 = vmatpush.msra.mxu0 %v7139
        %7435 = vmatpush.msra.mxu0 %v7138
        %7436 = vmatpush.msra.mxu0 %v7137
        %7437 = vmatpush.msra.mxu0 %v7136
        %7438 = vmatpush.msra.mxu0 %v7135
        %7439 = vmatpush.msra.mxu0 %v7134
        %7440 = vmatpush.msra.mxu0 %v7133
        %7441 = vmatpush.msra.mxu0 %v7132
        %7442 = vmatpush.msra.mxu0 %v7131
        %7443 = vmatpush.msra.mxu0 %v7130
        %7444 = vmatpush.msra.mxu0 %v7129
        %7445 = vmatpush.msra.mxu0 %v7128
        %7446 = vmatpush.msra.mxu0 %v7127
        %7447 = vmatmul.f32.gmra.mxu0 %v6946
        %v7448 = vpop.f32.mrf.mxu0
        %v7449 = vadd.f32 %v7429, %v7448
        %7450 = vdwg.mxu0
        %7451 = vmatpush.msra.mxu0 %v7158
        %7452 = vmatpush.msra.mxu0 %v7157
        %7453 = vmatpush.msra.mxu0 %v7156
        %7454 = vmatpush.msra.mxu0 %v7155
        %7455 = vmatpush.msra.mxu0 %v7154
        %7456 = vmatpush.msra.mxu0 %v7153
        %7457 = vmatpush.msra.mxu0 %v7152
        %7458 = vmatpush.msra.mxu0 %v7151
        %7459 = vmatpush.msra.mxu0 %v7150
        %7460 = vmatpush.msra.mxu0 %v7149
        %7461 = vmatpush.msra.mxu0 %v7148
        %7462 = vmatpush.msra.mxu0 %v7147
        %7463 = vmatpush.msra.mxu0 %v7146
        %7464 = vmatpush.msra.mxu0 %v7145
        %7465 = vmatpush.msra.mxu0 %v7144
        %7466 = vmatpush.msra.mxu0 %v7143
        %7467 = vmatmul.f32.gmra.mxu0 %v6947
        %v7468 = vpop.f32.mrf.mxu0
        %v7469 = vadd.f32 %v7449, %v7468
        %7470 = vdwg.mxu0
        %7471 = vmatpush.msra.mxu0 %v7174
        %7472 = vmatpush.msra.mxu0 %v7173
        %7473 = vmatpush.msra.mxu0 %v7172
        %7474 = vmatpush.msra.mxu0 %v7171
        %7475 = vmatpush.msra.mxu0 %v7170
        %7476 = vmatpush.msra.mxu0 %v7169
        %7477 = vmatpush.msra.mxu0 %v7168
        %7478 = vmatpush.msra.mxu0 %v7167
        %7479 = vmatpush.msra.mxu0 %v7166
        %7480 = vmatpush.msra.mxu0 %v7165
        %7481 = vmatpush.msra.mxu0 %v7164
        %7482 = vmatpush.msra.mxu0 %v7163
        %7483 = vmatpush.msra.mxu0 %v7162
        %7484 = vmatpush.msra.mxu0 %v7161
        %7485 = vmatpush.msra.mxu0 %v7160
        %7486 = vmatpush.msra.mxu0 %v7159
        %7487 = vmatmul.f32.gmra.mxu0 %v6948
        %v7488 = vpop.f32.mrf.mxu0
        %v7489 = vadd.f32 %v7469, %v7488
        %7490 = vdwg.mxu0
        %7491 = vmatpush.msra.mxu0 %v7190
        %7492 = vmatpush.msra.mxu0 %v7189
        %7493 = vmatpush.msra.mxu0 %v7188
        %7494 = vmatpush.msra.mxu0 %v7187
        %7495 = vmatpush.msra.mxu0 %v7186
        %7496 = vmatpush.msra.mxu0 %v7185
        %7497 = vmatpush.msra.mxu0 %v7184
        %7498 = vmatpush.msra.mxu0 %v7183
        %7499 = vmatpush.msra.mxu0 %v7182
        %7500 = vmatpush.msra.mxu0 %v7181
        %7501 = vmatpush.msra.mxu0 %v7180
        %7502 = vmatpush.msra.mxu0 %v7179
        %7503 = vmatpush.msra.mxu0 %v7178
        %7504 = vmatpush.msra.mxu0 %v7177
        %7505 = vmatpush.msra.mxu0 %v7176
        %7506 = vmatpush.msra.mxu0 %v7175
        %7507 = vmatmul.f32.gmra.mxu0 %v6949
        %v7508 = vpop.f32.mrf.mxu0
        %v7509 = vadd.f32 %v7489, %v7508
        %7510 = vdwg.mxu0
        %7511 = vmatpush.msra.mxu0 %v7206
        %7512 = vmatpush.msra.mxu0 %v7205
        %7513 = vmatpush.msra.mxu0 %v7204
        %7514 = vmatpush.msra.mxu0 %v7203
        %7515 = vmatpush.msra.mxu0 %v7202
        %7516 = vmatpush.msra.mxu0 %v7201
        %7517 = vmatpush.msra.mxu0 %v7200
        %7518 = vmatpush.msra.mxu0 %v7199
        %7519 = vmatpush.msra.mxu0 %v7198
        %7520 = vmatpush.msra.mxu0 %v7197
        %7521 = vmatpush.msra.mxu0 %v7196
        %7522 = vmatpush.msra.mxu0 %v7195
        %7523 = vmatpush.msra.mxu0 %v7194
        %7524 = vmatpush.msra.mxu0 %v7193
        %7525 = vmatpush.msra.mxu0 %v7192
        %7526 = vmatpush.msra.mxu0 %v7191
        %7527 = vmatmul.f32.gmra.mxu0 %v6950
        %v7528 = vpop.f32.mrf.mxu0
        %v7529 = vadd.f32 %v7509, %v7528
        %7530 = vdwg.mxu0
        %v7531 = vadd.f32 %v6495, %v7529
        %v7532 = vld [vmem:[%s95] sm:$0x1]
        %v7533 = vld [vmem:[%s97] sm:$0x1]
        %v7534 = vsel %vm1579, %v7531, 0.0
        %7535 = vadd.xlane.f32.xlu0 %v7534
        %v7536 = vpop.xlane.xlu0 %7535
        %v7537 = vmul.f32 %v7536, %v2478
        %v7538 = vsub.f32 %v7531, %v7537
        %v7539 = vmul.f32 %v7538, %v7538
        %v7540 = vsel %vm1579, %v7539, 0.0
        %7541 = vadd.xlane.f32.xlu0 %v7540
        %v7542 = vpop.xlane.xlu0 %7541
        %v7543 = vmul.f32 %v7542, %v2478
        %v7544 = vadd.f32 %v7543, 1e-05
        %v7545 = vrsqrt.pop %v7544
        %v7546 = vmul.f32 %v7545, %v7544
        %v7547 = vmul.f32 %v7546, %v7545
        %v7548 = vmul.f32 0.5, %v7547
        %v7549 = vsub.f32 1.5, %v7548
        %v7550 = vmul.f32 %v7545, %v7549
        %vm7551 = vweird.f32 %v7544
        %vm7552 = vweird.f32 %v7545
        %vm7553 = vmor %vm7551, %vm7552
        %v7554 = vsel %vm7553, %v7545, %v7550
        %v7555 = vmul.f32 %v7538, %v7554
        %v7557 = vperm.slane %v7532, 0
        %v7559 = vmul.f32 %v7555, %v7557
        %v7561 = vperm.slane %v7533, 0
        %v7563 = vadd.f32 %v7559, %v7561
        %v7564 = vsel %vm1579, %v7563, 0.0
        %v7565 = vrot.slane %v7564, 4
        %v7566 = vadd.f32 %v7564, %v7565
        %v7567 = vrot.slane %v7566, 2
        %v7568 = vadd.f32 %v7566, %v7567
        %v7569 = vrot.slane %v7568, 1
        %v7570 = vadd.f32 %v7568, %v7569
        %v7571 = vrcp.pop 8.0
        %v7572 = vmul.f32 8.0, %v7571
        %v7573 = vsub.f32 1.0, %v7572
        %v7574 = vmul.f32 %v7571, %v7573
        %v7575 = vadd.f32 %v7571, %v7574
        %vm7576 = vweird.f32 %v7571
        %v7577 = vsel %vm7576, %v7571, %v7575
        %v7578 = vmul.f32 %v7570, %v7577
        %v7579 = vsel %vm1579, %v7563, -inf
        %v7580 = vrot.slane %v7579, 4
        %v7581 = vmax.f32 %v7579, %v7580
        %v7582 = vrot.slane %v7581, 2
        %v7583 = vmax.f32 %v7581, %v7582
        %v7584 = vrot.slane %v7583, 1
        %v7585 = vmax.f32 %v7583, %v7584
        %v7586 = vsel %vm1579, %v7563, inf
        %v7587 = vrot.slane %v7586, 4
        %v7588 = vmin.f32 %v7586, %v7587
        %v7589 = vrot.slane %v7588, 2
        %v7590 = vmin.f32 %v7588, %v7589
        %v7591 = vrot.slane %v7590, 1
        %v7592 = vmin.f32 %v7590, %v7591
        %v7593 = vld [vmem:[%s99] sm:$0xff]
        %v7594 = vld [vmem:[%s99 + $0x8] sm:$0xff]
        %v7595 = vld [vmem:[%s99 + $0x10] sm:$0xff]
        %v7596 = vld [vmem:[%s99 + $0x18] sm:$0xff]
        %v7597 = vld [vmem:[%s99 + $0x20] sm:$0xff]
        %v7598 = vld [vmem:[%s101] sm:$0xff]
        %v7599 = vld [vmem:[%s101 + $0x8] sm:$0xff]
        %v7600 = vld [vmem:[%s101 + $0x10] sm:$0xff]
        %v7601 = vld [vmem:[%s101 + $0x18] sm:$0xff]
        %v7602 = vld [vmem:[%s101 + $0x20] sm:$0xff]
        %v7604 = vsel %vm1579, %v7585, 0
        %7606 = vmatpush.msra.mxu0 0.0
        %7607 = vmatpush.msra.mxu0 0.0
        %7608 = vmatpush.msra.mxu0 0.0
        %7609 = vmatpush.msra.mxu0 0.0
        %7610 = vmatpush.msra.mxu0 0.0
        %7611 = vmatpush.msra.mxu0 0.0
        %7612 = vmatpush.msra.mxu0 0.0
        %7613 = vmatpush.msra.mxu0 0.0
        %7614 = vmatpush.msra.mxu0 0.0
        %7615 = vmatpush.msra.mxu0 0.0
        %7616 = vmatpush.msra.mxu0 0.0
        %7617 = vmatpush.msra.mxu0 %v7602
        %7618 = vmatpush.msra.mxu0 %v7601
        %7619 = vmatpush.msra.mxu0 %v7600
        %7620 = vmatpush.msra.mxu0 %v7599
        %7621 = vmatpush.msra.mxu0 %v7598
        %7622 = vmatmul.f32.gmra.mxu0 %v7604
        %v7623 = vpop.f32.mrf.mxu0
        %v7624 = vadd.f32 0.0, %v7623
        %7625 = vdwg.mxu0
        %v7627 = vsel %vm1579, %v7578, 0
        %7629 = vmatpush.msra.mxu0 0.0
        %7630 = vmatpush.msra.mxu0 0.0
        %7631 = vmatpush.msra.mxu0 0.0
        %7632 = vmatpush.msra.mxu0 0.0
        %7633 = vmatpush.msra.mxu0 0.0
        %7634 = vmatpush.msra.mxu0 0.0
        %7635 = vmatpush.msra.mxu0 0.0
        %7636 = vmatpush.msra.mxu0 0.0
        %7637 = vmatpush.msra.mxu0 0.0
        %7638 = vmatpush.msra.mxu0 0.0
        %7639 = vmatpush.msra.mxu0 0.0
        %7640 = vmatpush.msra.mxu0 %v7597
        %7641 = vmatpush.msra.mxu0 %v7596
        %7642 = vmatpush.msra.mxu0 %v7595
        %7643 = vmatpush.msra.mxu0 %v7594
        %7644 = vmatpush.msra.mxu0 %v7593
        %7645 = vmatmul.f32.gmra.mxu0 %v7627
        %v7646 = vpop.f32.mrf.mxu0
        %v7647 = vadd.f32 %v7624, %v7646
        %7648 = vdwg.mxu0
        %v7649 = vld [vmem:[%s103] sm:$0xff]
        %v7650 = vld [vmem:[%s103 + $0x8] sm:$0xff]
        %v7651 = vld [vmem:[%s103 + $0x10] sm:$0xff]
        %v7652 = vld [vmem:[%s103 + $0x18] sm:$0xff]
        %v7653 = vld [vmem:[%s103 + $0x20] sm:$0xff]
        %v7655 = vsel %vm1579, %v7592, 0
        %7657 = vmatpush.msra.mxu0 0.0
        %7658 = vmatpush.msra.mxu0 0.0
        %7659 = vmatpush.msra.mxu0 0.0
        %7660 = vmatpush.msra.mxu0 0.0
        %7661 = vmatpush.msra.mxu0 0.0
        %7662 = vmatpush.msra.mxu0 0.0
        %7663 = vmatpush.msra.mxu0 0.0
        %7664 = vmatpush.msra.mxu0 0.0
        %7665 = vmatpush.msra.mxu0 0.0
        %7666 = vmatpush.msra.mxu0 0.0
        %7667 = vmatpush.msra.mxu0 0.0
        %7668 = vmatpush.msra.mxu0 %v7653
        %7669 = vmatpush.msra.mxu0 %v7652
        %7670 = vmatpush.msra.mxu0 %v7651
        %7671 = vmatpush.msra.mxu0 %v7650
        %7672 = vmatpush.msra.mxu0 %v7649
        %7673 = vmatmul.f32.gmra.mxu0 %v7655
        %v7674 = vpop.f32.mrf.mxu0
        %v7675 = vadd.f32 0.0, %v7674
        %7676 = vdwg.mxu0
        %v7677 = vadd.f32 %v7647, %v7675
        %v7678 = vld [vmem:[%s105] sm:$0x1]
        %v7679 = vadd.f32 %v7677, %v7678
        %vm7680 = vcmask 73728
        %7681 = vst.msk [vmem:[%s1564] sm:$0x1] %vm7680, %v7679
        %s7682 = sand.u32 %s1247, 1
        %s7683 = scalar_lea.sflag [#allocation3], %s7682
        %s7684 = sand.u32 %s1247, 1
        %s7685 = scalar_lea.vmem [#allocation2], %s7684
        // Predicated region
        $region233: #{transformer_classifier_forward.1} parent=231 // pred_check
          %p7686 = pneg %p1257
        $region234: #{transformer_classifier_forward.1} parent=231 // pred_check_branch
          %7688 = sbr.rel (%p7686) target = $region236
        $region235: #{transformer_classifier_forward.1} parent=231 // pred_region
          %7690 = vsyncadd %s7683, 0
          %s7691 = scalar_lea.hbm %s107, %s121
          %s7693 = sshll.u32 %s7685, 4
          %s7694 = int_to_ptr.vmem [resolvable:$true] %s7693
          %s7695 = sshll.u32 %s7691, 4
          %s7696 = int_to_ptr.hbm [resolvable:$true] %s7695
          %7698 = dma.vmem_to_hbm [thread:$0]  %s7694, 16, %s7696, %s7683
        $region236: #{transformer_classifier_forward.1} parent=231 // pred_fallthru
          _
      $region232: #{transformer_classifier_forward.1} parent=5 // pred_fallthru
        _
      %p7699 = scmp.le.s32.totalorder 2, %s116
      // Predicated region
      $region237: #{transformer_classifier_forward.1} parent=5 // pred_check
        %p7700 = pneg %p7699
      $region238: #{transformer_classifier_forward.1} parent=5 // pred_check_branch
        %7702 = sbr.rel (%p7700) target = $region240
      $region239: #{transformer_classifier_forward.1} parent=5 // pred_region
        %s7703 = ssub.s32 %s116, 2
        // Predicated region
        $region241: #{transformer_classifier_forward.1} parent=239 // pred_check
          %p7704 = pneg %p1263
        $region242: #{transformer_classifier_forward.1} parent=239 // pred_check_branch
          %7706 = sbr.rel (%p7704) target = $region244
        $region243: #{transformer_classifier_forward.1} parent=239 // pred_region
          %s7707 = sand.u32 %s1248, 1
          %s7708 = scalar_lea.sflag [#allocation3], %s7707
          %s7709 = sand.u32 %s1248, 1
          %s7710 = scalar_lea.vmem [#allocation2], %s7709
          %7712 = dma.done %s7708, 16
        $region244: #{transformer_classifier_forward.1} parent=239 // pred_fallthru
          _
      $region240: #{transformer_classifier_forward.1} parent=5 // pred_fallthru
        _
    $region6: #{transformer_classifier_forward.1} parent=1 // loop_footer
      %s120 = sadd.s32 1, %s116
    $region7: #{transformer_classifier_forward.1} parent=1 // loop_footer_branch
      %115 = sbr.rel target = $region3
    $region8: #{transformer_classifier_forward.1} parent=1 // loop_exit
      _
    %7713 = vsyncpa [#allocation3], 1
    %s7714 = scalar_lea.sflag [#allocation3], 1
    %7715 = vsyncpa %s7714, 1

</llo_original>
